<compile_context>
chip_gen: v7x
topology: tpu7x:2x2x1
jax: 0.10.0
libtpu: 0.0.40
codegen_flags: <defaults>
</compile_context>

<pallas_src>
import functools
import math
import numpy as np
import jax
import jax.numpy as jnp
from jax.experimental import pallas as pl
from jax.experimental.pallas import tpu as pltpu

INV_SQRT2 = 1.0 / math.sqrt(2.0)
SILU_SCALE = 1.0 / 0.6          # ScaledSiLU scale factor used by GemNet
MAX_ROW_BLOCK = 512             # row tile cap (512 x 128 x f32 = 256 KiB / buffer)
TRIP_BLOCK_MAX = 256            # triplet block of the gather/scatter kernel
BF16 = jnp.bfloat16


def _round_up(x, m):
    return -(-x // m) * m


def _pad_and_block(M, min_pad=0):
    """Padded row count Mp (a multiple of the row block) and the row block rb.

    Aims for >= 2 grid steps so dimension_semantics=('parallel',) can shard
    across the two TensorCores on v7x; rows always a multiple of 8 sublanes.
    """
    target = max(M + min_pad, 8)
    rb = min(MAX_ROW_BLOCK, _round_up(-(-target // 2), 8))
    Mp = _round_up(target, rb)
    return Mp, rb


# ----------------------------------------------------------------------------
# In-kernel helpers
# ----------------------------------------------------------------------------
def _ssilu(y):
    return y * jax.nn.sigmoid(y) * SILU_SCALE


def _mm(x, w):
    # bf16 MXU operands, f32 accumulation
    return jnp.dot(x.astype(BF16), w.astype(BF16),
                   preferred_element_type=jnp.float32)


def _ln_core(x, g, b):
    mu = jnp.mean(x, axis=-1, keepdims=True)
    xc = x - mu
    var = jnp.mean(xc * xc, axis=-1, keepdims=True)
    return xc * jax.lax.rsqrt(var + 1e-5) * g + b


def _res_stack(x, w_refs):
    # w_refs: flat [w1_0, w2_0, w1_1, w2_1, ...] resident weight refs
    for i in range(0, len(w_refs), 2):
        y = _ssilu(_mm(x, w_refs[i][...]))
        y = _ssilu(_mm(y, w_refs[i + 1][...]))
        x = (x + y) * INV_SQRT2
    return x


# ----------------------------------------------------------------------------
# Pallas kernels (row refs first, resident weight refs after, output refs last)
# ----------------------------------------------------------------------------
def _dense_kernel(x_ref, w_ref, o_ref, *, act):
    y = _mm(x_ref[...], w_ref[...])
    o_ref[...] = _ssilu(y) if act else y


def _ln_kernel(x_ref, g_ref, b_ref, o_ref):
    o_ref[...] = _ln_core(x_ref[...], g_ref[...], b_ref[...])


def _add_ln_kernel(x_ref, y_ref, g_ref, b_ref, o_ref):
    o_ref[...] = _ln_core(x_ref[...] + y_ref[...], g_ref[...], b_ref[...])


def _edge_emb_kernel(hs_ref, ht_ref, r_ref, ws_ref, wt_ref, wr_ref, o_ref):
    # EdgeEmbedding: ScaledSiLU([h_s | h_t | rbf] @ W) without the 96-wide concat
    y = (_mm(hs_ref[...], ws_ref[...]) + _mm(ht_ref[...], wt_ref[...])
         + _mm(r_ref[...], wr_ref[...]))
    o_ref[...] = _ssilu(y)


def _edge_rbf_scale_kernel(rbf_ref, m_ref, w_ref, o_ref):
    # AtomUpdate/OutputBlock edge scaling with the folded (R, Ed) weight
    o_ref[...] = m_ref[...] * _mm(rbf_ref[...], w_ref[...])


def _trip_pre_kernel(m_ref, rbf_ref, wmm_ref, wrbf_ref, wdown_ref,
                     xdown_ref, xca_ref, *, Ed):
    # dense_ca | dense_ba fused (shared LHS m), rbf3 weight folded, down proj
    y = _ssilu(_mm(m_ref[...], wmm_ref[...]))            # (B, 2*Ed): [ca | ba]
    xca_ref[...] = y[:, :Ed]
    xba = y[:, Ed:]
    x = xba * _mm(rbf_ref[...], wrbf_ref[...])
    xdown_ref[...] = _ssilu(_mm(x, wdown_ref[...]))


def _trip_bil_kernel(rbfw1_ref, sumk_ref, wbil_ref, wup_ref, o_ref, *, Cb, Sp, T):
    # s-contraction on the VPU (no batch of tiny MXU matmuls), then bilinear
    # + fused up_ca|up_ac projection -> lane-dense (B, 2*Ed) output.
    a = rbfw1_ref[...]                                   # (B, Cb, Sp)
    b = sumk_ref[...]                                    # (B, Sp, T)
    rws = a[:, :, 0:1] * b[:, 0:1, :]
    for s in range(1, Sp):
        rws = rws + a[:, :, s:s + 1] * b[:, s:s + 1, :]  # (B, Cb, T)
    B = rws.shape[0]
    x = rws.reshape(B, Cb * T)
    x = _mm(x, wbil_ref[...])                            # (B, U), no activation
    o_ref[...] = _ssilu(_mm(x, wup_ref[...]))            # (B, 2*Ed)


def _edge_update_kernel(xca_ref, xfull_ref, xsw_ref, m_ref, *rest, Ed, nb, na):
    # x3 merge + before_skip stack + m skip + after_skip stack, all fused
    refs = rest[:-1]
    o_ref = rest[-1]
    x3 = (xfull_ref[...][:, :Ed] + xsw_ref[...][:, Ed:]) * INV_SQRT2
    x = (xca_ref[...] + x3) * INV_SQRT2
    x = _res_stack(x, refs[:2 * nb])
    m = (m_ref[...] + x) * INV_SQRT2
    m = _res_stack(m, refs[2 * nb:2 * (nb + na)])
    o_ref[...] = m


def _atom_update_kernel(x_ref, h_ref, *rest, nres):
    # AtomUpdateBlock MLP + residual stack + skip connection, fused
    w0 = rest[0]
    refs = rest[1:1 + 2 * nres]
    o_ref = rest[-1]
    t = _ssilu(_mm(x_ref[...], w0[...]))
    t = _res_stack(t, refs)
    o_ref[...] = (h_ref[...] + t) * INV_SQRT2


def _out_mlp_kernel(x_ref, *rest, nres):
    # OutputBlock energy MLP + residual stack, fused
    w0 = rest[0]
    refs = rest[1:1 + 2 * nres]
    o_ref = rest[-1]
    t = _ssilu(_mm(x_ref[...], w0[...]))
    o_ref[...] = _res_stack(t, refs)


def _concat_update_kernel(hs_ref, ht_ref, m_ref, *rest, nres):
    # concat layer (split weights, no 96-wide concat) + residual_m stack
    # + skip + fused LayerNorm on m
    ws_, wt_, wm_ = rest[0], rest[1], rest[2]
    refs = rest[3:3 + 2 * nres]
    g_ref, b_ref = rest[3 + 2 * nres], rest[4 + 2 * nres]
    o_ref = rest[-1]
    m = m_ref[...]
    m2 = _ssilu(_mm(hs_ref[...], ws_[...]) + _mm(ht_ref[...], wt_[...])
                + _mm(m, wm_[...]))
    m2 = _res_stack(m2, refs)
    o_ref[...] = _ln_core((m + m2) * INV_SQRT2, g_ref[...], b_ref[...])


def _trip_scatter_kernel(ba_ref, ca_ref, cbf_ref, xd_ref, o_ref, *, tb):
    # Triplet gather + outer product + scatter-add into the per-edge
    # accumulator sum_k, kept resident in VMEM across all triplet blocks.
    @pl.when(pl.program_id(0) == 0)
    def _():
        o_ref[...] = jnp.zeros_like(o_ref)

    base = pl.program_id(0) * tb

    def body(j, carry):
        b = ba_ref[base + j]
        c = ca_ref[base + j]
        w = cbf_ref[pl.ds(j, 1), :, :]          # (1, Sp, 1)
        x = xd_ref[pl.ds(b, 1), :, :]           # (1, 1, T)
        o_ref[pl.ds(c, 1), :, :] = o_ref[pl.ds(c, 1), :, :] + w * x
        return carry

    jax.lax.fori_loop(0, tb, body, 0)


# ----------------------------------------------------------------------------
# pallas_call wrappers
# ----------------------------------------------------------------------------
def _row_map(ndim):
    tail = (0,) * (ndim - 1)

    def idx(i):
        return (i,) + tail
    return idx


def _full_map(ndim):
    zeros = (0,) * ndim

    def idx(i):
        return zeros
    return idx


def _call_rows(kernel, row_args, full_args, out_tails, rb):
    """Run `kernel` over row tiles of size `rb`.

    row_args: arrays sharing a (pre-padded) leading row dim; full_args:
    resident weights / LN params.  out_tails: tuple (single output) or list of
    tuples (multiple outputs); outputs are float32.
    """
    M = row_args[0].shape[0]
    assert M % rb == 0, (M, rb)
    grid = (M // rb,)
    in_specs = ([pl.BlockSpec((rb,) + a.shape[1:], _row_map(a.ndim))
                 for a in row_args]
                + [pl.BlockSpec(w.shape, _full_map(w.ndim)) for w in full_args])
    multi = isinstance(out_tails, list)
    tails = out_tails if multi else [out_tails]
    out_shape = [jax.ShapeDtypeStruct((M,) + tuple(t), jnp.float32) for t in tails]
    out_specs = [pl.BlockSpec((rb,) + tuple(t), _row_map(1 + len(t))) for t in tails]
    outs = pl.pallas_call(
        kernel,
        out_shape=out_shape if multi else out_shape[0],
        grid=grid,
        in_specs=in_specs,
        out_specs=out_specs if multi else out_specs[0],
        compiler_params=pltpu.CompilerParams(
            dimension_semantics=("parallel",)),
    )(*row_args, *full_args)
    return outs


def pallas_trip_scatter(id3_ba, id3_ca, cbf3d, x_down, nEp, Sp, T, tb):
    nTp = cbf3d.shape[0]
    xd3d = x_down.reshape(nEp, 1, T)
    return pl.pallas_call(
        functools.partial(_trip_scatter_kernel, tb=tb),
        out_shape=jax.ShapeDtypeStruct((nEp, Sp, T), jnp.float32),
        grid_spec=pltpu.PrefetchScalarGridSpec(
            num_scalar_prefetch=2,
            grid=(nTp // tb,),
            in_specs=[
                pl.BlockSpec((tb, Sp, 1), lambda t, ba, ca: (t, 0, 0)),
                pl.BlockSpec((nEp, 1, T), lambda t, ba, ca: (0, 0, 0)),
            ],
            out_specs=pl.BlockSpec((nEp, Sp, T), lambda t, ba, ca: (0, 0, 0)),
        ),
        compiler_params=pltpu.CompilerParams(
            dimension_semantics=("arbitrary",)),
    )(id3_ba, id3_ca, cbf3d, xd3d)


# ----------------------------------------------------------------------------
# Basis functions (elementwise preprocessing, plain JAX glue)
# ----------------------------------------------------------------------------
def radial_basis(D, num_radial, cutoff):
    """Gaussian RBF with polynomial envelope (exponent=5)."""
    d = D / cutoff
    p = 5.0
    a = -(p + 1) * (p + 2) / 2.0
    b = p * (p + 2)
    c = -p * (p + 1) / 2.0
    env = 1.0 + a * d ** p + b * d ** (p + 1) + c * d ** (p + 2)
    env = jnp.where(d < 1.0, env, 0.0)
    offsets = jnp.linspace(0.0, 1.0, num_radial)
    coeff = -0.5 / (offsets[1] - offsets[0]) ** 2
    g = jnp.exp(coeff * (d[:, None] - offsets[None, :]) ** 2)
    return env[:, None] * g


def sph_harm_l0(cos_phi, num_spherical):
    """Real spherical harmonics Y_l^0(cos phi) = sqrt((2l+1)/4pi) P_l(cos phi)."""
    P = [jnp.ones_like(cos_phi), cos_phi]
    for l in range(2, num_spherical):
        P.append(((2 * l - 1) * cos_phi * P[l - 1] - (l - 1) * P[l - 2]) / l)
    out = [np.sqrt((2 * l + 1) / (4 * math.pi)) * P[l] for l in range(num_spherical)]
    return jnp.stack(out, axis=1)


# ----------------------------------------------------------------------------
# Parameter initialization (deterministic, synthetic)
# ----------------------------------------------------------------------------
class KeyGen:
    def __init__(self, key):
        self.key = key

    def __call__(self):
        self.key, sub = jax.random.split(self.key)
        return sub


def init_dense(kg, fan_in, fan_out):
    return jax.random.normal(kg(), (fan_in, fan_out), jnp.float32) / np.sqrt(fan_in)


def init_residual(kg, units):
    return [init_dense(kg, units, units), init_dense(kg, units, units)]


def init_params(kg, cfg):
    A, Ed, T = cfg['emb_size_atom'], cfg['emb_size_edge'], cfg['emb_size_trip']
    Rb, Cb, U = cfg['emb_size_rbf'], cfg['emb_size_cbf'], cfg['emb_size_bil_trip']
    R, S = cfg['num_radial'], cfg['num_spherical']

    def atom_mlp_params():
        return {'dense_rbf': init_dense(kg, Rb, Ed),
                'mlp0': init_dense(kg, Ed, A),
                'res': [init_residual(kg, A) for _ in range(cfg['num_atom'])]}

    p = {
        'atom_emb': jax.random.normal(kg(), (cfg['max_atomic_num'], A), jnp.float32),
        'mlp_rbf3': init_dense(kg, R, Rb),
        'mlp_cbf3': jax.random.normal(kg(), (S, R, Cb), jnp.float32) / np.sqrt(R),
        'mlp_rbf_h': init_dense(kg, R, Rb),
        'mlp_rbf_out': init_dense(kg, R, Rb),
        'edge_emb': init_dense(kg, 2 * A + R, Ed),
        'int_blocks': [],
        'out_blocks': [],
    }
    for _ in range(cfg['num_blocks']):
        p['int_blocks'].append({
            'dense_ca': init_dense(kg, Ed, Ed),
            'trip': {
                'dense_ba': init_dense(kg, Ed, Ed),
                'mlp_rbf': init_dense(kg, Rb, Ed),
                'bilinear': jax.random.normal(kg(), (T, Cb, U), jnp.float32) / np.sqrt(T * Cb),
                'down': init_dense(kg, Ed, T),
                'up_ca': init_dense(kg, U, Ed),
                'up_ac': init_dense(kg, U, Ed),
            },
            'before_skip': [init_residual(kg, Ed) for _ in range(cfg['num_before_skip'])],
            'after_skip': [init_residual(kg, Ed) for _ in range(cfg['num_after_skip'])],
            'atom_update': atom_mlp_params(),
            'concat': init_dense(kg, 2 * A + Ed, Ed),
            'residual_m': [init_residual(kg, Ed) for _ in range(cfg['num_concat'])],
        })
    for _ in range(cfg['num_blocks'] + 1):
        p['out_blocks'].append(atom_mlp_params())
    nb1 = cfg['num_blocks'] + 1
    p['ln_h'] = [(jnp.ones((A,)), jnp.zeros((A,))) for _ in range(nb1)]
    p['ln_m'] = [(jnp.ones((Ed,)), jnp.zeros((Ed,))) for _ in range(nb1)]
    p['ln_E'] = [(jnp.ones((A,)), jnp.zeros((A,))) for _ in range(nb1)]
    return p


def prepare_params(p, cfg):
    """One-time weight folding / splitting / re-layout / bf16 cast."""
    bf = lambda w: w.astype(BF16)
    A, Ed = cfg['emb_size_atom'], cfg['emb_size_edge']
    S, R, Cb = cfg['num_spherical'], cfg['num_radial'], cfg['emb_size_cbf']
    T, U = cfg['emb_size_trip'], cfg['emb_size_bil_trip']
    Sp = _round_up(S, 8)

    def prep_res(res_list):
        flat = []
        for w1, w2 in res_list:
            flat += [bf(w1), bf(w2)]
        return flat

    def prep_ln(lns):
        return [(g.reshape(1, -1).astype(jnp.float32),
                 b.reshape(1, -1).astype(jnp.float32)) for g, b in lns]

    def fold_rbf(base, w):            # compose in f32, cast once to bf16
        return bf(jnp.dot(base, w))

    def prep_atom_mlp(a, base):
        return {'w_rbf': fold_rbf(base, a['dense_rbf']),    # (R, Ed) folded
                'w0': bf(a['mlp0']),
                'res': prep_res(a['res'])}

    ee = p['edge_emb']                                        # (2A + R, Ed)
    # cbf down-projection laid out so (rbf @ W).reshape(nE, Cb, Sp) == rbfW1,
    # zero-padded along S to a sublane multiple.
    Wc = jnp.pad(p['mlp_cbf3'], ((0, Sp - S), (0, 0), (0, 0)))   # (Sp, R, Cb)
    cbf_W = jnp.transpose(Wc, (1, 2, 0)).reshape(R, Cb * Sp)

    q = {
        'atom_emb': p['atom_emb'],         # keep f32 (max_norm renorm + LN)
        'ee_ws': bf(ee[:A]), 'ee_wt': bf(ee[A:2 * A]), 'ee_wr': bf(ee[2 * A:]),
        'cbf_W': bf(cbf_W),
        'ln_h': prep_ln(p['ln_h']), 'ln_m': prep_ln(p['ln_m']),
        'ln_E': prep_ln(p['ln_E']),
        'out_blocks': [prep_atom_mlp(o, p['mlp_rbf_out']) for o in p['out_blocks']],
        'int_blocks': [],
    }
    for ib in p['int_blocks']:
        t = ib['trip']
        Wb = t['bilinear']                                   # (T, Cb, U)
        cc = ib['concat']                                    # (2A + Ed, Ed)
        q['int_blocks'].append({
            'w_mm': bf(jnp.concatenate([ib['dense_ca'], t['dense_ba']], axis=1)),
            'w_rbf3': fold_rbf(p['mlp_rbf3'], t['mlp_rbf']),  # (R, Ed) folded
            'w_down': bf(t['down']),
            'bil2': bf(jnp.transpose(Wb, (1, 0, 2)).reshape(Cb * T, U)),
            'up': bf(jnp.concatenate([t['up_ca'], t['up_ac']], axis=1)),
            'before_skip': prep_res(ib['before_skip']),
            'after_skip': prep_res(ib['after_skip']),
            'atom_update': prep_atom_mlp(ib['atom_update'], p['mlp_rbf_h']),
            'cc_ws': bf(cc[:A]), 'cc_wt': bf(cc[A:2 * A]), 'cc_wm': bf(cc[2 * A:]),
            'residual_m': prep_res(ib['residual_m']),
        })
    return q


# ----------------------------------------------------------------------------
# Graph construction + one-time padding (host-side numpy; dynamic shapes)
# ----------------------------------------------------------------------------
def build_graph_np(pos, batch, num_graphs, cutoff):
    N = pos.shape[0]
    src, tgt = [], []
    for i in range(N):                 # target atom (radius_graph groups by target)
        for j in range(N):
            if i == j or batch[i] != batch[j]:
                continue
            if np.linalg.norm(pos[j] - pos[i]) <= cutoff:
                src.append(j)
                tgt.append(i)
    edge_index = np.array([src, tgt], dtype=np.int64)
    dist_vec = pos[edge_index[0]] - pos[edge_index[1]]
    D = np.linalg.norm(dist_vec, axis=-1)
    V = -dist_vec / D[:, None]
    neighbors = np.bincount(batch[edge_index[1]], minlength=num_graphs)

    # reorder_symmetric_edges (no PBC -> cell_offsets all zero)
    mask = edge_index[0] < edge_index[1]
    ei_dir = edge_index[:, mask]
    E2 = ei_dir.shape[1]
    ei_cat = np.concatenate([ei_dir, ei_dir[::-1]], axis=1)
    batch_edge = np.repeat(np.arange(num_graphs), neighbors)[mask]
    n_per_graph = np.bincount(batch_edge, minlength=num_graphs)

    reorder, id_swap = [], []
    c, o = 0, 0
    for g in range(num_graphs):
        n = int(n_per_graph[g])
        reorder.extend(range(c, c + n))
        reorder.extend(range(c + E2, c + E2 + n))
        id_swap.extend(range(o + n, o + 2 * n))
        id_swap.extend(range(o, o + n))
        c += n
        o += 2 * n
    reorder = np.array(reorder, dtype=np.int64)
    id_swap = np.array(id_swap, dtype=np.int64)

    edge_index_new = ei_cat[:, reorder]
    D_dir, V_dir = D[mask], V[mask]
    D_new = np.concatenate([D_dir, D_dir])[reorder]
    V_new = np.concatenate([V_dir, -V_dir])[reorder]

    # triplets b->a<-c  (exact within-group ordering does not affect numerics)
    idx_s, idx_t = edge_index_new
    E = idx_s.shape[0]
    id3_ba, id3_ca = [], []
    for e_out in range(E):
        a = idx_t[e_out]
        for e_in in range(E):
            if idx_t[e_in] == a and e_in != e_out:
                id3_ba.append(e_in)
                id3_ca.append(e_out)
    id3_ba = np.array(id3_ba, dtype=np.int64)
    id3_ca = np.array(id3_ca, dtype=np.int64)
    return (edge_index_new.astype(np.int32), neighbors,
            D_new.astype(np.float32), V_new.astype(np.float32),
            id_swap.astype(np.int32), id3_ba.astype(np.int32),
            id3_ca.astype(np.int32))


def pad_graph_np(z, edge_index, D, V, id_swap, id3_ba, id3_ca, cutoff):
    """Pad all row classes once; padded edges route to a padded atom row,
    padded triplets are masked to zero contribution."""
    nA, nE, nT = z.shape[0], D.shape[0], id3_ba.shape[0]
    nAp, rb_a = _pad_and_block(nA, min_pad=1)        # keep >= 1 pad atom row
    nEp, rb_e = _pad_and_block(nE)
    tb = min(TRIP_BLOCK_MAX, _round_up(max(nT, 1), 8))
    nTp = _round_up(max(nT, 1), tb)

    z_p = np.concatenate([z, np.zeros(nAp - nA, np.int32)])
    idx_s = np.concatenate([edge_index[0], np.zeros(nEp - nE, np.int32)])
    idx_t = np.concatenate([edge_index[1], np.full(nEp - nE, nAp - 1, np.int32)])
    D_p = np.concatenate([D, np.full(nEp - nE, 2.0 * cutoff, np.float32)])
    V_p = np.concatenate([V, np.zeros((nEp - nE, 3), np.float32)], axis=0)
    id_swap_p = np.concatenate([id_swap, np.full(nEp - nE, nEp - 1, np.int32)])
    ba_p = np.concatenate([id3_ba, np.zeros(nTp - nT, np.int32)])
    ca_p = np.concatenate([id3_ca, np.zeros(nTp - nT, np.int32)])
    tmask = np.concatenate([np.ones(nT, np.float32),
                            np.zeros(nTp - nT, np.float32)])[:, None]
    return (z_p, idx_s, idx_t, D_p, V_p, id_swap_p, ba_p, ca_p, tmask,
            nA, rb_e, rb_a, tb)


# ----------------------------------------------------------------------------
# GemNet-T building blocks (matmuls / activations / LN in Pallas;
# ragged gathers and the edge->atom scatter-add via XLA)
# ----------------------------------------------------------------------------
def output_block_energy(ob, m, rbf, idx_t, nAp, rb_e, rb_a):
    x_e = _call_rows(_edge_rbf_scale_kernel, [rbf, m], [ob['w_rbf']],
                     (m.shape[1],), rb_e)
    # TODO(synk): edge->atom scatter-add stays in XLA segment_sum; a scalar-
    # prefetch Pallas scatter (like the triplet one) could fuse it here.
    x_a = jax.ops.segment_sum(x_e, idx_t, num_segments=nAp)
    nres = len(ob['res']) // 2
    return _call_rows(functools.partial(_out_mlp_kernel, nres=nres),
                      [x_a], [ob['w0']] + ob['res'], (ob['w0'].shape[1],), rb_a)


def gemnet_forward(q, z, idx_s, idx_t, D_st, V_st, id_swap, id3_ba, id3_ca,
                   trip_mask, *, cfg, rb_e, rb_a, trip_block):
    nAp = z.shape[0]
    nEp = D_st.shape[0]
    nTp = id3_ba.shape[0]
    S, R, Cb = cfg['num_spherical'], cfg['num_radial'], cfg['emb_size_cbf']
    Ed, A, T = cfg['emb_size_edge'], cfg['emb_size_atom'], cfg['emb_size_trip']
    Sp = _round_up(S, 8)

    # ---- basis functions (elementwise preprocessing) ----
    rbf = radial_basis(D_st, R, cfg['cutoff'])                  # (nEp, R); pad rows = 0
    cos_phi = jnp.clip(jnp.sum(V_st[id3_ca] * V_st[id3_ba], -1), -1.0, 1.0)
    cbf = sph_harm_l0(cos_phi, S)                               # (nTp, S)
    cbf = jnp.pad(cbf, ((0, 0), (0, Sp - S))) * trip_mask       # zero pad-triplet rows
    cbf3d = cbf.reshape(nTp, Sp, 1)

    # ---- atom embedding (nn.Embedding with max_norm=1 applied at lookup) ----
    h = q['atom_emb'][z]
    nrm = jnp.linalg.norm(h, axis=-1, keepdims=True)
    h = jnp.where(nrm > 1.0, h / (nrm + 1e-7), h)

    # ---- edge embedding (split weights; no 96-wide concat) ----
    hs, ht = h[idx_s], h[idx_t]
    m = _call_rows(_edge_emb_kernel, [hs, ht, rbf],
                   [q['ee_ws'], q['ee_wt'], q['ee_wr']], (Ed,), rb_e)

    # ---- EfficientInteractionDownProjection (second RadialBasis == rbf) ----
    rbfW1 = _call_rows(functools.partial(_dense_kernel, act=False),
                       [rbf], [q['cbf_W']], (Cb * Sp,), rb_e).reshape(nEp, Cb, Sp)

    h = _call_rows(_ln_kernel, [h], list(q['ln_h'][0]), (A,), rb_a)
    m = _call_rows(_ln_kernel, [m], list(q['ln_m'][0]), (Ed,), rb_e)
    # OutputBlock 0 (direct_forces=False -> force branch is zero)
    E_t = output_block_energy(q['out_blocks'][0], m, rbf, idx_t, nAp, rb_e, rb_a)
    E_t = _call_rows(_ln_kernel, [E_t], list(q['ln_E'][0]), (A,), rb_a)

    for i in range(cfg['num_blocks']):
        ib = q['int_blocks'][i]
        h_skip = h

        # --- triplet pre: fused dense_ca|dense_ba, folded rbf3, down-proj ---
        x_down, x_ca_skip = _call_rows(
            functools.partial(_trip_pre_kernel, Ed=Ed),
            [m, rbf], [ib['w_mm'], ib['w_rbf3'], ib['w_down']],
            [(T,), (Ed,)], rb_e)

        # --- triplet gather + outer product + segment-sum (Pallas, VMEM acc) ---
        sum_k = pallas_trip_scatter(id3_ba, id3_ca, cbf3d, x_down,
                                    nEp, Sp, T, trip_block)

        # --- s-contraction + bilinear + fused up_ca|up_ac projection ---
        x_up = _call_rows(
            functools.partial(_trip_bil_kernel, Cb=Cb, Sp=Sp, T=T),
            [rbfW1, sum_k], [ib['bil2'], ib['up']], (2 * Ed,), rb_e)
        x_sw = x_up[id_swap]

        # --- edge update: x3 merge + before/after skip stacks, fused ---
        m = _call_rows(
            functools.partial(_edge_update_kernel, Ed=Ed,
                              nb=cfg['num_before_skip'],
                              na=cfg['num_after_skip']),
            [x_ca_skip, x_up, x_sw, m],
            ib['before_skip'] + ib['after_skip'], (Ed,), rb_e)

        # --- atom update (fused MLP + res stack + skip) ---
        au = ib['atom_update']
        x_e = _call_rows(_edge_rbf_scale_kernel, [rbf, m], [au['w_rbf']],
                         (Ed,), rb_e)
        x_a = jax.ops.segment_sum(x_e, idx_t, num_segments=nAp)
        h = _call_rows(
            functools.partial(_atom_update_kernel, nres=cfg['num_atom']),
            [x_a, h], [au['w0']] + au['res'], (A,), rb_a)

        # --- concat layer + residual_m stack + skip + fused LN_m ---
        hs, ht = h[idx_s], h[idx_t]
        m = _call_rows(
            functools.partial(_concat_update_kernel, nres=cfg['num_concat']),
            [hs, ht, m],
            [ib['cc_ws'], ib['cc_wt'], ib['cc_wm']] + ib['residual_m']
            + list(q['ln_m'][i + 1]),
            (Ed,), rb_e)

        # --- h skip + LN ---
        h = _call_rows(_add_ln_kernel, [h, h_skip], list(q['ln_h'][i + 1]),
                       (A,), rb_a)

        # --- output block + E_t accumulation + LN ---
        E = output_block_energy(q['out_blocks'][i + 1], m, rbf, idx_t,
                                nAp, rb_e, rb_a)
        E_t = _call_rows(_add_ln_kernel, [E_t, E], list(q['ln_E'][i + 1]),
                         (A,), rb_a)
    # TODO(synk): a feature-major (features x rows) layout would make every
    # output lane-dense; left row-major since all feature dims here are 8-64.
    return E_t


# ----------------------------------------------------------------------------
# Main
# ----------------------------------------------------------------------------
if __name__ == "__main__":
    cfg = dict(max_atomic_num=10, num_spherical=7, num_radial=16, num_blocks=2,
               emb_size_atom=32, emb_size_edge=32, emb_size_trip=16,
               emb_size_rbf=8, emb_size_cbf=8, emb_size_bil_trip=16,
               num_before_skip=1, num_after_skip=1, num_concat=1, num_atom=2,
               cutoff=6.0)

    kg = KeyGen(jax.random.PRNGKey(0))
    params = init_params(kg, cfg)
    prepped = prepare_params(params, cfg)     # one-time fold / split / bf16

    # small synthetic system: 2 molecules with 4 and 3 atoms
    natoms = np.array([4, 3])
    N = int(natoms.sum())
    batch = np.repeat(np.arange(2), natoms)
    kz, kp = jax.random.split(jax.random.PRNGKey(0))
    z = np.asarray(jax.random.randint(kz, (N,), 0, cfg['max_atomic_num']),
                   dtype=np.int32)
    pos = np.asarray(jax.random.uniform(kp, (N, 3), jnp.float32, 0.0, 2.0),
                     dtype=np.float32)

    (edge_index, neighbors, D_st, V_st, id_swap,
     id3_ba, id3_ca) = build_graph_np(pos, batch, 2, cfg['cutoff'])
    assert np.all(neighbors > 0), "an image has no neighbors"

    (z_p, idx_s, idx_t, D_p, V_p, id_swap_p, ba_p, ca_p, tmask,
     nA, rb_e, rb_a, tb) = pad_graph_np(z, edge_index, D_st, V_st, id_swap,
                                        id3_ba, id3_ca, cfg['cutoff'])

    fwd = jax.jit(functools.partial(gemnet_forward, cfg=cfg, rb_e=rb_e,
                                    rb_a=rb_a, trip_block=tb))

    E_pad = fwd(prepped, jnp.asarray(z_p), jnp.asarray(idx_s),
                jnp.asarray(idx_t), jnp.asarray(D_p), jnp.asarray(V_p),
                jnp.asarray(id_swap_p), jnp.asarray(ba_p), jnp.asarray(ca_p),
                jnp.asarray(tmask))
    E_pad = jax.block_until_ready(E_pad)
    E_t = np.asarray(E_pad)[:nA]
    assert E_t.shape == (N, cfg['emb_size_atom'])
    assert np.all(np.isfinite(E_t))
    print("KERNEL_OK")
</pallas_src>

<mosaic_0001>
module attributes {stable_mosaic.version = 11 : i64} {
  func.func @_ln_kernel(%arg0: i32, %arg1: memref<16x32xf32, #tpu.memory_space<vmem>>, %arg2: memref<1x32xf32, #tpu.memory_space<vmem>>, %arg3: memref<1x32xf32, #tpu.memory_space<vmem>>, %arg4: memref<16x32xf32, #tpu.memory_space<vmem>>) attributes {dimension_semantics = [#tpu.dimension_semantics<parallel>], iteration_bounds = array<i64: 2>, scalar_prefetch = 0 : i64, scratch_operands = 0 : i64, tpu.core_type = #tpu.core_type<tc>, window_params = [{transform_indices = @transform_0, window_bounds = array<i64: 16, 32>}, {pipeline_mode = #tpu.pipeline_mode<synchronous>, transform_indices = @transform_1, window_bounds = array<i64: 1, 32>}, {pipeline_mode = #tpu.pipeline_mode<synchronous>, transform_indices = @transform_2, window_bounds = array<i64: 1, 32>}, {transform_indices = @transform_3, window_bounds = array<i64: 16, 32>}]} {
    %c0 = arith.constant 0 : index
    %c0_0 = arith.constant 0 : index
    %0 = vector.load %arg1[%c0, %c0_0] : memref<16x32xf32, #tpu.memory_space<vmem>>, vector<16x32xf32>
    %c0_1 = arith.constant 0 : index
    %c0_2 = arith.constant 0 : index
    %1 = vector.load %arg2[%c0_1, %c0_2] : memref<1x32xf32, #tpu.memory_space<vmem>>, vector<1x32xf32>
    %c0_3 = arith.constant 0 : index
    %c0_4 = arith.constant 0 : index
    %2 = vector.load %arg3[%c0_3, %c0_4] : memref<1x32xf32, #tpu.memory_space<vmem>>, vector<1x32xf32>
    %cst = arith.constant dense<0.000000e+00> : vector<16xf32>
    %3 = vector.multi_reduction <add>, %0, %cst [1] : vector<16x32xf32> to vector<16xf32>
    %4 = vector.shape_cast %3 : vector<16xf32> to vector<16x1xf32>
    %cst_5 = arith.constant 3.200000e+01 : f32
    %5 = vector.broadcast %cst_5 : f32 to vector<16x1xf32>
    %6 = arith.divf %4, %5 : vector<16x1xf32>
    %7 = vector.broadcast %6 : vector<16x1xf32> to vector<16x32xf32>
    %8 = arith.subf %0, %7 : vector<16x32xf32>
    %9 = arith.mulf %8, %8 : vector<16x32xf32>
    %cst_6 = arith.constant dense<0.000000e+00> : vector<16xf32>
    %10 = vector.multi_reduction <add>, %9, %cst_6 [1] : vector<16x32xf32> to vector<16xf32>
    %11 = vector.shape_cast %10 : vector<16xf32> to vector<16x1xf32>
    %cst_7 = arith.constant 3.200000e+01 : f32
    %12 = vector.broadcast %cst_7 : f32 to vector<16x1xf32>
    %13 = arith.divf %11, %12 : vector<16x1xf32>
    %cst_8 = arith.constant 9.99999974E-6 : f32
    %14 = vector.broadcast %cst_8 : f32 to vector<16x1xf32>
    %15 = arith.addf %13, %14 : vector<16x1xf32>
    %16 = math.rsqrt %15 : vector<16x1xf32>
    %17 = vector.broadcast %16 : vector<16x1xf32> to vector<16x32xf32>
    %18 = arith.mulf %8, %17 : vector<16x32xf32>
    %19 = vector.broadcast %1 : vector<1x32xf32> to vector<16x32xf32>
    %20 = arith.mulf %18, %19 : vector<16x32xf32>
    %21 = vector.broadcast %2 : vector<1x32xf32> to vector<16x32xf32>
    %22 = arith.addf %20, %21 : vector<16x32xf32>
    %c0_9 = arith.constant 0 : index
    %c0_10 = arith.constant 0 : index
    %23 = vector.load %arg4[%c0_9, %c0_10] : memref<16x32xf32, #tpu.memory_space<vmem>>, vector<16x32xf32>
    tpu.vector_store %arg4[%c0_9, %c0_10], %22 {strides = array<i32>} : memref<16x32xf32, #tpu.memory_space<vmem>>, vector<16x32xf32>,
    return
  }
  func.func @transform_0(%arg0: i32) -> (i32, i32) {
    %c0_i32 = arith.constant 0 : i32
    %c0_i32_0 = arith.constant 0 : i32
    return %arg0, %c0_i32 : i32, i32
  }
  func.func @transform_1(%arg0: i32) -> (i32, i32) {
    %c0_i32 = arith.constant 0 : i32
    %c0_i32_0 = arith.constant 0 : i32
    %c0_i32_1 = arith.constant 0 : i32
    return %c0_i32, %c0_i32_0 : i32, i32
  }
  func.func @transform_2(%arg0: i32) -> (i32, i32) {
    %c0_i32 = arith.constant 0 : i32
    %c0_i32_0 = arith.constant 0 : i32
    %c0_i32_1 = arith.constant 0 : i32
    return %c0_i32, %c0_i32_0 : i32, i32
  }
  func.func @transform_3(%arg0: i32) -> (i32, i32) {
    %c0_i32 = arith.constant 0 : i32
    %c0_i32_0 = arith.constant 0 : i32
    return %arg0, %c0_i32 : i32, i32
  }
}

module attributes {stable_mosaic.version = 11 : i64} {
  func.func @_edge_emb_kernel(%arg0: i32, %arg1: memref<16x32xf32, #tpu.memory_space<vmem>>, %arg2: memref<16x32xf32, #tpu.memory_space<vmem>>, %arg3: memref<16x16xf32, #tpu.memory_space<vmem>>, %arg4: memref<32x32xbf16, #tpu.memory_space<vmem>>, %arg5: memref<32x32xbf16, #tpu.memory_space<vmem>>, %arg6: memref<16x32xbf16, #tpu.memory_space<vmem>>, %arg7: memref<16x32xf32, #tpu.memory_space<vmem>>) attributes {dimension_semantics = [#tpu.dimension_semantics<parallel>], iteration_bounds = array<i64: 2>, scalar_prefetch = 0 : i64, scratch_operands = 0 : i64, tpu.core_type = #tpu.core_type<tc>, window_params = [{transform_indices = @transform_0, window_bounds = array<i64: 16, 32>}, {transform_indices = @transform_1, window_bounds = array<i64: 16, 32>}, {transform_indices = @transform_2, window_bounds = array<i64: 16, 16>}, {pipeline_mode = #tpu.pipeline_mode<synchronous>, transform_indices = @transform_3, window_bounds = array<i64: 32, 32>}, {pipeline_mode = #tpu.pipeline_mode<synchronous>, transform_indices = @transform_4, window_bounds = array<i64: 32, 32>}, {pipeline_mode = #tpu.pipeline_mode<synchronous>, transform_indices = @transform_5, window_bounds = array<i64: 16, 32>}, {transform_indices = @transform_6, window_bounds = array<i64: 16, 32>}]} {
    %c0 = arith.constant 0 : index
    %c0_0 = arith.constant 0 : index
    %0 = vector.load %arg1[%c0, %c0_0] : memref<16x32xf32, #tpu.memory_space<vmem>>, vector<16x32xf32>
    %c0_1 = arith.constant 0 : index
    %c0_2 = arith.constant 0 : index
    %1 = vector.load %arg4[%c0_1, %c0_2] : memref<32x32xbf16, #tpu.memory_space<vmem>>, vector<32x32xbf16>
    %2 = arith.truncf %0 : vector<16x32xf32> to vector<16x32xbf16>
    %cst = arith.constant dense<0.000000e+00> : vector<16x32xf32>
    %3 = tpu.matmul %2, %1, %cst {dimension_numbers = #tpu.dot_dimension_numbers<[1], [0], [0], [1], [0, 0, 1, 1], [], []>} : vector<16x32xbf16>, vector<32x32xbf16>, vector<16x32xf32> -> vector<16x32xf32>
    %c0_3 = arith.constant 0 : index
    %c0_4 = arith.constant 0 : index
    %4 = vector.load %arg2[%c0_3, %c0_4] : memref<16x32xf32, #tpu.memory_space<vmem>>, vector<16x32xf32>
    %c0_5 = arith.constant 0 : index
    %c0_6 = arith.constant 0 : index
    %5 = vector.load %arg5[%c0_5, %c0_6] : memref<32x32xbf16, #tpu.memory_space<vmem>>, vector<32x32xbf16>
    %6 = arith.truncf %4 : vector<16x32xf32> to vector<16x32xbf16>
    %cst_7 = arith.constant dense<0.000000e+00> : vector<16x32xf32>
    %7 = tpu.matmul %6, %5, %cst_7 {dimension_numbers = #tpu.dot_dimension_numbers<[1], [0], [0], [1], [0, 0, 1, 1], [], []>} : vector<16x32xbf16>, vector<32x32xbf16>, vector<16x32xf32> -> vector<16x32xf32>
    %8 = arith.addf %3, %7 : vector<16x32xf32>
    %c0_8 = arith.constant 0 : index
    %c0_9 = arith.constant 0 : index
    %9 = vector.load %arg3[%c0_8, %c0_9] : memref<16x16xf32, #tpu.memory_space<vmem>>, vector<16x16xf32>
    %c0_10 = arith.constant 0 : index
    %c0_11 = arith.constant 0 : index
    %10 = vector.load %arg6[%c0_10, %c0_11] : memref<16x32xbf16, #tpu.memory_space<vmem>>, vector<16x32xbf16>
    %11 = arith.truncf %9 : vector<16x16xf32> to vector<16x16xbf16>
    %cst_12 = arith.constant dense<0.000000e+00> : vector<16x32xf32>
    %12 = tpu.matmul %11, %10, %cst_12 {dimension_numbers = #tpu.dot_dimension_numbers<[1], [0], [0], [1], [0, 0, 1, 1], [], []>} : vector<16x16xbf16>, vector<16x32xbf16>, vector<16x32xf32> -> vector<16x32xf32>
    %13 = arith.addf %8, %12 : vector<16x32xf32>
    %14 = arith.negf %13 : vector<16x32xf32>
    %15 = math.exp %14 : vector<16x32xf32>
    %cst_13 = arith.constant 1.000000e+00 : f32
    %16 = vector.broadcast %cst_13 : f32 to vector<16x32xf32>
    %17 = arith.addf %16, %15 : vector<16x32xf32>
    %18 = arith.divf %16, %17 : vector<16x32xf32>
    %19 = arith.mulf %13, %18 : vector<16x32xf32>
    %cst_14 = arith.constant 1.66666663 : f32
    %20 = vector.broadcast %cst_14 : f32 to vector<16x32xf32>
    %21 = arith.mulf %19, %20 : vector<16x32xf32>
    %c0_15 = arith.constant 0 : index
    %c0_16 = arith.constant 0 : index
    %22 = vector.load %arg7[%c0_15, %c0_16] : memref<16x32xf32, #tpu.memory_space<vmem>>, vector<16x32xf32>
    tpu.vector_store %arg7[%c0_15, %c0_16], %21 {strides = array<i32>} : memref<16x32xf32, #tpu.memory_space<vmem>>, vector<16x32xf32>,
    return
  }
  func.func @transform_0(%arg0: i32) -> (i32, i32) {
    %c0_i32 = arith.constant 0 : i32
    %c0_i32_0 = arith.constant 0 : i32
    return %arg0, %c0_i32 : i32, i32
  }
  func.func @transform_1(%arg0: i32) -> (i32, i32) {
    %c0_i32 = arith.constant 0 : i32
    %c0_i32_0 = arith.constant 0 : i32
    return %arg0, %c0_i32 : i32, i32
  }
  func.func @transform_2(%arg0: i32) -> (i32, i32) {
    %c0_i32 = arith.constant 0 : i32
    %c0_i32_0 = arith.constant 0 : i32
    return %arg0, %c0_i32 : i32, i32
  }
  func.func @transform_3(%arg0: i32) -> (i32, i32) {
    %c0_i32 = arith.constant 0 : i32
    %c0_i32_0 = arith.constant 0 : i32
    %c0_i32_1 = arith.constant 0 : i32
    return %c0_i32, %c0_i32_0 : i32, i32
  }
  func.func @transform_4(%arg0: i32) -> (i32, i32) {
    %c0_i32 = arith.constant 0 : i32
    %c0_i32_0 = arith.constant 0 : i32
    %c0_i32_1 = arith.constant 0 : i32
    return %c0_i32, %c0_i32_0 : i32, i32
  }
  func.func @transform_5(%arg0: i32) -> (i32, i32) {
    %c0_i32 = arith.constant 0 : i32
    %c0_i32_0 = arith.constant 0 : i32
    %c0_i32_1 = arith.constant 0 : i32
    return %c0_i32, %c0_i32_0 : i32, i32
  }
  func.func @transform_6(%arg0: i32) -> (i32, i32) {
    %c0_i32 = arith.constant 0 : i32
    %c0_i32_0 = arith.constant 0 : i32
    return %arg0, %c0_i32 : i32, i32
  }
}

module attributes {stable_mosaic.version = 11 : i64} {
  func.func @_trip_pre_kernel(%arg0: i32, %arg1: memref<16x32xf32, #tpu.memory_space<vmem>>, %arg2: memref<16x16xf32, #tpu.memory_space<vmem>>, %arg3: memref<32x64xbf16, #tpu.memory_space<vmem>>, %arg4: memref<16x32xbf16, #tpu.memory_space<vmem>>, %arg5: memref<32x16xbf16, #tpu.memory_space<vmem>>, %arg6: memref<16x16xf32, #tpu.memory_space<vmem>>, %arg7: memref<16x32xf32, #tpu.memory_space<vmem>>) attributes {dimension_semantics = [#tpu.dimension_semantics<parallel>], iteration_bounds = array<i64: 2>, scalar_prefetch = 0 : i64, scratch_operands = 0 : i64, tpu.core_type = #tpu.core_type<tc>, window_params = [{transform_indices = @transform_0, window_bounds = array<i64: 16, 32>}, {transform_indices = @transform_1, window_bounds = array<i64: 16, 16>}, {pipeline_mode = #tpu.pipeline_mode<synchronous>, transform_indices = @transform_2, window_bounds = array<i64: 32, 64>}, {pipeline_mode = #tpu.pipeline_mode<synchronous>, transform_indices = @transform_3, window_bounds = array<i64: 16, 32>}, {pipeline_mode = #tpu.pipeline_mode<synchronous>, transform_indices = @transform_4, window_bounds = array<i64: 32, 16>}, {transform_indices = @transform_5, window_bounds = array<i64: 16, 16>}, {transform_indices = @transform_6, window_bounds = array<i64: 16, 32>}]} {
    %c0 = arith.constant 0 : index
    %c0_0 = arith.constant 0 : index
    %0 = vector.load %arg1[%c0, %c0_0] : memref<16x32xf32, #tpu.memory_space<vmem>>, vector<16x32xf32>
    %c0_1 = arith.constant 0 : index
    %c0_2 = arith.constant 0 : index
    %1 = vector.load %arg3[%c0_1, %c0_2] : memref<32x64xbf16, #tpu.memory_space<vmem>>, vector<32x64xbf16>
    %2 = arith.truncf %0 : vector<16x32xf32> to vector<16x32xbf16>
    %cst = arith.constant dense<0.000000e+00> : vector<16x64xf32>
    %3 = tpu.matmul %2, %1, %cst {dimension_numbers = #tpu.dot_dimension_numbers<[1], [0], [0], [1], [0, 0, 1, 1], [], []>} : vector<16x32xbf16>, vector<32x64xbf16>, vector<16x64xf32> -> vector<16x64xf32>
    %4 = arith.negf %3 : vector<16x64xf32>
    %5 = math.exp %4 : vector<16x64xf32>
    %cst_3 = arith.constant 1.000000e+00 : f32
    %6 = vector.broadcast %cst_3 : f32 to vector<16x64xf32>
    %7 = arith.addf %6, %5 : vector<16x64xf32>
    %8 = arith.divf %6, %7 : vector<16x64xf32>
    %9 = arith.mulf %3, %8 : vector<16x64xf32>
    %cst_4 = arith.constant 1.66666663 : f32
    %10 = vector.broadcast %cst_4 : f32 to vector<16x64xf32>
    %11 = arith.mulf %9, %10 : vector<16x64xf32>
    %12 = vector.extract_strided_slice %11 {offsets = [0, 0], sizes = [16, 32], strides = [1, 1]} : vector<16x64xf32> to vector<16x32xf32>
    %c0_5 = arith.constant 0 : index
    %c0_6 = arith.constant 0 : index
    %13 = vector.load %arg7[%c0_5, %c0_6] : memref<16x32xf32, #tpu.memory_space<vmem>>, vector<16x32xf32>
    tpu.vector_store %arg7[%c0_5, %c0_6], %12 {strides = array<i32>} : memref<16x32xf32, #tpu.memory_space<vmem>>, vector<16x32xf32>,
    %14 = vector.extract_strided_slice %11 {offsets = [0, 32], sizes = [16, 32], strides = [1, 1]} : vector<16x64xf32> to vector<16x32xf32>
    %c0_7 = arith.constant 0 : index
    %c0_8 = arith.constant 0 : index
    %15 = vector.load %arg2[%c0_7, %c0_8] : memref<16x16xf32, #tpu.memory_space<vmem>>, vector<16x16xf32>
    %c0_9 = arith.constant 0 : index
    %c0_10 = arith.constant 0 : index
    %16 = vector.load %arg4[%c0_9, %c0_10] : memref<16x32xbf16, #tpu.memory_space<vmem>>, vector<16x32xbf16>
    %17 = arith.truncf %15 : vector<16x16xf32> to vector<16x16xbf16>
    %cst_11 = arith.constant dense<0.000000e+00> : vector<16x32xf32>
    %18 = tpu.matmul %17, %16, %cst_11 {dimension_numbers = #tpu.dot_dimension_numbers<[1], [0], [0], [1], [0, 0, 1, 1], [], []>} : vector<16x16xbf16>, vector<16x32xbf16>, vector<16x32xf32> -> vector<16x32xf32>
    %19 = arith.mulf %14, %18 : vector<16x32xf32>
    %c0_12 = arith.constant 0 : index
    %c0_13 = arith.constant 0 : index
    %20 = vector.load %arg5[%c0_12, %c0_13] : memref<32x16xbf16, #tpu.memory_space<vmem>>, vector<32x16xbf16>
    %21 = arith.truncf %19 : vector<16x32xf32> to vector<16x32xbf16>
    %cst_14 = arith.constant dense<0.000000e+00> : vector<16x16xf32>
    %22 = tpu.matmul %21, %20, %cst_14 {dimension_numbers = #tpu.dot_dimension_numbers<[1], [0], [0], [1], [0, 0, 1, 1], [], []>} : vector<16x32xbf16>, vector<32x16xbf16>, vector<16x16xf32> -> vector<16x16xf32>
    %23 = arith.negf %22 : vector<16x16xf32>
    %24 = math.exp %23 : vector<16x16xf32>
    %cst_15 = arith.constant 1.000000e+00 : f32
    %25 = vector.broadcast %cst_15 : f32 to vector<16x16xf32>
    %26 = arith.addf %25, %24 : vector<16x16xf32>
    %27 = arith.divf %25, %26 : vector<16x16xf32>
    %28 = arith.mulf %22, %27 : vector<16x16xf32>
    %cst_16 = arith.constant 1.66666663 : f32
    %29 = vector.broadcast %cst_16 : f32 to vector<16x16xf32>
    %30 = arith.mulf %28, %29 : vector<16x16xf32>
    %c0_17 = arith.constant 0 : index
    %c0_18 = arith.constant 0 : index
    %31 = vector.load %arg6[%c0_17, %c0_18] : memref<16x16xf32, #tpu.memory_space<vmem>>, vector<16x16xf32>
    tpu.vector_store %arg6[%c0_17, %c0_18], %30 {strides = array<i32>} : memref<16x16xf32, #tpu.memory_space<vmem>>, vector<16x16xf32>,
    return
  }
  func.func @transform_0(%arg0: i32) -> (i32, i32) {
    %c0_i32 = arith.constant 0 : i32
    %c0_i32_0 = arith.constant 0 : i32
    return %arg0, %c0_i32 : i32, i32
  }
  func.func @transform_1(%arg0: i32) -> (i32, i32) {
    %c0_i32 = arith.constant 0 : i32
    %c0_i32_0 = arith.constant 0 : i32
    return %arg0, %c0_i32 : i32, i32
  }
  func.func @transform_2(%arg0: i32) -> (i32, i32) {
    %c0_i32 = arith.constant 0 : i32
    %c0_i32_0 = arith.constant 0 : i32
    %c0_i32_1 = arith.constant 0 : i32
    return %c0_i32, %c0_i32_0 : i32, i32
  }
  func.func @transform_3(%arg0: i32) -> (i32, i32) {
    %c0_i32 = arith.constant 0 : i32
    %c0_i32_0 = arith.constant 0 : i32
    %c0_i32_1 = arith.constant 0 : i32
    return %c0_i32, %c0_i32_0 : i32, i32
  }
  func.func @transform_4(%arg0: i32) -> (i32, i32) {
    %c0_i32 = arith.constant 0 : i32
    %c0_i32_0 = arith.constant 0 : i32
    %c0_i32_1 = arith.constant 0 : i32
    return %c0_i32, %c0_i32_0 : i32, i32
  }
  func.func @transform_5(%arg0: i32) -> (i32, i32) {
    %c0_i32 = arith.constant 0 : i32
    %c0_i32_0 = arith.constant 0 : i32
    return %arg0, %c0_i32 : i32, i32
  }
  func.func @transform_6(%arg0: i32) -> (i32, i32) {
    %c0_i32 = arith.constant 0 : i32
    %c0_i32_0 = arith.constant 0 : i32
    return %arg0, %c0_i32 : i32, i32
  }
}

module attributes {stable_mosaic.version = 11 : i64} {
  func.func @_dense_kernel(%arg0: i32, %arg1: memref<16x16xf32, #tpu.memory_space<vmem>>, %arg2: memref<16x64xbf16, #tpu.memory_space<vmem>>, %arg3: memref<16x64xf32, #tpu.memory_space<vmem>>) attributes {dimension_semantics = [#tpu.dimension_semantics<parallel>], iteration_bounds = array<i64: 2>, scalar_prefetch = 0 : i64, scratch_operands = 0 : i64, tpu.core_type = #tpu.core_type<tc>, window_params = [{transform_indices = @transform_0, window_bounds = array<i64: 16, 16>}, {pipeline_mode = #tpu.pipeline_mode<synchronous>, transform_indices = @transform_1, window_bounds = array<i64: 16, 64>}, {transform_indices = @transform_2, window_bounds = array<i64: 16, 64>}]} {
    %c0 = arith.constant 0 : index
    %c0_0 = arith.constant 0 : index
    %0 = vector.load %arg1[%c0, %c0_0] : memref<16x16xf32, #tpu.memory_space<vmem>>, vector<16x16xf32>
    %c0_1 = arith.constant 0 : index
    %c0_2 = arith.constant 0 : index
    %1 = vector.load %arg2[%c0_1, %c0_2] : memref<16x64xbf16, #tpu.memory_space<vmem>>, vector<16x64xbf16>
    %2 = arith.truncf %0 : vector<16x16xf32> to vector<16x16xbf16>
    %cst = arith.constant dense<0.000000e+00> : vector<16x64xf32>
    %3 = tpu.matmul %2, %1, %cst {dimension_numbers = #tpu.dot_dimension_numbers<[1], [0], [0], [1], [0, 0, 1, 1], [], []>} : vector<16x16xbf16>, vector<16x64xbf16>, vector<16x64xf32> -> vector<16x64xf32>
    %c0_3 = arith.constant 0 : index
    %c0_4 = arith.constant 0 : index
    %4 = vector.load %arg3[%c0_3, %c0_4] : memref<16x64xf32, #tpu.memory_space<vmem>>, vector<16x64xf32>
    tpu.vector_store %arg3[%c0_3, %c0_4], %3 {strides = array<i32>} : memref<16x64xf32, #tpu.memory_space<vmem>>, vector<16x64xf32>,
    return
  }
  func.func @transform_0(%arg0: i32) -> (i32, i32) {
    %c0_i32 = arith.constant 0 : i32
    %c0_i32_0 = arith.constant 0 : i32
    return %arg0, %c0_i32 : i32, i32
  }
  func.func @transform_1(%arg0: i32) -> (i32, i32) {
    %c0_i32 = arith.constant 0 : i32
    %c0_i32_0 = arith.constant 0 : i32
    %c0_i32_1 = arith.constant 0 : i32
    return %c0_i32, %c0_i32_0 : i32, i32
  }
  func.func @transform_2(%arg0: i32) -> (i32, i32) {
    %c0_i32 = arith.constant 0 : i32
    %c0_i32_0 = arith.constant 0 : i32
    return %arg0, %c0_i32 : i32, i32
  }
}

module attributes {stable_mosaic.version = 11 : i64} {
  func.func @_trip_scatter_kernel(%arg0: i32, %arg1: memref<32xi32, #tpu.memory_space<smem>>, %arg2: memref<32xi32, #tpu.memory_space<smem>>, %arg3: memref<32x8x1xf32, #tpu.memory_space<vmem>>, %arg4: memref<32x1x16xf32, #tpu.memory_space<vmem>>, %arg5: memref<32x8x16xf32, #tpu.memory_space<vmem>>) attributes {dimension_semantics = [#tpu.dimension_semantics<arbitrary>], iteration_bounds = array<i64: 1>, scalar_prefetch = 2 : i64, scratch_operands = 0 : i64, tpu.core_type = #tpu.core_type<tc>, window_params = [{transform_indices = @transform_0, window_bounds = array<i64: 32, 8, 1>}, {pipeline_mode = #tpu.pipeline_mode<synchronous>, transform_indices = @transform_1, window_bounds = array<i64: 32, 1, 16>}, {pipeline_mode = #tpu.pipeline_mode<synchronous>, transform_indices = @transform_2, window_bounds = array<i64: 32, 8, 16>}]} {
    %c0_i32 = arith.constant 0 : i32
    %0 = arith.cmpi eq, %arg0, %c0_i32 : i32
    %1 = arith.extui %0 : i1 to i32
    %c0_i32_0 = arith.constant 0 : i32
    %2 = arith.cmpi ne, %1, %c0_i32_0 : i32
    scf.if %2 {
      %cst = arith.constant 0.000000e+00 : f32
      %5 = vector.broadcast %cst : f32 to vector<32x8x16xf32>
      %c0 = arith.constant 0 : index
      %c0_4 = arith.constant 0 : index
      %c0_5 = arith.constant 0 : index
      %6 = vector.load %arg5[%c0, %c0_4, %c0_5] : memref<32x8x16xf32, #tpu.memory_space<vmem>>, vector<32x8x16xf32>
      tpu.vector_store %arg5[%c0, %c0_4, %c0_5], %5 {strides = array<i32>} : memref<32x8x16xf32, #tpu.memory_space<vmem>>, vector<32x8x16xf32>,
    } else {
    }
    %c32_i32 = arith.constant 32 : i32
    %3 = arith.muli %arg0, %c32_i32 : i32
    %c0_i32_1 = arith.constant 0 : i32
    %c32_i32_2 = arith.constant 32 : i32
    %4 = arith.addi %c0_i32_1, %c32_i32_2 : i32
    %c1_i32 = arith.constant 1 : i32
    scf.for %arg6 = %c0_i32_1 to %4 step %c1_i32  : i32 {
      %5 = arith.addi %3, %arg6 : i32
      %6 = arith.index_cast %5 : i32 to index
      %7 = memref.load %arg1[%6] : memref<32xi32, #tpu.memory_space<smem>>
      %8 = arith.addi %3, %arg6 : i32
      %9 = arith.index_cast %8 : i32 to index
      %10 = memref.load %arg2[%9] : memref<32xi32, #tpu.memory_space<smem>>
      %11 = arith.index_cast %arg6 : i32 to index
      %c0 = arith.constant 0 : index
      %c0_4 = arith.constant 0 : index
      %12 = vector.load %arg3[%11, %c0, %c0_4] : memref<32x8x1xf32, #tpu.memory_space<vmem>>, vector<1x8x1xf32>
      %13 = arith.index_cast %7 : i32 to index
      %c0_5 = arith.constant 0 : index
      %c0_6 = arith.constant 0 : index
      %14 = vector.load %arg4[%13, %c0_5, %c0_6] : memref<32x1x16xf32, #tpu.memory_space<vmem>>, vector<1x1x16xf32>
      %15 = arith.index_cast %10 : i32 to index
      %c0_7 = arith.constant 0 : index
      %c0_8 = arith.constant 0 : index
      %16 = vector.load %arg5[%15, %c0_7, %c0_8] : memref<32x8x16xf32, #tpu.memory_space<vmem>>, vector<1x8x16xf32>
      %17 = vector.broadcast %12 : vector<1x8x1xf32> to vector<1x8x16xf32>
      %18 = vector.broadcast %14 : vector<1x1x16xf32> to vector<1x8x16xf32>
      %19 = arith.mulf %17, %18 : vector<1x8x16xf32>
      %20 = arith.addf %16, %19 : vector<1x8x16xf32>
      %21 = arith.index_cast %10 : i32 to index
      %c0_9 = arith.constant 0 : index
      %c0_10 = arith.constant 0 : index
      %22 = vector.load %arg5[%21, %c0_9, %c0_10] : memref<32x8x16xf32, #tpu.memory_space<vmem>>, vector<1x8x16xf32>
      tpu.vector_store %arg5[%21, %c0_9, %c0_10], %20 {strides = array<i32>} : memref<32x8x16xf32, #tpu.memory_space<vmem>>, vector<1x8x16xf32>,
    }
    %c32_i32_3 = arith.constant 32 : i32
    return
  }
  func.func @transform_0(%arg0: i32, %arg1: memref<32xi32, #tpu.memory_space<smem>>, %arg2: memref<32xi32, #tpu.memory_space<smem>>) -> (i32, i32, i32) {
    %c0_i32 = arith.constant 0 : i32
    %c0_i32_0 = arith.constant 0 : i32
    %c0_i32_1 = arith.constant 0 : i32
    return %arg0, %c0_i32, %c0_i32_0 : i32, i32, i32
  }
  func.func @transform_1(%arg0: i32, %arg1: memref<32xi32, #tpu.memory_space<smem>>, %arg2: memref<32xi32, #tpu.memory_space<smem>>) -> (i32, i32, i32) {
    %c0_i32 = arith.constant 0 : i32
    %c0_i32_0 = arith.constant 0 : i32
    %c0_i32_1 = arith.constant 0 : i32
    %c0_i32_2 = arith.constant 0 : i32
    return %c0_i32, %c0_i32_0, %c0_i32_1 : i32, i32, i32
  }
  func.func @transform_2(%arg0: i32, %arg1: memref<32xi32, #tpu.memory_space<smem>>, %arg2: memref<32xi32, #tpu.memory_space<smem>>) -> (i32, i32, i32) {
    %c0_i32 = arith.constant 0 : i32
    %c0_i32_0 = arith.constant 0 : i32
    %c0_i32_1 = arith.constant 0 : i32
    %c0_i32_2 = arith.constant 0 : i32
    return %c0_i32, %c0_i32_0, %c0_i32_1 : i32, i32, i32
  }
}

module attributes {stable_mosaic.version = 11 : i64} {
  func.func @_trip_bil_kernel(%arg0: i32, %arg1: memref<16x8x8xf32, #tpu.memory_space<vmem>>, %arg2: memref<16x8x16xf32, #tpu.memory_space<vmem>>, %arg3: memref<128x16xbf16, #tpu.memory_space<vmem>>, %arg4: memref<16x64xbf16, #tpu.memory_space<vmem>>, %arg5: memref<16x64xf32, #tpu.memory_space<vmem>>) attributes {dimension_semantics = [#tpu.dimension_semantics<parallel>], iteration_bounds = array<i64: 2>, scalar_prefetch = 0 : i64, scratch_operands = 0 : i64, tpu.core_type = #tpu.core_type<tc>, window_params = [{transform_indices = @transform_0, window_bounds = array<i64: 16, 8, 8>}, {transform_indices = @transform_1, window_bounds = array<i64: 16, 8, 16>}, {pipeline_mode = #tpu.pipeline_mode<synchronous>, transform_indices = @transform_2, window_bounds = array<i64: 128, 16>}, {pipeline_mode = #tpu.pipeline_mode<synchronous>, transform_indices = @transform_3, window_bounds = array<i64: 16, 64>}, {transform_indices = @transform_4, window_bounds = array<i64: 16, 64>}]} {
    %c0 = arith.constant 0 : index
    %c0_0 = arith.constant 0 : index
    %c0_1 = arith.constant 0 : index
    %0 = vector.load %arg1[%c0, %c0_0, %c0_1] : memref<16x8x8xf32, #tpu.memory_space<vmem>>, vector<16x8x8xf32>
    %c0_2 = arith.constant 0 : index
    %c0_3 = arith.constant 0 : index
    %c0_4 = arith.constant 0 : index
    %1 = vector.load %arg2[%c0_2, %c0_3, %c0_4] : memref<16x8x16xf32, #tpu.memory_space<vmem>>, vector<16x8x16xf32>
    %2 = vector.extract_strided_slice %0 {offsets = [0, 0, 0], sizes = [16, 8, 1], strides = [1, 1, 1]} : vector<16x8x8xf32> to vector<16x8x1xf32>
    %3 = vector.extract_strided_slice %1 {offsets = [0, 0, 0], sizes = [16, 1, 16], strides = [1, 1, 1]} : vector<16x8x16xf32> to vector<16x1x16xf32>
    %4 = vector.broadcast %2 : vector<16x8x1xf32> to vector<16x8x16xf32>
    %5 = vector.broadcast %3 : vector<16x1x16xf32> to vector<16x8x16xf32>
    %6 = arith.mulf %4, %5 : vector<16x8x16xf32>
    %7 = vector.extract_strided_slice %0 {offsets = [0, 0, 1], sizes = [16, 8, 1], strides = [1, 1, 1]} : vector<16x8x8xf32> to vector<16x8x1xf32>
    %8 = vector.extract_strided_slice %1 {offsets = [0, 1, 0], sizes = [16, 1, 16], strides = [1, 1, 1]} : vector<16x8x16xf32> to vector<16x1x16xf32>
    %9 = vector.broadcast %7 : vector<16x8x1xf32> to vector<16x8x16xf32>
    %10 = vector.broadcast %8 : vector<16x1x16xf32> to vector<16x8x16xf32>
    %11 = arith.mulf %9, %10 : vector<16x8x16xf32>
    %12 = arith.addf %6, %11 : vector<16x8x16xf32>
    %13 = vector.extract_strided_slice %0 {offsets = [0, 0, 2], sizes = [16, 8, 1], strides = [1, 1, 1]} : vector<16x8x8xf32> to vector<16x8x1xf32>
    %14 = vector.extract_strided_slice %1 {offsets = [0, 2, 0], sizes = [16, 1, 16], strides = [1, 1, 1]} : vector<16x8x16xf32> to vector<16x1x16xf32>
    %15 = vector.broadcast %13 : vector<16x8x1xf32> to vector<16x8x16xf32>
    %16 = vector.broadcast %14 : vector<16x1x16xf32> to vector<16x8x16xf32>
    %17 = arith.mulf %15, %16 : vector<16x8x16xf32>
    %18 = arith.addf %12, %17 : vector<16x8x16xf32>
    %19 = vector.extract_strided_slice %0 {offsets = [0, 0, 3], sizes = [16, 8, 1], strides = [1, 1, 1]} : vector<16x8x8xf32> to vector<16x8x1xf32>
    %20 = vector.extract_strided_slice %1 {offsets = [0, 3, 0], sizes = [16, 1, 16], strides = [1, 1, 1]} : vector<16x8x16xf32> to vector<16x1x16xf32>
    %21 = vector.broadcast %19 : vector<16x8x1xf32> to vector<16x8x16xf32>
    %22 = vector.broadcast %20 : vector<16x1x16xf32> to vector<16x8x16xf32>
    %23 = arith.mulf %21, %22 : vector<16x8x16xf32>
    %24 = arith.addf %18, %23 : vector<16x8x16xf32>
    %25 = vector.extract_strided_slice %0 {offsets = [0, 0, 4], sizes = [16, 8, 1], strides = [1, 1, 1]} : vector<16x8x8xf32> to vector<16x8x1xf32>
    %26 = vector.extract_strided_slice %1 {offsets = [0, 4, 0], sizes = [16, 1, 16], strides = [1, 1, 1]} : vector<16x8x16xf32> to vector<16x1x16xf32>
    %27 = vector.broadcast %25 : vector<16x8x1xf32> to vector<16x8x16xf32>
    %28 = vector.broadcast %26 : vector<16x1x16xf32> to vector<16x8x16xf32>
    %29 = arith.mulf %27, %28 : vector<16x8x16xf32>
    %30 = arith.addf %24, %29 : vector<16x8x16xf32>
    %31 = vector.extract_strided_slice %0 {offsets = [0, 0, 5], sizes = [16, 8, 1], strides = [1, 1, 1]} : vector<16x8x8xf32> to vector<16x8x1xf32>
    %32 = vector.extract_strided_slice %1 {offsets = [0, 5, 0], sizes = [16, 1, 16], strides = [1, 1, 1]} : vector<16x8x16xf32> to vector<16x1x16xf32>
    %33 = vector.broadcast %31 : vector<16x8x1xf32> to vector<16x8x16xf32>
    %34 = vector.broadcast %32 : vector<16x1x16xf32> to vector<16x8x16xf32>
    %35 = arith.mulf %33, %34 : vector<16x8x16xf32>
    %36 = arith.addf %30, %35 : vector<16x8x16xf32>
    %37 = vector.extract_strided_slice %0 {offsets = [0, 0, 6], sizes = [16, 8, 1], strides = [1, 1, 1]} : vector<16x8x8xf32> to vector<16x8x1xf32>
    %38 = vector.extract_strided_slice %1 {offsets = [0, 6, 0], sizes = [16, 1, 16], strides = [1, 1, 1]} : vector<16x8x16xf32> to vector<16x1x16xf32>
    %39 = vector.broadcast %37 : vector<16x8x1xf32> to vector<16x8x16xf32>
    %40 = vector.broadcast %38 : vector<16x1x16xf32> to vector<16x8x16xf32>
    %41 = arith.mulf %39, %40 : vector<16x8x16xf32>
    %42 = arith.addf %36, %41 : vector<16x8x16xf32>
    %43 = vector.extract_strided_slice %0 {offsets = [0, 0, 7], sizes = [16, 8, 1], strides = [1, 1, 1]} : vector<16x8x8xf32> to vector<16x8x1xf32>
    %44 = vector.extract_strided_slice %1 {offsets = [0, 7, 0], sizes = [16, 1, 16], strides = [1, 1, 1]} : vector<16x8x16xf32> to vector<16x1x16xf32>
    %45 = vector.broadcast %43 : vector<16x8x1xf32> to vector<16x8x16xf32>
    %46 = vector.broadcast %44 : vector<16x1x16xf32> to vector<16x8x16xf32>
    %47 = arith.mulf %45, %46 : vector<16x8x16xf32>
    %48 = arith.addf %42, %47 : vector<16x8x16xf32>
    %49 = vector.shape_cast %48 : vector<16x8x16xf32> to vector<16x128xf32>
    %c0_5 = arith.constant 0 : index
    %c0_6 = arith.constant 0 : index
    %50 = vector.load %arg3[%c0_5, %c0_6] : memref<128x16xbf16, #tpu.memory_space<vmem>>, vector<128x16xbf16>
    %51 = arith.truncf %49 : vector<16x128xf32> to vector<16x128xbf16>
    %cst = arith.constant dense<0.000000e+00> : vector<16x16xf32>
    %52 = tpu.matmul %51, %50, %cst {dimension_numbers = #tpu.dot_dimension_numbers<[1], [0], [0], [1], [0, 0, 1, 1], [], []>} : vector<16x128xbf16>, vector<128x16xbf16>, vector<16x16xf32> -> vector<16x16xf32>
    %c0_7 = arith.constant 0 : index
    %c0_8 = arith.constant 0 : index
    %53 = vector.load %arg4[%c0_7, %c0_8] : memref<16x64xbf16, #tpu.memory_space<vmem>>, vector<16x64xbf16>
    %54 = arith.truncf %52 : vector<16x16xf32> to vector<16x16xbf16>
    %cst_9 = arith.constant dense<0.000000e+00> : vector<16x64xf32>
    %55 = tpu.matmul %54, %53, %cst_9 {dimension_numbers = #tpu.dot_dimension_numbers<[1], [0], [0], [1], [0, 0, 1, 1], [], []>} : vector<16x16xbf16>, vector<16x64xbf16>, vector<16x64xf32> -> vector<16x64xf32>
    %56 = arith.negf %55 : vector<16x64xf32>
    %57 = math.exp %56 : vector<16x64xf32>
    %cst_10 = arith.constant 1.000000e+00 : f32
    %58 = vector.broadcast %cst_10 : f32 to vector<16x64xf32>
    %59 = arith.addf %58, %57 : vector<16x64xf32>
    %60 = arith.divf %58, %59 : vector<16x64xf32>
    %61 = arith.mulf %55, %60 : vector<16x64xf32>
    %cst_11 = arith.constant 1.66666663 : f32
    %62 = vector.broadcast %cst_11 : f32 to vector<16x64xf32>
    %63 = arith.mulf %61, %62 : vector<16x64xf32>
    %c0_12 = arith.constant 0 : index
    %c0_13 = arith.constant 0 : index
    %64 = vector.load %arg5[%c0_12, %c0_13] : memref<16x64xf32, #tpu.memory_space<vmem>>, vector<16x64xf32>
    tpu.vector_store %arg5[%c0_12, %c0_13], %63 {strides = array<i32>} : memref<16x64xf32, #tpu.memory_space<vmem>>, vector<16x64xf32>,
    return
  }
  func.func @transform_0(%arg0: i32) -> (i32, i32, i32) {
    %c0_i32 = arith.constant 0 : i32
    %c0_i32_0 = arith.constant 0 : i32
    %c0_i32_1 = arith.constant 0 : i32
    return %arg0, %c0_i32, %c0_i32_0 : i32, i32, i32
  }
  func.func @transform_1(%arg0: i32) -> (i32, i32, i32) {
    %c0_i32 = arith.constant 0 : i32
    %c0_i32_0 = arith.constant 0 : i32
    %c0_i32_1 = arith.constant 0 : i32
    return %arg0, %c0_i32, %c0_i32_0 : i32, i32, i32
  }
  func.func @transform_2(%arg0: i32) -> (i32, i32) {
    %c0_i32 = arith.constant 0 : i32
    %c0_i32_0 = arith.constant 0 : i32
    %c0_i32_1 = arith.constant 0 : i32
    return %c0_i32, %c0_i32_0 : i32, i32
  }
  func.func @transform_3(%arg0: i32) -> (i32, i32) {
    %c0_i32 = arith.constant 0 : i32
    %c0_i32_0 = arith.constant 0 : i32
    %c0_i32_1 = arith.constant 0 : i32
    return %c0_i32, %c0_i32_0 : i32, i32
  }
  func.func @transform_4(%arg0: i32) -> (i32, i32) {
    %c0_i32 = arith.constant 0 : i32
    %c0_i32_0 = arith.constant 0 : i32
    return %arg0, %c0_i32 : i32, i32
  }
}

module attributes {stable_mosaic.version = 11 : i64} {
  func.func @_edge_update_kernel(%arg0: i32, %arg1: memref<16x32xf32, #tpu.memory_space<vmem>>, %arg2: memref<16x64xf32, #tpu.memory_space<vmem>>, %arg3: memref<16x64xf32, #tpu.memory_space<vmem>>, %arg4: memref<16x32xf32, #tpu.memory_space<vmem>>, %arg5: memref<32x32xbf16, #tpu.memory_space<vmem>>, %arg6: memref<32x32xbf16, #tpu.memory_space<vmem>>, %arg7: memref<32x32xbf16, #tpu.memory_space<vmem>>, %arg8: memref<32x32xbf16, #tpu.memory_space<vmem>>, %arg9: memref<16x32xf32, #tpu.memory_space<vmem>>) attributes {dimension_semantics = [#tpu.dimension_semantics<parallel>], iteration_bounds = array<i64: 2>, scalar_prefetch = 0 : i64, scratch_operands = 0 : i64, tpu.core_type = #tpu.core_type<tc>, window_params = [{transform_indices = @transform_0, window_bounds = array<i64: 16, 32>}, {transform_indices = @transform_1, window_bounds = array<i64: 16, 64>}, {transform_indices = @transform_2, window_bounds = array<i64: 16, 64>}, {transform_indices = @transform_3, window_bounds = array<i64: 16, 32>}, {pipeline_mode = #tpu.pipeline_mode<synchronous>, transform_indices = @transform_4, window_bounds = array<i64: 32, 32>}, {pipeline_mode = #tpu.pipeline_mode<synchronous>, transform_indices = @transform_5, window_bounds = array<i64: 32, 32>}, {pipeline_mode = #tpu.pipeline_mode<synchronous>, transform_indices = @transform_6, window_bounds = array<i64: 32, 32>}, {pipeline_mode = #tpu.pipeline_mode<synchronous>, transform_indices = @transform_7, window_bounds = array<i64: 32, 32>}, {transform_indices = @transform_8, window_bounds = array<i64: 16, 32>}]} {
    %c0 = arith.constant 0 : index
    %c0_0 = arith.constant 0 : index
    %0 = vector.load %arg2[%c0, %c0_0] : memref<16x64xf32, #tpu.memory_space<vmem>>, vector<16x64xf32>
    %1 = vector.extract_strided_slice %0 {offsets = [0, 0], sizes = [16, 32], strides = [1, 1]} : vector<16x64xf32> to vector<16x32xf32>
    %c0_1 = arith.constant 0 : index
    %c0_2 = arith.constant 0 : index
    %2 = vector.load %arg3[%c0_1, %c0_2] : memref<16x64xf32, #tpu.memory_space<vmem>>, vector<16x64xf32>
    %3 = vector.extract_strided_slice %2 {offsets = [0, 32], sizes = [16, 32], strides = [1, 1]} : vector<16x64xf32> to vector<16x32xf32>
    %4 = arith.addf %1, %3 : vector<16x32xf32>
    %cst = arith.constant 0.707106769 : f32
    %5 = vector.broadcast %cst : f32 to vector<16x32xf32>
    %6 = arith.mulf %4, %5 : vector<16x32xf32>
    %c0_3 = arith.constant 0 : index
    %c0_4 = arith.constant 0 : index
    %7 = vector.load %arg1[%c0_3, %c0_4] : memref<16x32xf32, #tpu.memory_space<vmem>>, vector<16x32xf32>
    %8 = arith.addf %7, %6 : vector<16x32xf32>
    %cst_5 = arith.constant 0.707106769 : f32
    %9 = vector.broadcast %cst_5 : f32 to vector<16x32xf32>
    %10 = arith.mulf %8, %9 : vector<16x32xf32>
    %c0_6 = arith.constant 0 : index
    %c0_7 = arith.constant 0 : index
    %11 = vector.load %arg5[%c0_6, %c0_7] : memref<32x32xbf16, #tpu.memory_space<vmem>>, vector<32x32xbf16>
    %12 = arith.truncf %10 : vector<16x32xf32> to vector<16x32xbf16>
    %cst_8 = arith.constant dense<0.000000e+00> : vector<16x32xf32>
    %13 = tpu.matmul %12, %11, %cst_8 {dimension_numbers = #tpu.dot_dimension_numbers<[1], [0], [0], [1], [0, 0, 1, 1], [], []>} : vector<16x32xbf16>, vector<32x32xbf16>, vector<16x32xf32> -> vector<16x32xf32>
    %14 = arith.negf %13 : vector<16x32xf32>
    %15 = math.exp %14 : vector<16x32xf32>
    %cst_9 = arith.constant 1.000000e+00 : f32
    %16 = vector.broadcast %cst_9 : f32 to vector<16x32xf32>
    %17 = arith.addf %16, %15 : vector<16x32xf32>
    %18 = arith.divf %16, %17 : vector<16x32xf32>
    %19 = arith.mulf %13, %18 : vector<16x32xf32>
    %cst_10 = arith.constant 1.66666663 : f32
    %20 = vector.broadcast %cst_10 : f32 to vector<16x32xf32>
    %21 = arith.mulf %19, %20 : vector<16x32xf32>
    %c0_11 = arith.constant 0 : index
    %c0_12 = arith.constant 0 : index
    %22 = vector.load %arg6[%c0_11, %c0_12] : memref<32x32xbf16, #tpu.memory_space<vmem>>, vector<32x32xbf16>
    %23 = arith.truncf %21 : vector<16x32xf32> to vector<16x32xbf16>
    %cst_13 = arith.constant dense<0.000000e+00> : vector<16x32xf32>
    %24 = tpu.matmul %23, %22, %cst_13 {dimension_numbers = #tpu.dot_dimension_numbers<[1], [0], [0], [1], [0, 0, 1, 1], [], []>} : vector<16x32xbf16>, vector<32x32xbf16>, vector<16x32xf32> -> vector<16x32xf32>
    %25 = arith.negf %24 : vector<16x32xf32>
    %26 = math.exp %25 : vector<16x32xf32>
    %cst_14 = arith.constant 1.000000e+00 : f32
    %27 = vector.broadcast %cst_14 : f32 to vector<16x32xf32>
    %28 = arith.addf %27, %26 : vector<16x32xf32>
    %29 = arith.divf %27, %28 : vector<16x32xf32>
    %30 = arith.mulf %24, %29 : vector<16x32xf32>
    %cst_15 = arith.constant 1.66666663 : f32
    %31 = vector.broadcast %cst_15 : f32 to vector<16x32xf32>
    %32 = arith.mulf %30, %31 : vector<16x32xf32>
    %33 = arith.addf %10, %32 : vector<16x32xf32>
    %cst_16 = arith.constant 0.707106769 : f32
    %34 = vector.broadcast %cst_16 : f32 to vector<16x32xf32>
    %35 = arith.mulf %33, %34 : vector<16x32xf32>
    %c0_17 = arith.constant 0 : index
    %c0_18 = arith.constant 0 : index
    %36 = vector.load %arg4[%c0_17, %c0_18] : memref<16x32xf32, #tpu.memory_space<vmem>>, vector<16x32xf32>
    %37 = arith.addf %36, %35 : vector<16x32xf32>
    %cst_19 = arith.constant 0.707106769 : f32
    %38 = vector.broadcast %cst_19 : f32 to vector<16x32xf32>
    %39 = arith.mulf %37, %38 : vector<16x32xf32>
    %c0_20 = arith.constant 0 : index
    %c0_21 = arith.constant 0 : index
    %40 = vector.load %arg7[%c0_20, %c0_21] : memref<32x32xbf16, #tpu.memory_space<vmem>>, vector<32x32xbf16>
    %41 = arith.truncf %39 : vector<16x32xf32> to vector<16x32xbf16>
    %cst_22 = arith.constant dense<0.000000e+00> : vector<16x32xf32>
    %42 = tpu.matmul %41, %40, %cst_22 {dimension_numbers = #tpu.dot_dimension_numbers<[1], [0], [0], [1], [0, 0, 1, 1], [], []>} : vector<16x32xbf16>, vector<32x32xbf16>, vector<16x32xf32> -> vector<16x32xf32>
    %43 = arith.negf %42 : vector<16x32xf32>
    %44 = math.exp %43 : vector<16x32xf32>
    %cst_23 = arith.constant 1.000000e+00 : f32
    %45 = vector.broadcast %cst_23 : f32 to vector<16x32xf32>
    %46 = arith.addf %45, %44 : vector<16x32xf32>
    %47 = arith.divf %45, %46 : vector<16x32xf32>
    %48 = arith.mulf %42, %47 : vector<16x32xf32>
    %cst_24 = arith.constant 1.66666663 : f32
    %49 = vector.broadcast %cst_24 : f32 to vector<16x32xf32>
    %50 = arith.mulf %48, %49 : vector<16x32xf32>
    %c0_25 = arith.constant 0 : index
    %c0_26 = arith.constant 0 : index
    %51 = vector.load %arg8[%c0_25, %c0_26] : memref<32x32xbf16, #tpu.memory_space<vmem>>, vector<32x32xbf16>
    %52 = arith.truncf %50 : vector<16x32xf32> to vector<16x32xbf16>
    %cst_27 = arith.constant dense<0.000000e+00> : vector<16x32xf32>
    %53 = tpu.matmul %52, %51, %cst_27 {dimension_numbers = #tpu.dot_dimension_numbers<[1], [0], [0], [1], [0, 0, 1, 1], [], []>} : vector<16x32xbf16>, vector<32x32xbf16>, vector<16x32xf32> -> vector<16x32xf32>
    %54 = arith.negf %53 : vector<16x32xf32>
    %55 = math.exp %54 : vector<16x32xf32>
    %cst_28 = arith.constant 1.000000e+00 : f32
    %56 = vector.broadcast %cst_28 : f32 to vector<16x32xf32>
    %57 = arith.addf %56, %55 : vector<16x32xf32>
    %58 = arith.divf %56, %57 : vector<16x32xf32>
    %59 = arith.mulf %53, %58 : vector<16x32xf32>
    %cst_29 = arith.constant 1.66666663 : f32
    %60 = vector.broadcast %cst_29 : f32 to vector<16x32xf32>
    %61 = arith.mulf %59, %60 : vector<16x32xf32>
    %62 = arith.addf %39, %61 : vector<16x32xf32>
    %cst_30 = arith.constant 0.707106769 : f32
    %63 = vector.broadcast %cst_30 : f32 to vector<16x32xf32>
    %64 = arith.mulf %62, %63 : vector<16x32xf32>
    %c0_31 = arith.constant 0 : index
    %c0_32 = arith.constant 0 : index
    %65 = vector.load %arg9[%c0_31, %c0_32] : memref<16x32xf32, #tpu.memory_space<vmem>>, vector<16x32xf32>
    tpu.vector_store %arg9[%c0_31, %c0_32], %64 {strides = array<i32>} : memref<16x32xf32, #tpu.memory_space<vmem>>, vector<16x32xf32>,
    return
  }
  func.func @transform_0(%arg0: i32) -> (i32, i32) {
    %c0_i32 = arith.constant 0 : i32
    %c0_i32_0 = arith.constant 0 : i32
    return %arg0, %c0_i32 : i32, i32
  }
  func.func @transform_1(%arg0: i32) -> (i32, i32) {
    %c0_i32 = arith.constant 0 : i32
    %c0_i32_0 = arith.constant 0 : i32
    return %arg0, %c0_i32 : i32, i32
  }
  func.func @transform_2(%arg0: i32) -> (i32, i32) {
    %c0_i32 = arith.constant 0 : i32
    %c0_i32_0 = arith.constant 0 : i32
    return %arg0, %c0_i32 : i32, i32
  }
  func.func @transform_3(%arg0: i32) -> (i32, i32) {
    %c0_i32 = arith.constant 0 : i32
    %c0_i32_0 = arith.constant 0 : i32
    return %arg0, %c0_i32 : i32, i32
  }
  func.func @transform_4(%arg0: i32) -> (i32, i32) {
    %c0_i32 = arith.constant 0 : i32
    %c0_i32_0 = arith.constant 0 : i32
    %c0_i32_1 = arith.constant 0 : i32
    return %c0_i32, %c0_i32_0 : i32, i32
  }
  func.func @transform_5(%arg0: i32) -> (i32, i32) {
    %c0_i32 = arith.constant 0 : i32
    %c0_i32_0 = arith.constant 0 : i32
    %c0_i32_1 = arith.constant 0 : i32
    return %c0_i32, %c0_i32_0 : i32, i32
  }
  func.func @transform_6(%arg0: i32) -> (i32, i32) {
    %c0_i32 = arith.constant 0 : i32
    %c0_i32_0 = arith.constant 0 : i32
    %c0_i32_1 = arith.constant 0 : i32
    return %c0_i32, %c0_i32_0 : i32, i32
  }
  func.func @transform_7(%arg0: i32) -> (i32, i32) {
    %c0_i32 = arith.constant 0 : i32
    %c0_i32_0 = arith.constant 0 : i32
    %c0_i32_1 = arith.constant 0 : i32
    return %c0_i32, %c0_i32_0 : i32, i32
  }
  func.func @transform_8(%arg0: i32) -> (i32, i32) {
    %c0_i32 = arith.constant 0 : i32
    %c0_i32_0 = arith.constant 0 : i32
    return %arg0, %c0_i32 : i32, i32
  }
}

module attributes {stable_mosaic.version = 11 : i64} {
  func.func @_edge_rbf_scale_kernel(%arg0: i32, %arg1: memref<16x16xf32, #tpu.memory_space<vmem>>, %arg2: memref<16x32xf32, #tpu.memory_space<vmem>>, %arg3: memref<16x32xbf16, #tpu.memory_space<vmem>>, %arg4: memref<16x32xf32, #tpu.memory_space<vmem>>) attributes {dimension_semantics = [#tpu.dimension_semantics<parallel>], iteration_bounds = array<i64: 2>, scalar_prefetch = 0 : i64, scratch_operands = 0 : i64, tpu.core_type = #tpu.core_type<tc>, window_params = [{transform_indices = @transform_0, window_bounds = array<i64: 16, 16>}, {transform_indices = @transform_1, window_bounds = array<i64: 16, 32>}, {pipeline_mode = #tpu.pipeline_mode<synchronous>, transform_indices = @transform_2, window_bounds = array<i64: 16, 32>}, {transform_indices = @transform_3, window_bounds = array<i64: 16, 32>}]} {
    %c0 = arith.constant 0 : index
    %c0_0 = arith.constant 0 : index
    %0 = vector.load %arg2[%c0, %c0_0] : memref<16x32xf32, #tpu.memory_space<vmem>>, vector<16x32xf32>
    %c0_1 = arith.constant 0 : index
    %c0_2 = arith.constant 0 : index
    %1 = vector.load %arg1[%c0_1, %c0_2] : memref<16x16xf32, #tpu.memory_space<vmem>>, vector<16x16xf32>
    %c0_3 = arith.constant 0 : index
    %c0_4 = arith.constant 0 : index
    %2 = vector.load %arg3[%c0_3, %c0_4] : memref<16x32xbf16, #tpu.memory_space<vmem>>, vector<16x32xbf16>
    %3 = arith.truncf %1 : vector<16x16xf32> to vector<16x16xbf16>
    %cst = arith.constant dense<0.000000e+00> : vector<16x32xf32>
    %4 = tpu.matmul %3, %2, %cst {dimension_numbers = #tpu.dot_dimension_numbers<[1], [0], [0], [1], [0, 0, 1, 1], [], []>} : vector<16x16xbf16>, vector<16x32xbf16>, vector<16x32xf32> -> vector<16x32xf32>
    %5 = arith.mulf %0, %4 : vector<16x32xf32>
    %c0_5 = arith.constant 0 : index
    %c0_6 = arith.constant 0 : index
    %6 = vector.load %arg4[%c0_5, %c0_6] : memref<16x32xf32, #tpu.memory_space<vmem>>, vector<16x32xf32>
    tpu.vector_store %arg4[%c0_5, %c0_6], %5 {strides = array<i32>} : memref<16x32xf32, #tpu.memory_space<vmem>>, vector<16x32xf32>,
    return
  }
  func.func @transform_0(%arg0: i32) -> (i32, i32) {
    %c0_i32 = arith.constant 0 : i32
    %c0_i32_0 = arith.constant 0 : i32
    return %arg0, %c0_i32 : i32, i32
  }
  func.func @transform_1(%arg0: i32) -> (i32, i32) {
    %c0_i32 = arith.constant 0 : i32
    %c0_i32_0 = arith.constant 0 : i32
    return %arg0, %c0_i32 : i32, i32
  }
  func.func @transform_2(%arg0: i32) -> (i32, i32) {
    %c0_i32 = arith.constant 0 : i32
    %c0_i32_0 = arith.constant 0 : i32
    %c0_i32_1 = arith.constant 0 : i32
    return %c0_i32, %c0_i32_0 : i32, i32
  }
  func.func @transform_3(%arg0: i32) -> (i32, i32) {
    %c0_i32 = arith.constant 0 : i32
    %c0_i32_0 = arith.constant 0 : i32
    return %arg0, %c0_i32 : i32, i32
  }
}

module attributes {stable_mosaic.version = 11 : i64} {
  func.func @_ln_kernel(%arg0: i32, %arg1: memref<8x32xf32, #tpu.memory_space<vmem>>, %arg2: memref<1x32xf32, #tpu.memory_space<vmem>>, %arg3: memref<1x32xf32, #tpu.memory_space<vmem>>, %arg4: memref<8x32xf32, #tpu.memory_space<vmem>>) attributes {dimension_semantics = [#tpu.dimension_semantics<parallel>], iteration_bounds = array<i64: 1>, scalar_prefetch = 0 : i64, scratch_operands = 0 : i64, tpu.core_type = #tpu.core_type<tc>, window_params = [{transform_indices = @transform_0, window_bounds = array<i64: 8, 32>}, {pipeline_mode = #tpu.pipeline_mode<synchronous>, transform_indices = @transform_1, window_bounds = array<i64: 1, 32>}, {pipeline_mode = #tpu.pipeline_mode<synchronous>, transform_indices = @transform_2, window_bounds = array<i64: 1, 32>}, {transform_indices = @transform_3, window_bounds = array<i64: 8, 32>}]} {
    %c0 = arith.constant 0 : index
    %c0_0 = arith.constant 0 : index
    %0 = vector.load %arg1[%c0, %c0_0] : memref<8x32xf32, #tpu.memory_space<vmem>>, vector<8x32xf32>
    %c0_1 = arith.constant 0 : index
    %c0_2 = arith.constant 0 : index
    %1 = vector.load %arg2[%c0_1, %c0_2] : memref<1x32xf32, #tpu.memory_space<vmem>>, vector<1x32xf32>
    %c0_3 = arith.constant 0 : index
    %c0_4 = arith.constant 0 : index
    %2 = vector.load %arg3[%c0_3, %c0_4] : memref<1x32xf32, #tpu.memory_space<vmem>>, vector<1x32xf32>
    %cst = arith.constant dense<0.000000e+00> : vector<8xf32>
    %3 = vector.multi_reduction <add>, %0, %cst [1] : vector<8x32xf32> to vector<8xf32>
    %4 = vector.shape_cast %3 : vector<8xf32> to vector<8x1xf32>
    %cst_5 = arith.constant 3.200000e+01 : f32
    %5 = vector.broadcast %cst_5 : f32 to vector<8x1xf32>
    %6 = arith.divf %4, %5 : vector<8x1xf32>
    %7 = vector.broadcast %6 : vector<8x1xf32> to vector<8x32xf32>
    %8 = arith.subf %0, %7 : vector<8x32xf32>
    %9 = arith.mulf %8, %8 : vector<8x32xf32>
    %cst_6 = arith.constant dense<0.000000e+00> : vector<8xf32>
    %10 = vector.multi_reduction <add>, %9, %cst_6 [1] : vector<8x32xf32> to vector<8xf32>
    %11 = vector.shape_cast %10 : vector<8xf32> to vector<8x1xf32>
    %cst_7 = arith.constant 3.200000e+01 : f32
    %12 = vector.broadcast %cst_7 : f32 to vector<8x1xf32>
    %13 = arith.divf %11, %12 : vector<8x1xf32>
    %cst_8 = arith.constant 9.99999974E-6 : f32
    %14 = vector.broadcast %cst_8 : f32 to vector<8x1xf32>
    %15 = arith.addf %13, %14 : vector<8x1xf32>
    %16 = math.rsqrt %15 : vector<8x1xf32>
    %17 = vector.broadcast %16 : vector<8x1xf32> to vector<8x32xf32>
    %18 = arith.mulf %8, %17 : vector<8x32xf32>
    %19 = vector.broadcast %1 : vector<1x32xf32> to vector<8x32xf32>
    %20 = arith.mulf %18, %19 : vector<8x32xf32>
    %21 = vector.broadcast %2 : vector<1x32xf32> to vector<8x32xf32>
    %22 = arith.addf %20, %21 : vector<8x32xf32>
    %c0_9 = arith.constant 0 : index
    %c0_10 = arith.constant 0 : index
    %23 = vector.load %arg4[%c0_9, %c0_10] : memref<8x32xf32, #tpu.memory_space<vmem>>, vector<8x32xf32>
    tpu.vector_store %arg4[%c0_9, %c0_10], %22 {strides = array<i32>} : memref<8x32xf32, #tpu.memory_space<vmem>>, vector<8x32xf32>,
    return
  }
  func.func @transform_0(%arg0: i32) -> (i32, i32) {
    %c0_i32 = arith.constant 0 : i32
    %c0_i32_0 = arith.constant 0 : i32
    return %arg0, %c0_i32 : i32, i32
  }
  func.func @transform_1(%arg0: i32) -> (i32, i32) {
    %c0_i32 = arith.constant 0 : i32
    %c0_i32_0 = arith.constant 0 : i32
    %c0_i32_1 = arith.constant 0 : i32
    return %c0_i32, %c0_i32_0 : i32, i32
  }
  func.func @transform_2(%arg0: i32) -> (i32, i32) {
    %c0_i32 = arith.constant 0 : i32
    %c0_i32_0 = arith.constant 0 : i32
    %c0_i32_1 = arith.constant 0 : i32
    return %c0_i32, %c0_i32_0 : i32, i32
  }
  func.func @transform_3(%arg0: i32) -> (i32, i32) {
    %c0_i32 = arith.constant 0 : i32
    %c0_i32_0 = arith.constant 0 : i32
    return %arg0, %c0_i32 : i32, i32
  }
}

module attributes {stable_mosaic.version = 11 : i64} {
  func.func @_atom_update_kernel(%arg0: i32, %arg1: memref<8x32xf32, #tpu.memory_space<vmem>>, %arg2: memref<8x32xf32, #tpu.memory_space<vmem>>, %arg3: memref<32x32xbf16, #tpu.memory_space<vmem>>, %arg4: memref<32x32xbf16, #tpu.memory_space<vmem>>, %arg5: memref<32x32xbf16, #tpu.memory_space<vmem>>, %arg6: memref<32x32xbf16, #tpu.memory_space<vmem>>, %arg7: memref<32x32xbf16, #tpu.memory_space<vmem>>, %arg8: memref<8x32xf32, #tpu.memory_space<vmem>>) attributes {dimension_semantics = [#tpu.dimension_semantics<parallel>], iteration_bounds = array<i64: 1>, scalar_prefetch = 0 : i64, scratch_operands = 0 : i64, tpu.core_type = #tpu.core_type<tc>, window_params = [{transform_indices = @transform_0, window_bounds = array<i64: 8, 32>}, {transform_indices = @transform_1, window_bounds = array<i64: 8, 32>}, {pipeline_mode = #tpu.pipeline_mode<synchronous>, transform_indices = @transform_2, window_bounds = array<i64: 32, 32>}, {pipeline_mode = #tpu.pipeline_mode<synchronous>, transform_indices = @transform_3, window_bounds = array<i64: 32, 32>}, {pipeline_mode = #tpu.pipeline_mode<synchronous>, transform_indices = @transform_4, window_bounds = array<i64: 32, 32>}, {pipeline_mode = #tpu.pipeline_mode<synchronous>, transform_indices = @transform_5, window_bounds = array<i64: 32, 32>}, {pipeline_mode = #tpu.pipeline_mode<synchronous>, transform_indices = @transform_6, window_bounds = array<i64: 32, 32>}, {transform_indices = @transform_7, window_bounds = array<i64: 8, 32>}]} {
    %c0 = arith.constant 0 : index
    %c0_0 = arith.constant 0 : index
    %0 = vector.load %arg1[%c0, %c0_0] : memref<8x32xf32, #tpu.memory_space<vmem>>, vector<8x32xf32>
    %c0_1 = arith.constant 0 : index
    %c0_2 = arith.constant 0 : index
    %1 = vector.load %arg3[%c0_1, %c0_2] : memref<32x32xbf16, #tpu.memory_space<vmem>>, vector<32x32xbf16>
    %2 = arith.truncf %0 : vector<8x32xf32> to vector<8x32xbf16>
    %cst = arith.constant dense<0.000000e+00> : vector<8x32xf32>
    %3 = tpu.matmul %2, %1, %cst {dimension_numbers = #tpu.dot_dimension_numbers<[1], [0], [0], [1], [0, 0, 1, 1], [], []>} : vector<8x32xbf16>, vector<32x32xbf16>, vector<8x32xf32> -> vector<8x32xf32>
    %4 = arith.negf %3 : vector<8x32xf32>
    %5 = math.exp %4 : vector<8x32xf32>
    %cst_3 = arith.constant 1.000000e+00 : f32
    %6 = vector.broadcast %cst_3 : f32 to vector<8x32xf32>
    %7 = arith.addf %6, %5 : vector<8x32xf32>
    %8 = arith.divf %6, %7 : vector<8x32xf32>
    %9 = arith.mulf %3, %8 : vector<8x32xf32>
    %cst_4 = arith.constant 1.66666663 : f32
    %10 = vector.broadcast %cst_4 : f32 to vector<8x32xf32>
    %11 = arith.mulf %9, %10 : vector<8x32xf32>
    %c0_5 = arith.constant 0 : index
    %c0_6 = arith.constant 0 : index
    %12 = vector.load %arg4[%c0_5, %c0_6] : memref<32x32xbf16, #tpu.memory_space<vmem>>, vector<32x32xbf16>
    %13 = arith.truncf %11 : vector<8x32xf32> to vector<8x32xbf16>
    %cst_7 = arith.constant dense<0.000000e+00> : vector<8x32xf32>
    %14 = tpu.matmul %13, %12, %cst_7 {dimension_numbers = #tpu.dot_dimension_numbers<[1], [0], [0], [1], [0, 0, 1, 1], [], []>} : vector<8x32xbf16>, vector<32x32xbf16>, vector<8x32xf32> -> vector<8x32xf32>
    %15 = arith.negf %14 : vector<8x32xf32>
    %16 = math.exp %15 : vector<8x32xf32>
    %cst_8 = arith.constant 1.000000e+00 : f32
    %17 = vector.broadcast %cst_8 : f32 to vector<8x32xf32>
    %18 = arith.addf %17, %16 : vector<8x32xf32>
    %19 = arith.divf %17, %18 : vector<8x32xf32>
    %20 = arith.mulf %14, %19 : vector<8x32xf32>
    %cst_9 = arith.constant 1.66666663 : f32
    %21 = vector.broadcast %cst_9 : f32 to vector<8x32xf32>
    %22 = arith.mulf %20, %21 : vector<8x32xf32>
    %c0_10 = arith.constant 0 : index
    %c0_11 = arith.constant 0 : index
    %23 = vector.load %arg5[%c0_10, %c0_11] : memref<32x32xbf16, #tpu.memory_space<vmem>>, vector<32x32xbf16>
    %24 = arith.truncf %22 : vector<8x32xf32> to vector<8x32xbf16>
    %cst_12 = arith.constant dense<0.000000e+00> : vector<8x32xf32>
    %25 = tpu.matmul %24, %23, %cst_12 {dimension_numbers = #tpu.dot_dimension_numbers<[1], [0], [0], [1], [0, 0, 1, 1], [], []>} : vector<8x32xbf16>, vector<32x32xbf16>, vector<8x32xf32> -> vector<8x32xf32>
    %26 = arith.negf %25 : vector<8x32xf32>
    %27 = math.exp %26 : vector<8x32xf32>
    %cst_13 = arith.constant 1.000000e+00 : f32
    %28 = vector.broadcast %cst_13 : f32 to vector<8x32xf32>
    %29 = arith.addf %28, %27 : vector<8x32xf32>
    %30 = arith.divf %28, %29 : vector<8x32xf32>
    %31 = arith.mulf %25, %30 : vector<8x32xf32>
    %cst_14 = arith.constant 1.66666663 : f32
    %32 = vector.broadcast %cst_14 : f32 to vector<8x32xf32>
    %33 = arith.mulf %31, %32 : vector<8x32xf32>
    %34 = arith.addf %11, %33 : vector<8x32xf32>
    %cst_15 = arith.constant 0.707106769 : f32
    %35 = vector.broadcast %cst_15 : f32 to vector<8x32xf32>
    %36 = arith.mulf %34, %35 : vector<8x32xf32>
    %c0_16 = arith.constant 0 : index
    %c0_17 = arith.constant 0 : index
    %37 = vector.load %arg6[%c0_16, %c0_17] : memref<32x32xbf16, #tpu.memory_space<vmem>>, vector<32x32xbf16>
    %38 = arith.truncf %36 : vector<8x32xf32> to vector<8x32xbf16>
    %cst_18 = arith.constant dense<0.000000e+00> : vector<8x32xf32>
    %39 = tpu.matmul %38, %37, %cst_18 {dimension_numbers = #tpu.dot_dimension_numbers<[1], [0], [0], [1], [0, 0, 1, 1], [], []>} : vector<8x32xbf16>, vector<32x32xbf16>, vector<8x32xf32> -> vector<8x32xf32>
    %40 = arith.negf %39 : vector<8x32xf32>
    %41 = math.exp %40 : vector<8x32xf32>
    %cst_19 = arith.constant 1.000000e+00 : f32
    %42 = vector.broadcast %cst_19 : f32 to vector<8x32xf32>
    %43 = arith.addf %42, %41 : vector<8x32xf32>
    %44 = arith.divf %42, %43 : vector<8x32xf32>
    %45 = arith.mulf %39, %44 : vector<8x32xf32>
    %cst_20 = arith.constant 1.66666663 : f32
    %46 = vector.broadcast %cst_20 : f32 to vector<8x32xf32>
    %47 = arith.mulf %45, %46 : vector<8x32xf32>
    %c0_21 = arith.constant 0 : index
    %c0_22 = arith.constant 0 : index
    %48 = vector.load %arg7[%c0_21, %c0_22] : memref<32x32xbf16, #tpu.memory_space<vmem>>, vector<32x32xbf16>
    %49 = arith.truncf %47 : vector<8x32xf32> to vector<8x32xbf16>
    %cst_23 = arith.constant dense<0.000000e+00> : vector<8x32xf32>
    %50 = tpu.matmul %49, %48, %cst_23 {dimension_numbers = #tpu.dot_dimension_numbers<[1], [0], [0], [1], [0, 0, 1, 1], [], []>} : vector<8x32xbf16>, vector<32x32xbf16>, vector<8x32xf32> -> vector<8x32xf32>
    %51 = arith.negf %50 : vector<8x32xf32>
    %52 = math.exp %51 : vector<8x32xf32>
    %cst_24 = arith.constant 1.000000e+00 : f32
    %53 = vector.broadcast %cst_24 : f32 to vector<8x32xf32>
    %54 = arith.addf %53, %52 : vector<8x32xf32>
    %55 = arith.divf %53, %54 : vector<8x32xf32>
    %56 = arith.mulf %50, %55 : vector<8x32xf32>
    %cst_25 = arith.constant 1.66666663 : f32
    %57 = vector.broadcast %cst_25 : f32 to vector<8x32xf32>
    %58 = arith.mulf %56, %57 : vector<8x32xf32>
    %59 = arith.addf %36, %58 : vector<8x32xf32>
    %cst_26 = arith.constant 0.707106769 : f32
    %60 = vector.broadcast %cst_26 : f32 to vector<8x32xf32>
    %61 = arith.mulf %59, %60 : vector<8x32xf32>
    %c0_27 = arith.constant 0 : index
    %c0_28 = arith.constant 0 : index
    %62 = vector.load %arg2[%c0_27, %c0_28] : memref<8x32xf32, #tpu.memory_space<vmem>>, vector<8x32xf32>
    %63 = arith.addf %62, %61 : vector<8x32xf32>
    %cst_29 = arith.constant 0.707106769 : f32
    %64 = vector.broadcast %cst_29 : f32 to vector<8x32xf32>
    %65 = arith.mulf %63, %64 : vector<8x32xf32>
    %c0_30 = arith.constant 0 : index
    %c0_31 = arith.constant 0 : index
    %66 = vector.load %arg8[%c0_30, %c0_31] : memref<8x32xf32, #tpu.memory_space<vmem>>, vector<8x32xf32>
    tpu.vector_store %arg8[%c0_30, %c0_31], %65 {strides = array<i32>} : memref<8x32xf32, #tpu.memory_space<vmem>>, vector<8x32xf32>,
    return
  }
  func.func @transform_0(%arg0: i32) -> (i32, i32) {
    %c0_i32 = arith.constant 0 : i32
    %c0_i32_0 = arith.constant 0 : i32
    return %arg0, %c0_i32 : i32, i32
  }
  func.func @transform_1(%arg0: i32) -> (i32, i32) {
    %c0_i32 = arith.constant 0 : i32
    %c0_i32_0 = arith.constant 0 : i32
    return %arg0, %c0_i32 : i32, i32
  }
  func.func @transform_2(%arg0: i32) -> (i32, i32) {
    %c0_i32 = arith.constant 0 : i32
    %c0_i32_0 = arith.constant 0 : i32
    %c0_i32_1 = arith.constant 0 : i32
    return %c0_i32, %c0_i32_0 : i32, i32
  }
  func.func @transform_3(%arg0: i32) -> (i32, i32) {
    %c0_i32 = arith.constant 0 : i32
    %c0_i32_0 = arith.constant 0 : i32
    %c0_i32_1 = arith.constant 0 : i32
    return %c0_i32, %c0_i32_0 : i32, i32
  }
  func.func @transform_4(%arg0: i32) -> (i32, i32) {
    %c0_i32 = arith.constant 0 : i32
    %c0_i32_0 = arith.constant 0 : i32
    %c0_i32_1 = arith.constant 0 : i32
    return %c0_i32, %c0_i32_0 : i32, i32
  }
  func.func @transform_5(%arg0: i32) -> (i32, i32) {
    %c0_i32 = arith.constant 0 : i32
    %c0_i32_0 = arith.constant 0 : i32
    %c0_i32_1 = arith.constant 0 : i32
    return %c0_i32, %c0_i32_0 : i32, i32
  }
  func.func @transform_6(%arg0: i32) -> (i32, i32) {
    %c0_i32 = arith.constant 0 : i32
    %c0_i32_0 = arith.constant 0 : i32
    %c0_i32_1 = arith.constant 0 : i32
    return %c0_i32, %c0_i32_0 : i32, i32
  }
  func.func @transform_7(%arg0: i32) -> (i32, i32) {
    %c0_i32 = arith.constant 0 : i32
    %c0_i32_0 = arith.constant 0 : i32
    return %arg0, %c0_i32 : i32, i32
  }
}

module attributes {stable_mosaic.version = 11 : i64} {
  func.func @_concat_update_kernel(%arg0: i32, %arg1: memref<16x32xf32, #tpu.memory_space<vmem>>, %arg2: memref<16x32xf32, #tpu.memory_space<vmem>>, %arg3: memref<16x32xf32, #tpu.memory_space<vmem>>, %arg4: memref<32x32xbf16, #tpu.memory_space<vmem>>, %arg5: memref<32x32xbf16, #tpu.memory_space<vmem>>, %arg6: memref<32x32xbf16, #tpu.memory_space<vmem>>, %arg7: memref<32x32xbf16, #tpu.memory_space<vmem>>, %arg8: memref<32x32xbf16, #tpu.memory_space<vmem>>, %arg9: memref<1x32xf32, #tpu.memory_space<vmem>>, %arg10: memref<1x32xf32, #tpu.memory_space<vmem>>, %arg11: memref<16x32xf32, #tpu.memory_space<vmem>>) attributes {dimension_semantics = [#tpu.dimension_semantics<parallel>], iteration_bounds = array<i64: 2>, scalar_prefetch = 0 : i64, scratch_operands = 0 : i64, tpu.core_type = #tpu.core_type<tc>, window_params = [{transform_indices = @transform_0, window_bounds = array<i64: 16, 32>}, {transform_indices = @transform_1, window_bounds = array<i64: 16, 32>}, {transform_indices = @transform_2, window_bounds = array<i64: 16, 32>}, {pipeline_mode = #tpu.pipeline_mode<synchronous>, transform_indices = @transform_3, window_bounds = array<i64: 32, 32>}, {pipeline_mode = #tpu.pipeline_mode<synchronous>, transform_indices = @transform_4, window_bounds = array<i64: 32, 32>}, {pipeline_mode = #tpu.pipeline_mode<synchronous>, transform_indices = @transform_5, window_bounds = array<i64: 32, 32>}, {pipeline_mode = #tpu.pipeline_mode<synchronous>, transform_indices = @transform_6, window_bounds = array<i64: 32, 32>}, {pipeline_mode = #tpu.pipeline_mode<synchronous>, transform_indices = @transform_7, window_bounds = array<i64: 32, 32>}, {pipeline_mode = #tpu.pipeline_mode<synchronous>, transform_indices = @transform_8, window_bounds = array<i64: 1, 32>}, {pipeline_mode = #tpu.pipeline_mode<synchronous>, transform_indices = @transform_9, window_bounds = array<i64: 1, 32>}, {transform_indices = @transform_10, window_bounds = array<i64: 16, 32>}]} {
    %c0 = arith.constant 0 : index
    %c0_0 = arith.constant 0 : index
    %0 = vector.load %arg3[%c0, %c0_0] : memref<16x32xf32, #tpu.memory_space<vmem>>, vector<16x32xf32>
    %c0_1 = arith.constant 0 : index
    %c0_2 = arith.constant 0 : index
    %1 = vector.load %arg1[%c0_1, %c0_2] : memref<16x32xf32, #tpu.memory_space<vmem>>, vector<16x32xf32>
    %c0_3 = arith.constant 0 : index
    %c0_4 = arith.constant 0 : index
    %2 = vector.load %arg4[%c0_3, %c0_4] : memref<32x32xbf16, #tpu.memory_space<vmem>>, vector<32x32xbf16>
    %3 = arith.truncf %1 : vector<16x32xf32> to vector<16x32xbf16>
    %cst = arith.constant dense<0.000000e+00> : vector<16x32xf32>
    %4 = tpu.matmul %3, %2, %cst {dimension_numbers = #tpu.dot_dimension_numbers<[1], [0], [0], [1], [0, 0, 1, 1], [], []>} : vector<16x32xbf16>, vector<32x32xbf16>, vector<16x32xf32> -> vector<16x32xf32>
    %c0_5 = arith.constant 0 : index
    %c0_6 = arith.constant 0 : index
    %5 = vector.load %arg2[%c0_5, %c0_6] : memref<16x32xf32, #tpu.memory_space<vmem>>, vector<16x32xf32>
    %c0_7 = arith.constant 0 : index
    %c0_8 = arith.constant 0 : index
    %6 = vector.load %arg5[%c0_7, %c0_8] : memref<32x32xbf16, #tpu.memory_space<vmem>>, vector<32x32xbf16>
    %7 = arith.truncf %5 : vector<16x32xf32> to vector<16x32xbf16>
    %cst_9 = arith.constant dense<0.000000e+00> : vector<16x32xf32>
    %8 = tpu.matmul %7, %6, %cst_9 {dimension_numbers = #tpu.dot_dimension_numbers<[1], [0], [0], [1], [0, 0, 1, 1], [], []>} : vector<16x32xbf16>, vector<32x32xbf16>, vector<16x32xf32> -> vector<16x32xf32>
    %9 = arith.addf %4, %8 : vector<16x32xf32>
    %c0_10 = arith.constant 0 : index
    %c0_11 = arith.constant 0 : index
    %10 = vector.load %arg6[%c0_10, %c0_11] : memref<32x32xbf16, #tpu.memory_space<vmem>>, vector<32x32xbf16>
    %11 = arith.truncf %0 : vector<16x32xf32> to vector<16x32xbf16>
    %cst_12 = arith.constant dense<0.000000e+00> : vector<16x32xf32>
    %12 = tpu.matmul %11, %10, %cst_12 {dimension_numbers = #tpu.dot_dimension_numbers<[1], [0], [0], [1], [0, 0, 1, 1], [], []>} : vector<16x32xbf16>, vector<32x32xbf16>, vector<16x32xf32> -> vector<16x32xf32>
    %13 = arith.addf %9, %12 : vector<16x32xf32>
    %14 = arith.negf %13 : vector<16x32xf32>
    %15 = math.exp %14 : vector<16x32xf32>
    %cst_13 = arith.constant 1.000000e+00 : f32
    %16 = vector.broadcast %cst_13 : f32 to vector<16x32xf32>
    %17 = arith.addf %16, %15 : vector<16x32xf32>
    %18 = arith.divf %16, %17 : vector<16x32xf32>
    %19 = arith.mulf %13, %18 : vector<16x32xf32>
    %cst_14 = arith.constant 1.66666663 : f32
    %20 = vector.broadcast %cst_14 : f32 to vector<16x32xf32>
    %21 = arith.mulf %19, %20 : vector<16x32xf32>
    %c0_15 = arith.constant 0 : index
    %c0_16 = arith.constant 0 : index
    %22 = vector.load %arg7[%c0_15, %c0_16] : memref<32x32xbf16, #tpu.memory_space<vmem>>, vector<32x32xbf16>
    %23 = arith.truncf %21 : vector<16x32xf32> to vector<16x32xbf16>
    %cst_17 = arith.constant dense<0.000000e+00> : vector<16x32xf32>
    %24 = tpu.matmul %23, %22, %cst_17 {dimension_numbers = #tpu.dot_dimension_numbers<[1], [0], [0], [1], [0, 0, 1, 1], [], []>} : vector<16x32xbf16>, vector<32x32xbf16>, vector<16x32xf32> -> vector<16x32xf32>
    %25 = arith.negf %24 : vector<16x32xf32>
    %26 = math.exp %25 : vector<16x32xf32>
    %cst_18 = arith.constant 1.000000e+00 : f32
    %27 = vector.broadcast %cst_18 : f32 to vector<16x32xf32>
    %28 = arith.addf %27, %26 : vector<16x32xf32>
    %29 = arith.divf %27, %28 : vector<16x32xf32>
    %30 = arith.mulf %24, %29 : vector<16x32xf32>
    %cst_19 = arith.constant 1.66666663 : f32
    %31 = vector.broadcast %cst_19 : f32 to vector<16x32xf32>
    %32 = arith.mulf %30, %31 : vector<16x32xf32>
    %c0_20 = arith.constant 0 : index
    %c0_21 = arith.constant 0 : index
    %33 = vector.load %arg8[%c0_20, %c0_21] : memref<32x32xbf16, #tpu.memory_space<vmem>>, vector<32x32xbf16>
    %34 = arith.truncf %32 : vector<16x32xf32> to vector<16x32xbf16>
    %cst_22 = arith.constant dense<0.000000e+00> : vector<16x32xf32>
    %35 = tpu.matmul %34, %33, %cst_22 {dimension_numbers = #tpu.dot_dimension_numbers<[1], [0], [0], [1], [0, 0, 1, 1], [], []>} : vector<16x32xbf16>, vector<32x32xbf16>, vector<16x32xf32> -> vector<16x32xf32>
    %36 = arith.negf %35 : vector<16x32xf32>
    %37 = math.exp %36 : vector<16x32xf32>
    %cst_23 = arith.constant 1.000000e+00 : f32
    %38 = vector.broadcast %cst_23 : f32 to vector<16x32xf32>
    %39 = arith.addf %38, %37 : vector<16x32xf32>
    %40 = arith.divf %38, %39 : vector<16x32xf32>
    %41 = arith.mulf %35, %40 : vector<16x32xf32>
    %cst_24 = arith.constant 1.66666663 : f32
    %42 = vector.broadcast %cst_24 : f32 to vector<16x32xf32>
    %43 = arith.mulf %41, %42 : vector<16x32xf32>
    %44 = arith.addf %21, %43 : vector<16x32xf32>
    %cst_25 = arith.constant 0.707106769 : f32
    %45 = vector.broadcast %cst_25 : f32 to vector<16x32xf32>
    %46 = arith.mulf %44, %45 : vector<16x32xf32>
    %47 = arith.addf %0, %46 : vector<16x32xf32>
    %cst_26 = arith.constant 0.707106769 : f32
    %48 = vector.broadcast %cst_26 : f32 to vector<16x32xf32>
    %49 = arith.mulf %47, %48 : vector<16x32xf32>
    %c0_27 = arith.constant 0 : index
    %c0_28 = arith.constant 0 : index
    %50 = vector.load %arg9[%c0_27, %c0_28] : memref<1x32xf32, #tpu.memory_space<vmem>>, vector<1x32xf32>
    %c0_29 = arith.constant 0 : index
    %c0_30 = arith.constant 0 : index
    %51 = vector.load %arg10[%c0_29, %c0_30] : memref<1x32xf32, #tpu.memory_space<vmem>>, vector<1x32xf32>
    %cst_31 = arith.constant dense<0.000000e+00> : vector<16xf32>
    %52 = vector.multi_reduction <add>, %49, %cst_31 [1] : vector<16x32xf32> to vector<16xf32>
    %53 = vector.shape_cast %52 : vector<16xf32> to vector<16x1xf32>
    %cst_32 = arith.constant 3.200000e+01 : f32
    %54 = vector.broadcast %cst_32 : f32 to vector<16x1xf32>
    %55 = arith.divf %53, %54 : vector<16x1xf32>
    %56 = vector.broadcast %55 : vector<16x1xf32> to vector<16x32xf32>
    %57 = arith.subf %49, %56 : vector<16x32xf32>
    %58 = arith.mulf %57, %57 : vector<16x32xf32>
    %cst_33 = arith.constant dense<0.000000e+00> : vector<16xf32>
    %59 = vector.multi_reduction <add>, %58, %cst_33 [1] : vector<16x32xf32> to vector<16xf32>
    %60 = vector.shape_cast %59 : vector<16xf32> to vector<16x1xf32>
    %cst_34 = arith.constant 3.200000e+01 : f32
    %61 = vector.broadcast %cst_34 : f32 to vector<16x1xf32>
    %62 = arith.divf %60, %61 : vector<16x1xf32>
    %cst_35 = arith.constant 9.99999974E-6 : f32
    %63 = vector.broadcast %cst_35 : f32 to vector<16x1xf32>
    %64 = arith.addf %62, %63 : vector<16x1xf32>
    %65 = math.rsqrt %64 : vector<16x1xf32>
    %66 = vector.broadcast %65 : vector<16x1xf32> to vector<16x32xf32>
    %67 = arith.mulf %57, %66 : vector<16x32xf32>
    %68 = vector.broadcast %50 : vector<1x32xf32> to vector<16x32xf32>
    %69 = arith.mulf %67, %68 : vector<16x32xf32>
    %70 = vector.broadcast %51 : vector<1x32xf32> to vector<16x32xf32>
    %71 = arith.addf %69, %70 : vector<16x32xf32>
    %c0_36 = arith.constant 0 : index
    %c0_37 = arith.constant 0 : index
    %72 = vector.load %arg11[%c0_36, %c0_37] : memref<16x32xf32, #tpu.memory_space<vmem>>, vector<16x32xf32>
    tpu.vector_store %arg11[%c0_36, %c0_37], %71 {strides = array<i32>} : memref<16x32xf32, #tpu.memory_space<vmem>>, vector<16x32xf32>,
    return
  }
  func.func @transform_0(%arg0: i32) -> (i32, i32) {
    %c0_i32 = arith.constant 0 : i32
    %c0_i32_0 = arith.constant 0 : i32
    return %arg0, %c0_i32 : i32, i32
  }
  func.func @transform_1(%arg0: i32) -> (i32, i32) {
    %c0_i32 = arith.constant 0 : i32
    %c0_i32_0 = arith.constant 0 : i32
    return %arg0, %c0_i32 : i32, i32
  }
  func.func @transform_2(%arg0: i32) -> (i32, i32) {
    %c0_i32 = arith.constant 0 : i32
    %c0_i32_0 = arith.constant 0 : i32
    return %arg0, %c0_i32 : i32, i32
  }
  func.func @transform_3(%arg0: i32) -> (i32, i32) {
    %c0_i32 = arith.constant 0 : i32
    %c0_i32_0 = arith.constant 0 : i32
    %c0_i32_1 = arith.constant 0 : i32
    return %c0_i32, %c0_i32_0 : i32, i32
  }
  func.func @transform_4(%arg0: i32) -> (i32, i32) {
    %c0_i32 = arith.constant 0 : i32
    %c0_i32_0 = arith.constant 0 : i32
    %c0_i32_1 = arith.constant 0 : i32
    return %c0_i32, %c0_i32_0 : i32, i32
  }
  func.func @transform_5(%arg0: i32) -> (i32, i32) {
    %c0_i32 = arith.constant 0 : i32
    %c0_i32_0 = arith.constant 0 : i32
    %c0_i32_1 = arith.constant 0 : i32
    return %c0_i32, %c0_i32_0 : i32, i32
  }
  func.func @transform_6(%arg0: i32) -> (i32, i32) {
    %c0_i32 = arith.constant 0 : i32
    %c0_i32_0 = arith.constant 0 : i32
    %c0_i32_1 = arith.constant 0 : i32
    return %c0_i32, %c0_i32_0 : i32, i32
  }
  func.func @transform_7(%arg0: i32) -> (i32, i32) {
    %c0_i32 = arith.constant 0 : i32
    %c0_i32_0 = arith.constant 0 : i32
    %c0_i32_1 = arith.constant 0 : i32
    return %c0_i32, %c0_i32_0 : i32, i32
  }
  func.func @transform_8(%arg0: i32) -> (i32, i32) {
    %c0_i32 = arith.constant 0 : i32
    %c0_i32_0 = arith.constant 0 : i32
    %c0_i32_1 = arith.constant 0 : i32
    return %c0_i32, %c0_i32_0 : i32, i32
  }
  func.func @transform_9(%arg0: i32) -> (i32, i32) {
    %c0_i32 = arith.constant 0 : i32
    %c0_i32_0 = arith.constant 0 : i32
    %c0_i32_1 = arith.constant 0 : i32
    return %c0_i32, %c0_i32_0 : i32, i32
  }
  func.func @transform_10(%arg0: i32) -> (i32, i32) {
    %c0_i32 = arith.constant 0 : i32
    %c0_i32_0 = arith.constant 0 : i32
    return %arg0, %c0_i32 : i32, i32
  }
}

module attributes {stable_mosaic.version = 11 : i64} {
  func.func @_out_mlp_kernel(%arg0: i32, %arg1: memref<8x32xf32, #tpu.memory_space<vmem>>, %arg2: memref<32x32xbf16, #tpu.memory_space<vmem>>, %arg3: memref<32x32xbf16, #tpu.memory_space<vmem>>, %arg4: memref<32x32xbf16, #tpu.memory_space<vmem>>, %arg5: memref<32x32xbf16, #tpu.memory_space<vmem>>, %arg6: memref<32x32xbf16, #tpu.memory_space<vmem>>, %arg7: memref<8x32xf32, #tpu.memory_space<vmem>>) attributes {dimension_semantics = [#tpu.dimension_semantics<parallel>], iteration_bounds = array<i64: 1>, scalar_prefetch = 0 : i64, scratch_operands = 0 : i64, tpu.core_type = #tpu.core_type<tc>, window_params = [{transform_indices = @transform_0, window_bounds = array<i64: 8, 32>}, {pipeline_mode = #tpu.pipeline_mode<synchronous>, transform_indices = @transform_1, window_bounds = array<i64: 32, 32>}, {pipeline_mode = #tpu.pipeline_mode<synchronous>, transform_indices = @transform_2, window_bounds = array<i64: 32, 32>}, {pipeline_mode = #tpu.pipeline_mode<synchronous>, transform_indices = @transform_3, window_bounds = array<i64: 32, 32>}, {pipeline_mode = #tpu.pipeline_mode<synchronous>, transform_indices = @transform_4, window_bounds = array<i64: 32, 32>}, {pipeline_mode = #tpu.pipeline_mode<synchronous>, transform_indices = @transform_5, window_bounds = array<i64: 32, 32>}, {transform_indices = @transform_6, window_bounds = array<i64: 8, 32>}]} {
    %c0 = arith.constant 0 : index
    %c0_0 = arith.constant 0 : index
    %0 = vector.load %arg1[%c0, %c0_0] : memref<8x32xf32, #tpu.memory_space<vmem>>, vector<8x32xf32>
    %c0_1 = arith.constant 0 : index
    %c0_2 = arith.constant 0 : index
    %1 = vector.load %arg2[%c0_1, %c0_2] : memref<32x32xbf16, #tpu.memory_space<vmem>>, vector<32x32xbf16>
    %2 = arith.truncf %0 : vector<8x32xf32> to vector<8x32xbf16>
    %cst = arith.constant dense<0.000000e+00> : vector<8x32xf32>
    %3 = tpu.matmul %2, %1, %cst {dimension_numbers = #tpu.dot_dimension_numbers<[1], [0], [0], [1], [0, 0, 1, 1], [], []>} : vector<8x32xbf16>, vector<32x32xbf16>, vector<8x32xf32> -> vector<8x32xf32>
    %4 = arith.negf %3 : vector<8x32xf32>
    %5 = math.exp %4 : vector<8x32xf32>
    %cst_3 = arith.constant 1.000000e+00 : f32
    %6 = vector.broadcast %cst_3 : f32 to vector<8x32xf32>
    %7 = arith.addf %6, %5 : vector<8x32xf32>
    %8 = arith.divf %6, %7 : vector<8x32xf32>
    %9 = arith.mulf %3, %8 : vector<8x32xf32>
    %cst_4 = arith.constant 1.66666663 : f32
    %10 = vector.broadcast %cst_4 : f32 to vector<8x32xf32>
    %11 = arith.mulf %9, %10 : vector<8x32xf32>
    %c0_5 = arith.constant 0 : index
    %c0_6 = arith.constant 0 : index
    %12 = vector.load %arg3[%c0_5, %c0_6] : memref<32x32xbf16, #tpu.memory_space<vmem>>, vector<32x32xbf16>
    %13 = arith.truncf %11 : vector<8x32xf32> to vector<8x32xbf16>
    %cst_7 = arith.constant dense<0.000000e+00> : vector<8x32xf32>
    %14 = tpu.matmul %13, %12, %cst_7 {dimension_numbers = #tpu.dot_dimension_numbers<[1], [0], [0], [1], [0, 0, 1, 1], [], []>} : vector<8x32xbf16>, vector<32x32xbf16>, vector<8x32xf32> -> vector<8x32xf32>
    %15 = arith.negf %14 : vector<8x32xf32>
    %16 = math.exp %15 : vector<8x32xf32>
    %cst_8 = arith.constant 1.000000e+00 : f32
    %17 = vector.broadcast %cst_8 : f32 to vector<8x32xf32>
    %18 = arith.addf %17, %16 : vector<8x32xf32>
    %19 = arith.divf %17, %18 : vector<8x32xf32>
    %20 = arith.mulf %14, %19 : vector<8x32xf32>
    %cst_9 = arith.constant 1.66666663 : f32
    %21 = vector.broadcast %cst_9 : f32 to vector<8x32xf32>
    %22 = arith.mulf %20, %21 : vector<8x32xf32>
    %c0_10 = arith.constant 0 : index
    %c0_11 = arith.constant 0 : index
    %23 = vector.load %arg4[%c0_10, %c0_11] : memref<32x32xbf16, #tpu.memory_space<vmem>>, vector<32x32xbf16>
    %24 = arith.truncf %22 : vector<8x32xf32> to vector<8x32xbf16>
    %cst_12 = arith.constant dense<0.000000e+00> : vector<8x32xf32>
    %25 = tpu.matmul %24, %23, %cst_12 {dimension_numbers = #tpu.dot_dimension_numbers<[1], [0], [0], [1], [0, 0, 1, 1], [], []>} : vector<8x32xbf16>, vector<32x32xbf16>, vector<8x32xf32> -> vector<8x32xf32>
    %26 = arith.negf %25 : vector<8x32xf32>
    %27 = math.exp %26 : vector<8x32xf32>
    %cst_13 = arith.constant 1.000000e+00 : f32
    %28 = vector.broadcast %cst_13 : f32 to vector<8x32xf32>
    %29 = arith.addf %28, %27 : vector<8x32xf32>
    %30 = arith.divf %28, %29 : vector<8x32xf32>
    %31 = arith.mulf %25, %30 : vector<8x32xf32>
    %cst_14 = arith.constant 1.66666663 : f32
    %32 = vector.broadcast %cst_14 : f32 to vector<8x32xf32>
    %33 = arith.mulf %31, %32 : vector<8x32xf32>
    %34 = arith.addf %11, %33 : vector<8x32xf32>
    %cst_15 = arith.constant 0.707106769 : f32
    %35 = vector.broadcast %cst_15 : f32 to vector<8x32xf32>
    %36 = arith.mulf %34, %35 : vector<8x32xf32>
    %c0_16 = arith.constant 0 : index
    %c0_17 = arith.constant 0 : index
    %37 = vector.load %arg5[%c0_16, %c0_17] : memref<32x32xbf16, #tpu.memory_space<vmem>>, vector<32x32xbf16>
    %38 = arith.truncf %36 : vector<8x32xf32> to vector<8x32xbf16>
    %cst_18 = arith.constant dense<0.000000e+00> : vector<8x32xf32>
    %39 = tpu.matmul %38, %37, %cst_18 {dimension_numbers = #tpu.dot_dimension_numbers<[1], [0], [0], [1], [0, 0, 1, 1], [], []>} : vector<8x32xbf16>, vector<32x32xbf16>, vector<8x32xf32> -> vector<8x32xf32>
    %40 = arith.negf %39 : vector<8x32xf32>
    %41 = math.exp %40 : vector<8x32xf32>
    %cst_19 = arith.constant 1.000000e+00 : f32
    %42 = vector.broadcast %cst_19 : f32 to vector<8x32xf32>
    %43 = arith.addf %42, %41 : vector<8x32xf32>
    %44 = arith.divf %42, %43 : vector<8x32xf32>
    %45 = arith.mulf %39, %44 : vector<8x32xf32>
    %cst_20 = arith.constant 1.66666663 : f32
    %46 = vector.broadcast %cst_20 : f32 to vector<8x32xf32>
    %47 = arith.mulf %45, %46 : vector<8x32xf32>
    %c0_21 = arith.constant 0 : index
    %c0_22 = arith.constant 0 : index
    %48 = vector.load %arg6[%c0_21, %c0_22] : memref<32x32xbf16, #tpu.memory_space<vmem>>, vector<32x32xbf16>
    %49 = arith.truncf %47 : vector<8x32xf32> to vector<8x32xbf16>
    %cst_23 = arith.constant dense<0.000000e+00> : vector<8x32xf32>
    %50 = tpu.matmul %49, %48, %cst_23 {dimension_numbers = #tpu.dot_dimension_numbers<[1], [0], [0], [1], [0, 0, 1, 1], [], []>} : vector<8x32xbf16>, vector<32x32xbf16>, vector<8x32xf32> -> vector<8x32xf32>
    %51 = arith.negf %50 : vector<8x32xf32>
    %52 = math.exp %51 : vector<8x32xf32>
    %cst_24 = arith.constant 1.000000e+00 : f32
    %53 = vector.broadcast %cst_24 : f32 to vector<8x32xf32>
    %54 = arith.addf %53, %52 : vector<8x32xf32>
    %55 = arith.divf %53, %54 : vector<8x32xf32>
    %56 = arith.mulf %50, %55 : vector<8x32xf32>
    %cst_25 = arith.constant 1.66666663 : f32
    %57 = vector.broadcast %cst_25 : f32 to vector<8x32xf32>
    %58 = arith.mulf %56, %57 : vector<8x32xf32>
    %59 = arith.addf %36, %58 : vector<8x32xf32>
    %cst_26 = arith.constant 0.707106769 : f32
    %60 = vector.broadcast %cst_26 : f32 to vector<8x32xf32>
    %61 = arith.mulf %59, %60 : vector<8x32xf32>
    %c0_27 = arith.constant 0 : index
    %c0_28 = arith.constant 0 : index
    %62 = vector.load %arg7[%c0_27, %c0_28] : memref<8x32xf32, #tpu.memory_space<vmem>>, vector<8x32xf32>
    tpu.vector_store %arg7[%c0_27, %c0_28], %61 {strides = array<i32>} : memref<8x32xf32, #tpu.memory_space<vmem>>, vector<8x32xf32>,
    return
  }
  func.func @transform_0(%arg0: i32) -> (i32, i32) {
    %c0_i32 = arith.constant 0 : i32
    %c0_i32_0 = arith.constant 0 : i32
    return %arg0, %c0_i32 : i32, i32
  }
  func.func @transform_1(%arg0: i32) -> (i32, i32) {
    %c0_i32 = arith.constant 0 : i32
    %c0_i32_0 = arith.constant 0 : i32
    %c0_i32_1 = arith.constant 0 : i32
    return %c0_i32, %c0_i32_0 : i32, i32
  }
  func.func @transform_2(%arg0: i32) -> (i32, i32) {
    %c0_i32 = arith.constant 0 : i32
    %c0_i32_0 = arith.constant 0 : i32
    %c0_i32_1 = arith.constant 0 : i32
    return %c0_i32, %c0_i32_0 : i32, i32
  }
  func.func @transform_3(%arg0: i32) -> (i32, i32) {
    %c0_i32 = arith.constant 0 : i32
    %c0_i32_0 = arith.constant 0 : i32
    %c0_i32_1 = arith.constant 0 : i32
    return %c0_i32, %c0_i32_0 : i32, i32
  }
  func.func @transform_4(%arg0: i32) -> (i32, i32) {
    %c0_i32 = arith.constant 0 : i32
    %c0_i32_0 = arith.constant 0 : i32
    %c0_i32_1 = arith.constant 0 : i32
    return %c0_i32, %c0_i32_0 : i32, i32
  }
  func.func @transform_5(%arg0: i32) -> (i32, i32) {
    %c0_i32 = arith.constant 0 : i32
    %c0_i32_0 = arith.constant 0 : i32
    %c0_i32_1 = arith.constant 0 : i32
    return %c0_i32, %c0_i32_0 : i32, i32
  }
  func.func @transform_6(%arg0: i32) -> (i32, i32) {
    %c0_i32 = arith.constant 0 : i32
    %c0_i32_0 = arith.constant 0 : i32
    return %arg0, %c0_i32 : i32, i32
  }
}

module attributes {stable_mosaic.version = 11 : i64} {
  func.func @_add_ln_kernel(%arg0: i32, %arg1: memref<8x32xf32, #tpu.memory_space<vmem>>, %arg2: memref<8x32xf32, #tpu.memory_space<vmem>>, %arg3: memref<1x32xf32, #tpu.memory_space<vmem>>, %arg4: memref<1x32xf32, #tpu.memory_space<vmem>>, %arg5: memref<8x32xf32, #tpu.memory_space<vmem>>) attributes {dimension_semantics = [#tpu.dimension_semantics<parallel>], iteration_bounds = array<i64: 1>, scalar_prefetch = 0 : i64, scratch_operands = 0 : i64, tpu.core_type = #tpu.core_type<tc>, window_params = [{transform_indices = @transform_0, window_bounds = array<i64: 8, 32>}, {transform_indices = @transform_1, window_bounds = array<i64: 8, 32>}, {pipeline_mode = #tpu.pipeline_mode<synchronous>, transform_indices = @transform_2, window_bounds = array<i64: 1, 32>}, {pipeline_mode = #tpu.pipeline_mode<synchronous>, transform_indices = @transform_3, window_bounds = array<i64: 1, 32>}, {transform_indices = @transform_4, window_bounds = array<i64: 8, 32>}]} {
    %c0 = arith.constant 0 : index
    %c0_0 = arith.constant 0 : index
    %0 = vector.load %arg1[%c0, %c0_0] : memref<8x32xf32, #tpu.memory_space<vmem>>, vector<8x32xf32>
    %c0_1 = arith.constant 0 : index
    %c0_2 = arith.constant 0 : index
    %1 = vector.load %arg2[%c0_1, %c0_2] : memref<8x32xf32, #tpu.memory_space<vmem>>, vector<8x32xf32>
    %2 = arith.addf %0, %1 : vector<8x32xf32>
    %c0_3 = arith.constant 0 : index
    %c0_4 = arith.constant 0 : index
    %3 = vector.load %arg3[%c0_3, %c0_4] : memref<1x32xf32, #tpu.memory_space<vmem>>, vector<1x32xf32>
    %c0_5 = arith.constant 0 : index
    %c0_6 = arith.constant 0 : index
    %4 = vector.load %arg4[%c0_5, %c0_6] : memref<1x32xf32, #tpu.memory_space<vmem>>, vector<1x32xf32>
    %cst = arith.constant dense<0.000000e+00> : vector<8xf32>
    %5 = vector.multi_reduction <add>, %2, %cst [1] : vector<8x32xf32> to vector<8xf32>
    %6 = vector.shape_cast %5 : vector<8xf32> to vector<8x1xf32>
    %cst_7 = arith.constant 3.200000e+01 : f32
    %7 = vector.broadcast %cst_7 : f32 to vector<8x1xf32>
    %8 = arith.divf %6, %7 : vector<8x1xf32>
    %9 = vector.broadcast %8 : vector<8x1xf32> to vector<8x32xf32>
    %10 = arith.subf %2, %9 : vector<8x32xf32>
    %11 = arith.mulf %10, %10 : vector<8x32xf32>
    %cst_8 = arith.constant dense<0.000000e+00> : vector<8xf32>
    %12 = vector.multi_reduction <add>, %11, %cst_8 [1] : vector<8x32xf32> to vector<8xf32>
    %13 = vector.shape_cast %12 : vector<8xf32> to vector<8x1xf32>
    %cst_9 = arith.constant 3.200000e+01 : f32
    %14 = vector.broadcast %cst_9 : f32 to vector<8x1xf32>
    %15 = arith.divf %13, %14 : vector<8x1xf32>
    %cst_10 = arith.constant 9.99999974E-6 : f32
    %16 = vector.broadcast %cst_10 : f32 to vector<8x1xf32>
    %17 = arith.addf %15, %16 : vector<8x1xf32>
    %18 = math.rsqrt %17 : vector<8x1xf32>
    %19 = vector.broadcast %18 : vector<8x1xf32> to vector<8x32xf32>
    %20 = arith.mulf %10, %19 : vector<8x32xf32>
    %21 = vector.broadcast %3 : vector<1x32xf32> to vector<8x32xf32>
    %22 = arith.mulf %20, %21 : vector<8x32xf32>
    %23 = vector.broadcast %4 : vector<1x32xf32> to vector<8x32xf32>
    %24 = arith.addf %22, %23 : vector<8x32xf32>
    %c0_11 = arith.constant 0 : index
    %c0_12 = arith.constant 0 : index
    %25 = vector.load %arg5[%c0_11, %c0_12] : memref<8x32xf32, #tpu.memory_space<vmem>>, vector<8x32xf32>
    tpu.vector_store %arg5[%c0_11, %c0_12], %24 {strides = array<i32>} : memref<8x32xf32, #tpu.memory_space<vmem>>, vector<8x32xf32>,
    return
  }
  func.func @transform_0(%arg0: i32) -> (i32, i32) {
    %c0_i32 = arith.constant 0 : i32
    %c0_i32_0 = arith.constant 0 : i32
    return %arg0, %c0_i32 : i32, i32
  }
  func.func @transform_1(%arg0: i32) -> (i32, i32) {
    %c0_i32 = arith.constant 0 : i32
    %c0_i32_0 = arith.constant 0 : i32
    return %arg0, %c0_i32 : i32, i32
  }
  func.func @transform_2(%arg0: i32) -> (i32, i32) {
    %c0_i32 = arith.constant 0 : i32
    %c0_i32_0 = arith.constant 0 : i32
    %c0_i32_1 = arith.constant 0 : i32
    return %c0_i32, %c0_i32_0 : i32, i32
  }
  func.func @transform_3(%arg0: i32) -> (i32, i32) {
    %c0_i32 = arith.constant 0 : i32
    %c0_i32_0 = arith.constant 0 : i32
    %c0_i32_1 = arith.constant 0 : i32
    return %c0_i32, %c0_i32_0 : i32, i32
  }
  func.func @transform_4(%arg0: i32) -> (i32, i32) {
    %c0_i32 = arith.constant 0 : i32
    %c0_i32_0 = arith.constant 0 : i32
    return %arg0, %c0_i32 : i32, i32
  }
}

module attributes {stable_mosaic.version = 11 : i64} {
  func.func @_add_ln_kernel(%arg0: i32, %arg1: memref<8x32xf32, #tpu.memory_space<vmem>>, %arg2: memref<8x32xf32, #tpu.memory_space<vmem>>, %arg3: memref<1x32xf32, #tpu.memory_space<vmem>>, %arg4: memref<1x32xf32, #tpu.memory_space<vmem>>, %arg5: memref<8x32xf32, #tpu.memory_space<vmem>>) attributes {dimension_semantics = [#tpu.dimension_semantics<parallel>], iteration_bounds = array<i64: 1>, scalar_prefetch = 0 : i64, scratch_operands = 0 : i64, tpu.core_type = #tpu.core_type<tc>, window_params = [{transform_indices = @transform_0, window_bounds = array<i64: 8, 32>}, {transform_indices = @transform_1, window_bounds = array<i64: 8, 32>}, {pipeline_mode = #tpu.pipeline_mode<synchronous>, transform_indices = @transform_2, window_bounds = array<i64: 1, 32>}, {pipeline_mode = #tpu.pipeline_mode<synchronous>, transform_indices = @transform_3, window_bounds = array<i64: 1, 32>}, {transform_indices = @transform_4, window_bounds = array<i64: 8, 32>}]} {
    %c0 = arith.constant 0 : index
    %c0_0 = arith.constant 0 : index
    %0 = vector.load %arg1[%c0, %c0_0] : memref<8x32xf32, #tpu.memory_space<vmem>>, vector<8x32xf32>
    %c0_1 = arith.constant 0 : index
    %c0_2 = arith.constant 0 : index
    %1 = vector.load %arg2[%c0_1, %c0_2] : memref<8x32xf32, #tpu.memory_space<vmem>>, vector<8x32xf32>
    %2 = arith.addf %0, %1 : vector<8x32xf32>
    %c0_3 = arith.constant 0 : index
    %c0_4 = arith.constant 0 : index
    %3 = vector.load %arg3[%c0_3, %c0_4] : memref<1x32xf32, #tpu.memory_space<vmem>>, vector<1x32xf32>
    %c0_5 = arith.constant 0 : index
    %c0_6 = arith.constant 0 : index
    %4 = vector.load %arg4[%c0_5, %c0_6] : memref<1x32xf32, #tpu.memory_space<vmem>>, vector<1x32xf32>
    %cst = arith.constant dense<0.000000e+00> : vector<8xf32>
    %5 = vector.multi_reduction <add>, %2, %cst [1] : vector<8x32xf32> to vector<8xf32>
    %6 = vector.shape_cast %5 : vector<8xf32> to vector<8x1xf32>
    %cst_7 = arith.constant 3.200000e+01 : f32
    %7 = vector.broadcast %cst_7 : f32 to vector<8x1xf32>
    %8 = arith.divf %6, %7 : vector<8x1xf32>
    %9 = vector.broadcast %8 : vector<8x1xf32> to vector<8x32xf32>
    %10 = arith.subf %2, %9 : vector<8x32xf32>
    %11 = arith.mulf %10, %10 : vector<8x32xf32>
    %cst_8 = arith.constant dense<0.000000e+00> : vector<8xf32>
    %12 = vector.multi_reduction <add>, %11, %cst_8 [1] : vector<8x32xf32> to vector<8xf32>
    %13 = vector.shape_cast %12 : vector<8xf32> to vector<8x1xf32>
    %cst_9 = arith.constant 3.200000e+01 : f32
    %14 = vector.broadcast %cst_9 : f32 to vector<8x1xf32>
    %15 = arith.divf %13, %14 : vector<8x1xf32>
    %cst_10 = arith.constant 9.99999974E-6 : f32
    %16 = vector.broadcast %cst_10 : f32 to vector<8x1xf32>
    %17 = arith.addf %15, %16 : vector<8x1xf32>
    %18 = math.rsqrt %17 : vector<8x1xf32>
    %19 = vector.broadcast %18 : vector<8x1xf32> to vector<8x32xf32>
    %20 = arith.mulf %10, %19 : vector<8x32xf32>
    %21 = vector.broadcast %3 : vector<1x32xf32> to vector<8x32xf32>
    %22 = arith.mulf %20, %21 : vector<8x32xf32>
    %23 = vector.broadcast %4 : vector<1x32xf32> to vector<8x32xf32>
    %24 = arith.addf %22, %23 : vector<8x32xf32>
    %c0_11 = arith.constant 0 : index
    %c0_12 = arith.constant 0 : index
    %25 = vector.load %arg5[%c0_11, %c0_12] : memref<8x32xf32, #tpu.memory_space<vmem>>, vector<8x32xf32>
    tpu.vector_store %arg5[%c0_11, %c0_12], %24 {strides = array<i32>} : memref<8x32xf32, #tpu.memory_space<vmem>>, vector<8x32xf32>,
    return
  }
  func.func @transform_0(%arg0: i32) -> (i32, i32) {
    %c0_i32 = arith.constant 0 : i32
    %c0_i32_0 = arith.constant 0 : i32
    return %arg0, %c0_i32 : i32, i32
  }
  func.func @transform_1(%arg0: i32) -> (i32, i32) {
    %c0_i32 = arith.constant 0 : i32
    %c0_i32_0 = arith.constant 0 : i32
    return %arg0, %c0_i32 : i32, i32
  }
  func.func @transform_2(%arg0: i32) -> (i32, i32) {
    %c0_i32 = arith.constant 0 : i32
    %c0_i32_0 = arith.constant 0 : i32
    %c0_i32_1 = arith.constant 0 : i32
    return %c0_i32, %c0_i32_0 : i32, i32
  }
  func.func @transform_3(%arg0: i32) -> (i32, i32) {
    %c0_i32 = arith.constant 0 : i32
    %c0_i32_0 = arith.constant 0 : i32
    %c0_i32_1 = arith.constant 0 : i32
    return %c0_i32, %c0_i32_0 : i32, i32
  }
  func.func @transform_4(%arg0: i32) -> (i32, i32) {
    %c0_i32 = arith.constant 0 : i32
    %c0_i32_0 = arith.constant 0 : i32
    return %arg0, %c0_i32 : i32, i32
  }
}

</mosaic_0001>

<llo_original>
// kernel: gemnet_forward.31
$region0: #{gemnet_forward.31}
  #allocation0 [shape = 'u32[]', space=smem, size = 0x4, offset = 0x4, fixed_abs, tag = 'smem constant byte address 0x4 - core index']
  #allocation1 [shape = 'u32[144,128]{1,0:T(1,128)}', space=vmem, size = 0x12000, scoped, tag = 'internal scratch']
  %s0 = inlined_call_operand.vmem [shape: f32[32,32], index: 0, kind: input, shape index: {}]
  %s1 = inlined_call_operand.vmem [shape: f32[1,32], index: 1, kind: input, shape index: {}]
  %s2 = inlined_call_operand.vmem [shape: f32[1,32], index: 2, kind: input, shape index: {}]
  %s3 = inlined_call_operand.vmem [shape: f32[32,32], index: 3, kind: output, shape index: {}]
  %s4 = sld [smem:[#allocation0]]
  $region45: #{gemnet_forward.31} parent=0
    _
  %s6 = ssub.s32 1, %s4
  %s7 = scalar_select 0, %s6, %s4
  loop: start=0, step=1, limit=4
  $region2: #{gemnet_forward.31} parent=0 // loop_pre_header
    _
  $region3: #{gemnet_forward.31} parent=0 // loop_header
    %s9 = sphi 0, %s13
    %p10 = scmp.ge.s32.totalorder %s9, 4
    %s19 = sphi 0, %s21
    %s22 = sphi 0, %s19
    %s23 = sphi 0, %s22
    %s39 = sphi 0, %s23
    %s43 = sphi 0, %s43
    %s45 = sphi 0, %s43
    %s46 = sphi 0, %s45
    %s60 = sphi 0, %s46
    %s64 = sphi 0, %s64
    %s66 = sphi 0, %s64
    %s67 = sphi 0, %s66
    %s81 = sphi 0, %s67
    %s87 = sphi 0, %s89
    %s90 = sphi 0, %s87
    %s91 = sphi 0, %s90
    %s107 = sphi 0, %s91
  $region4: #{gemnet_forward.31} parent=0 // loop_header_branch
    %12 = sbr.rel (%p10) target = $region8
  $region5: #{gemnet_forward.31} parent=0 // loop_body
    %s14 = ssub.s32 %s9, 1
    %s15 = ssub.s32 %s9, 2
    %s16 = sadd.s32 %s9, 1
    %s17 = ssub.s32 %s9, %s16
    %p18 = scmp.eq.s32.totalorder %s17, 0
    %s20 = sadd.s32 %s19, 1
    %s21 = scalar_select %p18, %s19, %s20
    %p24 = pneg %p18
    %p25 = scmp.eq.s32.totalorder %s9, 1
    %p26 = por %p24, %p25
    %p27 = scmp.ne.s32.totalorder %s19, %s22
    %p28 = scmp.eq.s32.totalorder %s9, 0
    %p29 = por %p27, %p28
    %p30 = scmp.ne.s32.totalorder %s19, %s22
    %p31 = scmp.eq.s32.totalorder %s14, 1
    %p32 = por %p30, %p31
    %p33 = scmp.ne.s32.totalorder %s22, %s23
    %p34 = scmp.eq.s32.totalorder %s14, 0
    %p35 = por %p33, %p34
    %p36 = scmp.ne.s32.totalorder %s22, %s23
    %p37 = scmp.eq.s32.totalorder %s15, 1
    %p38 = por %p36, %p37
    %p40 = scmp.ne.s32.totalorder %s23, %s39
    %p41 = scmp.eq.s32.totalorder %s15, 0
    %p42 = por %p40, %p41
    %s44 = sadd.s32 %s43, 1
    %p47 = scmp.eq.s32.totalorder %s9, 1
    %p48 = scmp.ne.s32.totalorder %s43, %s45
    %p49 = scmp.eq.s32.totalorder %s9, 0
    %p50 = por %p48, %p49
    %p51 = scmp.ne.s32.totalorder %s43, %s45
    %p52 = scmp.eq.s32.totalorder %s14, 1
    %p53 = por %p51, %p52
    %p54 = scmp.ne.s32.totalorder %s45, %s46
    %p55 = scmp.eq.s32.totalorder %s14, 0
    %p56 = por %p54, %p55
    %p57 = scmp.ne.s32.totalorder %s45, %s46
    %p58 = scmp.eq.s32.totalorder %s15, 1
    %p59 = por %p57, %p58
    %p61 = scmp.ne.s32.totalorder %s46, %s60
    %p62 = scmp.eq.s32.totalorder %s15, 0
    %p63 = por %p61, %p62
    %s65 = sadd.s32 %s64, 1
    %p68 = scmp.eq.s32.totalorder %s9, 1
    %p69 = scmp.ne.s32.totalorder %s64, %s66
    %p70 = scmp.eq.s32.totalorder %s9, 0
    %p71 = por %p69, %p70
    %p72 = scmp.ne.s32.totalorder %s64, %s66
    %p73 = scmp.eq.s32.totalorder %s14, 1
    %p74 = por %p72, %p73
    %p75 = scmp.ne.s32.totalorder %s66, %s67
    %p76 = scmp.eq.s32.totalorder %s14, 0
    %p77 = por %p75, %p76
    %p78 = scmp.ne.s32.totalorder %s66, %s67
    %p79 = scmp.eq.s32.totalorder %s15, 1
    %p80 = por %p78, %p79
    %p82 = scmp.ne.s32.totalorder %s67, %s81
    %p83 = scmp.eq.s32.totalorder %s15, 0
    %p84 = por %p82, %p83
    %s85 = ssub.s32 %s9, %s16
    %p86 = scmp.eq.s32.totalorder %s85, 0
    %s88 = sadd.s32 %s87, 1
    %s89 = scalar_select %p86, %s87, %s88
    %p92 = pneg %p86
    %p93 = scmp.eq.s32.totalorder %s9, 1
    %p94 = por %p92, %p93
    %p95 = scmp.ne.s32.totalorder %s87, %s90
    %p96 = scmp.eq.s32.totalorder %s9, 0
    %p97 = por %p95, %p96
    %p98 = scmp.ne.s32.totalorder %s87, %s90
    %p99 = scmp.eq.s32.totalorder %s14, 1
    %p100 = por %p98, %p99
    %p101 = scmp.ne.s32.totalorder %s90, %s91
    %p102 = scmp.eq.s32.totalorder %s14, 0
    %p103 = por %p101, %p102
    %p104 = scmp.ne.s32.totalorder %s90, %s91
    %p105 = scmp.eq.s32.totalorder %s15, 1
    %p106 = por %p104, %p105
    %p108 = scmp.ne.s32.totalorder %s91, %s107
    %p109 = scmp.eq.s32.totalorder %s15, 0
    %p110 = por %p108, %p109
    %p111 = scmp.le.s32.totalorder 1, %s9
    %p112 = scmp.lt.s32.totalorder %s9, 3
    %p113 = pnand %p111, %p112
    %p114 = pneg %p113
    // Predicated region
    $region9: #{gemnet_forward.31} parent=5 // pred_check
      _
    $region10: #{gemnet_forward.31} parent=5 // pred_check_branch
      %116 = sbr.rel (%p113) target = $region12
    $region11: #{gemnet_forward.31} parent=5 // pred_region
      %s117 = ssub.s32 %s9, 1
      // Predicated region
      $region13: #{gemnet_forward.31} parent=11 // pred_check
        %p118 = pneg %p56
      $region14: #{gemnet_forward.31} parent=11 // pred_check_branch
        %120 = sbr.rel (%p118) target = $region16
      $region15: #{gemnet_forward.31} parent=11 // pred_region
        _
      $region16: #{gemnet_forward.31} parent=11 // pred_fallthru
        _
      // Predicated region
      $region17: #{gemnet_forward.31} parent=11 // pred_check
        %p121 = pneg %p77
      $region18: #{gemnet_forward.31} parent=11 // pred_check_branch
        %123 = sbr.rel (%p121) target = $region20
      $region19: #{gemnet_forward.31} parent=11 // pred_region
        _
      $region20: #{gemnet_forward.31} parent=11 // pred_fallthru
        _
    $region12: #{gemnet_forward.31} parent=5 // pred_fallthru
      _
    %p124 = scmp.lt.s32.totalorder %s9, 2
    // Predicated region
    $region21: #{gemnet_forward.31} parent=5 // pred_check
      %p125 = pneg %p124
    $region22: #{gemnet_forward.31} parent=5 // pred_check_branch
      %127 = sbr.rel (%p125) target = $region24
    $region23: #{gemnet_forward.31} parent=5 // pred_region
      // Predicated region
      $region25: #{gemnet_forward.31} parent=23 // pred_check
        %p128 = pneg %p29
      $region26: #{gemnet_forward.31} parent=23 // pred_check_branch
        %130 = sbr.rel (%p128) target = $region28
      $region27: #{gemnet_forward.31} parent=23 // pred_region
        %s131 = smul.u32 2, %s9
        %p132 = scmp.lt.s32.totalorder %s131, 3
        %s133 = scalar_select %p132, %s131, 3
        %s134 = smul.addr %s133, 8
        %s135 = scalar_lea.vmem %s0, %s134
        %s136 = smul.u32 2, %s9
      $region28: #{gemnet_forward.31} parent=23 // pred_fallthru
        _
    $region24: #{gemnet_forward.31} parent=5 // pred_fallthru
      _
    %p137 = scmp.le.s32.totalorder 1, %s9
    %p138 = scmp.lt.s32.totalorder %s9, 3
    %p139 = pnand %p137, %p138
    %p140 = pneg %p139
    // Predicated region
    $region29: #{gemnet_forward.31} parent=5 // pred_check
      _
    $region30: #{gemnet_forward.31} parent=5 // pred_check_branch
      %142 = sbr.rel (%p139) target = $region32
    $region31: #{gemnet_forward.31} parent=5 // pred_region
      %s143 = ssub.s32 %s9, 1
      %s144 = smul.u32 2, %s14
      %p145 = scmp.lt.s32.totalorder %s144, 3
      %s146 = scalar_select %p145, %s144, 3
      %s147 = smul.addr %s146, 8
      %s148 = scalar_lea.vmem %s0, %s147
      %p149 = pneg %p35
      %p150 = pneg %p32
      %p151 = pneg %p56
      %p152 = pneg %p53
      %p153 = pneg %p77
      %p154 = pneg %p74
      %p155 = pneg %p103
      %p156 = pneg %p100
      %s157 = smul.u32 2, %s14
      %p158 = scmp.lt.s32.totalorder %s157, 3
      %s159 = scalar_select %p158, %s157, 3
      %s160 = smul.addr %s159, 8
      %s161 = scalar_lea.vmem %s3, %s160
      %s162 = smul.u32 2, %s14
      %p163 = scmp.lt.s32.totalorder %s162, 3
      %s164 = scalar_select %p163, %s162, 3
      %s165 = smul.addr %s164, 8
      %s166 = scalar_lea.vmem %s0, %s165
      %s167 = smul.u32 2, %s14
      %s168 = smul.u32 2, %s14
      %p169 = scmp.lt.s32.totalorder %s168, 3
      %s170 = scalar_select %p169, %s168, 3
      %s171 = smul.addr %s170, 8
      %s172 = scalar_lea.vmem %s3, %s171
      %s173 = smul.u32 2, %s14
      %v174 = vld [vmem:[%s166] sm:$0xff]
      %v175 = vld [vmem:[%s166 + $0x8] sm:$0xff]
      %v176 = vld [vmem:[%s1] sm:$0x1]
      %v177 = vld [vmem:[%s2] sm:$0x1]
      %vm178 = vcmask 261120
      %v179 = vsel %vm178, %v174, 0.0
      %180 = vadd.xlane.f32.xlu0 %v179
      %v181 = vpop.xlane.xlu0 %180
      %v182 = vsel %vm178, %v175, 0.0
      %183 = vadd.xlane.f32.xlu0 %v182
      %v184 = vpop.xlane.xlu0 %183
      %v185 = vrcp.pop 32.0
      %v186 = vmul.f32 %v181, %v185
      %v187 = vmul.f32 %v184, %v185
      %v188 = vsub.f32 %v174, %v186
      %v189 = vsub.f32 %v175, %v187
      %v190 = vmul.f32 %v188, %v188
      %v191 = vmul.f32 %v189, %v189
      %v192 = vsel %vm178, %v190, 0.0
      %193 = vadd.xlane.f32.xlu0 %v192
      %v194 = vpop.xlane.xlu0 %193
      %v195 = vsel %vm178, %v191, 0.0
      %196 = vadd.xlane.f32.xlu0 %v195
      %v197 = vpop.xlane.xlu0 %196
      %v198 = vmul.f32 %v194, %v185
      %v199 = vmul.f32 %v197, %v185
      %v200 = vadd.f32 %v198, 1e-05
      %v201 = vadd.f32 %v199, 1e-05
      %v202 = vrsqrt.pop %v200
      %v203 = vrsqrt.pop %v201
      %v204 = vmul.f32 %v188, %v202
      %v205 = vmul.f32 %v189, %v203
      %v207 = vlaneseq
      %v208 = vshrl.u32 %v207, 7
      %v209 = vsub.s32 0, %v208
      %v210 = vrot.slane %v176, %v209
      %v212 = vmul.f32 %v204, %v210
      %v213 = vmul.f32 %v205, %v210
      %v215 = vlaneseq
      %v216 = vshrl.u32 %v215, 7
      %v217 = vsub.s32 0, %v216
      %v218 = vrot.slane %v177, %v217
      %v220 = vadd.f32 %v212, %v218
      %v221 = vadd.f32 %v213, %v218
      %222 = vst.msk [vmem:[%s172] sm:$0xff] %vm178, %v220
      %223 = vst.msk [vmem:[%s172 + $0x8] sm:$0xff] %vm178, %v221
      %s224 = smul.u32 2, %s14
      %p225 = scmp.lt.s32.totalorder %s224, 3
      %s226 = scalar_select %p225, %s224, 3
      %s227 = smul.addr %s226, 8
      %s228 = scalar_lea.vmem %s3, %s227
      // Predicated region
      $region33: #{gemnet_forward.31} parent=31 // pred_check
        %p229 = pneg %p100
      $region34: #{gemnet_forward.31} parent=31 // pred_check_branch
        %231 = sbr.rel (%p229) target = $region36
      $region35: #{gemnet_forward.31} parent=31 // pred_region
        %s232 = smul.u32 2, %s14
      $region36: #{gemnet_forward.31} parent=31 // pred_fallthru
        _
    $region32: #{gemnet_forward.31} parent=5 // pred_fallthru
      _
    %p233 = scmp.le.s32.totalorder 2, %s9
    // Predicated region
    $region37: #{gemnet_forward.31} parent=5 // pred_check
      %p234 = pneg %p233
    $region38: #{gemnet_forward.31} parent=5 // pred_check_branch
      %236 = sbr.rel (%p234) target = $region40
    $region39: #{gemnet_forward.31} parent=5 // pred_region
      %s237 = ssub.s32 %s9, 2
      // Predicated region
      $region41: #{gemnet_forward.31} parent=39 // pred_check
        %p238 = pneg %p106
      $region42: #{gemnet_forward.31} parent=39 // pred_check_branch
        %240 = sbr.rel (%p238) target = $region44
      $region43: #{gemnet_forward.31} parent=39 // pred_region
        %s241 = smul.u32 2, %s15
        %p242 = scmp.lt.s32.totalorder %s241, 3
        %s243 = scalar_select %p242, %s241, 3
        %s244 = smul.addr %s243, 8
        %s245 = scalar_lea.vmem %s3, %s244
      $region44: #{gemnet_forward.31} parent=39 // pred_fallthru
        _
    $region40: #{gemnet_forward.31} parent=5 // pred_fallthru
      _
  $region6: #{gemnet_forward.31} parent=0 // loop_footer
    %s13 = sadd.s32 1, %s9
  $region7: #{gemnet_forward.31} parent=0 // loop_footer_branch
    %8 = sbr.rel target = $region3
  $region8: #{gemnet_forward.31} parent=0 // loop_exit
    _

// kernel: gemnet_forward.28
$region0: #{gemnet_forward.28}
  #allocation0 [shape = 'u32[]', space=smem, size = 0x4, offset = 0x4, fixed_abs, tag = 'smem constant byte address 0x4 - core index']
  #allocation1 [shape = 'u32[144,128]{1,0:T(1,128)}', space=vmem, size = 0x12000, scoped, tag = 'internal scratch']
  %s0 = inlined_call_operand.vmem [shape: f32[32,32], index: 0, kind: input, shape index: {}]
  %s1 = inlined_call_operand.vmem [shape: f32[32,32], index: 1, kind: input, shape index: {}]
  %s2 = inlined_call_operand.vmem [shape: f32[32,16], index: 2, kind: input, shape index: {}]
  %s3 = inlined_call_operand.vmem [shape: bf16[32,32], index: 3, kind: input, shape index: {}]
  %s4 = inlined_call_operand.vmem [shape: bf16[32,32], index: 4, kind: input, shape index: {}]
  %s5 = inlined_call_operand.vmem [shape: bf16[16,32], index: 5, kind: input, shape index: {}]
  %s6 = inlined_call_operand.vmem [shape: f32[32,32], index: 6, kind: output, shape index: {}]
  %s7 = sld [smem:[#allocation0]]
  $region57: #{gemnet_forward.28} parent=0
    _
  %s9 = ssub.s32 1, %s7
  %s10 = scalar_select 0, %s9, %s7
  loop: start=0, step=1, limit=4
  $region2: #{gemnet_forward.28} parent=0 // loop_pre_header
    _
  $region3: #{gemnet_forward.28} parent=0 // loop_header
    %s12 = sphi 0, %s16
    %p13 = scmp.ge.s32.totalorder %s12, 4
    %s22 = sphi 0, %s24
    %s25 = sphi 0, %s22
    %s26 = sphi 0, %s25
    %s42 = sphi 0, %s26
    %s48 = sphi 0, %s50
    %s51 = sphi 0, %s48
    %s52 = sphi 0, %s51
    %s68 = sphi 0, %s52
    %s74 = sphi 0, %s76
    %s77 = sphi 0, %s74
    %s78 = sphi 0, %s77
    %s94 = sphi 0, %s78
    %s98 = sphi 0, %s98
    %s100 = sphi 0, %s98
    %s101 = sphi 0, %s100
    %s115 = sphi 0, %s101
    %s119 = sphi 0, %s119
    %s121 = sphi 0, %s119
    %s122 = sphi 0, %s121
    %s136 = sphi 0, %s122
    %s140 = sphi 0, %s140
    %s142 = sphi 0, %s140
    %s143 = sphi 0, %s142
    %s157 = sphi 0, %s143
    %s163 = sphi 0, %s165
    %s166 = sphi 0, %s163
    %s167 = sphi 0, %s166
    %s183 = sphi 0, %s167
  $region4: #{gemnet_forward.28} parent=0 // loop_header_branch
    %15 = sbr.rel (%p13) target = $region8
  $region5: #{gemnet_forward.28} parent=0 // loop_body
    %s17 = ssub.s32 %s12, 1
    %s18 = ssub.s32 %s12, 2
    %s19 = sadd.s32 %s12, 1
    %s20 = ssub.s32 %s12, %s19
    %p21 = scmp.eq.s32.totalorder %s20, 0
    %s23 = sadd.s32 %s22, 1
    %s24 = scalar_select %p21, %s22, %s23
    %p27 = pneg %p21
    %p28 = scmp.eq.s32.totalorder %s12, 1
    %p29 = por %p27, %p28
    %p30 = scmp.ne.s32.totalorder %s22, %s25
    %p31 = scmp.eq.s32.totalorder %s12, 0
    %p32 = por %p30, %p31
    %p33 = scmp.ne.s32.totalorder %s22, %s25
    %p34 = scmp.eq.s32.totalorder %s17, 1
    %p35 = por %p33, %p34
    %p36 = scmp.ne.s32.totalorder %s25, %s26
    %p37 = scmp.eq.s32.totalorder %s17, 0
    %p38 = por %p36, %p37
    %p39 = scmp.ne.s32.totalorder %s25, %s26
    %p40 = scmp.eq.s32.totalorder %s18, 1
    %p41 = por %p39, %p40
    %p43 = scmp.ne.s32.totalorder %s26, %s42
    %p44 = scmp.eq.s32.totalorder %s18, 0
    %p45 = por %p43, %p44
    %s46 = ssub.s32 %s12, %s19
    %p47 = scmp.eq.s32.totalorder %s46, 0
    %s49 = sadd.s32 %s48, 1
    %s50 = scalar_select %p47, %s48, %s49
    %p53 = pneg %p47
    %p54 = scmp.eq.s32.totalorder %s12, 1
    %p55 = por %p53, %p54
    %p56 = scmp.ne.s32.totalorder %s48, %s51
    %p57 = scmp.eq.s32.totalorder %s12, 0
    %p58 = por %p56, %p57
    %p59 = scmp.ne.s32.totalorder %s48, %s51
    %p60 = scmp.eq.s32.totalorder %s17, 1
    %p61 = por %p59, %p60
    %p62 = scmp.ne.s32.totalorder %s51, %s52
    %p63 = scmp.eq.s32.totalorder %s17, 0
    %p64 = por %p62, %p63
    %p65 = scmp.ne.s32.totalorder %s51, %s52
    %p66 = scmp.eq.s32.totalorder %s18, 1
    %p67 = por %p65, %p66
    %p69 = scmp.ne.s32.totalorder %s52, %s68
    %p70 = scmp.eq.s32.totalorder %s18, 0
    %p71 = por %p69, %p70
    %s72 = ssub.s32 %s12, %s19
    %p73 = scmp.eq.s32.totalorder %s72, 0
    %s75 = sadd.s32 %s74, 1
    %s76 = scalar_select %p73, %s74, %s75
    %p79 = pneg %p73
    %p80 = scmp.eq.s32.totalorder %s12, 1
    %p81 = por %p79, %p80
    %p82 = scmp.ne.s32.totalorder %s74, %s77
    %p83 = scmp.eq.s32.totalorder %s12, 0
    %p84 = por %p82, %p83
    %p85 = scmp.ne.s32.totalorder %s74, %s77
    %p86 = scmp.eq.s32.totalorder %s17, 1
    %p87 = por %p85, %p86
    %p88 = scmp.ne.s32.totalorder %s77, %s78
    %p89 = scmp.eq.s32.totalorder %s17, 0
    %p90 = por %p88, %p89
    %p91 = scmp.ne.s32.totalorder %s77, %s78
    %p92 = scmp.eq.s32.totalorder %s18, 1
    %p93 = por %p91, %p92
    %p95 = scmp.ne.s32.totalorder %s78, %s94
    %p96 = scmp.eq.s32.totalorder %s18, 0
    %p97 = por %p95, %p96
    %s99 = sadd.s32 %s98, 1
    %p102 = scmp.eq.s32.totalorder %s12, 1
    %p103 = scmp.ne.s32.totalorder %s98, %s100
    %p104 = scmp.eq.s32.totalorder %s12, 0
    %p105 = por %p103, %p104
    %p106 = scmp.ne.s32.totalorder %s98, %s100
    %p107 = scmp.eq.s32.totalorder %s17, 1
    %p108 = por %p106, %p107
    %p109 = scmp.ne.s32.totalorder %s100, %s101
    %p110 = scmp.eq.s32.totalorder %s17, 0
    %p111 = por %p109, %p110
    %p112 = scmp.ne.s32.totalorder %s100, %s101
    %p113 = scmp.eq.s32.totalorder %s18, 1
    %p114 = por %p112, %p113
    %p116 = scmp.ne.s32.totalorder %s101, %s115
    %p117 = scmp.eq.s32.totalorder %s18, 0
    %p118 = por %p116, %p117
    %s120 = sadd.s32 %s119, 1
    %p123 = scmp.eq.s32.totalorder %s12, 1
    %p124 = scmp.ne.s32.totalorder %s119, %s121
    %p125 = scmp.eq.s32.totalorder %s12, 0
    %p126 = por %p124, %p125
    %p127 = scmp.ne.s32.totalorder %s119, %s121
    %p128 = scmp.eq.s32.totalorder %s17, 1
    %p129 = por %p127, %p128
    %p130 = scmp.ne.s32.totalorder %s121, %s122
    %p131 = scmp.eq.s32.totalorder %s17, 0
    %p132 = por %p130, %p131
    %p133 = scmp.ne.s32.totalorder %s121, %s122
    %p134 = scmp.eq.s32.totalorder %s18, 1
    %p135 = por %p133, %p134
    %p137 = scmp.ne.s32.totalorder %s122, %s136
    %p138 = scmp.eq.s32.totalorder %s18, 0
    %p139 = por %p137, %p138
    %s141 = sadd.s32 %s140, 1
    %p144 = scmp.eq.s32.totalorder %s12, 1
    %p145 = scmp.ne.s32.totalorder %s140, %s142
    %p146 = scmp.eq.s32.totalorder %s12, 0
    %p147 = por %p145, %p146
    %p148 = scmp.ne.s32.totalorder %s140, %s142
    %p149 = scmp.eq.s32.totalorder %s17, 1
    %p150 = por %p148, %p149
    %p151 = scmp.ne.s32.totalorder %s142, %s143
    %p152 = scmp.eq.s32.totalorder %s17, 0
    %p153 = por %p151, %p152
    %p154 = scmp.ne.s32.totalorder %s142, %s143
    %p155 = scmp.eq.s32.totalorder %s18, 1
    %p156 = por %p154, %p155
    %p158 = scmp.ne.s32.totalorder %s143, %s157
    %p159 = scmp.eq.s32.totalorder %s18, 0
    %p160 = por %p158, %p159
    %s161 = ssub.s32 %s12, %s19
    %p162 = scmp.eq.s32.totalorder %s161, 0
    %s164 = sadd.s32 %s163, 1
    %s165 = scalar_select %p162, %s163, %s164
    %p168 = pneg %p162
    %p169 = scmp.eq.s32.totalorder %s12, 1
    %p170 = por %p168, %p169
    %p171 = scmp.ne.s32.totalorder %s163, %s166
    %p172 = scmp.eq.s32.totalorder %s12, 0
    %p173 = por %p171, %p172
    %p174 = scmp.ne.s32.totalorder %s163, %s166
    %p175 = scmp.eq.s32.totalorder %s17, 1
    %p176 = por %p174, %p175
    %p177 = scmp.ne.s32.totalorder %s166, %s167
    %p178 = scmp.eq.s32.totalorder %s17, 0
    %p179 = por %p177, %p178
    %p180 = scmp.ne.s32.totalorder %s166, %s167
    %p181 = scmp.eq.s32.totalorder %s18, 1
    %p182 = por %p180, %p181
    %p184 = scmp.ne.s32.totalorder %s167, %s183
    %p185 = scmp.eq.s32.totalorder %s18, 0
    %p186 = por %p184, %p185
    %p187 = scmp.le.s32.totalorder 1, %s12
    %p188 = scmp.lt.s32.totalorder %s12, 3
    %p189 = pnand %p187, %p188
    %p190 = pneg %p189
    // Predicated region
    $region9: #{gemnet_forward.28} parent=5 // pred_check
      _
    $region10: #{gemnet_forward.28} parent=5 // pred_check_branch
      %192 = sbr.rel (%p189) target = $region12
    $region11: #{gemnet_forward.28} parent=5 // pred_region
      %s193 = ssub.s32 %s12, 1
      // Predicated region
      $region13: #{gemnet_forward.28} parent=11 // pred_check
        %p194 = pneg %p111
      $region14: #{gemnet_forward.28} parent=11 // pred_check_branch
        %196 = sbr.rel (%p194) target = $region16
      $region15: #{gemnet_forward.28} parent=11 // pred_region
        _
      $region16: #{gemnet_forward.28} parent=11 // pred_fallthru
        _
      // Predicated region
      $region17: #{gemnet_forward.28} parent=11 // pred_check
        %p197 = pneg %p132
      $region18: #{gemnet_forward.28} parent=11 // pred_check_branch
        %199 = sbr.rel (%p197) target = $region20
      $region19: #{gemnet_forward.28} parent=11 // pred_region
        _
      $region20: #{gemnet_forward.28} parent=11 // pred_fallthru
        _
      // Predicated region
      $region21: #{gemnet_forward.28} parent=11 // pred_check
        %p200 = pneg %p153
      $region22: #{gemnet_forward.28} parent=11 // pred_check_branch
        %202 = sbr.rel (%p200) target = $region24
      $region23: #{gemnet_forward.28} parent=11 // pred_region
        _
      $region24: #{gemnet_forward.28} parent=11 // pred_fallthru
        _
    $region12: #{gemnet_forward.28} parent=5 // pred_fallthru
      _
    %p203 = scmp.lt.s32.totalorder %s12, 2
    // Predicated region
    $region25: #{gemnet_forward.28} parent=5 // pred_check
      %p204 = pneg %p203
    $region26: #{gemnet_forward.28} parent=5 // pred_check_branch
      %206 = sbr.rel (%p204) target = $region28
    $region27: #{gemnet_forward.28} parent=5 // pred_region
      // Predicated region
      $region29: #{gemnet_forward.28} parent=27 // pred_check
        %p207 = pneg %p32
      $region30: #{gemnet_forward.28} parent=27 // pred_check_branch
        %209 = sbr.rel (%p207) target = $region32
      $region31: #{gemnet_forward.28} parent=27 // pred_region
        %s210 = smul.u32 2, %s12
        %p211 = scmp.lt.s32.totalorder %s210, 3
        %s212 = scalar_select %p211, %s210, 3
        %s213 = smul.addr %s212, 8
        %s214 = scalar_lea.vmem %s0, %s213
        %s215 = smul.u32 2, %s12
      $region32: #{gemnet_forward.28} parent=27 // pred_fallthru
        _
      // Predicated region
      $region33: #{gemnet_forward.28} parent=27 // pred_check
        %p216 = pneg %p58
      $region34: #{gemnet_forward.28} parent=27 // pred_check_branch
        %218 = sbr.rel (%p216) target = $region36
      $region35: #{gemnet_forward.28} parent=27 // pred_region
        %s219 = smul.u32 2, %s12
        %p220 = scmp.lt.s32.totalorder %s219, 3
        %s221 = scalar_select %p220, %s219, 3
        %s222 = smul.addr %s221, 8
        %s223 = scalar_lea.vmem %s1, %s222
        %s224 = smul.u32 2, %s12
      $region36: #{gemnet_forward.28} parent=27 // pred_fallthru
        _
      // Predicated region
      $region37: #{gemnet_forward.28} parent=27 // pred_check
        %p225 = pneg %p84
      $region38: #{gemnet_forward.28} parent=27 // pred_check_branch
        %227 = sbr.rel (%p225) target = $region40
      $region39: #{gemnet_forward.28} parent=27 // pred_region
        %s228 = smul.u32 2, %s12
        %p229 = scmp.lt.s32.totalorder %s228, 3
        %s230 = scalar_select %p229, %s228, 3
        %s231 = smul.addr %s230, 8
        %s232 = scalar_lea.vmem %s2, %s231
        %s233 = smul.u32 2, %s12
      $region40: #{gemnet_forward.28} parent=27 // pred_fallthru
        _
    $region28: #{gemnet_forward.28} parent=5 // pred_fallthru
      _
    %p234 = scmp.le.s32.totalorder 1, %s12
    %p235 = scmp.lt.s32.totalorder %s12, 3
    %p236 = pnand %p234, %p235
    %p237 = pneg %p236
    // Predicated region
    $region41: #{gemnet_forward.28} parent=5 // pred_check
      _
    $region42: #{gemnet_forward.28} parent=5 // pred_check_branch
      %239 = sbr.rel (%p236) target = $region44
    $region43: #{gemnet_forward.28} parent=5 // pred_region
      %s240 = ssub.s32 %s12, 1
      %s241 = smul.u32 2, %s17
      %p242 = scmp.lt.s32.totalorder %s241, 3
      %s243 = scalar_select %p242, %s241, 3
      %s244 = smul.addr %s243, 8
      %s245 = scalar_lea.vmem %s0, %s244
      %p246 = pneg %p38
      %p247 = pneg %p35
      %s248 = smul.u32 2, %s17
      %p249 = scmp.lt.s32.totalorder %s248, 3
      %s250 = scalar_select %p249, %s248, 3
      %s251 = smul.addr %s250, 8
      %s252 = scalar_lea.vmem %s1, %s251
      %p253 = pneg %p64
      %p254 = pneg %p61
      %s255 = smul.u32 2, %s17
      %p256 = scmp.lt.s32.totalorder %s255, 3
      %s257 = scalar_select %p256, %s255, 3
      %s258 = smul.addr %s257, 8
      %s259 = scalar_lea.vmem %s2, %s258
      %p260 = pneg %p90
      %p261 = pneg %p87
      %p262 = pneg %p111
      %p263 = pneg %p108
      %p264 = pneg %p132
      %p265 = pneg %p129
      %p266 = pneg %p153
      %p267 = pneg %p150
      %p268 = pneg %p179
      %p269 = pneg %p176
      %s270 = smul.u32 2, %s17
      %p271 = scmp.lt.s32.totalorder %s270, 3
      %s272 = scalar_select %p271, %s270, 3
      %s273 = smul.addr %s272, 8
      %s274 = scalar_lea.vmem %s6, %s273
      %s275 = smul.u32 2, %s17
      %p276 = scmp.lt.s32.totalorder %s275, 3
      %s277 = scalar_select %p276, %s275, 3
      %s278 = smul.addr %s277, 8
      %s279 = scalar_lea.vmem %s0, %s278
      %s280 = smul.u32 2, %s17
      %s281 = smul.u32 2, %s17
      %p282 = scmp.lt.s32.totalorder %s281, 3
      %s283 = scalar_select %p282, %s281, 3
      %s284 = smul.addr %s283, 8
      %s285 = scalar_lea.vmem %s1, %s284
      %s286 = smul.u32 2, %s17
      %s287 = smul.u32 2, %s17
      %p288 = scmp.lt.s32.totalorder %s287, 3
      %s289 = scalar_select %p288, %s287, 3
      %s290 = smul.addr %s289, 8
      %s291 = scalar_lea.vmem %s2, %s290
      %s292 = smul.u32 2, %s17
      %s293 = smul.u32 2, %s17
      %p294 = scmp.lt.s32.totalorder %s293, 3
      %s295 = scalar_select %p294, %s293, 3
      %s296 = smul.addr %s295, 8
      %s297 = scalar_lea.vmem %s6, %s296
      %s298 = smul.u32 2, %s17
      %v300 = vld [vmem:[%s279] sm:$0xff]
      %v301 = vld [vmem:[%s279 + $0x8] sm:$0xff]
      %v302 = vld [vmem:[%s3] sm:$0xf]
      %v303 = vld [vmem:[%s3 + $0x4] sm:$0xf]
      %v304 = vld [vmem:[%s3 + $0x8] sm:$0xf]
      %v305 = vld [vmem:[%s3 + $0xc] sm:$0xf]
      %v306 = vpack.c.bf16 %v301, %v300
      %v307 = vld [vmem:[%s285] sm:$0xff]
      %v308 = vld [vmem:[%s285 + $0x8] sm:$0xff]
      %v309 = vld [vmem:[%s4] sm:$0xf]
      %v310 = vld [vmem:[%s4 + $0x4] sm:$0xf]
      %v311 = vld [vmem:[%s4 + $0x8] sm:$0xf]
      %v312 = vld [vmem:[%s4 + $0xc] sm:$0xf]
      %v313 = vpack.c.bf16 %v308, %v307
      %v318 = vunpack.c.l.b16 %v309
      %v319 = vunpack.c.l.b16 %v310
      %v320 = vunpack.c.l.b16 %v311
      %v321 = vunpack.c.l.b16 %v312
      %v322 = vpack.c.b16 %v319, %v318
      %v323 = vpack.c.b16 %v321, %v320
      %vm326 = vcmask 261120
      %v328 = vsel %vm326, %v313, 0
      %330 = vmatprep.subr.bf16.mxu0 0
      %331 = vmatpush1.bf16.msra.mxu0 %v322
      %332 = vmatprep.subr.bf16.mxu0 0
      %333 = vmatpush1.bf16.msra.mxu0 %v323
      %334 = vmatprep.subr.bf16.mxu0 0
      %335 = vmatpush1.bf16.msra.mxu0 0
      %336 = vmatprep.subr.bf16.mxu0 0
      %337 = vmatpush1.bf16.msra.mxu0 0
      %338 = vmatprep.subr.bf16.mxu0 0
      %339 = vmatpush1.bf16.msra.mxu0 0
      %340 = vmatprep.subr.bf16.mxu0 0
      %341 = vmatpush1.bf16.msra.mxu0 0
      %342 = vmatprep.subr.bf16.mxu0 0
      %343 = vmatpush1.bf16.msra.mxu0 0
      %344 = vmatprep.subr.bf16.mxu0 0
      %345 = vmatpush1.bf16.msra.mxu0 0
      %346 = vmatprep.subr.bf16.mxu0 0
      %347 = vmatpush1.bf16.msra.mxu0 0
      %348 = vmatprep.subr.bf16.mxu0 0
      %349 = vmatpush1.bf16.msra.mxu0 0
      %350 = vmatprep.subr.bf16.mxu0 0
      %351 = vmatpush1.bf16.msra.mxu0 0
      %352 = vmatprep.subr.bf16.mxu0 0
      %353 = vmatpush1.bf16.msra.mxu0 0
      %354 = vmatprep.subr.bf16.mxu0 0
      %355 = vmatpush1.bf16.msra.mxu0 0
      %356 = vmatprep.subr.bf16.mxu0 0
      %357 = vmatpush1.bf16.msra.mxu0 0
      %358 = vmatprep.subr.bf16.mxu0 0
      %359 = vmatpush1.bf16.msra.mxu0 0
      %360 = vmatprep.subr.bf16.mxu0 0
      %361 = vmatpush1.bf16.msra.mxu0 0
      %362 = vmatprep.mubr.bf16.mxu0 0
      %363 = vmatmul.mubr.bf16.gmra.mrb[0].mxu0 %v328
      %v364 = vpop.f32.mrb[0].mxu0
      %v365 = vadd.f32 0.0, %v364
      %v366 = vpop.f32.mrb[0].mxu0
      %v367 = vpop.f32.mrb[0].mxu0
      %v368 = vadd.f32 0.0, %v367
      %v369 = vpop.f32.mrb[0].mxu0
      %370 = vdwg.mxu0
      %v375 = vunpack.c.l.b16 %v302
      %v376 = vunpack.c.l.b16 %v303
      %v377 = vunpack.c.l.b16 %v304
      %v378 = vunpack.c.l.b16 %v305
      %v379 = vpack.c.b16 %v376, %v375
      %v380 = vpack.c.b16 %v378, %v377
      %v384 = vsel %vm326, %v306, 0
      %386 = vmatprep.subr.bf16.mxu0 0
      %387 = vmatpush1.bf16.msra.mxu0 %v379
      %388 = vmatprep.subr.bf16.mxu0 0
      %389 = vmatpush1.bf16.msra.mxu0 %v380
      %390 = vmatprep.subr.bf16.mxu0 0
      %391 = vmatpush1.bf16.msra.mxu0 0
      %392 = vmatprep.subr.bf16.mxu0 0
      %393 = vmatpush1.bf16.msra.mxu0 0
      %394 = vmatprep.subr.bf16.mxu0 0
      %395 = vmatpush1.bf16.msra.mxu0 0
      %396 = vmatprep.subr.bf16.mxu0 0
      %397 = vmatpush1.bf16.msra.mxu0 0
      %398 = vmatprep.subr.bf16.mxu0 0
      %399 = vmatpush1.bf16.msra.mxu0 0
      %400 = vmatprep.subr.bf16.mxu0 0
      %401 = vmatpush1.bf16.msra.mxu0 0
      %402 = vmatprep.subr.bf16.mxu0 0
      %403 = vmatpush1.bf16.msra.mxu0 0
      %404 = vmatprep.subr.bf16.mxu0 0
      %405 = vmatpush1.bf16.msra.mxu0 0
      %406 = vmatprep.subr.bf16.mxu0 0
      %407 = vmatpush1.bf16.msra.mxu0 0
      %408 = vmatprep.subr.bf16.mxu0 0
      %409 = vmatpush1.bf16.msra.mxu0 0
      %410 = vmatprep.subr.bf16.mxu0 0
      %411 = vmatpush1.bf16.msra.mxu0 0
      %412 = vmatprep.subr.bf16.mxu0 0
      %413 = vmatpush1.bf16.msra.mxu0 0
      %414 = vmatprep.subr.bf16.mxu0 0
      %415 = vmatpush1.bf16.msra.mxu0 0
      %416 = vmatprep.subr.bf16.mxu0 0
      %417 = vmatpush1.bf16.msra.mxu0 0
      %418 = vmatprep.mubr.bf16.mxu0 0
      %419 = vmatmul.mubr.bf16.gmra.mrb[0].mxu0 %v384
      %v420 = vpop.f32.mrb[0].mxu0
      %v421 = vadd.f32 %v365, %v420
      %v422 = vpop.f32.mrb[0].mxu0
      %v423 = vpop.f32.mrb[0].mxu0
      %v424 = vadd.f32 %v368, %v423
      %v425 = vpop.f32.mrb[0].mxu0
      %426 = vdwg.mxu0
      %v427 = vld [vmem:[%s291] sm:$0xff]
      %v428 = vld [vmem:[%s291 + $0x8] sm:$0xff]
      %v429 = vld [vmem:[%s5] sm:$0xf]
      %v430 = vld [vmem:[%s5 + $0x4] sm:$0xf]
      %v431 = vpack.c.bf16 %v428, %v427
      %v434 = vunpack.c.l.b16 %v429
      %v435 = vunpack.c.l.b16 %v430
      %v436 = vpack.c.b16 %v435, %v434
      %vm438 = vcmask 130048
      %v440 = vsel %vm438, %v431, 0
      %442 = vmatprep.subr.bf16.mxu0 0
      %443 = vmatpush1.bf16.msra.mxu0 %v436
      %444 = vmatprep.subr.bf16.mxu0 0
      %445 = vmatpush1.bf16.msra.mxu0 0
      %446 = vmatprep.subr.bf16.mxu0 0
      %447 = vmatpush1.bf16.msra.mxu0 0
      %448 = vmatprep.subr.bf16.mxu0 0
      %449 = vmatpush1.bf16.msra.mxu0 0
      %450 = vmatprep.subr.bf16.mxu0 0
      %451 = vmatpush1.bf16.msra.mxu0 0
      %452 = vmatprep.subr.bf16.mxu0 0
      %453 = vmatpush1.bf16.msra.mxu0 0
      %454 = vmatprep.subr.bf16.mxu0 0
      %455 = vmatpush1.bf16.msra.mxu0 0
      %456 = vmatprep.subr.bf16.mxu0 0
      %457 = vmatpush1.bf16.msra.mxu0 0
      %458 = vmatprep.subr.bf16.mxu0 0
      %459 = vmatpush1.bf16.msra.mxu0 0
      %460 = vmatprep.subr.bf16.mxu0 0
      %461 = vmatpush1.bf16.msra.mxu0 0
      %462 = vmatprep.subr.bf16.mxu0 0
      %463 = vmatpush1.bf16.msra.mxu0 0
      %464 = vmatprep.subr.bf16.mxu0 0
      %465 = vmatpush1.bf16.msra.mxu0 0
      %466 = vmatprep.subr.bf16.mxu0 0
      %467 = vmatpush1.bf16.msra.mxu0 0
      %468 = vmatprep.subr.bf16.mxu0 0
      %469 = vmatpush1.bf16.msra.mxu0 0
      %470 = vmatprep.subr.bf16.mxu0 0
      %471 = vmatpush1.bf16.msra.mxu0 0
      %472 = vmatprep.subr.bf16.mxu0 0
      %473 = vmatpush1.bf16.msra.mxu0 0
      %474 = vmatprep.mubr.bf16.mxu0 0
      %475 = vmatmul.mubr.bf16.gmra.mrb[0].mxu0 %v440
      %v476 = vpop.f32.mrb[0].mxu0
      %v477 = vadd.f32 0.0, %v476
      %v478 = vpop.f32.mrb[0].mxu0
      %v479 = vpop.f32.mrb[0].mxu0
      %v480 = vadd.f32 0.0, %v479
      %v481 = vpop.f32.mrb[0].mxu0
      %482 = vdwg.mxu0
      %v483 = vadd.f32 %v421, %v477
      %v484 = vadd.f32 %v424, %v480
      %v485 = vxor.u32 %v483, 2147483648
      %v486 = vxor.u32 %v484, 2147483648
      %v487 = vmul.f32 %v485, 1.442695
      %v488 = vpow.pop %v487
      %v489 = vmul.f32 %v486, 1.442695
      %v490 = vpow.pop %v489
      %v491 = vadd.f32 %v488, 1.0
      %v492 = vadd.f32 %v490, 1.0
      %v493 = vrcp.pop %v491
      %v494 = vmul.f32 1.0, %v493
      %v495 = vrcp.pop %v492
      %v496 = vmul.f32 1.0, %v495
      %v497 = vmul.f32 %v483, %v494
      %v498 = vmul.f32 %v484, %v496
      %v499 = vmul.f32 %v497, 1.6666666
      %v500 = vmul.f32 %v498, 1.6666666
      %501 = vst.msk [vmem:[%s297] sm:$0xff] %vm326, %v499
      %502 = vst.msk [vmem:[%s297 + $0x8] sm:$0xff] %vm326, %v500
      %s503 = smul.u32 2, %s17
      %p504 = scmp.lt.s32.totalorder %s503, 3
      %s505 = scalar_select %p504, %s503, 3
      %s506 = smul.addr %s505, 8
      %s507 = scalar_lea.vmem %s6, %s506
      // Predicated region
      $region45: #{gemnet_forward.28} parent=43 // pred_check
        %p508 = pneg %p176
      $region46: #{gemnet_forward.28} parent=43 // pred_check_branch
        %510 = sbr.rel (%p508) target = $region48
      $region47: #{gemnet_forward.28} parent=43 // pred_region
        %s511 = smul.u32 2, %s17
      $region48: #{gemnet_forward.28} parent=43 // pred_fallthru
        _
    $region44: #{gemnet_forward.28} parent=5 // pred_fallthru
      _
    %p512 = scmp.le.s32.totalorder 2, %s12
    // Predicated region
    $region49: #{gemnet_forward.28} parent=5 // pred_check
      %p513 = pneg %p512
    $region50: #{gemnet_forward.28} parent=5 // pred_check_branch
      %515 = sbr.rel (%p513) target = $region52
    $region51: #{gemnet_forward.28} parent=5 // pred_region
      %s516 = ssub.s32 %s12, 2
      // Predicated region
      $region53: #{gemnet_forward.28} parent=51 // pred_check
        %p517 = pneg %p182
      $region54: #{gemnet_forward.28} parent=51 // pred_check_branch
        %519 = sbr.rel (%p517) target = $region56
      $region55: #{gemnet_forward.28} parent=51 // pred_region
        %s520 = smul.u32 2, %s18
        %p521 = scmp.lt.s32.totalorder %s520, 3
        %s522 = scalar_select %p521, %s520, 3
        %s523 = smul.addr %s522, 8
        %s524 = scalar_lea.vmem %s6, %s523
      $region56: #{gemnet_forward.28} parent=51 // pred_fallthru
        _
    $region52: #{gemnet_forward.28} parent=5 // pred_fallthru
      _
  $region6: #{gemnet_forward.28} parent=0 // loop_footer
    %s16 = sadd.s32 1, %s12
  $region7: #{gemnet_forward.28} parent=0 // loop_footer_branch
    %11 = sbr.rel target = $region3
  $region8: #{gemnet_forward.28} parent=0 // loop_exit
    _

// kernel: gemnet_forward.35
$region0: #{gemnet_forward.35}
  #allocation0 [shape = 'u32[]', space=smem, size = 0x4, offset = 0x4, fixed_abs, tag = 'smem constant byte address 0x4 - core index']
  #allocation1 [shape = 'u32[144,128]{1,0:T(1,128)}', space=vmem, size = 0x12000, scoped, tag = 'internal scratch']
  %s0 = inlined_call_operand.vmem [shape: f32[32,32], index: 0, kind: input, shape index: {}]
  %s1 = inlined_call_operand.vmem [shape: f32[32,16], index: 1, kind: input, shape index: {}]
  %s2 = inlined_call_operand.vmem [shape: bf16[32,64], index: 2, kind: input, shape index: {}]
  %s3 = inlined_call_operand.vmem [shape: bf16[16,32], index: 3, kind: input, shape index: {}]
  %s4 = inlined_call_operand.vmem [shape: bf16[32,16], index: 4, kind: input, shape index: {}]
  %s5 = inlined_call_operand.vmem [shape: f32[32,16], index: 5, kind: output, shape index: {0}]
  %s6 = inlined_call_operand.vmem [shape: f32[32,32], index: 6, kind: output, shape index: {1}]
  %7 = xla_tuple %s5, %s6
  %s8 = sld [smem:[#allocation0]]
  $region61: #{gemnet_forward.35} parent=0
    _
  %s10 = ssub.s32 1, %s8
  %s11 = scalar_select 0, %s10, %s8
  loop: start=0, step=1, limit=4
  $region2: #{gemnet_forward.35} parent=0 // loop_pre_header
    _
  $region3: #{gemnet_forward.35} parent=0 // loop_header
    %s13 = sphi 0, %s17
    %p14 = scmp.ge.s32.totalorder %s13, 4
    %s23 = sphi 0, %s25
    %s26 = sphi 0, %s23
    %s27 = sphi 0, %s26
    %s43 = sphi 0, %s27
    %s49 = sphi 0, %s51
    %s52 = sphi 0, %s49
    %s53 = sphi 0, %s52
    %s69 = sphi 0, %s53
    %s73 = sphi 0, %s73
    %s75 = sphi 0, %s73
    %s76 = sphi 0, %s75
    %s90 = sphi 0, %s76
    %s94 = sphi 0, %s94
    %s96 = sphi 0, %s94
    %s97 = sphi 0, %s96
    %s111 = sphi 0, %s97
    %s115 = sphi 0, %s115
    %s117 = sphi 0, %s115
    %s118 = sphi 0, %s117
    %s132 = sphi 0, %s118
    %s138 = sphi 0, %s140
    %s141 = sphi 0, %s138
    %s142 = sphi 0, %s141
    %s158 = sphi 0, %s142
    %s164 = sphi 0, %s166
    %s167 = sphi 0, %s164
    %s168 = sphi 0, %s167
    %s184 = sphi 0, %s168
  $region4: #{gemnet_forward.35} parent=0 // loop_header_branch
    %16 = sbr.rel (%p14) target = $region8
  $region5: #{gemnet_forward.35} parent=0 // loop_body
    %s18 = ssub.s32 %s13, 1
    %s19 = ssub.s32 %s13, 2
    %s20 = sadd.s32 %s13, 1
    %s21 = ssub.s32 %s13, %s20
    %p22 = scmp.eq.s32.totalorder %s21, 0
    %s24 = sadd.s32 %s23, 1
    %s25 = scalar_select %p22, %s23, %s24
    %p28 = pneg %p22
    %p29 = scmp.eq.s32.totalorder %s13, 1
    %p30 = por %p28, %p29
    %p31 = scmp.ne.s32.totalorder %s23, %s26
    %p32 = scmp.eq.s32.totalorder %s13, 0
    %p33 = por %p31, %p32
    %p34 = scmp.ne.s32.totalorder %s23, %s26
    %p35 = scmp.eq.s32.totalorder %s18, 1
    %p36 = por %p34, %p35
    %p37 = scmp.ne.s32.totalorder %s26, %s27
    %p38 = scmp.eq.s32.totalorder %s18, 0
    %p39 = por %p37, %p38
    %p40 = scmp.ne.s32.totalorder %s26, %s27
    %p41 = scmp.eq.s32.totalorder %s19, 1
    %p42 = por %p40, %p41
    %p44 = scmp.ne.s32.totalorder %s27, %s43
    %p45 = scmp.eq.s32.totalorder %s19, 0
    %p46 = por %p44, %p45
    %s47 = ssub.s32 %s13, %s20
    %p48 = scmp.eq.s32.totalorder %s47, 0
    %s50 = sadd.s32 %s49, 1
    %s51 = scalar_select %p48, %s49, %s50
    %p54 = pneg %p48
    %p55 = scmp.eq.s32.totalorder %s13, 1
    %p56 = por %p54, %p55
    %p57 = scmp.ne.s32.totalorder %s49, %s52
    %p58 = scmp.eq.s32.totalorder %s13, 0
    %p59 = por %p57, %p58
    %p60 = scmp.ne.s32.totalorder %s49, %s52
    %p61 = scmp.eq.s32.totalorder %s18, 1
    %p62 = por %p60, %p61
    %p63 = scmp.ne.s32.totalorder %s52, %s53
    %p64 = scmp.eq.s32.totalorder %s18, 0
    %p65 = por %p63, %p64
    %p66 = scmp.ne.s32.totalorder %s52, %s53
    %p67 = scmp.eq.s32.totalorder %s19, 1
    %p68 = por %p66, %p67
    %p70 = scmp.ne.s32.totalorder %s53, %s69
    %p71 = scmp.eq.s32.totalorder %s19, 0
    %p72 = por %p70, %p71
    %s74 = sadd.s32 %s73, 1
    %p77 = scmp.eq.s32.totalorder %s13, 1
    %p78 = scmp.ne.s32.totalorder %s73, %s75
    %p79 = scmp.eq.s32.totalorder %s13, 0
    %p80 = por %p78, %p79
    %p81 = scmp.ne.s32.totalorder %s73, %s75
    %p82 = scmp.eq.s32.totalorder %s18, 1
    %p83 = por %p81, %p82
    %p84 = scmp.ne.s32.totalorder %s75, %s76
    %p85 = scmp.eq.s32.totalorder %s18, 0
    %p86 = por %p84, %p85
    %p87 = scmp.ne.s32.totalorder %s75, %s76
    %p88 = scmp.eq.s32.totalorder %s19, 1
    %p89 = por %p87, %p88
    %p91 = scmp.ne.s32.totalorder %s76, %s90
    %p92 = scmp.eq.s32.totalorder %s19, 0
    %p93 = por %p91, %p92
    %s95 = sadd.s32 %s94, 1
    %p98 = scmp.eq.s32.totalorder %s13, 1
    %p99 = scmp.ne.s32.totalorder %s94, %s96
    %p100 = scmp.eq.s32.totalorder %s13, 0
    %p101 = por %p99, %p100
    %p102 = scmp.ne.s32.totalorder %s94, %s96
    %p103 = scmp.eq.s32.totalorder %s18, 1
    %p104 = por %p102, %p103
    %p105 = scmp.ne.s32.totalorder %s96, %s97
    %p106 = scmp.eq.s32.totalorder %s18, 0
    %p107 = por %p105, %p106
    %p108 = scmp.ne.s32.totalorder %s96, %s97
    %p109 = scmp.eq.s32.totalorder %s19, 1
    %p110 = por %p108, %p109
    %p112 = scmp.ne.s32.totalorder %s97, %s111
    %p113 = scmp.eq.s32.totalorder %s19, 0
    %p114 = por %p112, %p113
    %s116 = sadd.s32 %s115, 1
    %p119 = scmp.eq.s32.totalorder %s13, 1
    %p120 = scmp.ne.s32.totalorder %s115, %s117
    %p121 = scmp.eq.s32.totalorder %s13, 0
    %p122 = por %p120, %p121
    %p123 = scmp.ne.s32.totalorder %s115, %s117
    %p124 = scmp.eq.s32.totalorder %s18, 1
    %p125 = por %p123, %p124
    %p126 = scmp.ne.s32.totalorder %s117, %s118
    %p127 = scmp.eq.s32.totalorder %s18, 0
    %p128 = por %p126, %p127
    %p129 = scmp.ne.s32.totalorder %s117, %s118
    %p130 = scmp.eq.s32.totalorder %s19, 1
    %p131 = por %p129, %p130
    %p133 = scmp.ne.s32.totalorder %s118, %s132
    %p134 = scmp.eq.s32.totalorder %s19, 0
    %p135 = por %p133, %p134
    %s136 = ssub.s32 %s13, %s20
    %p137 = scmp.eq.s32.totalorder %s136, 0
    %s139 = sadd.s32 %s138, 1
    %s140 = scalar_select %p137, %s138, %s139
    %p143 = pneg %p137
    %p144 = scmp.eq.s32.totalorder %s13, 1
    %p145 = por %p143, %p144
    %p146 = scmp.ne.s32.totalorder %s138, %s141
    %p147 = scmp.eq.s32.totalorder %s13, 0
    %p148 = por %p146, %p147
    %p149 = scmp.ne.s32.totalorder %s138, %s141
    %p150 = scmp.eq.s32.totalorder %s18, 1
    %p151 = por %p149, %p150
    %p152 = scmp.ne.s32.totalorder %s141, %s142
    %p153 = scmp.eq.s32.totalorder %s18, 0
    %p154 = por %p152, %p153
    %p155 = scmp.ne.s32.totalorder %s141, %s142
    %p156 = scmp.eq.s32.totalorder %s19, 1
    %p157 = por %p155, %p156
    %p159 = scmp.ne.s32.totalorder %s142, %s158
    %p160 = scmp.eq.s32.totalorder %s19, 0
    %p161 = por %p159, %p160
    %s162 = ssub.s32 %s13, %s20
    %p163 = scmp.eq.s32.totalorder %s162, 0
    %s165 = sadd.s32 %s164, 1
    %s166 = scalar_select %p163, %s164, %s165
    %p169 = pneg %p163
    %p170 = scmp.eq.s32.totalorder %s13, 1
    %p171 = por %p169, %p170
    %p172 = scmp.ne.s32.totalorder %s164, %s167
    %p173 = scmp.eq.s32.totalorder %s13, 0
    %p174 = por %p172, %p173
    %p175 = scmp.ne.s32.totalorder %s164, %s167
    %p176 = scmp.eq.s32.totalorder %s18, 1
    %p177 = por %p175, %p176
    %p178 = scmp.ne.s32.totalorder %s167, %s168
    %p179 = scmp.eq.s32.totalorder %s18, 0
    %p180 = por %p178, %p179
    %p181 = scmp.ne.s32.totalorder %s167, %s168
    %p182 = scmp.eq.s32.totalorder %s19, 1
    %p183 = por %p181, %p182
    %p185 = scmp.ne.s32.totalorder %s168, %s184
    %p186 = scmp.eq.s32.totalorder %s19, 0
    %p187 = por %p185, %p186
    %p188 = scmp.le.s32.totalorder 1, %s13
    %p189 = scmp.lt.s32.totalorder %s13, 3
    %p190 = pnand %p188, %p189
    %p191 = pneg %p190
    // Predicated region
    $region9: #{gemnet_forward.35} parent=5 // pred_check
      _
    $region10: #{gemnet_forward.35} parent=5 // pred_check_branch
      %193 = sbr.rel (%p190) target = $region12
    $region11: #{gemnet_forward.35} parent=5 // pred_region
      %s194 = ssub.s32 %s13, 1
      // Predicated region
      $region13: #{gemnet_forward.35} parent=11 // pred_check
        %p195 = pneg %p86
      $region14: #{gemnet_forward.35} parent=11 // pred_check_branch
        %197 = sbr.rel (%p195) target = $region16
      $region15: #{gemnet_forward.35} parent=11 // pred_region
        _
      $region16: #{gemnet_forward.35} parent=11 // pred_fallthru
        _
      // Predicated region
      $region17: #{gemnet_forward.35} parent=11 // pred_check
        %p198 = pneg %p107
      $region18: #{gemnet_forward.35} parent=11 // pred_check_branch
        %200 = sbr.rel (%p198) target = $region20
      $region19: #{gemnet_forward.35} parent=11 // pred_region
        _
      $region20: #{gemnet_forward.35} parent=11 // pred_fallthru
        _
      // Predicated region
      $region21: #{gemnet_forward.35} parent=11 // pred_check
        %p201 = pneg %p128
      $region22: #{gemnet_forward.35} parent=11 // pred_check_branch
        %203 = sbr.rel (%p201) target = $region24
      $region23: #{gemnet_forward.35} parent=11 // pred_region
        _
      $region24: #{gemnet_forward.35} parent=11 // pred_fallthru
        _
    $region12: #{gemnet_forward.35} parent=5 // pred_fallthru
      _
    %p204 = scmp.lt.s32.totalorder %s13, 2
    // Predicated region
    $region25: #{gemnet_forward.35} parent=5 // pred_check
      %p205 = pneg %p204
    $region26: #{gemnet_forward.35} parent=5 // pred_check_branch
      %207 = sbr.rel (%p205) target = $region28
    $region27: #{gemnet_forward.35} parent=5 // pred_region
      // Predicated region
      $region29: #{gemnet_forward.35} parent=27 // pred_check
        %p208 = pneg %p33
      $region30: #{gemnet_forward.35} parent=27 // pred_check_branch
        %210 = sbr.rel (%p208) target = $region32
      $region31: #{gemnet_forward.35} parent=27 // pred_region
        %s211 = smul.u32 2, %s13
        %p212 = scmp.lt.s32.totalorder %s211, 3
        %s213 = scalar_select %p212, %s211, 3
        %s214 = smul.addr %s213, 8
        %s215 = scalar_lea.vmem %s0, %s214
        %s216 = smul.u32 2, %s13
      $region32: #{gemnet_forward.35} parent=27 // pred_fallthru
        _
      // Predicated region
      $region33: #{gemnet_forward.35} parent=27 // pred_check
        %p217 = pneg %p59
      $region34: #{gemnet_forward.35} parent=27 // pred_check_branch
        %219 = sbr.rel (%p217) target = $region36
      $region35: #{gemnet_forward.35} parent=27 // pred_region
        %s220 = smul.u32 2, %s13
        %p221 = scmp.lt.s32.totalorder %s220, 3
        %s222 = scalar_select %p221, %s220, 3
        %s223 = smul.addr %s222, 8
        %s224 = scalar_lea.vmem %s1, %s223
        %s225 = smul.u32 2, %s13
      $region36: #{gemnet_forward.35} parent=27 // pred_fallthru
        _
    $region28: #{gemnet_forward.35} parent=5 // pred_fallthru
      _
    %p226 = scmp.le.s32.totalorder 1, %s13
    %p227 = scmp.lt.s32.totalorder %s13, 3
    %p228 = pnand %p226, %p227
    %p229 = pneg %p228
    // Predicated region
    $region37: #{gemnet_forward.35} parent=5 // pred_check
      _
    $region38: #{gemnet_forward.35} parent=5 // pred_check_branch
      %231 = sbr.rel (%p228) target = $region40
    $region39: #{gemnet_forward.35} parent=5 // pred_region
      %s232 = ssub.s32 %s13, 1
      %s233 = smul.u32 2, %s18
      %p234 = scmp.lt.s32.totalorder %s233, 3
      %s235 = scalar_select %p234, %s233, 3
      %s236 = smul.addr %s235, 8
      %s237 = scalar_lea.vmem %s0, %s236
      %p238 = pneg %p39
      %p239 = pneg %p36
      %s240 = smul.u32 2, %s18
      %p241 = scmp.lt.s32.totalorder %s240, 3
      %s242 = scalar_select %p241, %s240, 3
      %s243 = smul.addr %s242, 8
      %s244 = scalar_lea.vmem %s1, %s243
      %p245 = pneg %p65
      %p246 = pneg %p62
      %p247 = pneg %p86
      %p248 = pneg %p83
      %p249 = pneg %p107
      %p250 = pneg %p104
      %p251 = pneg %p128
      %p252 = pneg %p125
      %p253 = pneg %p154
      %p254 = pneg %p151
      %s255 = smul.u32 2, %s18
      %p256 = scmp.lt.s32.totalorder %s255, 3
      %s257 = scalar_select %p256, %s255, 3
      %s258 = smul.addr %s257, 8
      %s259 = scalar_lea.vmem %s5, %s258
      %p260 = pneg %p180
      %p261 = pneg %p177
      %s262 = smul.u32 2, %s18
      %p263 = scmp.lt.s32.totalorder %s262, 3
      %s264 = scalar_select %p263, %s262, 3
      %s265 = smul.addr %s264, 8
      %s266 = scalar_lea.vmem %s6, %s265
      %s267 = smul.u32 2, %s18
      %p268 = scmp.lt.s32.totalorder %s267, 3
      %s269 = scalar_select %p268, %s267, 3
      %s270 = smul.addr %s269, 8
      %s271 = scalar_lea.vmem %s0, %s270
      %s272 = smul.u32 2, %s18
      %s273 = smul.u32 2, %s18
      %p274 = scmp.lt.s32.totalorder %s273, 3
      %s275 = scalar_select %p274, %s273, 3
      %s276 = smul.addr %s275, 8
      %s277 = scalar_lea.vmem %s1, %s276
      %s278 = smul.u32 2, %s18
      %s279 = smul.u32 2, %s18
      %p280 = scmp.lt.s32.totalorder %s279, 3
      %s281 = scalar_select %p280, %s279, 3
      %s282 = smul.addr %s281, 8
      %s283 = scalar_lea.vmem %s5, %s282
      %s284 = smul.u32 2, %s18
      %s285 = smul.u32 2, %s18
      %p286 = scmp.lt.s32.totalorder %s285, 3
      %s287 = scalar_select %p286, %s285, 3
      %s288 = smul.addr %s287, 8
      %s289 = scalar_lea.vmem %s6, %s288
      %s290 = smul.u32 2, %s18
      %v292 = vld [vmem:[%s271] sm:$0xff]
      %v293 = vld [vmem:[%s271 + $0x8] sm:$0xff]
      %v294 = vld [vmem:[%s2] sm:$0xf]
      %v295 = vld [vmem:[%s2 + $0x4] sm:$0xf]
      %v296 = vld [vmem:[%s2 + $0x8] sm:$0xf]
      %v297 = vld [vmem:[%s2 + $0xc] sm:$0xf]
      %v298 = vpack.c.bf16 %v293, %v292
      %v303 = vunpack.c.l.b16 %v294
      %v304 = vunpack.c.l.b16 %v295
      %v305 = vunpack.c.l.b16 %v296
      %v306 = vunpack.c.l.b16 %v297
      %v307 = vpack.c.b16 %v304, %v303
      %v308 = vpack.c.b16 %v306, %v305
      %vm311 = vcmask 261120
      %v313 = vsel %vm311, %v298, 0
      %315 = vmatprep.subr.bf16.mxu0 0
      %316 = vmatpush1.bf16.msra.mxu0 %v307
      %317 = vmatprep.subr.bf16.mxu0 0
      %318 = vmatpush1.bf16.msra.mxu0 %v308
      %319 = vmatprep.subr.bf16.mxu0 0
      %320 = vmatpush1.bf16.msra.mxu0 0
      %321 = vmatprep.subr.bf16.mxu0 0
      %322 = vmatpush1.bf16.msra.mxu0 0
      %323 = vmatprep.subr.bf16.mxu0 0
      %324 = vmatpush1.bf16.msra.mxu0 0
      %325 = vmatprep.subr.bf16.mxu0 0
      %326 = vmatpush1.bf16.msra.mxu0 0
      %327 = vmatprep.subr.bf16.mxu0 0
      %328 = vmatpush1.bf16.msra.mxu0 0
      %329 = vmatprep.subr.bf16.mxu0 0
      %330 = vmatpush1.bf16.msra.mxu0 0
      %331 = vmatprep.subr.bf16.mxu0 0
      %332 = vmatpush1.bf16.msra.mxu0 0
      %333 = vmatprep.subr.bf16.mxu0 0
      %334 = vmatpush1.bf16.msra.mxu0 0
      %335 = vmatprep.subr.bf16.mxu0 0
      %336 = vmatpush1.bf16.msra.mxu0 0
      %337 = vmatprep.subr.bf16.mxu0 0
      %338 = vmatpush1.bf16.msra.mxu0 0
      %339 = vmatprep.subr.bf16.mxu0 0
      %340 = vmatpush1.bf16.msra.mxu0 0
      %341 = vmatprep.subr.bf16.mxu0 0
      %342 = vmatpush1.bf16.msra.mxu0 0
      %343 = vmatprep.subr.bf16.mxu0 0
      %344 = vmatpush1.bf16.msra.mxu0 0
      %345 = vmatprep.subr.bf16.mxu0 0
      %346 = vmatpush1.bf16.msra.mxu0 0
      %347 = vmatprep.mubr.bf16.mxu0 0
      %348 = vmatmul.mubr.bf16.gmra.mrb[0].mxu0 %v313
      %v349 = vpop.f32.mrb[0].mxu0
      %v350 = vadd.f32 0.0, %v349
      %v351 = vpop.f32.mrb[0].mxu0
      %v352 = vpop.f32.mrb[0].mxu0
      %v353 = vadd.f32 0.0, %v352
      %v354 = vpop.f32.mrb[0].mxu0
      %355 = vdwg.mxu0
      %v356 = vxor.u32 %v350, 2147483648
      %v357 = vxor.u32 %v353, 2147483648
      %v358 = vmul.f32 %v356, 1.442695
      %v359 = vpow.pop %v358
      %v360 = vmul.f32 %v357, 1.442695
      %v361 = vpow.pop %v360
      %v362 = vadd.f32 %v359, 1.0
      %v363 = vadd.f32 %v361, 1.0
      %v364 = vrcp.pop %v362
      %v365 = vmul.f32 1.0, %v364
      %v366 = vrcp.pop %v363
      %v367 = vmul.f32 1.0, %v366
      %v368 = vmul.f32 %v350, %v365
      %v369 = vmul.f32 %v353, %v367
      %v370 = vmul.f32 %v368, 1.6666666
      %v371 = vmul.f32 %v369, 1.6666666
      %372 = vst.msk [vmem:[%s289] sm:$0xff] %vm311, %v370
      %373 = vst.msk [vmem:[%s289 + $0x8] sm:$0xff] %vm311, %v371
      %v374 = vld [vmem:[%s277] sm:$0xff]
      %v375 = vld [vmem:[%s277 + $0x8] sm:$0xff]
      %v376 = vld [vmem:[%s3] sm:$0xf]
      %v377 = vld [vmem:[%s3 + $0x4] sm:$0xf]
      %v378 = vpack.c.bf16 %v375, %v374
      %v381 = vunpack.c.l.b16 %v376
      %v382 = vunpack.c.l.b16 %v377
      %v383 = vpack.c.b16 %v382, %v381
      %vm385 = vcmask 130048
      %v387 = vsel %vm385, %v378, 0
      %389 = vmatprep.subr.bf16.mxu0 0
      %390 = vmatpush1.bf16.msra.mxu0 %v383
      %391 = vmatprep.subr.bf16.mxu0 0
      %392 = vmatpush1.bf16.msra.mxu0 0
      %393 = vmatprep.subr.bf16.mxu0 0
      %394 = vmatpush1.bf16.msra.mxu0 0
      %395 = vmatprep.subr.bf16.mxu0 0
      %396 = vmatpush1.bf16.msra.mxu0 0
      %397 = vmatprep.subr.bf16.mxu0 0
      %398 = vmatpush1.bf16.msra.mxu0 0
      %399 = vmatprep.subr.bf16.mxu0 0
      %400 = vmatpush1.bf16.msra.mxu0 0
      %401 = vmatprep.subr.bf16.mxu0 0
      %402 = vmatpush1.bf16.msra.mxu0 0
      %403 = vmatprep.subr.bf16.mxu0 0
      %404 = vmatpush1.bf16.msra.mxu0 0
      %405 = vmatprep.subr.bf16.mxu0 0
      %406 = vmatpush1.bf16.msra.mxu0 0
      %407 = vmatprep.subr.bf16.mxu0 0
      %408 = vmatpush1.bf16.msra.mxu0 0
      %409 = vmatprep.subr.bf16.mxu0 0
      %410 = vmatpush1.bf16.msra.mxu0 0
      %411 = vmatprep.subr.bf16.mxu0 0
      %412 = vmatpush1.bf16.msra.mxu0 0
      %413 = vmatprep.subr.bf16.mxu0 0
      %414 = vmatpush1.bf16.msra.mxu0 0
      %415 = vmatprep.subr.bf16.mxu0 0
      %416 = vmatpush1.bf16.msra.mxu0 0
      %417 = vmatprep.subr.bf16.mxu0 0
      %418 = vmatpush1.bf16.msra.mxu0 0
      %419 = vmatprep.subr.bf16.mxu0 0
      %420 = vmatpush1.bf16.msra.mxu0 0
      %421 = vmatprep.mubr.bf16.mxu0 0
      %422 = vmatmul.mubr.bf16.gmra.mrb[0].mxu0 %v387
      %v423 = vpop.f32.mrb[0].mxu0
      %v424 = vadd.f32 0.0, %v423
      %v425 = vpop.f32.mrb[0].mxu0
      %v426 = vpop.f32.mrb[0].mxu0
      %v427 = vadd.f32 0.0, %v426
      %v428 = vpop.f32.mrb[0].mxu0
      %429 = vdwg.mxu0
      %432 = vrot.lane.b32.xlu0 %v424, 32
      %v433 = vpop.permute.xlu0 %432
      %434 = vrot.lane.b32.xlu0 %v427, 32
      %v435 = vpop.permute.xlu0 %434
      %v438 = vmul.f32 %v370, %v433
      %v439 = vmul.f32 %v371, %v435
      %v440 = vld [vmem:[%s4] sm:$0xf]
      %v441 = vld [vmem:[%s4 + $0x4] sm:$0xf]
      %v442 = vld [vmem:[%s4 + $0x8] sm:$0xf]
      %v443 = vld [vmem:[%s4 + $0xc] sm:$0xf]
      %v444 = vpack.c.bf16 %v439, %v438
      %446 = vrot.lane.b32.xlu0 %v444, 96
      %v447 = vpop.permute.xlu0 %446
      %v452 = vunpack.c.l.b16 %v440
      %v453 = vunpack.c.l.b16 %v441
      %v454 = vunpack.c.l.b16 %v442
      %v455 = vunpack.c.l.b16 %v443
      %v456 = vpack.c.b16 %v453, %v452
      %v457 = vpack.c.b16 %v455, %v454
      %v461 = vsel %vm311, %v447, 0
      %463 = vmatprep.subr.bf16.mxu0 0
      %464 = vmatpush1.bf16.msra.mxu0 %v456
      %465 = vmatprep.subr.bf16.mxu0 0
      %466 = vmatpush1.bf16.msra.mxu0 %v457
      %467 = vmatprep.subr.bf16.mxu0 0
      %468 = vmatpush1.bf16.msra.mxu0 0
      %469 = vmatprep.subr.bf16.mxu0 0
      %470 = vmatpush1.bf16.msra.mxu0 0
      %471 = vmatprep.subr.bf16.mxu0 0
      %472 = vmatpush1.bf16.msra.mxu0 0
      %473 = vmatprep.subr.bf16.mxu0 0
      %474 = vmatpush1.bf16.msra.mxu0 0
      %475 = vmatprep.subr.bf16.mxu0 0
      %476 = vmatpush1.bf16.msra.mxu0 0
      %477 = vmatprep.subr.bf16.mxu0 0
      %478 = vmatpush1.bf16.msra.mxu0 0
      %479 = vmatprep.subr.bf16.mxu0 0
      %480 = vmatpush1.bf16.msra.mxu0 0
      %481 = vmatprep.subr.bf16.mxu0 0
      %482 = vmatpush1.bf16.msra.mxu0 0
      %483 = vmatprep.subr.bf16.mxu0 0
      %484 = vmatpush1.bf16.msra.mxu0 0
      %485 = vmatprep.subr.bf16.mxu0 0
      %486 = vmatpush1.bf16.msra.mxu0 0
      %487 = vmatprep.subr.bf16.mxu0 0
      %488 = vmatpush1.bf16.msra.mxu0 0
      %489 = vmatprep.subr.bf16.mxu0 0
      %490 = vmatpush1.bf16.msra.mxu0 0
      %491 = vmatprep.subr.bf16.mxu0 0
      %492 = vmatpush1.bf16.msra.mxu0 0
      %493 = vmatprep.subr.bf16.mxu0 0
      %494 = vmatpush1.bf16.msra.mxu0 0
      %495 = vmatprep.mubr.bf16.mxu0 0
      %496 = vmatmul.mubr.bf16.gmra.mrb[0].mxu0 %v461
      %v497 = vpop.f32.mrb[0].mxu0
      %v498 = vadd.f32 0.0, %v497
      %v499 = vpop.f32.mrb[0].mxu0
      %v500 = vpop.f32.mrb[0].mxu0
      %v501 = vadd.f32 0.0, %v500
      %v502 = vpop.f32.mrb[0].mxu0
      %503 = vdwg.mxu0
      %v504 = vxor.u32 %v498, 2147483648
      %v505 = vxor.u32 %v501, 2147483648
      %v506 = vmul.f32 %v504, 1.442695
      %v507 = vpow.pop %v506
      %v508 = vmul.f32 %v505, 1.442695
      %v509 = vpow.pop %v508
      %v510 = vadd.f32 %v507, 1.0
      %v511 = vadd.f32 %v509, 1.0
      %v512 = vrcp.pop %v510
      %v513 = vmul.f32 1.0, %v512
      %v514 = vrcp.pop %v511
      %v515 = vmul.f32 1.0, %v514
      %v516 = vmul.f32 %v498, %v513
      %v517 = vmul.f32 %v501, %v515
      %v518 = vmul.f32 %v516, 1.6666666
      %v519 = vmul.f32 %v517, 1.6666666
      %520 = vst.msk [vmem:[%s283] sm:$0xff] %vm385, %v518
      %521 = vst.msk [vmem:[%s283 + $0x8] sm:$0xff] %vm385, %v519
      %s522 = smul.u32 2, %s18
      %p523 = scmp.lt.s32.totalorder %s522, 3
      %s524 = scalar_select %p523, %s522, 3
      %s525 = smul.addr %s524, 8
      %s526 = scalar_lea.vmem %s5, %s525
      %s527 = smul.u32 2, %s18
      %p528 = scmp.lt.s32.totalorder %s527, 3
      %s529 = scalar_select %p528, %s527, 3
      %s530 = smul.addr %s529, 8
      %s531 = scalar_lea.vmem %s6, %s530
      // Predicated region
      $region41: #{gemnet_forward.35} parent=39 // pred_check
        %p532 = pneg %p151
      $region42: #{gemnet_forward.35} parent=39 // pred_check_branch
        %534 = sbr.rel (%p532) target = $region44
      $region43: #{gemnet_forward.35} parent=39 // pred_region
        %s535 = smul.u32 2, %s18
      $region44: #{gemnet_forward.35} parent=39 // pred_fallthru
        _
      // Predicated region
      $region45: #{gemnet_forward.35} parent=39 // pred_check
        %p536 = pneg %p177
      $region46: #{gemnet_forward.35} parent=39 // pred_check_branch
        %538 = sbr.rel (%p536) target = $region48
      $region47: #{gemnet_forward.35} parent=39 // pred_region
        %s539 = smul.u32 2, %s18
      $region48: #{gemnet_forward.35} parent=39 // pred_fallthru
        _
    $region40: #{gemnet_forward.35} parent=5 // pred_fallthru
      _
    %p540 = scmp.le.s32.totalorder 2, %s13
    // Predicated region
    $region49: #{gemnet_forward.35} parent=5 // pred_check
      %p541 = pneg %p540
    $region50: #{gemnet_forward.35} parent=5 // pred_check_branch
      %543 = sbr.rel (%p541) target = $region52
    $region51: #{gemnet_forward.35} parent=5 // pred_region
      %s544 = ssub.s32 %s13, 2
      // Predicated region
      $region53: #{gemnet_forward.35} parent=51 // pred_check
        %p545 = pneg %p157
      $region54: #{gemnet_forward.35} parent=51 // pred_check_branch
        %547 = sbr.rel (%p545) target = $region56
      $region55: #{gemnet_forward.35} parent=51 // pred_region
        %s548 = smul.u32 2, %s19
        %p549 = scmp.lt.s32.totalorder %s548, 3
        %s550 = scalar_select %p549, %s548, 3
        %s551 = smul.addr %s550, 8
        %s552 = scalar_lea.vmem %s5, %s551
      $region56: #{gemnet_forward.35} parent=51 // pred_fallthru
        _
      // Predicated region
      $region57: #{gemnet_forward.35} parent=51 // pred_check
        %p553 = pneg %p183
      $region58: #{gemnet_forward.35} parent=51 // pred_check_branch
        %555 = sbr.rel (%p553) target = $region60
      $region59: #{gemnet_forward.35} parent=51 // pred_region
        %s556 = smul.u32 2, %s19
        %p557 = scmp.lt.s32.totalorder %s556, 3
        %s558 = scalar_select %p557, %s556, 3
        %s559 = smul.addr %s558, 8
        %s560 = scalar_lea.vmem %s6, %s559
      $region60: #{gemnet_forward.35} parent=51 // pred_fallthru
        _
    $region52: #{gemnet_forward.35} parent=5 // pred_fallthru
      _
  $region6: #{gemnet_forward.35} parent=0 // loop_footer
    %s17 = sadd.s32 1, %s13
  $region7: #{gemnet_forward.35} parent=0 // loop_footer_branch
    %12 = sbr.rel target = $region3
  $region8: #{gemnet_forward.35} parent=0 // loop_exit
    _

// kernel: gemnet_forward.29
$region0: #{gemnet_forward.29}
  #allocation0 [shape = 'u32[]', space=smem, size = 0x4, offset = 0x4, fixed_abs, tag = 'smem constant byte address 0x4 - core index']
  #allocation1 [shape = 'u32[144,128]{1,0:T(1,128)}', space=vmem, size = 0x12000, scoped, tag = 'internal scratch']
  %s0 = inlined_call_operand.vmem [shape: f32[32,16], index: 0, kind: input, shape index: {}]
  %s1 = inlined_call_operand.vmem [shape: bf16[16,64], index: 1, kind: input, shape index: {}]
  %s2 = inlined_call_operand.vmem [shape: f32[32,64], index: 2, kind: output, shape index: {}]
  %s3 = sld [smem:[#allocation0]]
  $region41: #{gemnet_forward.29} parent=0
    _
  %s5 = ssub.s32 1, %s3
  %s6 = scalar_select 0, %s5, %s3
  loop: start=0, step=1, limit=4
  $region2: #{gemnet_forward.29} parent=0 // loop_pre_header
    _
  $region3: #{gemnet_forward.29} parent=0 // loop_header
    %s8 = sphi 0, %s12
    %p9 = scmp.ge.s32.totalorder %s8, 4
    %s18 = sphi 0, %s20
    %s21 = sphi 0, %s18
    %s22 = sphi 0, %s21
    %s38 = sphi 0, %s22
    %s42 = sphi 0, %s42
    %s44 = sphi 0, %s42
    %s45 = sphi 0, %s44
    %s59 = sphi 0, %s45
    %s65 = sphi 0, %s67
    %s68 = sphi 0, %s65
    %s69 = sphi 0, %s68
    %s85 = sphi 0, %s69
  $region4: #{gemnet_forward.29} parent=0 // loop_header_branch
    %11 = sbr.rel (%p9) target = $region8
  $region5: #{gemnet_forward.29} parent=0 // loop_body
    %s13 = ssub.s32 %s8, 1
    %s14 = ssub.s32 %s8, 2
    %s15 = sadd.s32 %s8, 1
    %s16 = ssub.s32 %s8, %s15
    %p17 = scmp.eq.s32.totalorder %s16, 0
    %s19 = sadd.s32 %s18, 1
    %s20 = scalar_select %p17, %s18, %s19
    %p23 = pneg %p17
    %p24 = scmp.eq.s32.totalorder %s8, 1
    %p25 = por %p23, %p24
    %p26 = scmp.ne.s32.totalorder %s18, %s21
    %p27 = scmp.eq.s32.totalorder %s8, 0
    %p28 = por %p26, %p27
    %p29 = scmp.ne.s32.totalorder %s18, %s21
    %p30 = scmp.eq.s32.totalorder %s13, 1
    %p31 = por %p29, %p30
    %p32 = scmp.ne.s32.totalorder %s21, %s22
    %p33 = scmp.eq.s32.totalorder %s13, 0
    %p34 = por %p32, %p33
    %p35 = scmp.ne.s32.totalorder %s21, %s22
    %p36 = scmp.eq.s32.totalorder %s14, 1
    %p37 = por %p35, %p36
    %p39 = scmp.ne.s32.totalorder %s22, %s38
    %p40 = scmp.eq.s32.totalorder %s14, 0
    %p41 = por %p39, %p40
    %s43 = sadd.s32 %s42, 1
    %p46 = scmp.eq.s32.totalorder %s8, 1
    %p47 = scmp.ne.s32.totalorder %s42, %s44
    %p48 = scmp.eq.s32.totalorder %s8, 0
    %p49 = por %p47, %p48
    %p50 = scmp.ne.s32.totalorder %s42, %s44
    %p51 = scmp.eq.s32.totalorder %s13, 1
    %p52 = por %p50, %p51
    %p53 = scmp.ne.s32.totalorder %s44, %s45
    %p54 = scmp.eq.s32.totalorder %s13, 0
    %p55 = por %p53, %p54
    %p56 = scmp.ne.s32.totalorder %s44, %s45
    %p57 = scmp.eq.s32.totalorder %s14, 1
    %p58 = por %p56, %p57
    %p60 = scmp.ne.s32.totalorder %s45, %s59
    %p61 = scmp.eq.s32.totalorder %s14, 0
    %p62 = por %p60, %p61
    %s63 = ssub.s32 %s8, %s15
    %p64 = scmp.eq.s32.totalorder %s63, 0
    %s66 = sadd.s32 %s65, 1
    %s67 = scalar_select %p64, %s65, %s66
    %p70 = pneg %p64
    %p71 = scmp.eq.s32.totalorder %s8, 1
    %p72 = por %p70, %p71
    %p73 = scmp.ne.s32.totalorder %s65, %s68
    %p74 = scmp.eq.s32.totalorder %s8, 0
    %p75 = por %p73, %p74
    %p76 = scmp.ne.s32.totalorder %s65, %s68
    %p77 = scmp.eq.s32.totalorder %s13, 1
    %p78 = por %p76, %p77
    %p79 = scmp.ne.s32.totalorder %s68, %s69
    %p80 = scmp.eq.s32.totalorder %s13, 0
    %p81 = por %p79, %p80
    %p82 = scmp.ne.s32.totalorder %s68, %s69
    %p83 = scmp.eq.s32.totalorder %s14, 1
    %p84 = por %p82, %p83
    %p86 = scmp.ne.s32.totalorder %s69, %s85
    %p87 = scmp.eq.s32.totalorder %s14, 0
    %p88 = por %p86, %p87
    %p89 = scmp.le.s32.totalorder 1, %s8
    %p90 = scmp.lt.s32.totalorder %s8, 3
    %p91 = pnand %p89, %p90
    %p92 = pneg %p91
    // Predicated region
    $region9: #{gemnet_forward.29} parent=5 // pred_check
      _
    $region10: #{gemnet_forward.29} parent=5 // pred_check_branch
      %94 = sbr.rel (%p91) target = $region12
    $region11: #{gemnet_forward.29} parent=5 // pred_region
      %s95 = ssub.s32 %s8, 1
      // Predicated region
      $region13: #{gemnet_forward.29} parent=11 // pred_check
        %p96 = pneg %p55
      $region14: #{gemnet_forward.29} parent=11 // pred_check_branch
        %98 = sbr.rel (%p96) target = $region16
      $region15: #{gemnet_forward.29} parent=11 // pred_region
        _
      $region16: #{gemnet_forward.29} parent=11 // pred_fallthru
        _
    $region12: #{gemnet_forward.29} parent=5 // pred_fallthru
      _
    %p99 = scmp.lt.s32.totalorder %s8, 2
    // Predicated region
    $region17: #{gemnet_forward.29} parent=5 // pred_check
      %p100 = pneg %p99
    $region18: #{gemnet_forward.29} parent=5 // pred_check_branch
      %102 = sbr.rel (%p100) target = $region20
    $region19: #{gemnet_forward.29} parent=5 // pred_region
      // Predicated region
      $region21: #{gemnet_forward.29} parent=19 // pred_check
        %p103 = pneg %p28
      $region22: #{gemnet_forward.29} parent=19 // pred_check_branch
        %105 = sbr.rel (%p103) target = $region24
      $region23: #{gemnet_forward.29} parent=19 // pred_region
        %s106 = smul.u32 2, %s8
        %p107 = scmp.lt.s32.totalorder %s106, 3
        %s108 = scalar_select %p107, %s106, 3
        %s109 = smul.addr %s108, 8
        %s110 = scalar_lea.vmem %s0, %s109
        %s111 = smul.u32 2, %s8
      $region24: #{gemnet_forward.29} parent=19 // pred_fallthru
        _
    $region20: #{gemnet_forward.29} parent=5 // pred_fallthru
      _
    %p112 = scmp.le.s32.totalorder 1, %s8
    %p113 = scmp.lt.s32.totalorder %s8, 3
    %p114 = pnand %p112, %p113
    %p115 = pneg %p114
    // Predicated region
    $region25: #{gemnet_forward.29} parent=5 // pred_check
      _
    $region26: #{gemnet_forward.29} parent=5 // pred_check_branch
      %117 = sbr.rel (%p114) target = $region28
    $region27: #{gemnet_forward.29} parent=5 // pred_region
      %s118 = ssub.s32 %s8, 1
      %s119 = smul.u32 2, %s13
      %p120 = scmp.lt.s32.totalorder %s119, 3
      %s121 = scalar_select %p120, %s119, 3
      %s122 = smul.addr %s121, 8
      %s123 = scalar_lea.vmem %s0, %s122
      %p124 = pneg %p34
      %p125 = pneg %p31
      %p126 = pneg %p55
      %p127 = pneg %p52
      %p128 = pneg %p81
      %p129 = pneg %p78
      %s130 = smul.u32 2, %s13
      %p131 = scmp.lt.s32.totalorder %s130, 3
      %s132 = scalar_select %p131, %s130, 3
      %s133 = smul.addr %s132, 8
      %s134 = scalar_lea.vmem %s2, %s133
      %s135 = smul.u32 2, %s13
      %p136 = scmp.lt.s32.totalorder %s135, 3
      %s137 = scalar_select %p136, %s135, 3
      %s138 = smul.addr %s137, 8
      %s139 = scalar_lea.vmem %s0, %s138
      %s140 = smul.u32 2, %s13
      %s141 = smul.u32 2, %s13
      %p142 = scmp.lt.s32.totalorder %s141, 3
      %s143 = scalar_select %p142, %s141, 3
      %s144 = smul.addr %s143, 8
      %s145 = scalar_lea.vmem %s2, %s144
      %s146 = smul.u32 2, %s13
      %v148 = vld [vmem:[%s139] sm:$0xff]
      %v149 = vld [vmem:[%s139 + $0x8] sm:$0xff]
      %v150 = vld [vmem:[%s1] sm:$0xf]
      %v151 = vld [vmem:[%s1 + $0x4] sm:$0xf]
      %v152 = vpack.c.bf16 %v149, %v148
      %v155 = vunpack.c.l.b16 %v150
      %v156 = vunpack.c.l.b16 %v151
      %v157 = vpack.c.b16 %v156, %v155
      %vm159 = vcmask 130048
      %v161 = vsel %vm159, %v152, 0
      %163 = vmatprep.subr.bf16.mxu0 0
      %164 = vmatpush1.bf16.msra.mxu0 %v157
      %165 = vmatprep.subr.bf16.mxu0 0
      %166 = vmatpush1.bf16.msra.mxu0 0
      %167 = vmatprep.subr.bf16.mxu0 0
      %168 = vmatpush1.bf16.msra.mxu0 0
      %169 = vmatprep.subr.bf16.mxu0 0
      %170 = vmatpush1.bf16.msra.mxu0 0
      %171 = vmatprep.subr.bf16.mxu0 0
      %172 = vmatpush1.bf16.msra.mxu0 0
      %173 = vmatprep.subr.bf16.mxu0 0
      %174 = vmatpush1.bf16.msra.mxu0 0
      %175 = vmatprep.subr.bf16.mxu0 0
      %176 = vmatpush1.bf16.msra.mxu0 0
      %177 = vmatprep.subr.bf16.mxu0 0
      %178 = vmatpush1.bf16.msra.mxu0 0
      %179 = vmatprep.subr.bf16.mxu0 0
      %180 = vmatpush1.bf16.msra.mxu0 0
      %181 = vmatprep.subr.bf16.mxu0 0
      %182 = vmatpush1.bf16.msra.mxu0 0
      %183 = vmatprep.subr.bf16.mxu0 0
      %184 = vmatpush1.bf16.msra.mxu0 0
      %185 = vmatprep.subr.bf16.mxu0 0
      %186 = vmatpush1.bf16.msra.mxu0 0
      %187 = vmatprep.subr.bf16.mxu0 0
      %188 = vmatpush1.bf16.msra.mxu0 0
      %189 = vmatprep.subr.bf16.mxu0 0
      %190 = vmatpush1.bf16.msra.mxu0 0
      %191 = vmatprep.subr.bf16.mxu0 0
      %192 = vmatpush1.bf16.msra.mxu0 0
      %193 = vmatprep.subr.bf16.mxu0 0
      %194 = vmatpush1.bf16.msra.mxu0 0
      %195 = vmatprep.mubr.bf16.mxu0 0
      %196 = vmatmul.mubr.bf16.gmra.mrb[0].mxu0 %v161
      %v197 = vpop.f32.mrb[0].mxu0
      %v198 = vadd.f32 0.0, %v197
      %v199 = vpop.f32.mrb[0].mxu0
      %v200 = vpop.f32.mrb[0].mxu0
      %v201 = vadd.f32 0.0, %v200
      %v202 = vpop.f32.mrb[0].mxu0
      %203 = vdwg.mxu0
      %vm204 = vcmask 523264
      %205 = vst.msk [vmem:[%s145] sm:$0xff] %vm204, %v198
      %206 = vst.msk [vmem:[%s145 + $0x8] sm:$0xff] %vm204, %v201
      %s207 = smul.u32 2, %s13
      %p208 = scmp.lt.s32.totalorder %s207, 3
      %s209 = scalar_select %p208, %s207, 3
      %s210 = smul.addr %s209, 8
      %s211 = scalar_lea.vmem %s2, %s210
      // Predicated region
      $region29: #{gemnet_forward.29} parent=27 // pred_check
        %p212 = pneg %p78
      $region30: #{gemnet_forward.29} parent=27 // pred_check_branch
        %214 = sbr.rel (%p212) target = $region32
      $region31: #{gemnet_forward.29} parent=27 // pred_region
        %s215 = smul.u32 2, %s13
      $region32: #{gemnet_forward.29} parent=27 // pred_fallthru
        _
    $region28: #{gemnet_forward.29} parent=5 // pred_fallthru
      _
    %p216 = scmp.le.s32.totalorder 2, %s8
    // Predicated region
    $region33: #{gemnet_forward.29} parent=5 // pred_check
      %p217 = pneg %p216
    $region34: #{gemnet_forward.29} parent=5 // pred_check_branch
      %219 = sbr.rel (%p217) target = $region36
    $region35: #{gemnet_forward.29} parent=5 // pred_region
      %s220 = ssub.s32 %s8, 2
      // Predicated region
      $region37: #{gemnet_forward.29} parent=35 // pred_check
        %p221 = pneg %p84
      $region38: #{gemnet_forward.29} parent=35 // pred_check_branch
        %223 = sbr.rel (%p221) target = $region40
      $region39: #{gemnet_forward.29} parent=35 // pred_region
        %s224 = smul.u32 2, %s14
        %p225 = scmp.lt.s32.totalorder %s224, 3
        %s226 = scalar_select %p225, %s224, 3
        %s227 = smul.addr %s226, 8
        %s228 = scalar_lea.vmem %s2, %s227
      $region40: #{gemnet_forward.29} parent=35 // pred_fallthru
        _
    $region36: #{gemnet_forward.29} parent=5 // pred_fallthru
      _
  $region6: #{gemnet_forward.29} parent=0 // loop_footer
    %s12 = sadd.s32 1, %s8
  $region7: #{gemnet_forward.29} parent=0 // loop_footer_branch
    %7 = sbr.rel target = $region3
  $region8: #{gemnet_forward.29} parent=0 // loop_exit
    _

// kernel: gemnet_forward.36
$region0: #{gemnet_forward.36}
  #allocation0 [shape = 'u32[]', space=smem, size = 0x4, offset = 0x4, fixed_abs, tag = 'smem constant byte address 0x4 - core index']
  #allocation1 [shape = 'u32[144,128]{1,0:T(1,128)}', space=vmem, size = 0x12000, scoped, tag = 'internal scratch']
  #allocation2 [shape = 's32[1]{0}', space=sflag, size = 0x4, scoped, tag = 'scoped memory for gemnet_forward.36']
  #allocation3 [shape = 'u8[512]{0}', space=smem, size = 0x200, scoped, tag = 'prefetched SMEM operand 0']
  #allocation4 [shape = 'u8[512]{0}', space=smem, size = 0x200, scoped, tag = 'prefetched SMEM operand 1']
  %s0 = inlined_call_operand.vmem [shape: s32[32], index: 0, kind: input, shape index: {}]
  %s1 = inlined_call_operand.vmem [shape: s32[32], index: 1, kind: input, shape index: {}]
  %s2 = inlined_call_operand.vmem [shape: f32[32,8,1], index: 2, kind: input, shape index: {}]
  %s3 = inlined_call_operand.vmem [shape: f32[32,1,16], index: 3, kind: input, shape index: {}]
  %s4 = inlined_call_operand.vmem [shape: f32[32,8,16], index: 4, kind: output, shape index: {}]
  %s5 = sld [smem:[#allocation0]]
  $region29: #{gemnet_forward.36} parent=0
    _
  %s7 = ssub.s32 1, %s5
  %s8 = scalar_select 0, %s7, %s5
  %s9 = sshll.u32 %s0, 4
  %s10 = int_to_ptr.vmem [resolvable:$true] %s9
  %12 = dma.vmem_to_smem %s10, 16, [#allocation3], [#allocation2]
  %s13 = sshll.u32 %s1, 4
  %s14 = int_to_ptr.vmem [resolvable:$true] %s13
  %16 = dma.vmem_to_smem %s14, 16, [#allocation4], [#allocation2]
  %17 = dma.done [#allocation2], 32
  %18 = sfence
  // Predicated region
  $region2: #{gemnet_forward.36} parent=0 // pred_check
    _
  $region3: #{gemnet_forward.36} parent=0 // pred_check_branch
    %20 = sbr.rel (0) target = $region5
  $region4: #{gemnet_forward.36} parent=0 // pred_region
    _
  $region5: #{gemnet_forward.36} parent=0 // pred_fallthru
    _
  // Predicated region
  $region6: #{gemnet_forward.36} parent=0 // pred_check
    _
  $region7: #{gemnet_forward.36} parent=0 // pred_check_branch
    %22 = sbr.rel (0) target = $region9
  $region8: #{gemnet_forward.36} parent=0 // pred_region
    _
  $region9: #{gemnet_forward.36} parent=0 // pred_fallthru
    _
  %p23 = scmp.eq.s32.totalorder 0, 0
  // Predicated region
  $region10: #{gemnet_forward.36} parent=0 // pred_check
    %p24 = pneg %p23
  $region11: #{gemnet_forward.36} parent=0 // pred_check_branch
    %26 = sbr.rel (%p24) target = $region13
  $region12: #{gemnet_forward.36} parent=0 // pred_region
    %vm27 = vcmask 130048
    %28 = vst.msk [vmem:[%s4] sm:$0xff] %vm27, 0.0
    %29 = vst.msk [vmem:[%s4 + $0x8] sm:$0xff] %vm27, 0.0
    %30 = vst.msk [vmem:[%s4 + $0x10] sm:$0xff] %vm27, 0.0
    %31 = vst.msk [vmem:[%s4 + $0x18] sm:$0xff] %vm27, 0.0
    %32 = vst.msk [vmem:[%s4 + $0x20] sm:$0xff] %vm27, 0.0
    %33 = vst.msk [vmem:[%s4 + $0x28] sm:$0xff] %vm27, 0.0
    %34 = vst.msk [vmem:[%s4 + $0x30] sm:$0xff] %vm27, 0.0
    %35 = vst.msk [vmem:[%s4 + $0x38] sm:$0xff] %vm27, 0.0
    %36 = vst.msk [vmem:[%s4 + $0x40] sm:$0xff] %vm27, 0.0
    %37 = vst.msk [vmem:[%s4 + $0x48] sm:$0xff] %vm27, 0.0
    %38 = vst.msk [vmem:[%s4 + $0x50] sm:$0xff] %vm27, 0.0
    %39 = vst.msk [vmem:[%s4 + $0x58] sm:$0xff] %vm27, 0.0
    %40 = vst.msk [vmem:[%s4 + $0x60] sm:$0xff] %vm27, 0.0
    %41 = vst.msk [vmem:[%s4 + $0x68] sm:$0xff] %vm27, 0.0
    %42 = vst.msk [vmem:[%s4 + $0x70] sm:$0xff] %vm27, 0.0
    %43 = vst.msk [vmem:[%s4 + $0x78] sm:$0xff] %vm27, 0.0
    %44 = vst.msk [vmem:[%s4 + $0x80] sm:$0xff] %vm27, 0.0
    %45 = vst.msk [vmem:[%s4 + $0x88] sm:$0xff] %vm27, 0.0
    %46 = vst.msk [vmem:[%s4 + $0x90] sm:$0xff] %vm27, 0.0
    %47 = vst.msk [vmem:[%s4 + $0x98] sm:$0xff] %vm27, 0.0
    %48 = vst.msk [vmem:[%s4 + $0xa0] sm:$0xff] %vm27, 0.0
    %49 = vst.msk [vmem:[%s4 + $0xa8] sm:$0xff] %vm27, 0.0
    %50 = vst.msk [vmem:[%s4 + $0xb0] sm:$0xff] %vm27, 0.0
    %51 = vst.msk [vmem:[%s4 + $0xb8] sm:$0xff] %vm27, 0.0
    %52 = vst.msk [vmem:[%s4 + $0xc0] sm:$0xff] %vm27, 0.0
    %53 = vst.msk [vmem:[%s4 + $0xc8] sm:$0xff] %vm27, 0.0
    %54 = vst.msk [vmem:[%s4 + $0xd0] sm:$0xff] %vm27, 0.0
    %55 = vst.msk [vmem:[%s4 + $0xd8] sm:$0xff] %vm27, 0.0
    %56 = vst.msk [vmem:[%s4 + $0xe0] sm:$0xff] %vm27, 0.0
    %57 = vst.msk [vmem:[%s4 + $0xe8] sm:$0xff] %vm27, 0.0
    %58 = vst.msk [vmem:[%s4 + $0xf0] sm:$0xff] %vm27, 0.0
    %59 = vst.msk [vmem:[%s4 + $0xf8] sm:$0xff] %vm27, 0.0
  $region13: #{gemnet_forward.36} parent=0 // pred_fallthru
    _
  %s60 = smul.u32 0, 32
  loop: start=0, step=1, limit=32
  $region14: #{gemnet_forward.36} parent=0 // loop_pre_header
    _
  $region15: #{gemnet_forward.36} parent=0 // loop_header
    %s62 = sphi 0, %s66
    %p63 = scmp.ge.s32.totalorder %s62, 32
  $region16: #{gemnet_forward.36} parent=0 // loop_header_branch
    %65 = sbr.rel (%p63) target = $region20
  $region17: #{gemnet_forward.36} parent=0 // loop_body
    %s67 = sadd.s32 %s60, %s62
    %s68 = sld [smem:[#allocation3 + %s67]]
    %s69 = sld [smem:[#allocation4 + %s67]]
    %s70 = smul.u32 %s62, 8
    %s71 = scalar_lea.vmem %s2, %s70
    %v72 = vld [vmem:[%s71] sm:$0xff]
    %s73 = scalar_lea.vmem %s3, %s68
    %v74 = vld [vmem:[%s73] sm:$0x1]
    %s75 = smul.u32 %s69, 8
    %s76 = scalar_lea.vmem %s4, %s75
    %v77 = vld [vmem:[%s76] sm:$0xff]
    %79 = vset.pattern.permute.xlu0 0
    %80 = vperm.xlu0 %79, %v72
    %v81 = vpop.permute.xlu0 %80
    %v84 = vlaneseq
    %v85 = vshrl.u32 %v84, 7
    %v86 = vsub.s32 0, %v85
    %v87 = vrot.slane %v74, %v86
    %v89 = vmul.f32 %v81, %v87
    %v90 = vadd.f32 %v77, %v89
    %vm91 = vcmask 130048
    %92 = vst.msk [vmem:[%s76] sm:$0xff] %vm91, %v90
  $region18: #{gemnet_forward.36} parent=0 // loop_footer
    %s66 = sadd.s32 1, %s62
  $region19: #{gemnet_forward.36} parent=0 // loop_footer_branch
    %61 = sbr.rel target = $region15
  $region20: #{gemnet_forward.36} parent=0 // loop_exit
    _
  // Predicated region
  $region21: #{gemnet_forward.36} parent=0 // pred_check
    _
  $region22: #{gemnet_forward.36} parent=0 // pred_check_branch
    %94 = sbr.rel (0) target = $region24
  $region23: #{gemnet_forward.36} parent=0 // pred_region
    _
  $region24: #{gemnet_forward.36} parent=0 // pred_fallthru
    _
  // Predicated region
  $region25: #{gemnet_forward.36} parent=0 // pred_check
    _
  $region26: #{gemnet_forward.36} parent=0 // pred_check_branch
    %96 = sbr.rel (0) target = $region28
  $region27: #{gemnet_forward.36} parent=0 // pred_region
    _
  $region28: #{gemnet_forward.36} parent=0 // pred_fallthru
    _

// kernel: gemnet_forward.39
$region0: #{gemnet_forward.39}
  #allocation0 [shape = 'u32[]', space=smem, size = 0x4, offset = 0x4, fixed_abs, tag = 'smem constant byte address 0x4 - core index']
  #allocation1 [shape = 'u32[144,128]{1,0:T(1,128)}', space=vmem, size = 0x12000, scoped, tag = 'internal scratch']
  %s0 = inlined_call_operand.vmem [shape: f32[32,16], index: 0, kind: input, shape index: {}]
  %s1 = inlined_call_operand.vmem [shape: f32[32,32], index: 1, kind: input, shape index: {}]
  %s2 = inlined_call_operand.vmem [shape: bf16[16,32], index: 2, kind: input, shape index: {}]
  %s3 = inlined_call_operand.vmem [shape: f32[32,32], index: 3, kind: output, shape index: {}]
  %s4 = sld [smem:[#allocation0]]
  $region45: #{gemnet_forward.39} parent=0
    _
  %s6 = ssub.s32 1, %s4
  %s7 = scalar_select 0, %s6, %s4
  loop: start=0, step=1, limit=4
  $region2: #{gemnet_forward.39} parent=0 // loop_pre_header
    _
  $region3: #{gemnet_forward.39} parent=0 // loop_header
    %s9 = sphi 0, %s13
    %p10 = scmp.ge.s32.totalorder %s9, 4
    %s19 = sphi 0, %s21
    %s22 = sphi 0, %s19
    %s23 = sphi 0, %s22
    %s39 = sphi 0, %s23
    %s45 = sphi 0, %s47
    %s48 = sphi 0, %s45
    %s49 = sphi 0, %s48
    %s65 = sphi 0, %s49
    %s69 = sphi 0, %s69
    %s71 = sphi 0, %s69
    %s72 = sphi 0, %s71
    %s86 = sphi 0, %s72
    %s92 = sphi 0, %s94
    %s95 = sphi 0, %s92
    %s96 = sphi 0, %s95
    %s112 = sphi 0, %s96
  $region4: #{gemnet_forward.39} parent=0 // loop_header_branch
    %12 = sbr.rel (%p10) target = $region8
  $region5: #{gemnet_forward.39} parent=0 // loop_body
    %s14 = ssub.s32 %s9, 1
    %s15 = ssub.s32 %s9, 2
    %s16 = sadd.s32 %s9, 1
    %s17 = ssub.s32 %s9, %s16
    %p18 = scmp.eq.s32.totalorder %s17, 0
    %s20 = sadd.s32 %s19, 1
    %s21 = scalar_select %p18, %s19, %s20
    %p24 = pneg %p18
    %p25 = scmp.eq.s32.totalorder %s9, 1
    %p26 = por %p24, %p25
    %p27 = scmp.ne.s32.totalorder %s19, %s22
    %p28 = scmp.eq.s32.totalorder %s9, 0
    %p29 = por %p27, %p28
    %p30 = scmp.ne.s32.totalorder %s19, %s22
    %p31 = scmp.eq.s32.totalorder %s14, 1
    %p32 = por %p30, %p31
    %p33 = scmp.ne.s32.totalorder %s22, %s23
    %p34 = scmp.eq.s32.totalorder %s14, 0
    %p35 = por %p33, %p34
    %p36 = scmp.ne.s32.totalorder %s22, %s23
    %p37 = scmp.eq.s32.totalorder %s15, 1
    %p38 = por %p36, %p37
    %p40 = scmp.ne.s32.totalorder %s23, %s39
    %p41 = scmp.eq.s32.totalorder %s15, 0
    %p42 = por %p40, %p41
    %s43 = ssub.s32 %s9, %s16
    %p44 = scmp.eq.s32.totalorder %s43, 0
    %s46 = sadd.s32 %s45, 1
    %s47 = scalar_select %p44, %s45, %s46
    %p50 = pneg %p44
    %p51 = scmp.eq.s32.totalorder %s9, 1
    %p52 = por %p50, %p51
    %p53 = scmp.ne.s32.totalorder %s45, %s48
    %p54 = scmp.eq.s32.totalorder %s9, 0
    %p55 = por %p53, %p54
    %p56 = scmp.ne.s32.totalorder %s45, %s48
    %p57 = scmp.eq.s32.totalorder %s14, 1
    %p58 = por %p56, %p57
    %p59 = scmp.ne.s32.totalorder %s48, %s49
    %p60 = scmp.eq.s32.totalorder %s14, 0
    %p61 = por %p59, %p60
    %p62 = scmp.ne.s32.totalorder %s48, %s49
    %p63 = scmp.eq.s32.totalorder %s15, 1
    %p64 = por %p62, %p63
    %p66 = scmp.ne.s32.totalorder %s49, %s65
    %p67 = scmp.eq.s32.totalorder %s15, 0
    %p68 = por %p66, %p67
    %s70 = sadd.s32 %s69, 1
    %p73 = scmp.eq.s32.totalorder %s9, 1
    %p74 = scmp.ne.s32.totalorder %s69, %s71
    %p75 = scmp.eq.s32.totalorder %s9, 0
    %p76 = por %p74, %p75
    %p77 = scmp.ne.s32.totalorder %s69, %s71
    %p78 = scmp.eq.s32.totalorder %s14, 1
    %p79 = por %p77, %p78
    %p80 = scmp.ne.s32.totalorder %s71, %s72
    %p81 = scmp.eq.s32.totalorder %s14, 0
    %p82 = por %p80, %p81
    %p83 = scmp.ne.s32.totalorder %s71, %s72
    %p84 = scmp.eq.s32.totalorder %s15, 1
    %p85 = por %p83, %p84
    %p87 = scmp.ne.s32.totalorder %s72, %s86
    %p88 = scmp.eq.s32.totalorder %s15, 0
    %p89 = por %p87, %p88
    %s90 = ssub.s32 %s9, %s16
    %p91 = scmp.eq.s32.totalorder %s90, 0
    %s93 = sadd.s32 %s92, 1
    %s94 = scalar_select %p91, %s92, %s93
    %p97 = pneg %p91
    %p98 = scmp.eq.s32.totalorder %s9, 1
    %p99 = por %p97, %p98
    %p100 = scmp.ne.s32.totalorder %s92, %s95
    %p101 = scmp.eq.s32.totalorder %s9, 0
    %p102 = por %p100, %p101
    %p103 = scmp.ne.s32.totalorder %s92, %s95
    %p104 = scmp.eq.s32.totalorder %s14, 1
    %p105 = por %p103, %p104
    %p106 = scmp.ne.s32.totalorder %s95, %s96
    %p107 = scmp.eq.s32.totalorder %s14, 0
    %p108 = por %p106, %p107
    %p109 = scmp.ne.s32.totalorder %s95, %s96
    %p110 = scmp.eq.s32.totalorder %s15, 1
    %p111 = por %p109, %p110
    %p113 = scmp.ne.s32.totalorder %s96, %s112
    %p114 = scmp.eq.s32.totalorder %s15, 0
    %p115 = por %p113, %p114
    %p116 = scmp.le.s32.totalorder 1, %s9
    %p117 = scmp.lt.s32.totalorder %s9, 3
    %p118 = pnand %p116, %p117
    %p119 = pneg %p118
    // Predicated region
    $region9: #{gemnet_forward.39} parent=5 // pred_check
      _
    $region10: #{gemnet_forward.39} parent=5 // pred_check_branch
      %121 = sbr.rel (%p118) target = $region12
    $region11: #{gemnet_forward.39} parent=5 // pred_region
      %s122 = ssub.s32 %s9, 1
      // Predicated region
      $region13: #{gemnet_forward.39} parent=11 // pred_check
        %p123 = pneg %p82
      $region14: #{gemnet_forward.39} parent=11 // pred_check_branch
        %125 = sbr.rel (%p123) target = $region16
      $region15: #{gemnet_forward.39} parent=11 // pred_region
        _
      $region16: #{gemnet_forward.39} parent=11 // pred_fallthru
        _
    $region12: #{gemnet_forward.39} parent=5 // pred_fallthru
      _
    %p126 = scmp.lt.s32.totalorder %s9, 2
    // Predicated region
    $region17: #{gemnet_forward.39} parent=5 // pred_check
      %p127 = pneg %p126
    $region18: #{gemnet_forward.39} parent=5 // pred_check_branch
      %129 = sbr.rel (%p127) target = $region20
    $region19: #{gemnet_forward.39} parent=5 // pred_region
      // Predicated region
      $region21: #{gemnet_forward.39} parent=19 // pred_check
        %p130 = pneg %p29
      $region22: #{gemnet_forward.39} parent=19 // pred_check_branch
        %132 = sbr.rel (%p130) target = $region24
      $region23: #{gemnet_forward.39} parent=19 // pred_region
        %s133 = smul.u32 2, %s9
        %p134 = scmp.lt.s32.totalorder %s133, 3
        %s135 = scalar_select %p134, %s133, 3
        %s136 = smul.addr %s135, 8
        %s137 = scalar_lea.vmem %s0, %s136
        %s138 = smul.u32 2, %s9
      $region24: #{gemnet_forward.39} parent=19 // pred_fallthru
        _
      // Predicated region
      $region25: #{gemnet_forward.39} parent=19 // pred_check
        %p139 = pneg %p55
      $region26: #{gemnet_forward.39} parent=19 // pred_check_branch
        %141 = sbr.rel (%p139) target = $region28
      $region27: #{gemnet_forward.39} parent=19 // pred_region
        %s142 = smul.u32 2, %s9
        %p143 = scmp.lt.s32.totalorder %s142, 3
        %s144 = scalar_select %p143, %s142, 3
        %s145 = smul.addr %s144, 8
        %s146 = scalar_lea.vmem %s1, %s145
        %s147 = smul.u32 2, %s9
      $region28: #{gemnet_forward.39} parent=19 // pred_fallthru
        _
    $region20: #{gemnet_forward.39} parent=5 // pred_fallthru
      _
    %p148 = scmp.le.s32.totalorder 1, %s9
    %p149 = scmp.lt.s32.totalorder %s9, 3
    %p150 = pnand %p148, %p149
    %p151 = pneg %p150
    // Predicated region
    $region29: #{gemnet_forward.39} parent=5 // pred_check
      _
    $region30: #{gemnet_forward.39} parent=5 // pred_check_branch
      %153 = sbr.rel (%p150) target = $region32
    $region31: #{gemnet_forward.39} parent=5 // pred_region
      %s154 = ssub.s32 %s9, 1
      %s155 = smul.u32 2, %s14
      %p156 = scmp.lt.s32.totalorder %s155, 3
      %s157 = scalar_select %p156, %s155, 3
      %s158 = smul.addr %s157, 8
      %s159 = scalar_lea.vmem %s0, %s158
      %p160 = pneg %p35
      %p161 = pneg %p32
      %s162 = smul.u32 2, %s14
      %p163 = scmp.lt.s32.totalorder %s162, 3
      %s164 = scalar_select %p163, %s162, 3
      %s165 = smul.addr %s164, 8
      %s166 = scalar_lea.vmem %s1, %s165
      %p167 = pneg %p61
      %p168 = pneg %p58
      %p169 = pneg %p82
      %p170 = pneg %p79
      %p171 = pneg %p108
      %p172 = pneg %p105
      %s173 = smul.u32 2, %s14
      %p174 = scmp.lt.s32.totalorder %s173, 3
      %s175 = scalar_select %p174, %s173, 3
      %s176 = smul.addr %s175, 8
      %s177 = scalar_lea.vmem %s3, %s176
      %s178 = smul.u32 2, %s14
      %p179 = scmp.lt.s32.totalorder %s178, 3
      %s180 = scalar_select %p179, %s178, 3
      %s181 = smul.addr %s180, 8
      %s182 = scalar_lea.vmem %s0, %s181
      %s183 = smul.u32 2, %s14
      %s184 = smul.u32 2, %s14
      %p185 = scmp.lt.s32.totalorder %s184, 3
      %s186 = scalar_select %p185, %s184, 3
      %s187 = smul.addr %s186, 8
      %s188 = scalar_lea.vmem %s1, %s187
      %s189 = smul.u32 2, %s14
      %s190 = smul.u32 2, %s14
      %p191 = scmp.lt.s32.totalorder %s190, 3
      %s192 = scalar_select %p191, %s190, 3
      %s193 = smul.addr %s192, 8
      %s194 = scalar_lea.vmem %s3, %s193
      %s195 = smul.u32 2, %s14
      %v197 = vld [vmem:[%s188] sm:$0xff]
      %v198 = vld [vmem:[%s188 + $0x8] sm:$0xff]
      %v199 = vld [vmem:[%s182] sm:$0xff]
      %v200 = vld [vmem:[%s182 + $0x8] sm:$0xff]
      %v201 = vld [vmem:[%s2] sm:$0xf]
      %v202 = vld [vmem:[%s2 + $0x4] sm:$0xf]
      %v203 = vpack.c.bf16 %v200, %v199
      %v206 = vunpack.c.l.b16 %v201
      %v207 = vunpack.c.l.b16 %v202
      %v208 = vpack.c.b16 %v207, %v206
      %vm210 = vcmask 130048
      %v212 = vsel %vm210, %v203, 0
      %214 = vmatprep.subr.bf16.mxu0 0
      %215 = vmatpush1.bf16.msra.mxu0 %v208
      %216 = vmatprep.subr.bf16.mxu0 0
      %217 = vmatpush1.bf16.msra.mxu0 0
      %218 = vmatprep.subr.bf16.mxu0 0
      %219 = vmatpush1.bf16.msra.mxu0 0
      %220 = vmatprep.subr.bf16.mxu0 0
      %221 = vmatpush1.bf16.msra.mxu0 0
      %222 = vmatprep.subr.bf16.mxu0 0
      %223 = vmatpush1.bf16.msra.mxu0 0
      %224 = vmatprep.subr.bf16.mxu0 0
      %225 = vmatpush1.bf16.msra.mxu0 0
      %226 = vmatprep.subr.bf16.mxu0 0
      %227 = vmatpush1.bf16.msra.mxu0 0
      %228 = vmatprep.subr.bf16.mxu0 0
      %229 = vmatpush1.bf16.msra.mxu0 0
      %230 = vmatprep.subr.bf16.mxu0 0
      %231 = vmatpush1.bf16.msra.mxu0 0
      %232 = vmatprep.subr.bf16.mxu0 0
      %233 = vmatpush1.bf16.msra.mxu0 0
      %234 = vmatprep.subr.bf16.mxu0 0
      %235 = vmatpush1.bf16.msra.mxu0 0
      %236 = vmatprep.subr.bf16.mxu0 0
      %237 = vmatpush1.bf16.msra.mxu0 0
      %238 = vmatprep.subr.bf16.mxu0 0
      %239 = vmatpush1.bf16.msra.mxu0 0
      %240 = vmatprep.subr.bf16.mxu0 0
      %241 = vmatpush1.bf16.msra.mxu0 0
      %242 = vmatprep.subr.bf16.mxu0 0
      %243 = vmatpush1.bf16.msra.mxu0 0
      %244 = vmatprep.subr.bf16.mxu0 0
      %245 = vmatpush1.bf16.msra.mxu0 0
      %246 = vmatprep.mubr.bf16.mxu0 0
      %247 = vmatmul.mubr.bf16.gmra.mrb[0].mxu0 %v212
      %v248 = vpop.f32.mrb[0].mxu0
      %v249 = vadd.f32 0.0, %v248
      %v250 = vpop.f32.mrb[0].mxu0
      %v251 = vpop.f32.mrb[0].mxu0
      %v252 = vadd.f32 0.0, %v251
      %v253 = vpop.f32.mrb[0].mxu0
      %254 = vdwg.mxu0
      %v255 = vmul.f32 %v197, %v249
      %v256 = vmul.f32 %v198, %v252
      %vm257 = vcmask 261120
      %258 = vst.msk [vmem:[%s194] sm:$0xff] %vm257, %v255
      %259 = vst.msk [vmem:[%s194 + $0x8] sm:$0xff] %vm257, %v256
      %s260 = smul.u32 2, %s14
      %p261 = scmp.lt.s32.totalorder %s260, 3
      %s262 = scalar_select %p261, %s260, 3
      %s263 = smul.addr %s262, 8
      %s264 = scalar_lea.vmem %s3, %s263
      // Predicated region
      $region33: #{gemnet_forward.39} parent=31 // pred_check
        %p265 = pneg %p105
      $region34: #{gemnet_forward.39} parent=31 // pred_check_branch
        %267 = sbr.rel (%p265) target = $region36
      $region35: #{gemnet_forward.39} parent=31 // pred_region
        %s268 = smul.u32 2, %s14
      $region36: #{gemnet_forward.39} parent=31 // pred_fallthru
        _
    $region32: #{gemnet_forward.39} parent=5 // pred_fallthru
      _
    %p269 = scmp.le.s32.totalorder 2, %s9
    // Predicated region
    $region37: #{gemnet_forward.39} parent=5 // pred_check
      %p270 = pneg %p269
    $region38: #{gemnet_forward.39} parent=5 // pred_check_branch
      %272 = sbr.rel (%p270) target = $region40
    $region39: #{gemnet_forward.39} parent=5 // pred_region
      %s273 = ssub.s32 %s9, 2
      // Predicated region
      $region41: #{gemnet_forward.39} parent=39 // pred_check
        %p274 = pneg %p111
      $region42: #{gemnet_forward.39} parent=39 // pred_check_branch
        %276 = sbr.rel (%p274) target = $region44
      $region43: #{gemnet_forward.39} parent=39 // pred_region
        %s277 = smul.u32 2, %s15
        %p278 = scmp.lt.s32.totalorder %s277, 3
        %s279 = scalar_select %p278, %s277, 3
        %s280 = smul.addr %s279, 8
        %s281 = scalar_lea.vmem %s3, %s280
      $region44: #{gemnet_forward.39} parent=39 // pred_fallthru
        _
    $region40: #{gemnet_forward.39} parent=5 // pred_fallthru
      _
  $region6: #{gemnet_forward.39} parent=0 // loop_footer
    %s13 = sadd.s32 1, %s9
  $region7: #{gemnet_forward.39} parent=0 // loop_footer_branch
    %8 = sbr.rel target = $region3
  $region8: #{gemnet_forward.39} parent=0 // loop_exit
    _

// kernel: gemnet_forward.38
$region0: #{gemnet_forward.38}
  #allocation0 [shape = 'u32[]', space=smem, size = 0x4, offset = 0x4, fixed_abs, tag = 'smem constant byte address 0x4 - core index']
  #allocation1 [shape = 'u32[144,128]{1,0:T(1,128)}', space=vmem, size = 0x12000, scoped, tag = 'internal scratch']
  %s0 = inlined_call_operand.vmem [shape: f32[32,32], index: 0, kind: input, shape index: {}]
  %s1 = inlined_call_operand.vmem [shape: f32[32,64], index: 1, kind: input, shape index: {}]
  %s2 = inlined_call_operand.vmem [shape: f32[32,64], index: 2, kind: input, shape index: {}]
  %s3 = inlined_call_operand.vmem [shape: f32[32,32], index: 3, kind: input, shape index: {}]
  %s4 = inlined_call_operand.vmem [shape: bf16[32,32], index: 4, kind: input, shape index: {}]
  %s5 = inlined_call_operand.vmem [shape: bf16[32,32], index: 5, kind: input, shape index: {}]
  %s6 = inlined_call_operand.vmem [shape: bf16[32,32], index: 6, kind: input, shape index: {}]
  %s7 = inlined_call_operand.vmem [shape: bf16[32,32], index: 7, kind: input, shape index: {}]
  %s8 = inlined_call_operand.vmem [shape: f32[32,32], index: 8, kind: output, shape index: {}]
  %s9 = sld [smem:[#allocation0]]
  $region65: #{gemnet_forward.38} parent=0
    _
  %s11 = ssub.s32 1, %s9
  %s12 = scalar_select 0, %s11, %s9
  loop: start=0, step=1, limit=4
  $region2: #{gemnet_forward.38} parent=0 // loop_pre_header
    _
  $region3: #{gemnet_forward.38} parent=0 // loop_header
    %s14 = sphi 0, %s18
    %p15 = scmp.ge.s32.totalorder %s14, 4
    %s24 = sphi 0, %s26
    %s27 = sphi 0, %s24
    %s28 = sphi 0, %s27
    %s44 = sphi 0, %s28
    %s50 = sphi 0, %s52
    %s53 = sphi 0, %s50
    %s54 = sphi 0, %s53
    %s70 = sphi 0, %s54
    %s76 = sphi 0, %s78
    %s79 = sphi 0, %s76
    %s80 = sphi 0, %s79
    %s96 = sphi 0, %s80
    %s102 = sphi 0, %s104
    %s105 = sphi 0, %s102
    %s106 = sphi 0, %s105
    %s122 = sphi 0, %s106
    %s126 = sphi 0, %s126
    %s128 = sphi 0, %s126
    %s129 = sphi 0, %s128
    %s143 = sphi 0, %s129
    %s147 = sphi 0, %s147
    %s149 = sphi 0, %s147
    %s150 = sphi 0, %s149
    %s164 = sphi 0, %s150
    %s168 = sphi 0, %s168
    %s170 = sphi 0, %s168
    %s171 = sphi 0, %s170
    %s185 = sphi 0, %s171
    %s189 = sphi 0, %s189
    %s191 = sphi 0, %s189
    %s192 = sphi 0, %s191
    %s206 = sphi 0, %s192
    %s212 = sphi 0, %s214
    %s215 = sphi 0, %s212
    %s216 = sphi 0, %s215
    %s232 = sphi 0, %s216
  $region4: #{gemnet_forward.38} parent=0 // loop_header_branch
    %17 = sbr.rel (%p15) target = $region8
  $region5: #{gemnet_forward.38} parent=0 // loop_body
    %s19 = ssub.s32 %s14, 1
    %s20 = ssub.s32 %s14, 2
    %s21 = sadd.s32 %s14, 1
    %s22 = ssub.s32 %s14, %s21
    %p23 = scmp.eq.s32.totalorder %s22, 0
    %s25 = sadd.s32 %s24, 1
    %s26 = scalar_select %p23, %s24, %s25
    %p29 = pneg %p23
    %p30 = scmp.eq.s32.totalorder %s14, 1
    %p31 = por %p29, %p30
    %p32 = scmp.ne.s32.totalorder %s24, %s27
    %p33 = scmp.eq.s32.totalorder %s14, 0
    %p34 = por %p32, %p33
    %p35 = scmp.ne.s32.totalorder %s24, %s27
    %p36 = scmp.eq.s32.totalorder %s19, 1
    %p37 = por %p35, %p36
    %p38 = scmp.ne.s32.totalorder %s27, %s28
    %p39 = scmp.eq.s32.totalorder %s19, 0
    %p40 = por %p38, %p39
    %p41 = scmp.ne.s32.totalorder %s27, %s28
    %p42 = scmp.eq.s32.totalorder %s20, 1
    %p43 = por %p41, %p42
    %p45 = scmp.ne.s32.totalorder %s28, %s44
    %p46 = scmp.eq.s32.totalorder %s20, 0
    %p47 = por %p45, %p46
    %s48 = ssub.s32 %s14, %s21
    %p49 = scmp.eq.s32.totalorder %s48, 0
    %s51 = sadd.s32 %s50, 1
    %s52 = scalar_select %p49, %s50, %s51
    %p55 = pneg %p49
    %p56 = scmp.eq.s32.totalorder %s14, 1
    %p57 = por %p55, %p56
    %p58 = scmp.ne.s32.totalorder %s50, %s53
    %p59 = scmp.eq.s32.totalorder %s14, 0
    %p60 = por %p58, %p59
    %p61 = scmp.ne.s32.totalorder %s50, %s53
    %p62 = scmp.eq.s32.totalorder %s19, 1
    %p63 = por %p61, %p62
    %p64 = scmp.ne.s32.totalorder %s53, %s54
    %p65 = scmp.eq.s32.totalorder %s19, 0
    %p66 = por %p64, %p65
    %p67 = scmp.ne.s32.totalorder %s53, %s54
    %p68 = scmp.eq.s32.totalorder %s20, 1
    %p69 = por %p67, %p68
    %p71 = scmp.ne.s32.totalorder %s54, %s70
    %p72 = scmp.eq.s32.totalorder %s20, 0
    %p73 = por %p71, %p72
    %s74 = ssub.s32 %s14, %s21
    %p75 = scmp.eq.s32.totalorder %s74, 0
    %s77 = sadd.s32 %s76, 1
    %s78 = scalar_select %p75, %s76, %s77
    %p81 = pneg %p75
    %p82 = scmp.eq.s32.totalorder %s14, 1
    %p83 = por %p81, %p82
    %p84 = scmp.ne.s32.totalorder %s76, %s79
    %p85 = scmp.eq.s32.totalorder %s14, 0
    %p86 = por %p84, %p85
    %p87 = scmp.ne.s32.totalorder %s76, %s79
    %p88 = scmp.eq.s32.totalorder %s19, 1
    %p89 = por %p87, %p88
    %p90 = scmp.ne.s32.totalorder %s79, %s80
    %p91 = scmp.eq.s32.totalorder %s19, 0
    %p92 = por %p90, %p91
    %p93 = scmp.ne.s32.totalorder %s79, %s80
    %p94 = scmp.eq.s32.totalorder %s20, 1
    %p95 = por %p93, %p94
    %p97 = scmp.ne.s32.totalorder %s80, %s96
    %p98 = scmp.eq.s32.totalorder %s20, 0
    %p99 = por %p97, %p98
    %s100 = ssub.s32 %s14, %s21
    %p101 = scmp.eq.s32.totalorder %s100, 0
    %s103 = sadd.s32 %s102, 1
    %s104 = scalar_select %p101, %s102, %s103
    %p107 = pneg %p101
    %p108 = scmp.eq.s32.totalorder %s14, 1
    %p109 = por %p107, %p108
    %p110 = scmp.ne.s32.totalorder %s102, %s105
    %p111 = scmp.eq.s32.totalorder %s14, 0
    %p112 = por %p110, %p111
    %p113 = scmp.ne.s32.totalorder %s102, %s105
    %p114 = scmp.eq.s32.totalorder %s19, 1
    %p115 = por %p113, %p114
    %p116 = scmp.ne.s32.totalorder %s105, %s106
    %p117 = scmp.eq.s32.totalorder %s19, 0
    %p118 = por %p116, %p117
    %p119 = scmp.ne.s32.totalorder %s105, %s106
    %p120 = scmp.eq.s32.totalorder %s20, 1
    %p121 = por %p119, %p120
    %p123 = scmp.ne.s32.totalorder %s106, %s122
    %p124 = scmp.eq.s32.totalorder %s20, 0
    %p125 = por %p123, %p124
    %s127 = sadd.s32 %s126, 1
    %p130 = scmp.eq.s32.totalorder %s14, 1
    %p131 = scmp.ne.s32.totalorder %s126, %s128
    %p132 = scmp.eq.s32.totalorder %s14, 0
    %p133 = por %p131, %p132
    %p134 = scmp.ne.s32.totalorder %s126, %s128
    %p135 = scmp.eq.s32.totalorder %s19, 1
    %p136 = por %p134, %p135
    %p137 = scmp.ne.s32.totalorder %s128, %s129
    %p138 = scmp.eq.s32.totalorder %s19, 0
    %p139 = por %p137, %p138
    %p140 = scmp.ne.s32.totalorder %s128, %s129
    %p141 = scmp.eq.s32.totalorder %s20, 1
    %p142 = por %p140, %p141
    %p144 = scmp.ne.s32.totalorder %s129, %s143
    %p145 = scmp.eq.s32.totalorder %s20, 0
    %p146 = por %p144, %p145
    %s148 = sadd.s32 %s147, 1
    %p151 = scmp.eq.s32.totalorder %s14, 1
    %p152 = scmp.ne.s32.totalorder %s147, %s149
    %p153 = scmp.eq.s32.totalorder %s14, 0
    %p154 = por %p152, %p153
    %p155 = scmp.ne.s32.totalorder %s147, %s149
    %p156 = scmp.eq.s32.totalorder %s19, 1
    %p157 = por %p155, %p156
    %p158 = scmp.ne.s32.totalorder %s149, %s150
    %p159 = scmp.eq.s32.totalorder %s19, 0
    %p160 = por %p158, %p159
    %p161 = scmp.ne.s32.totalorder %s149, %s150
    %p162 = scmp.eq.s32.totalorder %s20, 1
    %p163 = por %p161, %p162
    %p165 = scmp.ne.s32.totalorder %s150, %s164
    %p166 = scmp.eq.s32.totalorder %s20, 0
    %p167 = por %p165, %p166
    %s169 = sadd.s32 %s168, 1
    %p172 = scmp.eq.s32.totalorder %s14, 1
    %p173 = scmp.ne.s32.totalorder %s168, %s170
    %p174 = scmp.eq.s32.totalorder %s14, 0
    %p175 = por %p173, %p174
    %p176 = scmp.ne.s32.totalorder %s168, %s170
    %p177 = scmp.eq.s32.totalorder %s19, 1
    %p178 = por %p176, %p177
    %p179 = scmp.ne.s32.totalorder %s170, %s171
    %p180 = scmp.eq.s32.totalorder %s19, 0
    %p181 = por %p179, %p180
    %p182 = scmp.ne.s32.totalorder %s170, %s171
    %p183 = scmp.eq.s32.totalorder %s20, 1
    %p184 = por %p182, %p183
    %p186 = scmp.ne.s32.totalorder %s171, %s185
    %p187 = scmp.eq.s32.totalorder %s20, 0
    %p188 = por %p186, %p187
    %s190 = sadd.s32 %s189, 1
    %p193 = scmp.eq.s32.totalorder %s14, 1
    %p194 = scmp.ne.s32.totalorder %s189, %s191
    %p195 = scmp.eq.s32.totalorder %s14, 0
    %p196 = por %p194, %p195
    %p197 = scmp.ne.s32.totalorder %s189, %s191
    %p198 = scmp.eq.s32.totalorder %s19, 1
    %p199 = por %p197, %p198
    %p200 = scmp.ne.s32.totalorder %s191, %s192
    %p201 = scmp.eq.s32.totalorder %s19, 0
    %p202 = por %p200, %p201
    %p203 = scmp.ne.s32.totalorder %s191, %s192
    %p204 = scmp.eq.s32.totalorder %s20, 1
    %p205 = por %p203, %p204
    %p207 = scmp.ne.s32.totalorder %s192, %s206
    %p208 = scmp.eq.s32.totalorder %s20, 0
    %p209 = por %p207, %p208
    %s210 = ssub.s32 %s14, %s21
    %p211 = scmp.eq.s32.totalorder %s210, 0
    %s213 = sadd.s32 %s212, 1
    %s214 = scalar_select %p211, %s212, %s213
    %p217 = pneg %p211
    %p218 = scmp.eq.s32.totalorder %s14, 1
    %p219 = por %p217, %p218
    %p220 = scmp.ne.s32.totalorder %s212, %s215
    %p221 = scmp.eq.s32.totalorder %s14, 0
    %p222 = por %p220, %p221
    %p223 = scmp.ne.s32.totalorder %s212, %s215
    %p224 = scmp.eq.s32.totalorder %s19, 1
    %p225 = por %p223, %p224
    %p226 = scmp.ne.s32.totalorder %s215, %s216
    %p227 = scmp.eq.s32.totalorder %s19, 0
    %p228 = por %p226, %p227
    %p229 = scmp.ne.s32.totalorder %s215, %s216
    %p230 = scmp.eq.s32.totalorder %s20, 1
    %p231 = por %p229, %p230
    %p233 = scmp.ne.s32.totalorder %s216, %s232
    %p234 = scmp.eq.s32.totalorder %s20, 0
    %p235 = por %p233, %p234
    %p236 = scmp.le.s32.totalorder 1, %s14
    %p237 = scmp.lt.s32.totalorder %s14, 3
    %p238 = pnand %p236, %p237
    %p239 = pneg %p238
    // Predicated region
    $region9: #{gemnet_forward.38} parent=5 // pred_check
      _
    $region10: #{gemnet_forward.38} parent=5 // pred_check_branch
      %241 = sbr.rel (%p238) target = $region12
    $region11: #{gemnet_forward.38} parent=5 // pred_region
      %s242 = ssub.s32 %s14, 1
      // Predicated region
      $region13: #{gemnet_forward.38} parent=11 // pred_check
        %p243 = pneg %p139
      $region14: #{gemnet_forward.38} parent=11 // pred_check_branch
        %245 = sbr.rel (%p243) target = $region16
      $region15: #{gemnet_forward.38} parent=11 // pred_region
        _
      $region16: #{gemnet_forward.38} parent=11 // pred_fallthru
        _
      // Predicated region
      $region17: #{gemnet_forward.38} parent=11 // pred_check
        %p246 = pneg %p160
      $region18: #{gemnet_forward.38} parent=11 // pred_check_branch
        %248 = sbr.rel (%p246) target = $region20
      $region19: #{gemnet_forward.38} parent=11 // pred_region
        _
      $region20: #{gemnet_forward.38} parent=11 // pred_fallthru
        _
      // Predicated region
      $region21: #{gemnet_forward.38} parent=11 // pred_check
        %p249 = pneg %p181
      $region22: #{gemnet_forward.38} parent=11 // pred_check_branch
        %251 = sbr.rel (%p249) target = $region24
      $region23: #{gemnet_forward.38} parent=11 // pred_region
        _
      $region24: #{gemnet_forward.38} parent=11 // pred_fallthru
        _
      // Predicated region
      $region25: #{gemnet_forward.38} parent=11 // pred_check
        %p252 = pneg %p202
      $region26: #{gemnet_forward.38} parent=11 // pred_check_branch
        %254 = sbr.rel (%p252) target = $region28
      $region27: #{gemnet_forward.38} parent=11 // pred_region
        _
      $region28: #{gemnet_forward.38} parent=11 // pred_fallthru
        _
    $region12: #{gemnet_forward.38} parent=5 // pred_fallthru
      _
    %p255 = scmp.lt.s32.totalorder %s14, 2
    // Predicated region
    $region29: #{gemnet_forward.38} parent=5 // pred_check
      %p256 = pneg %p255
    $region30: #{gemnet_forward.38} parent=5 // pred_check_branch
      %258 = sbr.rel (%p256) target = $region32
    $region31: #{gemnet_forward.38} parent=5 // pred_region
      // Predicated region
      $region33: #{gemnet_forward.38} parent=31 // pred_check
        %p259 = pneg %p34
      $region34: #{gemnet_forward.38} parent=31 // pred_check_branch
        %261 = sbr.rel (%p259) target = $region36
      $region35: #{gemnet_forward.38} parent=31 // pred_region
        %s262 = smul.u32 2, %s14
        %p263 = scmp.lt.s32.totalorder %s262, 3
        %s264 = scalar_select %p263, %s262, 3
        %s265 = smul.addr %s264, 8
        %s266 = scalar_lea.vmem %s0, %s265
        %s267 = smul.u32 2, %s14
      $region36: #{gemnet_forward.38} parent=31 // pred_fallthru
        _
      // Predicated region
      $region37: #{gemnet_forward.38} parent=31 // pred_check
        %p268 = pneg %p60
      $region38: #{gemnet_forward.38} parent=31 // pred_check_branch
        %270 = sbr.rel (%p268) target = $region40
      $region39: #{gemnet_forward.38} parent=31 // pred_region
        %s271 = smul.u32 2, %s14
        %p272 = scmp.lt.s32.totalorder %s271, 3
        %s273 = scalar_select %p272, %s271, 3
        %s274 = smul.addr %s273, 8
        %s275 = scalar_lea.vmem %s1, %s274
        %s276 = smul.u32 2, %s14
      $region40: #{gemnet_forward.38} parent=31 // pred_fallthru
        _
      // Predicated region
      $region41: #{gemnet_forward.38} parent=31 // pred_check
        %p277 = pneg %p86
      $region42: #{gemnet_forward.38} parent=31 // pred_check_branch
        %279 = sbr.rel (%p277) target = $region44
      $region43: #{gemnet_forward.38} parent=31 // pred_region
        %s280 = smul.u32 2, %s14
        %p281 = scmp.lt.s32.totalorder %s280, 3
        %s282 = scalar_select %p281, %s280, 3
        %s283 = smul.addr %s282, 8
        %s284 = scalar_lea.vmem %s2, %s283
        %s285 = smul.u32 2, %s14
      $region44: #{gemnet_forward.38} parent=31 // pred_fallthru
        _
      // Predicated region
      $region45: #{gemnet_forward.38} parent=31 // pred_check
        %p286 = pneg %p112
      $region46: #{gemnet_forward.38} parent=31 // pred_check_branch
        %288 = sbr.rel (%p286) target = $region48
      $region47: #{gemnet_forward.38} parent=31 // pred_region
        %s289 = smul.u32 2, %s14
        %p290 = scmp.lt.s32.totalorder %s289, 3
        %s291 = scalar_select %p290, %s289, 3
        %s292 = smul.addr %s291, 8
        %s293 = scalar_lea.vmem %s3, %s292
        %s294 = smul.u32 2, %s14
      $region48: #{gemnet_forward.38} parent=31 // pred_fallthru
        _
    $region32: #{gemnet_forward.38} parent=5 // pred_fallthru
      _
    %p295 = scmp.le.s32.totalorder 1, %s14
    %p296 = scmp.lt.s32.totalorder %s14, 3
    %p297 = pnand %p295, %p296
    %p298 = pneg %p297
    // Predicated region
    $region49: #{gemnet_forward.38} parent=5 // pred_check
      _
    $region50: #{gemnet_forward.38} parent=5 // pred_check_branch
      %300 = sbr.rel (%p297) target = $region52
    $region51: #{gemnet_forward.38} parent=5 // pred_region
      %s301 = ssub.s32 %s14, 1
      %s302 = smul.u32 2, %s19
      %p303 = scmp.lt.s32.totalorder %s302, 3
      %s304 = scalar_select %p303, %s302, 3
      %s305 = smul.addr %s304, 8
      %s306 = scalar_lea.vmem %s0, %s305
      %p307 = pneg %p40
      %p308 = pneg %p37
      %s309 = smul.u32 2, %s19
      %p310 = scmp.lt.s32.totalorder %s309, 3
      %s311 = scalar_select %p310, %s309, 3
      %s312 = smul.addr %s311, 8
      %s313 = scalar_lea.vmem %s1, %s312
      %p314 = pneg %p66
      %p315 = pneg %p63
      %s316 = smul.u32 2, %s19
      %p317 = scmp.lt.s32.totalorder %s316, 3
      %s318 = scalar_select %p317, %s316, 3
      %s319 = smul.addr %s318, 8
      %s320 = scalar_lea.vmem %s2, %s319
      %p321 = pneg %p92
      %p322 = pneg %p89
      %s323 = smul.u32 2, %s19
      %p324 = scmp.lt.s32.totalorder %s323, 3
      %s325 = scalar_select %p324, %s323, 3
      %s326 = smul.addr %s325, 8
      %s327 = scalar_lea.vmem %s3, %s326
      %p328 = pneg %p118
      %p329 = pneg %p115
      %p330 = pneg %p139
      %p331 = pneg %p136
      %p332 = pneg %p160
      %p333 = pneg %p157
      %p334 = pneg %p181
      %p335 = pneg %p178
      %p336 = pneg %p202
      %p337 = pneg %p199
      %p338 = pneg %p228
      %p339 = pneg %p225
      %s340 = smul.u32 2, %s19
      %p341 = scmp.lt.s32.totalorder %s340, 3
      %s342 = scalar_select %p341, %s340, 3
      %s343 = smul.addr %s342, 8
      %s344 = scalar_lea.vmem %s8, %s343
      %s345 = smul.u32 2, %s19
      %p346 = scmp.lt.s32.totalorder %s345, 3
      %s347 = scalar_select %p346, %s345, 3
      %s348 = smul.addr %s347, 8
      %s349 = scalar_lea.vmem %s0, %s348
      %s350 = smul.u32 2, %s19
      %s351 = smul.u32 2, %s19
      %p352 = scmp.lt.s32.totalorder %s351, 3
      %s353 = scalar_select %p352, %s351, 3
      %s354 = smul.addr %s353, 8
      %s355 = scalar_lea.vmem %s1, %s354
      %s356 = smul.u32 2, %s19
      %s357 = smul.u32 2, %s19
      %p358 = scmp.lt.s32.totalorder %s357, 3
      %s359 = scalar_select %p358, %s357, 3
      %s360 = smul.addr %s359, 8
      %s361 = scalar_lea.vmem %s2, %s360
      %s362 = smul.u32 2, %s19
      %s363 = smul.u32 2, %s19
      %p364 = scmp.lt.s32.totalorder %s363, 3
      %s365 = scalar_select %p364, %s363, 3
      %s366 = smul.addr %s365, 8
      %s367 = scalar_lea.vmem %s3, %s366
      %s368 = smul.u32 2, %s19
      %s369 = smul.u32 2, %s19
      %p370 = scmp.lt.s32.totalorder %s369, 3
      %s371 = scalar_select %p370, %s369, 3
      %s372 = smul.addr %s371, 8
      %s373 = scalar_lea.vmem %s8, %s372
      %s374 = smul.u32 2, %s19
      %v376 = vld [vmem:[%s355] sm:$0xff]
      %v377 = vld [vmem:[%s355 + $0x8] sm:$0xff]
      %v378 = vld [vmem:[%s361] sm:$0xff]
      %v379 = vld [vmem:[%s361 + $0x8] sm:$0xff]
      %382 = vrot.lane.b32.xlu0 %v378, 96
      %v383 = vpop.permute.xlu0 %382
      %384 = vrot.lane.b32.xlu0 %v379, 96
      %v385 = vpop.permute.xlu0 %384
      %v388 = vadd.f32 %v376, %v383
      %v389 = vadd.f32 %v377, %v385
      %v390 = vmul.f32 %v388, 0.70710677
      %v391 = vmul.f32 %v389, 0.70710677
      %v392 = vld [vmem:[%s349] sm:$0xff]
      %v393 = vld [vmem:[%s349 + $0x8] sm:$0xff]
      %v394 = vadd.f32 %v392, %v390
      %v395 = vadd.f32 %v393, %v391
      %v396 = vmul.f32 %v394, 0.70710677
      %v397 = vmul.f32 %v395, 0.70710677
      %v398 = vld [vmem:[%s4] sm:$0xf]
      %v399 = vld [vmem:[%s4 + $0x4] sm:$0xf]
      %v400 = vld [vmem:[%s4 + $0x8] sm:$0xf]
      %v401 = vld [vmem:[%s4 + $0xc] sm:$0xf]
      %v402 = vpack.c.bf16 %v397, %v396
      %v407 = vunpack.c.l.b16 %v398
      %v408 = vunpack.c.l.b16 %v399
      %v409 = vunpack.c.l.b16 %v400
      %v410 = vunpack.c.l.b16 %v401
      %v411 = vpack.c.b16 %v408, %v407
      %v412 = vpack.c.b16 %v410, %v409
      %vm415 = vcmask 261120
      %v417 = vsel %vm415, %v402, 0
      %419 = vmatprep.subr.bf16.mxu0 0
      %420 = vmatpush1.bf16.msra.mxu0 %v411
      %421 = vmatprep.subr.bf16.mxu0 0
      %422 = vmatpush1.bf16.msra.mxu0 %v412
      %423 = vmatprep.subr.bf16.mxu0 0
      %424 = vmatpush1.bf16.msra.mxu0 0
      %425 = vmatprep.subr.bf16.mxu0 0
      %426 = vmatpush1.bf16.msra.mxu0 0
      %427 = vmatprep.subr.bf16.mxu0 0
      %428 = vmatpush1.bf16.msra.mxu0 0
      %429 = vmatprep.subr.bf16.mxu0 0
      %430 = vmatpush1.bf16.msra.mxu0 0
      %431 = vmatprep.subr.bf16.mxu0 0
      %432 = vmatpush1.bf16.msra.mxu0 0
      %433 = vmatprep.subr.bf16.mxu0 0
      %434 = vmatpush1.bf16.msra.mxu0 0
      %435 = vmatprep.subr.bf16.mxu0 0
      %436 = vmatpush1.bf16.msra.mxu0 0
      %437 = vmatprep.subr.bf16.mxu0 0
      %438 = vmatpush1.bf16.msra.mxu0 0
      %439 = vmatprep.subr.bf16.mxu0 0
      %440 = vmatpush1.bf16.msra.mxu0 0
      %441 = vmatprep.subr.bf16.mxu0 0
      %442 = vmatpush1.bf16.msra.mxu0 0
      %443 = vmatprep.subr.bf16.mxu0 0
      %444 = vmatpush1.bf16.msra.mxu0 0
      %445 = vmatprep.subr.bf16.mxu0 0
      %446 = vmatpush1.bf16.msra.mxu0 0
      %447 = vmatprep.subr.bf16.mxu0 0
      %448 = vmatpush1.bf16.msra.mxu0 0
      %449 = vmatprep.subr.bf16.mxu0 0
      %450 = vmatpush1.bf16.msra.mxu0 0
      %451 = vmatprep.mubr.bf16.mxu0 0
      %452 = vmatmul.mubr.bf16.gmra.mrb[0].mxu0 %v417
      %v453 = vpop.f32.mrb[0].mxu0
      %v454 = vadd.f32 0.0, %v453
      %v455 = vpop.f32.mrb[0].mxu0
      %v456 = vpop.f32.mrb[0].mxu0
      %v457 = vadd.f32 0.0, %v456
      %v458 = vpop.f32.mrb[0].mxu0
      %459 = vdwg.mxu0
      %v460 = vxor.u32 %v454, 2147483648
      %v461 = vxor.u32 %v457, 2147483648
      %v462 = vmul.f32 %v460, 1.442695
      %v463 = vpow.pop %v462
      %v464 = vmul.f32 %v461, 1.442695
      %v465 = vpow.pop %v464
      %v466 = vadd.f32 %v463, 1.0
      %v467 = vadd.f32 %v465, 1.0
      %v468 = vrcp.pop %v466
      %v469 = vmul.f32 1.0, %v468
      %v470 = vrcp.pop %v467
      %v471 = vmul.f32 1.0, %v470
      %v472 = vmul.f32 %v454, %v469
      %v473 = vmul.f32 %v457, %v471
      %v474 = vmul.f32 %v472, 1.6666666
      %v475 = vmul.f32 %v473, 1.6666666
      %v476 = vld [vmem:[%s5] sm:$0xf]
      %v477 = vld [vmem:[%s5 + $0x4] sm:$0xf]
      %v478 = vld [vmem:[%s5 + $0x8] sm:$0xf]
      %v479 = vld [vmem:[%s5 + $0xc] sm:$0xf]
      %v480 = vpack.c.bf16 %v475, %v474
      %v485 = vunpack.c.l.b16 %v476
      %v486 = vunpack.c.l.b16 %v477
      %v487 = vunpack.c.l.b16 %v478
      %v488 = vunpack.c.l.b16 %v479
      %v489 = vpack.c.b16 %v486, %v485
      %v490 = vpack.c.b16 %v488, %v487
      %v494 = vsel %vm415, %v480, 0
      %496 = vmatprep.subr.bf16.mxu0 0
      %497 = vmatpush1.bf16.msra.mxu0 %v489
      %498 = vmatprep.subr.bf16.mxu0 0
      %499 = vmatpush1.bf16.msra.mxu0 %v490
      %500 = vmatprep.subr.bf16.mxu0 0
      %501 = vmatpush1.bf16.msra.mxu0 0
      %502 = vmatprep.subr.bf16.mxu0 0
      %503 = vmatpush1.bf16.msra.mxu0 0
      %504 = vmatprep.subr.bf16.mxu0 0
      %505 = vmatpush1.bf16.msra.mxu0 0
      %506 = vmatprep.subr.bf16.mxu0 0
      %507 = vmatpush1.bf16.msra.mxu0 0
      %508 = vmatprep.subr.bf16.mxu0 0
      %509 = vmatpush1.bf16.msra.mxu0 0
      %510 = vmatprep.subr.bf16.mxu0 0
      %511 = vmatpush1.bf16.msra.mxu0 0
      %512 = vmatprep.subr.bf16.mxu0 0
      %513 = vmatpush1.bf16.msra.mxu0 0
      %514 = vmatprep.subr.bf16.mxu0 0
      %515 = vmatpush1.bf16.msra.mxu0 0
      %516 = vmatprep.subr.bf16.mxu0 0
      %517 = vmatpush1.bf16.msra.mxu0 0
      %518 = vmatprep.subr.bf16.mxu0 0
      %519 = vmatpush1.bf16.msra.mxu0 0
      %520 = vmatprep.subr.bf16.mxu0 0
      %521 = vmatpush1.bf16.msra.mxu0 0
      %522 = vmatprep.subr.bf16.mxu0 0
      %523 = vmatpush1.bf16.msra.mxu0 0
      %524 = vmatprep.subr.bf16.mxu0 0
      %525 = vmatpush1.bf16.msra.mxu0 0
      %526 = vmatprep.subr.bf16.mxu0 0
      %527 = vmatpush1.bf16.msra.mxu0 0
      %528 = vmatprep.mubr.bf16.mxu0 0
      %529 = vmatmul.mubr.bf16.gmra.mrb[0].mxu0 %v494
      %v530 = vpop.f32.mrb[0].mxu0
      %v531 = vadd.f32 0.0, %v530
      %v532 = vpop.f32.mrb[0].mxu0
      %v533 = vpop.f32.mrb[0].mxu0
      %v534 = vadd.f32 0.0, %v533
      %v535 = vpop.f32.mrb[0].mxu0
      %536 = vdwg.mxu0
      %v537 = vxor.u32 %v531, 2147483648
      %v538 = vxor.u32 %v534, 2147483648
      %v539 = vmul.f32 %v537, 1.442695
      %v540 = vpow.pop %v539
      %v541 = vmul.f32 %v538, 1.442695
      %v542 = vpow.pop %v541
      %v543 = vadd.f32 %v540, 1.0
      %v544 = vadd.f32 %v542, 1.0
      %v545 = vrcp.pop %v543
      %v546 = vmul.f32 1.0, %v545
      %v547 = vrcp.pop %v544
      %v548 = vmul.f32 1.0, %v547
      %v549 = vmul.f32 %v531, %v546
      %v550 = vmul.f32 %v534, %v548
      %v551 = vmul.f32 %v549, 1.6666666
      %v552 = vmul.f32 %v550, 1.6666666
      %v553 = vadd.f32 %v396, %v551
      %v554 = vadd.f32 %v397, %v552
      %v555 = vmul.f32 %v553, 0.70710677
      %v556 = vmul.f32 %v554, 0.70710677
      %v557 = vld [vmem:[%s367] sm:$0xff]
      %v558 = vld [vmem:[%s367 + $0x8] sm:$0xff]
      %v559 = vadd.f32 %v557, %v555
      %v560 = vadd.f32 %v558, %v556
      %v561 = vmul.f32 %v559, 0.70710677
      %v562 = vmul.f32 %v560, 0.70710677
      %v563 = vld [vmem:[%s6] sm:$0xf]
      %v564 = vld [vmem:[%s6 + $0x4] sm:$0xf]
      %v565 = vld [vmem:[%s6 + $0x8] sm:$0xf]
      %v566 = vld [vmem:[%s6 + $0xc] sm:$0xf]
      %v567 = vpack.c.bf16 %v562, %v561
      %v572 = vunpack.c.l.b16 %v563
      %v573 = vunpack.c.l.b16 %v564
      %v574 = vunpack.c.l.b16 %v565
      %v575 = vunpack.c.l.b16 %v566
      %v576 = vpack.c.b16 %v573, %v572
      %v577 = vpack.c.b16 %v575, %v574
      %v581 = vsel %vm415, %v567, 0
      %583 = vmatprep.subr.bf16.mxu0 0
      %584 = vmatpush1.bf16.msra.mxu0 %v576
      %585 = vmatprep.subr.bf16.mxu0 0
      %586 = vmatpush1.bf16.msra.mxu0 %v577
      %587 = vmatprep.subr.bf16.mxu0 0
      %588 = vmatpush1.bf16.msra.mxu0 0
      %589 = vmatprep.subr.bf16.mxu0 0
      %590 = vmatpush1.bf16.msra.mxu0 0
      %591 = vmatprep.subr.bf16.mxu0 0
      %592 = vmatpush1.bf16.msra.mxu0 0
      %593 = vmatprep.subr.bf16.mxu0 0
      %594 = vmatpush1.bf16.msra.mxu0 0
      %595 = vmatprep.subr.bf16.mxu0 0
      %596 = vmatpush1.bf16.msra.mxu0 0
      %597 = vmatprep.subr.bf16.mxu0 0
      %598 = vmatpush1.bf16.msra.mxu0 0
      %599 = vmatprep.subr.bf16.mxu0 0
      %600 = vmatpush1.bf16.msra.mxu0 0
      %601 = vmatprep.subr.bf16.mxu0 0
      %602 = vmatpush1.bf16.msra.mxu0 0
      %603 = vmatprep.subr.bf16.mxu0 0
      %604 = vmatpush1.bf16.msra.mxu0 0
      %605 = vmatprep.subr.bf16.mxu0 0
      %606 = vmatpush1.bf16.msra.mxu0 0
      %607 = vmatprep.subr.bf16.mxu0 0
      %608 = vmatpush1.bf16.msra.mxu0 0
      %609 = vmatprep.subr.bf16.mxu0 0
      %610 = vmatpush1.bf16.msra.mxu0 0
      %611 = vmatprep.subr.bf16.mxu0 0
      %612 = vmatpush1.bf16.msra.mxu0 0
      %613 = vmatprep.subr.bf16.mxu0 0
      %614 = vmatpush1.bf16.msra.mxu0 0
      %615 = vmatprep.mubr.bf16.mxu0 0
      %616 = vmatmul.mubr.bf16.gmra.mrb[0].mxu0 %v581
      %v617 = vpop.f32.mrb[0].mxu0
      %v618 = vadd.f32 0.0, %v617
      %v619 = vpop.f32.mrb[0].mxu0
      %v620 = vpop.f32.mrb[0].mxu0
      %v621 = vadd.f32 0.0, %v620
      %v622 = vpop.f32.mrb[0].mxu0
      %623 = vdwg.mxu0
      %v624 = vxor.u32 %v618, 2147483648
      %v625 = vxor.u32 %v621, 2147483648
      %v626 = vmul.f32 %v624, 1.442695
      %v627 = vpow.pop %v626
      %v628 = vmul.f32 %v625, 1.442695
      %v629 = vpow.pop %v628
      %v630 = vadd.f32 %v627, 1.0
      %v631 = vadd.f32 %v629, 1.0
      %v632 = vrcp.pop %v630
      %v633 = vmul.f32 1.0, %v632
      %v634 = vrcp.pop %v631
      %v635 = vmul.f32 1.0, %v634
      %v636 = vmul.f32 %v618, %v633
      %v637 = vmul.f32 %v621, %v635
      %v638 = vmul.f32 %v636, 1.6666666
      %v639 = vmul.f32 %v637, 1.6666666
      %v640 = vld [vmem:[%s7] sm:$0xf]
      %v641 = vld [vmem:[%s7 + $0x4] sm:$0xf]
      %v642 = vld [vmem:[%s7 + $0x8] sm:$0xf]
      %v643 = vld [vmem:[%s7 + $0xc] sm:$0xf]
      %v644 = vpack.c.bf16 %v639, %v638
      %v649 = vunpack.c.l.b16 %v640
      %v650 = vunpack.c.l.b16 %v641
      %v651 = vunpack.c.l.b16 %v642
      %v652 = vunpack.c.l.b16 %v643
      %v653 = vpack.c.b16 %v650, %v649
      %v654 = vpack.c.b16 %v652, %v651
      %v658 = vsel %vm415, %v644, 0
      %660 = vmatprep.subr.bf16.mxu0 0
      %661 = vmatpush1.bf16.msra.mxu0 %v653
      %662 = vmatprep.subr.bf16.mxu0 0
      %663 = vmatpush1.bf16.msra.mxu0 %v654
      %664 = vmatprep.subr.bf16.mxu0 0
      %665 = vmatpush1.bf16.msra.mxu0 0
      %666 = vmatprep.subr.bf16.mxu0 0
      %667 = vmatpush1.bf16.msra.mxu0 0
      %668 = vmatprep.subr.bf16.mxu0 0
      %669 = vmatpush1.bf16.msra.mxu0 0
      %670 = vmatprep.subr.bf16.mxu0 0
      %671 = vmatpush1.bf16.msra.mxu0 0
      %672 = vmatprep.subr.bf16.mxu0 0
      %673 = vmatpush1.bf16.msra.mxu0 0
      %674 = vmatprep.subr.bf16.mxu0 0
      %675 = vmatpush1.bf16.msra.mxu0 0
      %676 = vmatprep.subr.bf16.mxu0 0
      %677 = vmatpush1.bf16.msra.mxu0 0
      %678 = vmatprep.subr.bf16.mxu0 0
      %679 = vmatpush1.bf16.msra.mxu0 0
      %680 = vmatprep.subr.bf16.mxu0 0
      %681 = vmatpush1.bf16.msra.mxu0 0
      %682 = vmatprep.subr.bf16.mxu0 0
      %683 = vmatpush1.bf16.msra.mxu0 0
      %684 = vmatprep.subr.bf16.mxu0 0
      %685 = vmatpush1.bf16.msra.mxu0 0
      %686 = vmatprep.subr.bf16.mxu0 0
      %687 = vmatpush1.bf16.msra.mxu0 0
      %688 = vmatprep.subr.bf16.mxu0 0
      %689 = vmatpush1.bf16.msra.mxu0 0
      %690 = vmatprep.subr.bf16.mxu0 0
      %691 = vmatpush1.bf16.msra.mxu0 0
      %692 = vmatprep.mubr.bf16.mxu0 0
      %693 = vmatmul.mubr.bf16.gmra.mrb[0].mxu0 %v658
      %v694 = vpop.f32.mrb[0].mxu0
      %v695 = vadd.f32 0.0, %v694
      %v696 = vpop.f32.mrb[0].mxu0
      %v697 = vpop.f32.mrb[0].mxu0
      %v698 = vadd.f32 0.0, %v697
      %v699 = vpop.f32.mrb[0].mxu0
      %700 = vdwg.mxu0
      %v701 = vxor.u32 %v695, 2147483648
      %v702 = vxor.u32 %v698, 2147483648
      %v703 = vmul.f32 %v701, 1.442695
      %v704 = vpow.pop %v703
      %v705 = vmul.f32 %v702, 1.442695
      %v706 = vpow.pop %v705
      %v707 = vadd.f32 %v704, 1.0
      %v708 = vadd.f32 %v706, 1.0
      %v709 = vrcp.pop %v707
      %v710 = vmul.f32 1.0, %v709
      %v711 = vrcp.pop %v708
      %v712 = vmul.f32 1.0, %v711
      %v713 = vmul.f32 %v695, %v710
      %v714 = vmul.f32 %v698, %v712
      %v715 = vmul.f32 %v713, 1.6666666
      %v716 = vmul.f32 %v714, 1.6666666
      %v717 = vadd.f32 %v561, %v715
      %v718 = vadd.f32 %v562, %v716
      %v719 = vmul.f32 %v717, 0.70710677
      %v720 = vmul.f32 %v718, 0.70710677
      %721 = vst.msk [vmem:[%s373] sm:$0xff] %vm415, %v719
      %722 = vst.msk [vmem:[%s373 + $0x8] sm:$0xff] %vm415, %v720
      %s723 = smul.u32 2, %s19
      %p724 = scmp.lt.s32.totalorder %s723, 3
      %s725 = scalar_select %p724, %s723, 3
      %s726 = smul.addr %s725, 8
      %s727 = scalar_lea.vmem %s8, %s726
      // Predicated region
      $region53: #{gemnet_forward.38} parent=51 // pred_check
        %p728 = pneg %p225
      $region54: #{gemnet_forward.38} parent=51 // pred_check_branch
        %730 = sbr.rel (%p728) target = $region56
      $region55: #{gemnet_forward.38} parent=51 // pred_region
        %s731 = smul.u32 2, %s19
      $region56: #{gemnet_forward.38} parent=51 // pred_fallthru
        _
    $region52: #{gemnet_forward.38} parent=5 // pred_fallthru
      _
    %p732 = scmp.le.s32.totalorder 2, %s14
    // Predicated region
    $region57: #{gemnet_forward.38} parent=5 // pred_check
      %p733 = pneg %p732
    $region58: #{gemnet_forward.38} parent=5 // pred_check_branch
      %735 = sbr.rel (%p733) target = $region60
    $region59: #{gemnet_forward.38} parent=5 // pred_region
      %s736 = ssub.s32 %s14, 2
      // Predicated region
      $region61: #{gemnet_forward.38} parent=59 // pred_check
        %p737 = pneg %p231
      $region62: #{gemnet_forward.38} parent=59 // pred_check_branch
        %739 = sbr.rel (%p737) target = $region64
      $region63: #{gemnet_forward.38} parent=59 // pred_region
        %s740 = smul.u32 2, %s20
        %p741 = scmp.lt.s32.totalorder %s740, 3
        %s742 = scalar_select %p741, %s740, 3
        %s743 = smul.addr %s742, 8
        %s744 = scalar_lea.vmem %s8, %s743
      $region64: #{gemnet_forward.38} parent=59 // pred_fallthru
        _
    $region60: #{gemnet_forward.38} parent=5 // pred_fallthru
      _
  $region6: #{gemnet_forward.38} parent=0 // loop_footer
    %s18 = sadd.s32 1, %s14
  $region7: #{gemnet_forward.38} parent=0 // loop_footer_branch
    %13 = sbr.rel target = $region3
  $region8: #{gemnet_forward.38} parent=0 // loop_exit
    _

// kernel: gemnet_forward.37
$region0: #{gemnet_forward.37}
  #allocation0 [shape = 'u32[]', space=smem, size = 0x4, offset = 0x4, fixed_abs, tag = 'smem constant byte address 0x4 - core index']
  #allocation1 [shape = 'u32[144,128]{1,0:T(1,128)}', space=vmem, size = 0x12000, scoped, tag = 'internal scratch']
  %s0 = inlined_call_operand.vmem [shape: f32[32,8,8], index: 0, kind: input, shape index: {}]
  %s1 = inlined_call_operand.vmem [shape: f32[32,8,16], index: 1, kind: input, shape index: {}]
  %s2 = inlined_call_operand.vmem [shape: bf16[128,16], index: 2, kind: input, shape index: {}]
  %s3 = inlined_call_operand.vmem [shape: bf16[16,64], index: 3, kind: input, shape index: {}]
  %s4 = inlined_call_operand.vmem [shape: f32[32,64], index: 4, kind: output, shape index: {}]
  %s5 = sld [smem:[#allocation0]]
  $region49: #{gemnet_forward.37} parent=0
    _
  %s7 = ssub.s32 1, %s5
  %s8 = scalar_select 0, %s7, %s5
  loop: start=0, step=1, limit=4
  $region2: #{gemnet_forward.37} parent=0 // loop_pre_header
    _
  $region3: #{gemnet_forward.37} parent=0 // loop_header
    %s10 = sphi 0, %s14
    %p11 = scmp.ge.s32.totalorder %s10, 4
    %s20 = sphi 0, %s22
    %s23 = sphi 0, %s20
    %s24 = sphi 0, %s23
    %s40 = sphi 0, %s24
    %s46 = sphi 0, %s48
    %s49 = sphi 0, %s46
    %s50 = sphi 0, %s49
    %s66 = sphi 0, %s50
    %s70 = sphi 0, %s70
    %s72 = sphi 0, %s70
    %s73 = sphi 0, %s72
    %s87 = sphi 0, %s73
    %s91 = sphi 0, %s91
    %s93 = sphi 0, %s91
    %s94 = sphi 0, %s93
    %s108 = sphi 0, %s94
    %s114 = sphi 0, %s116
    %s117 = sphi 0, %s114
    %s118 = sphi 0, %s117
    %s134 = sphi 0, %s118
  $region4: #{gemnet_forward.37} parent=0 // loop_header_branch
    %13 = sbr.rel (%p11) target = $region8
  $region5: #{gemnet_forward.37} parent=0 // loop_body
    %s15 = ssub.s32 %s10, 1
    %s16 = ssub.s32 %s10, 2
    %s17 = sadd.s32 %s10, 1
    %s18 = ssub.s32 %s10, %s17
    %p19 = scmp.eq.s32.totalorder %s18, 0
    %s21 = sadd.s32 %s20, 1
    %s22 = scalar_select %p19, %s20, %s21
    %p25 = pneg %p19
    %p26 = scmp.eq.s32.totalorder %s10, 1
    %p27 = por %p25, %p26
    %p28 = scmp.ne.s32.totalorder %s20, %s23
    %p29 = scmp.eq.s32.totalorder %s10, 0
    %p30 = por %p28, %p29
    %p31 = scmp.ne.s32.totalorder %s20, %s23
    %p32 = scmp.eq.s32.totalorder %s15, 1
    %p33 = por %p31, %p32
    %p34 = scmp.ne.s32.totalorder %s23, %s24
    %p35 = scmp.eq.s32.totalorder %s15, 0
    %p36 = por %p34, %p35
    %p37 = scmp.ne.s32.totalorder %s23, %s24
    %p38 = scmp.eq.s32.totalorder %s16, 1
    %p39 = por %p37, %p38
    %p41 = scmp.ne.s32.totalorder %s24, %s40
    %p42 = scmp.eq.s32.totalorder %s16, 0
    %p43 = por %p41, %p42
    %s44 = ssub.s32 %s10, %s17
    %p45 = scmp.eq.s32.totalorder %s44, 0
    %s47 = sadd.s32 %s46, 1
    %s48 = scalar_select %p45, %s46, %s47
    %p51 = pneg %p45
    %p52 = scmp.eq.s32.totalorder %s10, 1
    %p53 = por %p51, %p52
    %p54 = scmp.ne.s32.totalorder %s46, %s49
    %p55 = scmp.eq.s32.totalorder %s10, 0
    %p56 = por %p54, %p55
    %p57 = scmp.ne.s32.totalorder %s46, %s49
    %p58 = scmp.eq.s32.totalorder %s15, 1
    %p59 = por %p57, %p58
    %p60 = scmp.ne.s32.totalorder %s49, %s50
    %p61 = scmp.eq.s32.totalorder %s15, 0
    %p62 = por %p60, %p61
    %p63 = scmp.ne.s32.totalorder %s49, %s50
    %p64 = scmp.eq.s32.totalorder %s16, 1
    %p65 = por %p63, %p64
    %p67 = scmp.ne.s32.totalorder %s50, %s66
    %p68 = scmp.eq.s32.totalorder %s16, 0
    %p69 = por %p67, %p68
    %s71 = sadd.s32 %s70, 1
    %p74 = scmp.eq.s32.totalorder %s10, 1
    %p75 = scmp.ne.s32.totalorder %s70, %s72
    %p76 = scmp.eq.s32.totalorder %s10, 0
    %p77 = por %p75, %p76
    %p78 = scmp.ne.s32.totalorder %s70, %s72
    %p79 = scmp.eq.s32.totalorder %s15, 1
    %p80 = por %p78, %p79
    %p81 = scmp.ne.s32.totalorder %s72, %s73
    %p82 = scmp.eq.s32.totalorder %s15, 0
    %p83 = por %p81, %p82
    %p84 = scmp.ne.s32.totalorder %s72, %s73
    %p85 = scmp.eq.s32.totalorder %s16, 1
    %p86 = por %p84, %p85
    %p88 = scmp.ne.s32.totalorder %s73, %s87
    %p89 = scmp.eq.s32.totalorder %s16, 0
    %p90 = por %p88, %p89
    %s92 = sadd.s32 %s91, 1
    %p95 = scmp.eq.s32.totalorder %s10, 1
    %p96 = scmp.ne.s32.totalorder %s91, %s93
    %p97 = scmp.eq.s32.totalorder %s10, 0
    %p98 = por %p96, %p97
    %p99 = scmp.ne.s32.totalorder %s91, %s93
    %p100 = scmp.eq.s32.totalorder %s15, 1
    %p101 = por %p99, %p100
    %p102 = scmp.ne.s32.totalorder %s93, %s94
    %p103 = scmp.eq.s32.totalorder %s15, 0
    %p104 = por %p102, %p103
    %p105 = scmp.ne.s32.totalorder %s93, %s94
    %p106 = scmp.eq.s32.totalorder %s16, 1
    %p107 = por %p105, %p106
    %p109 = scmp.ne.s32.totalorder %s94, %s108
    %p110 = scmp.eq.s32.totalorder %s16, 0
    %p111 = por %p109, %p110
    %s112 = ssub.s32 %s10, %s17
    %p113 = scmp.eq.s32.totalorder %s112, 0
    %s115 = sadd.s32 %s114, 1
    %s116 = scalar_select %p113, %s114, %s115
    %p119 = pneg %p113
    %p120 = scmp.eq.s32.totalorder %s10, 1
    %p121 = por %p119, %p120
    %p122 = scmp.ne.s32.totalorder %s114, %s117
    %p123 = scmp.eq.s32.totalorder %s10, 0
    %p124 = por %p122, %p123
    %p125 = scmp.ne.s32.totalorder %s114, %s117
    %p126 = scmp.eq.s32.totalorder %s15, 1
    %p127 = por %p125, %p126
    %p128 = scmp.ne.s32.totalorder %s117, %s118
    %p129 = scmp.eq.s32.totalorder %s15, 0
    %p130 = por %p128, %p129
    %p131 = scmp.ne.s32.totalorder %s117, %s118
    %p132 = scmp.eq.s32.totalorder %s16, 1
    %p133 = por %p131, %p132
    %p135 = scmp.ne.s32.totalorder %s118, %s134
    %p136 = scmp.eq.s32.totalorder %s16, 0
    %p137 = por %p135, %p136
    %p138 = scmp.le.s32.totalorder 1, %s10
    %p139 = scmp.lt.s32.totalorder %s10, 3
    %p140 = pnand %p138, %p139
    %p141 = pneg %p140
    // Predicated region
    $region9: #{gemnet_forward.37} parent=5 // pred_check
      _
    $region10: #{gemnet_forward.37} parent=5 // pred_check_branch
      %143 = sbr.rel (%p140) target = $region12
    $region11: #{gemnet_forward.37} parent=5 // pred_region
      %s144 = ssub.s32 %s10, 1
      // Predicated region
      $region13: #{gemnet_forward.37} parent=11 // pred_check
        %p145 = pneg %p83
      $region14: #{gemnet_forward.37} parent=11 // pred_check_branch
        %147 = sbr.rel (%p145) target = $region16
      $region15: #{gemnet_forward.37} parent=11 // pred_region
        _
      $region16: #{gemnet_forward.37} parent=11 // pred_fallthru
        _
      // Predicated region
      $region17: #{gemnet_forward.37} parent=11 // pred_check
        %p148 = pneg %p104
      $region18: #{gemnet_forward.37} parent=11 // pred_check_branch
        %150 = sbr.rel (%p148) target = $region20
      $region19: #{gemnet_forward.37} parent=11 // pred_region
        _
      $region20: #{gemnet_forward.37} parent=11 // pred_fallthru
        _
    $region12: #{gemnet_forward.37} parent=5 // pred_fallthru
      _
    %p151 = scmp.lt.s32.totalorder %s10, 2
    // Predicated region
    $region21: #{gemnet_forward.37} parent=5 // pred_check
      %p152 = pneg %p151
    $region22: #{gemnet_forward.37} parent=5 // pred_check_branch
      %154 = sbr.rel (%p152) target = $region24
    $region23: #{gemnet_forward.37} parent=5 // pred_region
      // Predicated region
      $region25: #{gemnet_forward.37} parent=23 // pred_check
        %p155 = pneg %p30
      $region26: #{gemnet_forward.37} parent=23 // pred_check_branch
        %157 = sbr.rel (%p155) target = $region28
      $region27: #{gemnet_forward.37} parent=23 // pred_region
        %s158 = smul.u32 16, %s10
        %p159 = scmp.lt.s32.totalorder %s158, 31
        %s160 = scalar_select %p159, %s158, 31
        %s161 = smul.addr %s160, 8
        %s162 = scalar_lea.vmem %s0, %s161
        %s163 = smul.u32 16, %s10
      $region28: #{gemnet_forward.37} parent=23 // pred_fallthru
        _
      // Predicated region
      $region29: #{gemnet_forward.37} parent=23 // pred_check
        %p164 = pneg %p56
      $region30: #{gemnet_forward.37} parent=23 // pred_check_branch
        %166 = sbr.rel (%p164) target = $region32
      $region31: #{gemnet_forward.37} parent=23 // pred_region
        %s167 = smul.u32 16, %s10
        %p168 = scmp.lt.s32.totalorder %s167, 31
        %s169 = scalar_select %p168, %s167, 31
        %s170 = smul.addr %s169, 8
        %s171 = scalar_lea.vmem %s1, %s170
        %s172 = smul.u32 16, %s10
      $region32: #{gemnet_forward.37} parent=23 // pred_fallthru
        _
    $region24: #{gemnet_forward.37} parent=5 // pred_fallthru
      _
    %p173 = scmp.le.s32.totalorder 1, %s10
    %p174 = scmp.lt.s32.totalorder %s10, 3
    %p175 = pnand %p173, %p174
    %p176 = pneg %p175
    // Predicated region
    $region33: #{gemnet_forward.37} parent=5 // pred_check
      _
    $region34: #{gemnet_forward.37} parent=5 // pred_check_branch
      %178 = sbr.rel (%p175) target = $region36
    $region35: #{gemnet_forward.37} parent=5 // pred_region
      %s179 = ssub.s32 %s10, 1
      %s180 = smul.u32 16, %s15
      %p181 = scmp.lt.s32.totalorder %s180, 31
      %s182 = scalar_select %p181, %s180, 31
      %s183 = smul.addr %s182, 8
      %s184 = scalar_lea.vmem %s0, %s183
      %p185 = pneg %p36
      %p186 = pneg %p33
      %s187 = smul.u32 16, %s15
      %p188 = scmp.lt.s32.totalorder %s187, 31
      %s189 = scalar_select %p188, %s187, 31
      %s190 = smul.addr %s189, 8
      %s191 = scalar_lea.vmem %s1, %s190
      %p192 = pneg %p62
      %p193 = pneg %p59
      %p194 = pneg %p83
      %p195 = pneg %p80
      %p196 = pneg %p104
      %p197 = pneg %p101
      %p198 = pneg %p130
      %p199 = pneg %p127
      %s200 = smul.u32 2, %s15
      %p201 = scmp.lt.s32.totalorder %s200, 3
      %s202 = scalar_select %p201, %s200, 3
      %s203 = smul.addr %s202, 8
      %s204 = scalar_lea.vmem %s4, %s203
      %s205 = smul.u32 16, %s15
      %p206 = scmp.lt.s32.totalorder %s205, 31
      %s207 = scalar_select %p206, %s205, 31
      %s208 = smul.addr %s207, 8
      %s209 = scalar_lea.vmem %s0, %s208
      %s210 = smul.u32 16, %s15
      %s211 = smul.u32 16, %s15
      %p212 = scmp.lt.s32.totalorder %s211, 31
      %s213 = scalar_select %p212, %s211, 31
      %s214 = smul.addr %s213, 8
      %s215 = scalar_lea.vmem %s1, %s214
      %s216 = smul.u32 16, %s15
      %s217 = smul.u32 2, %s15
      %p218 = scmp.lt.s32.totalorder %s217, 3
      %s219 = scalar_select %p218, %s217, 3
      %s220 = smul.addr %s219, 8
      %s221 = scalar_lea.vmem %s4, %s220
      %s222 = smul.u32 2, %s15
      %v224 = vld [vmem:[%s209] sm:$0xff]
      %v225 = vld [vmem:[%s209 + $0x8] sm:$0xff]
      %v226 = vld [vmem:[%s209 + $0x10] sm:$0xff]
      %v227 = vld [vmem:[%s209 + $0x18] sm:$0xff]
      %v228 = vld [vmem:[%s209 + $0x20] sm:$0xff]
      %v229 = vld [vmem:[%s209 + $0x28] sm:$0xff]
      %v230 = vld [vmem:[%s209 + $0x30] sm:$0xff]
      %v231 = vld [vmem:[%s209 + $0x38] sm:$0xff]
      %v232 = vld [vmem:[%s209 + $0x40] sm:$0xff]
      %v233 = vld [vmem:[%s209 + $0x48] sm:$0xff]
      %v234 = vld [vmem:[%s209 + $0x50] sm:$0xff]
      %v235 = vld [vmem:[%s209 + $0x58] sm:$0xff]
      %v236 = vld [vmem:[%s209 + $0x60] sm:$0xff]
      %v237 = vld [vmem:[%s209 + $0x68] sm:$0xff]
      %v238 = vld [vmem:[%s209 + $0x70] sm:$0xff]
      %v239 = vld [vmem:[%s209 + $0x78] sm:$0xff]
      %v240 = vld [vmem:[%s215] sm:$0xff]
      %v241 = vld [vmem:[%s215 + $0x8] sm:$0xff]
      %v242 = vld [vmem:[%s215 + $0x10] sm:$0xff]
      %v243 = vld [vmem:[%s215 + $0x18] sm:$0xff]
      %v244 = vld [vmem:[%s215 + $0x20] sm:$0xff]
      %v245 = vld [vmem:[%s215 + $0x28] sm:$0xff]
      %v246 = vld [vmem:[%s215 + $0x30] sm:$0xff]
      %v247 = vld [vmem:[%s215 + $0x38] sm:$0xff]
      %v248 = vld [vmem:[%s215 + $0x40] sm:$0xff]
      %v249 = vld [vmem:[%s215 + $0x48] sm:$0xff]
      %v250 = vld [vmem:[%s215 + $0x50] sm:$0xff]
      %v251 = vld [vmem:[%s215 + $0x58] sm:$0xff]
      %v252 = vld [vmem:[%s215 + $0x60] sm:$0xff]
      %v253 = vld [vmem:[%s215 + $0x68] sm:$0xff]
      %v254 = vld [vmem:[%s215 + $0x70] sm:$0xff]
      %v255 = vld [vmem:[%s215 + $0x78] sm:$0xff]
      %257 = vset.pattern.permute.xlu0 0
      %258 = vperm.xlu0 %257, %v224
      %v259 = vpop.permute.xlu0 %258
      %262 = vset.pattern.permute.xlu0 0
      %263 = vperm.xlu0 %262, %v225
      %v264 = vpop.permute.xlu0 %263
      %267 = vset.pattern.permute.xlu0 0
      %268 = vperm.xlu0 %267, %v226
      %v269 = vpop.permute.xlu0 %268
      %272 = vset.pattern.permute.xlu0 0
      %273 = vperm.xlu0 %272, %v227
      %v274 = vpop.permute.xlu0 %273
      %277 = vset.pattern.permute.xlu0 0
      %278 = vperm.xlu0 %277, %v228
      %v279 = vpop.permute.xlu0 %278
      %282 = vset.pattern.permute.xlu0 0
      %283 = vperm.xlu0 %282, %v229
      %v284 = vpop.permute.xlu0 %283
      %287 = vset.pattern.permute.xlu0 0
      %288 = vperm.xlu0 %287, %v230
      %v289 = vpop.permute.xlu0 %288
      %292 = vset.pattern.permute.xlu0 0
      %293 = vperm.xlu0 %292, %v231
      %v294 = vpop.permute.xlu0 %293
      %297 = vset.pattern.permute.xlu0 0
      %298 = vperm.xlu0 %297, %v232
      %v299 = vpop.permute.xlu0 %298
      %302 = vset.pattern.permute.xlu0 0
      %303 = vperm.xlu0 %302, %v233
      %v304 = vpop.permute.xlu0 %303
      %307 = vset.pattern.permute.xlu0 0
      %308 = vperm.xlu0 %307, %v234
      %v309 = vpop.permute.xlu0 %308
      %312 = vset.pattern.permute.xlu0 0
      %313 = vperm.xlu0 %312, %v235
      %v314 = vpop.permute.xlu0 %313
      %317 = vset.pattern.permute.xlu0 0
      %318 = vperm.xlu0 %317, %v236
      %v319 = vpop.permute.xlu0 %318
      %322 = vset.pattern.permute.xlu0 0
      %323 = vperm.xlu0 %322, %v237
      %v324 = vpop.permute.xlu0 %323
      %327 = vset.pattern.permute.xlu0 0
      %328 = vperm.xlu0 %327, %v238
      %v329 = vpop.permute.xlu0 %328
      %332 = vset.pattern.permute.xlu0 0
      %333 = vperm.xlu0 %332, %v239
      %v334 = vpop.permute.xlu0 %333
      %v336 = vlaneseq
      %v337 = vshrl.u32 %v336, 7
      %v338 = vsub.s32 0, %v337
      %v339 = vrot.slane %v240, %v338
      %v340 = vlaneseq
      %v341 = vshrl.u32 %v340, 7
      %v342 = vsub.s32 0, %v341
      %v343 = vrot.slane %v241, %v342
      %v344 = vlaneseq
      %v345 = vshrl.u32 %v344, 7
      %v346 = vsub.s32 0, %v345
      %v347 = vrot.slane %v242, %v346
      %v348 = vlaneseq
      %v349 = vshrl.u32 %v348, 7
      %v350 = vsub.s32 0, %v349
      %v351 = vrot.slane %v243, %v350
      %v352 = vlaneseq
      %v353 = vshrl.u32 %v352, 7
      %v354 = vsub.s32 0, %v353
      %v355 = vrot.slane %v244, %v354
      %v356 = vlaneseq
      %v357 = vshrl.u32 %v356, 7
      %v358 = vsub.s32 0, %v357
      %v359 = vrot.slane %v245, %v358
      %v360 = vlaneseq
      %v361 = vshrl.u32 %v360, 7
      %v362 = vsub.s32 0, %v361
      %v363 = vrot.slane %v246, %v362
      %v364 = vlaneseq
      %v365 = vshrl.u32 %v364, 7
      %v366 = vsub.s32 0, %v365
      %v367 = vrot.slane %v247, %v366
      %v368 = vlaneseq
      %v369 = vshrl.u32 %v368, 7
      %v370 = vsub.s32 0, %v369
      %v371 = vrot.slane %v248, %v370
      %v372 = vlaneseq
      %v373 = vshrl.u32 %v372, 7
      %v374 = vsub.s32 0, %v373
      %v375 = vrot.slane %v249, %v374
      %v376 = vlaneseq
      %v377 = vshrl.u32 %v376, 7
      %v378 = vsub.s32 0, %v377
      %v379 = vrot.slane %v250, %v378
      %v380 = vlaneseq
      %v381 = vshrl.u32 %v380, 7
      %v382 = vsub.s32 0, %v381
      %v383 = vrot.slane %v251, %v382
      %v384 = vlaneseq
      %v385 = vshrl.u32 %v384, 7
      %v386 = vsub.s32 0, %v385
      %v387 = vrot.slane %v252, %v386
      %v388 = vlaneseq
      %v389 = vshrl.u32 %v388, 7
      %v390 = vsub.s32 0, %v389
      %v391 = vrot.slane %v253, %v390
      %v392 = vlaneseq
      %v393 = vshrl.u32 %v392, 7
      %v394 = vsub.s32 0, %v393
      %v395 = vrot.slane %v254, %v394
      %v396 = vlaneseq
      %v397 = vshrl.u32 %v396, 7
      %v398 = vsub.s32 0, %v397
      %v399 = vrot.slane %v255, %v398
      %v400 = vmul.f32 %v259, %v339
      %v401 = vmul.f32 %v264, %v343
      %v402 = vmul.f32 %v269, %v347
      %v403 = vmul.f32 %v274, %v351
      %v404 = vmul.f32 %v279, %v355
      %v405 = vmul.f32 %v284, %v359
      %v406 = vmul.f32 %v289, %v363
      %v407 = vmul.f32 %v294, %v367
      %v408 = vmul.f32 %v299, %v371
      %v409 = vmul.f32 %v304, %v375
      %v410 = vmul.f32 %v309, %v379
      %v411 = vmul.f32 %v314, %v383
      %v412 = vmul.f32 %v319, %v387
      %v413 = vmul.f32 %v324, %v391
      %v414 = vmul.f32 %v329, %v395
      %v415 = vmul.f32 %v334, %v399
      %416 = vset.pattern.permute.xlu0 1
      %417 = vperm.xlu0 %416, %v224
      %v418 = vpop.permute.xlu0 %417
      %420 = vset.pattern.permute.xlu0 1
      %421 = vperm.xlu0 %420, %v225
      %v422 = vpop.permute.xlu0 %421
      %424 = vset.pattern.permute.xlu0 1
      %425 = vperm.xlu0 %424, %v226
      %v426 = vpop.permute.xlu0 %425
      %428 = vset.pattern.permute.xlu0 1
      %429 = vperm.xlu0 %428, %v227
      %v430 = vpop.permute.xlu0 %429
      %432 = vset.pattern.permute.xlu0 1
      %433 = vperm.xlu0 %432, %v228
      %v434 = vpop.permute.xlu0 %433
      %436 = vset.pattern.permute.xlu0 1
      %437 = vperm.xlu0 %436, %v229
      %v438 = vpop.permute.xlu0 %437
      %440 = vset.pattern.permute.xlu0 1
      %441 = vperm.xlu0 %440, %v230
      %v442 = vpop.permute.xlu0 %441
      %444 = vset.pattern.permute.xlu0 1
      %445 = vperm.xlu0 %444, %v231
      %v446 = vpop.permute.xlu0 %445
      %448 = vset.pattern.permute.xlu0 1
      %449 = vperm.xlu0 %448, %v232
      %v450 = vpop.permute.xlu0 %449
      %452 = vset.pattern.permute.xlu0 1
      %453 = vperm.xlu0 %452, %v233
      %v454 = vpop.permute.xlu0 %453
      %456 = vset.pattern.permute.xlu0 1
      %457 = vperm.xlu0 %456, %v234
      %v458 = vpop.permute.xlu0 %457
      %460 = vset.pattern.permute.xlu0 1
      %461 = vperm.xlu0 %460, %v235
      %v462 = vpop.permute.xlu0 %461
      %464 = vset.pattern.permute.xlu0 1
      %465 = vperm.xlu0 %464, %v236
      %v466 = vpop.permute.xlu0 %465
      %468 = vset.pattern.permute.xlu0 1
      %469 = vperm.xlu0 %468, %v237
      %v470 = vpop.permute.xlu0 %469
      %472 = vset.pattern.permute.xlu0 1
      %473 = vperm.xlu0 %472, %v238
      %v474 = vpop.permute.xlu0 %473
      %476 = vset.pattern.permute.xlu0 1
      %477 = vperm.xlu0 %476, %v239
      %v478 = vpop.permute.xlu0 %477
      %v480 = vlaneseq
      %v481 = vshrl.u32 %v480, 7
      %v482 = vsub.s32 1, %v481
      %v483 = vrot.slane %v240, %v482
      %v484 = vlaneseq
      %v485 = vshrl.u32 %v484, 7
      %v486 = vsub.s32 1, %v485
      %v487 = vrot.slane %v241, %v486
      %v488 = vlaneseq
      %v489 = vshrl.u32 %v488, 7
      %v490 = vsub.s32 1, %v489
      %v491 = vrot.slane %v242, %v490
      %v492 = vlaneseq
      %v493 = vshrl.u32 %v492, 7
      %v494 = vsub.s32 1, %v493
      %v495 = vrot.slane %v243, %v494
      %v496 = vlaneseq
      %v497 = vshrl.u32 %v496, 7
      %v498 = vsub.s32 1, %v497
      %v499 = vrot.slane %v244, %v498
      %v500 = vlaneseq
      %v501 = vshrl.u32 %v500, 7
      %v502 = vsub.s32 1, %v501
      %v503 = vrot.slane %v245, %v502
      %v504 = vlaneseq
      %v505 = vshrl.u32 %v504, 7
      %v506 = vsub.s32 1, %v505
      %v507 = vrot.slane %v246, %v506
      %v508 = vlaneseq
      %v509 = vshrl.u32 %v508, 7
      %v510 = vsub.s32 1, %v509
      %v511 = vrot.slane %v247, %v510
      %v512 = vlaneseq
      %v513 = vshrl.u32 %v512, 7
      %v514 = vsub.s32 1, %v513
      %v515 = vrot.slane %v248, %v514
      %v516 = vlaneseq
      %v517 = vshrl.u32 %v516, 7
      %v518 = vsub.s32 1, %v517
      %v519 = vrot.slane %v249, %v518
      %v520 = vlaneseq
      %v521 = vshrl.u32 %v520, 7
      %v522 = vsub.s32 1, %v521
      %v523 = vrot.slane %v250, %v522
      %v524 = vlaneseq
      %v525 = vshrl.u32 %v524, 7
      %v526 = vsub.s32 1, %v525
      %v527 = vrot.slane %v251, %v526
      %v528 = vlaneseq
      %v529 = vshrl.u32 %v528, 7
      %v530 = vsub.s32 1, %v529
      %v531 = vrot.slane %v252, %v530
      %v532 = vlaneseq
      %v533 = vshrl.u32 %v532, 7
      %v534 = vsub.s32 1, %v533
      %v535 = vrot.slane %v253, %v534
      %v536 = vlaneseq
      %v537 = vshrl.u32 %v536, 7
      %v538 = vsub.s32 1, %v537
      %v539 = vrot.slane %v254, %v538
      %v540 = vlaneseq
      %v541 = vshrl.u32 %v540, 7
      %v542 = vsub.s32 1, %v541
      %v543 = vrot.slane %v255, %v542
      %v544 = vmul.f32 %v418, %v483
      %v545 = vmul.f32 %v422, %v487
      %v546 = vmul.f32 %v426, %v491
      %v547 = vmul.f32 %v430, %v495
      %v548 = vmul.f32 %v434, %v499
      %v549 = vmul.f32 %v438, %v503
      %v550 = vmul.f32 %v442, %v507
      %v551 = vmul.f32 %v446, %v511
      %v552 = vmul.f32 %v450, %v515
      %v553 = vmul.f32 %v454, %v519
      %v554 = vmul.f32 %v458, %v523
      %v555 = vmul.f32 %v462, %v527
      %v556 = vmul.f32 %v466, %v531
      %v557 = vmul.f32 %v470, %v535
      %v558 = vmul.f32 %v474, %v539
      %v559 = vmul.f32 %v478, %v543
      %v560 = vadd.f32 %v400, %v544
      %v561 = vadd.f32 %v401, %v545
      %v562 = vadd.f32 %v402, %v546
      %v563 = vadd.f32 %v403, %v547
      %v564 = vadd.f32 %v404, %v548
      %v565 = vadd.f32 %v405, %v549
      %v566 = vadd.f32 %v406, %v550
      %v567 = vadd.f32 %v407, %v551
      %v568 = vadd.f32 %v408, %v552
      %v569 = vadd.f32 %v409, %v553
      %v570 = vadd.f32 %v410, %v554
      %v571 = vadd.f32 %v411, %v555
      %v572 = vadd.f32 %v412, %v556
      %v573 = vadd.f32 %v413, %v557
      %v574 = vadd.f32 %v414, %v558
      %v575 = vadd.f32 %v415, %v559
      %576 = vset.pattern.permute.xlu0 2
      %577 = vperm.xlu0 %576, %v224
      %v578 = vpop.permute.xlu0 %577
      %580 = vset.pattern.permute.xlu0 2
      %581 = vperm.xlu0 %580, %v225
      %v582 = vpop.permute.xlu0 %581
      %584 = vset.pattern.permute.xlu0 2
      %585 = vperm.xlu0 %584, %v226
      %v586 = vpop.permute.xlu0 %585
      %588 = vset.pattern.permute.xlu0 2
      %589 = vperm.xlu0 %588, %v227
      %v590 = vpop.permute.xlu0 %589
      %592 = vset.pattern.permute.xlu0 2
      %593 = vperm.xlu0 %592, %v228
      %v594 = vpop.permute.xlu0 %593
      %596 = vset.pattern.permute.xlu0 2
      %597 = vperm.xlu0 %596, %v229
      %v598 = vpop.permute.xlu0 %597
      %600 = vset.pattern.permute.xlu0 2
      %601 = vperm.xlu0 %600, %v230
      %v602 = vpop.permute.xlu0 %601
      %604 = vset.pattern.permute.xlu0 2
      %605 = vperm.xlu0 %604, %v231
      %v606 = vpop.permute.xlu0 %605
      %608 = vset.pattern.permute.xlu0 2
      %609 = vperm.xlu0 %608, %v232
      %v610 = vpop.permute.xlu0 %609
      %612 = vset.pattern.permute.xlu0 2
      %613 = vperm.xlu0 %612, %v233
      %v614 = vpop.permute.xlu0 %613
      %616 = vset.pattern.permute.xlu0 2
      %617 = vperm.xlu0 %616, %v234
      %v618 = vpop.permute.xlu0 %617
      %620 = vset.pattern.permute.xlu0 2
      %621 = vperm.xlu0 %620, %v235
      %v622 = vpop.permute.xlu0 %621
      %624 = vset.pattern.permute.xlu0 2
      %625 = vperm.xlu0 %624, %v236
      %v626 = vpop.permute.xlu0 %625
      %628 = vset.pattern.permute.xlu0 2
      %629 = vperm.xlu0 %628, %v237
      %v630 = vpop.permute.xlu0 %629
      %632 = vset.pattern.permute.xlu0 2
      %633 = vperm.xlu0 %632, %v238
      %v634 = vpop.permute.xlu0 %633
      %636 = vset.pattern.permute.xlu0 2
      %637 = vperm.xlu0 %636, %v239
      %v638 = vpop.permute.xlu0 %637
      %v640 = vlaneseq
      %v641 = vshrl.u32 %v640, 7
      %v642 = vsub.s32 2, %v641
      %v643 = vrot.slane %v240, %v642
      %v644 = vlaneseq
      %v645 = vshrl.u32 %v644, 7
      %v646 = vsub.s32 2, %v645
      %v647 = vrot.slane %v241, %v646
      %v648 = vlaneseq
      %v649 = vshrl.u32 %v648, 7
      %v650 = vsub.s32 2, %v649
      %v651 = vrot.slane %v242, %v650
      %v652 = vlaneseq
      %v653 = vshrl.u32 %v652, 7
      %v654 = vsub.s32 2, %v653
      %v655 = vrot.slane %v243, %v654
      %v656 = vlaneseq
      %v657 = vshrl.u32 %v656, 7
      %v658 = vsub.s32 2, %v657
      %v659 = vrot.slane %v244, %v658
      %v660 = vlaneseq
      %v661 = vshrl.u32 %v660, 7
      %v662 = vsub.s32 2, %v661
      %v663 = vrot.slane %v245, %v662
      %v664 = vlaneseq
      %v665 = vshrl.u32 %v664, 7
      %v666 = vsub.s32 2, %v665
      %v667 = vrot.slane %v246, %v666
      %v668 = vlaneseq
      %v669 = vshrl.u32 %v668, 7
      %v670 = vsub.s32 2, %v669
      %v671 = vrot.slane %v247, %v670
      %v672 = vlaneseq
      %v673 = vshrl.u32 %v672, 7
      %v674 = vsub.s32 2, %v673
      %v675 = vrot.slane %v248, %v674
      %v676 = vlaneseq
      %v677 = vshrl.u32 %v676, 7
      %v678 = vsub.s32 2, %v677
      %v679 = vrot.slane %v249, %v678
      %v680 = vlaneseq
      %v681 = vshrl.u32 %v680, 7
      %v682 = vsub.s32 2, %v681
      %v683 = vrot.slane %v250, %v682
      %v684 = vlaneseq
      %v685 = vshrl.u32 %v684, 7
      %v686 = vsub.s32 2, %v685
      %v687 = vrot.slane %v251, %v686
      %v688 = vlaneseq
      %v689 = vshrl.u32 %v688, 7
      %v690 = vsub.s32 2, %v689
      %v691 = vrot.slane %v252, %v690
      %v692 = vlaneseq
      %v693 = vshrl.u32 %v692, 7
      %v694 = vsub.s32 2, %v693
      %v695 = vrot.slane %v253, %v694
      %v696 = vlaneseq
      %v697 = vshrl.u32 %v696, 7
      %v698 = vsub.s32 2, %v697
      %v699 = vrot.slane %v254, %v698
      %v700 = vlaneseq
      %v701 = vshrl.u32 %v700, 7
      %v702 = vsub.s32 2, %v701
      %v703 = vrot.slane %v255, %v702
      %v704 = vmul.f32 %v578, %v643
      %v705 = vmul.f32 %v582, %v647
      %v706 = vmul.f32 %v586, %v651
      %v707 = vmul.f32 %v590, %v655
      %v708 = vmul.f32 %v594, %v659
      %v709 = vmul.f32 %v598, %v663
      %v710 = vmul.f32 %v602, %v667
      %v711 = vmul.f32 %v606, %v671
      %v712 = vmul.f32 %v610, %v675
      %v713 = vmul.f32 %v614, %v679
      %v714 = vmul.f32 %v618, %v683
      %v715 = vmul.f32 %v622, %v687
      %v716 = vmul.f32 %v626, %v691
      %v717 = vmul.f32 %v630, %v695
      %v718 = vmul.f32 %v634, %v699
      %v719 = vmul.f32 %v638, %v703
      %v720 = vadd.f32 %v560, %v704
      %v721 = vadd.f32 %v561, %v705
      %v722 = vadd.f32 %v562, %v706
      %v723 = vadd.f32 %v563, %v707
      %v724 = vadd.f32 %v564, %v708
      %v725 = vadd.f32 %v565, %v709
      %v726 = vadd.f32 %v566, %v710
      %v727 = vadd.f32 %v567, %v711
      %v728 = vadd.f32 %v568, %v712
      %v729 = vadd.f32 %v569, %v713
      %v730 = vadd.f32 %v570, %v714
      %v731 = vadd.f32 %v571, %v715
      %v732 = vadd.f32 %v572, %v716
      %v733 = vadd.f32 %v573, %v717
      %v734 = vadd.f32 %v574, %v718
      %v735 = vadd.f32 %v575, %v719
      %736 = vset.pattern.permute.xlu0 3
      %737 = vperm.xlu0 %736, %v224
      %v738 = vpop.permute.xlu0 %737
      %740 = vset.pattern.permute.xlu0 3
      %741 = vperm.xlu0 %740, %v225
      %v742 = vpop.permute.xlu0 %741
      %744 = vset.pattern.permute.xlu0 3
      %745 = vperm.xlu0 %744, %v226
      %v746 = vpop.permute.xlu0 %745
      %748 = vset.pattern.permute.xlu0 3
      %749 = vperm.xlu0 %748, %v227
      %v750 = vpop.permute.xlu0 %749
      %752 = vset.pattern.permute.xlu0 3
      %753 = vperm.xlu0 %752, %v228
      %v754 = vpop.permute.xlu0 %753
      %756 = vset.pattern.permute.xlu0 3
      %757 = vperm.xlu0 %756, %v229
      %v758 = vpop.permute.xlu0 %757
      %760 = vset.pattern.permute.xlu0 3
      %761 = vperm.xlu0 %760, %v230
      %v762 = vpop.permute.xlu0 %761
      %764 = vset.pattern.permute.xlu0 3
      %765 = vperm.xlu0 %764, %v231
      %v766 = vpop.permute.xlu0 %765
      %768 = vset.pattern.permute.xlu0 3
      %769 = vperm.xlu0 %768, %v232
      %v770 = vpop.permute.xlu0 %769
      %772 = vset.pattern.permute.xlu0 3
      %773 = vperm.xlu0 %772, %v233
      %v774 = vpop.permute.xlu0 %773
      %776 = vset.pattern.permute.xlu0 3
      %777 = vperm.xlu0 %776, %v234
      %v778 = vpop.permute.xlu0 %777
      %780 = vset.pattern.permute.xlu0 3
      %781 = vperm.xlu0 %780, %v235
      %v782 = vpop.permute.xlu0 %781
      %784 = vset.pattern.permute.xlu0 3
      %785 = vperm.xlu0 %784, %v236
      %v786 = vpop.permute.xlu0 %785
      %788 = vset.pattern.permute.xlu0 3
      %789 = vperm.xlu0 %788, %v237
      %v790 = vpop.permute.xlu0 %789
      %792 = vset.pattern.permute.xlu0 3
      %793 = vperm.xlu0 %792, %v238
      %v794 = vpop.permute.xlu0 %793
      %796 = vset.pattern.permute.xlu0 3
      %797 = vperm.xlu0 %796, %v239
      %v798 = vpop.permute.xlu0 %797
      %v800 = vlaneseq
      %v801 = vshrl.u32 %v800, 7
      %v802 = vsub.s32 3, %v801
      %v803 = vrot.slane %v240, %v802
      %v804 = vlaneseq
      %v805 = vshrl.u32 %v804, 7
      %v806 = vsub.s32 3, %v805
      %v807 = vrot.slane %v241, %v806
      %v808 = vlaneseq
      %v809 = vshrl.u32 %v808, 7
      %v810 = vsub.s32 3, %v809
      %v811 = vrot.slane %v242, %v810
      %v812 = vlaneseq
      %v813 = vshrl.u32 %v812, 7
      %v814 = vsub.s32 3, %v813
      %v815 = vrot.slane %v243, %v814
      %v816 = vlaneseq
      %v817 = vshrl.u32 %v816, 7
      %v818 = vsub.s32 3, %v817
      %v819 = vrot.slane %v244, %v818
      %v820 = vlaneseq
      %v821 = vshrl.u32 %v820, 7
      %v822 = vsub.s32 3, %v821
      %v823 = vrot.slane %v245, %v822
      %v824 = vlaneseq
      %v825 = vshrl.u32 %v824, 7
      %v826 = vsub.s32 3, %v825
      %v827 = vrot.slane %v246, %v826
      %v828 = vlaneseq
      %v829 = vshrl.u32 %v828, 7
      %v830 = vsub.s32 3, %v829
      %v831 = vrot.slane %v247, %v830
      %v832 = vlaneseq
      %v833 = vshrl.u32 %v832, 7
      %v834 = vsub.s32 3, %v833
      %v835 = vrot.slane %v248, %v834
      %v836 = vlaneseq
      %v837 = vshrl.u32 %v836, 7
      %v838 = vsub.s32 3, %v837
      %v839 = vrot.slane %v249, %v838
      %v840 = vlaneseq
      %v841 = vshrl.u32 %v840, 7
      %v842 = vsub.s32 3, %v841
      %v843 = vrot.slane %v250, %v842
      %v844 = vlaneseq
      %v845 = vshrl.u32 %v844, 7
      %v846 = vsub.s32 3, %v845
      %v847 = vrot.slane %v251, %v846
      %v848 = vlaneseq
      %v849 = vshrl.u32 %v848, 7
      %v850 = vsub.s32 3, %v849
      %v851 = vrot.slane %v252, %v850
      %v852 = vlaneseq
      %v853 = vshrl.u32 %v852, 7
      %v854 = vsub.s32 3, %v853
      %v855 = vrot.slane %v253, %v854
      %v856 = vlaneseq
      %v857 = vshrl.u32 %v856, 7
      %v858 = vsub.s32 3, %v857
      %v859 = vrot.slane %v254, %v858
      %v860 = vlaneseq
      %v861 = vshrl.u32 %v860, 7
      %v862 = vsub.s32 3, %v861
      %v863 = vrot.slane %v255, %v862
      %v864 = vmul.f32 %v738, %v803
      %v865 = vmul.f32 %v742, %v807
      %v866 = vmul.f32 %v746, %v811
      %v867 = vmul.f32 %v750, %v815
      %v868 = vmul.f32 %v754, %v819
      %v869 = vmul.f32 %v758, %v823
      %v870 = vmul.f32 %v762, %v827
      %v871 = vmul.f32 %v766, %v831
      %v872 = vmul.f32 %v770, %v835
      %v873 = vmul.f32 %v774, %v839
      %v874 = vmul.f32 %v778, %v843
      %v875 = vmul.f32 %v782, %v847
      %v876 = vmul.f32 %v786, %v851
      %v877 = vmul.f32 %v790, %v855
      %v878 = vmul.f32 %v794, %v859
      %v879 = vmul.f32 %v798, %v863
      %v880 = vadd.f32 %v720, %v864
      %v881 = vadd.f32 %v721, %v865
      %v882 = vadd.f32 %v722, %v866
      %v883 = vadd.f32 %v723, %v867
      %v884 = vadd.f32 %v724, %v868
      %v885 = vadd.f32 %v725, %v869
      %v886 = vadd.f32 %v726, %v870
      %v887 = vadd.f32 %v727, %v871
      %v888 = vadd.f32 %v728, %v872
      %v889 = vadd.f32 %v729, %v873
      %v890 = vadd.f32 %v730, %v874
      %v891 = vadd.f32 %v731, %v875
      %v892 = vadd.f32 %v732, %v876
      %v893 = vadd.f32 %v733, %v877
      %v894 = vadd.f32 %v734, %v878
      %v895 = vadd.f32 %v735, %v879
      %896 = vset.pattern.permute.xlu0 4
      %897 = vperm.xlu0 %896, %v224
      %v898 = vpop.permute.xlu0 %897
      %900 = vset.pattern.permute.xlu0 4
      %901 = vperm.xlu0 %900, %v225
      %v902 = vpop.permute.xlu0 %901
      %904 = vset.pattern.permute.xlu0 4
      %905 = vperm.xlu0 %904, %v226
      %v906 = vpop.permute.xlu0 %905
      %908 = vset.pattern.permute.xlu0 4
      %909 = vperm.xlu0 %908, %v227
      %v910 = vpop.permute.xlu0 %909
      %912 = vset.pattern.permute.xlu0 4
      %913 = vperm.xlu0 %912, %v228
      %v914 = vpop.permute.xlu0 %913
      %916 = vset.pattern.permute.xlu0 4
      %917 = vperm.xlu0 %916, %v229
      %v918 = vpop.permute.xlu0 %917
      %920 = vset.pattern.permute.xlu0 4
      %921 = vperm.xlu0 %920, %v230
      %v922 = vpop.permute.xlu0 %921
      %924 = vset.pattern.permute.xlu0 4
      %925 = vperm.xlu0 %924, %v231
      %v926 = vpop.permute.xlu0 %925
      %928 = vset.pattern.permute.xlu0 4
      %929 = vperm.xlu0 %928, %v232
      %v930 = vpop.permute.xlu0 %929
      %932 = vset.pattern.permute.xlu0 4
      %933 = vperm.xlu0 %932, %v233
      %v934 = vpop.permute.xlu0 %933
      %936 = vset.pattern.permute.xlu0 4
      %937 = vperm.xlu0 %936, %v234
      %v938 = vpop.permute.xlu0 %937
      %940 = vset.pattern.permute.xlu0 4
      %941 = vperm.xlu0 %940, %v235
      %v942 = vpop.permute.xlu0 %941
      %944 = vset.pattern.permute.xlu0 4
      %945 = vperm.xlu0 %944, %v236
      %v946 = vpop.permute.xlu0 %945
      %948 = vset.pattern.permute.xlu0 4
      %949 = vperm.xlu0 %948, %v237
      %v950 = vpop.permute.xlu0 %949
      %952 = vset.pattern.permute.xlu0 4
      %953 = vperm.xlu0 %952, %v238
      %v954 = vpop.permute.xlu0 %953
      %956 = vset.pattern.permute.xlu0 4
      %957 = vperm.xlu0 %956, %v239
      %v958 = vpop.permute.xlu0 %957
      %v960 = vlaneseq
      %v961 = vshrl.u32 %v960, 7
      %v962 = vsub.s32 4, %v961
      %v963 = vrot.slane %v240, %v962
      %v964 = vlaneseq
      %v965 = vshrl.u32 %v964, 7
      %v966 = vsub.s32 4, %v965
      %v967 = vrot.slane %v241, %v966
      %v968 = vlaneseq
      %v969 = vshrl.u32 %v968, 7
      %v970 = vsub.s32 4, %v969
      %v971 = vrot.slane %v242, %v970
      %v972 = vlaneseq
      %v973 = vshrl.u32 %v972, 7
      %v974 = vsub.s32 4, %v973
      %v975 = vrot.slane %v243, %v974
      %v976 = vlaneseq
      %v977 = vshrl.u32 %v976, 7
      %v978 = vsub.s32 4, %v977
      %v979 = vrot.slane %v244, %v978
      %v980 = vlaneseq
      %v981 = vshrl.u32 %v980, 7
      %v982 = vsub.s32 4, %v981
      %v983 = vrot.slane %v245, %v982
      %v984 = vlaneseq
      %v985 = vshrl.u32 %v984, 7
      %v986 = vsub.s32 4, %v985
      %v987 = vrot.slane %v246, %v986
      %v988 = vlaneseq
      %v989 = vshrl.u32 %v988, 7
      %v990 = vsub.s32 4, %v989
      %v991 = vrot.slane %v247, %v990
      %v992 = vlaneseq
      %v993 = vshrl.u32 %v992, 7
      %v994 = vsub.s32 4, %v993
      %v995 = vrot.slane %v248, %v994
      %v996 = vlaneseq
      %v997 = vshrl.u32 %v996, 7
      %v998 = vsub.s32 4, %v997
      %v999 = vrot.slane %v249, %v998
      %v1000 = vlaneseq
      %v1001 = vshrl.u32 %v1000, 7
      %v1002 = vsub.s32 4, %v1001
      %v1003 = vrot.slane %v250, %v1002
      %v1004 = vlaneseq
      %v1005 = vshrl.u32 %v1004, 7
      %v1006 = vsub.s32 4, %v1005
      %v1007 = vrot.slane %v251, %v1006
      %v1008 = vlaneseq
      %v1009 = vshrl.u32 %v1008, 7
      %v1010 = vsub.s32 4, %v1009
      %v1011 = vrot.slane %v252, %v1010
      %v1012 = vlaneseq
      %v1013 = vshrl.u32 %v1012, 7
      %v1014 = vsub.s32 4, %v1013
      %v1015 = vrot.slane %v253, %v1014
      %v1016 = vlaneseq
      %v1017 = vshrl.u32 %v1016, 7
      %v1018 = vsub.s32 4, %v1017
      %v1019 = vrot.slane %v254, %v1018
      %v1020 = vlaneseq
      %v1021 = vshrl.u32 %v1020, 7
      %v1022 = vsub.s32 4, %v1021
      %v1023 = vrot.slane %v255, %v1022
      %v1024 = vmul.f32 %v898, %v963
      %v1025 = vmul.f32 %v902, %v967
      %v1026 = vmul.f32 %v906, %v971
      %v1027 = vmul.f32 %v910, %v975
      %v1028 = vmul.f32 %v914, %v979
      %v1029 = vmul.f32 %v918, %v983
      %v1030 = vmul.f32 %v922, %v987
      %v1031 = vmul.f32 %v926, %v991
      %v1032 = vmul.f32 %v930, %v995
      %v1033 = vmul.f32 %v934, %v999
      %v1034 = vmul.f32 %v938, %v1003
      %v1035 = vmul.f32 %v942, %v1007
      %v1036 = vmul.f32 %v946, %v1011
      %v1037 = vmul.f32 %v950, %v1015
      %v1038 = vmul.f32 %v954, %v1019
      %v1039 = vmul.f32 %v958, %v1023
      %v1040 = vadd.f32 %v880, %v1024
      %v1041 = vadd.f32 %v881, %v1025
      %v1042 = vadd.f32 %v882, %v1026
      %v1043 = vadd.f32 %v883, %v1027
      %v1044 = vadd.f32 %v884, %v1028
      %v1045 = vadd.f32 %v885, %v1029
      %v1046 = vadd.f32 %v886, %v1030
      %v1047 = vadd.f32 %v887, %v1031
      %v1048 = vadd.f32 %v888, %v1032
      %v1049 = vadd.f32 %v889, %v1033
      %v1050 = vadd.f32 %v890, %v1034
      %v1051 = vadd.f32 %v891, %v1035
      %v1052 = vadd.f32 %v892, %v1036
      %v1053 = vadd.f32 %v893, %v1037
      %v1054 = vadd.f32 %v894, %v1038
      %v1055 = vadd.f32 %v895, %v1039
      %1056 = vset.pattern.permute.xlu0 5
      %1057 = vperm.xlu0 %1056, %v224
      %v1058 = vpop.permute.xlu0 %1057
      %1060 = vset.pattern.permute.xlu0 5
      %1061 = vperm.xlu0 %1060, %v225
      %v1062 = vpop.permute.xlu0 %1061
      %1064 = vset.pattern.permute.xlu0 5
      %1065 = vperm.xlu0 %1064, %v226
      %v1066 = vpop.permute.xlu0 %1065
      %1068 = vset.pattern.permute.xlu0 5
      %1069 = vperm.xlu0 %1068, %v227
      %v1070 = vpop.permute.xlu0 %1069
      %1072 = vset.pattern.permute.xlu0 5
      %1073 = vperm.xlu0 %1072, %v228
      %v1074 = vpop.permute.xlu0 %1073
      %1076 = vset.pattern.permute.xlu0 5
      %1077 = vperm.xlu0 %1076, %v229
      %v1078 = vpop.permute.xlu0 %1077
      %1080 = vset.pattern.permute.xlu0 5
      %1081 = vperm.xlu0 %1080, %v230
      %v1082 = vpop.permute.xlu0 %1081
      %1084 = vset.pattern.permute.xlu0 5
      %1085 = vperm.xlu0 %1084, %v231
      %v1086 = vpop.permute.xlu0 %1085
      %1088 = vset.pattern.permute.xlu0 5
      %1089 = vperm.xlu0 %1088, %v232
      %v1090 = vpop.permute.xlu0 %1089
      %1092 = vset.pattern.permute.xlu0 5
      %1093 = vperm.xlu0 %1092, %v233
      %v1094 = vpop.permute.xlu0 %1093
      %1096 = vset.pattern.permute.xlu0 5
      %1097 = vperm.xlu0 %1096, %v234
      %v1098 = vpop.permute.xlu0 %1097
      %1100 = vset.pattern.permute.xlu0 5
      %1101 = vperm.xlu0 %1100, %v235
      %v1102 = vpop.permute.xlu0 %1101
      %1104 = vset.pattern.permute.xlu0 5
      %1105 = vperm.xlu0 %1104, %v236
      %v1106 = vpop.permute.xlu0 %1105
      %1108 = vset.pattern.permute.xlu0 5
      %1109 = vperm.xlu0 %1108, %v237
      %v1110 = vpop.permute.xlu0 %1109
      %1112 = vset.pattern.permute.xlu0 5
      %1113 = vperm.xlu0 %1112, %v238
      %v1114 = vpop.permute.xlu0 %1113
      %1116 = vset.pattern.permute.xlu0 5
      %1117 = vperm.xlu0 %1116, %v239
      %v1118 = vpop.permute.xlu0 %1117
      %v1120 = vlaneseq
      %v1121 = vshrl.u32 %v1120, 7
      %v1122 = vsub.s32 5, %v1121
      %v1123 = vrot.slane %v240, %v1122
      %v1124 = vlaneseq
      %v1125 = vshrl.u32 %v1124, 7
      %v1126 = vsub.s32 5, %v1125
      %v1127 = vrot.slane %v241, %v1126
      %v1128 = vlaneseq
      %v1129 = vshrl.u32 %v1128, 7
      %v1130 = vsub.s32 5, %v1129
      %v1131 = vrot.slane %v242, %v1130
      %v1132 = vlaneseq
      %v1133 = vshrl.u32 %v1132, 7
      %v1134 = vsub.s32 5, %v1133
      %v1135 = vrot.slane %v243, %v1134
      %v1136 = vlaneseq
      %v1137 = vshrl.u32 %v1136, 7
      %v1138 = vsub.s32 5, %v1137
      %v1139 = vrot.slane %v244, %v1138
      %v1140 = vlaneseq
      %v1141 = vshrl.u32 %v1140, 7
      %v1142 = vsub.s32 5, %v1141
      %v1143 = vrot.slane %v245, %v1142
      %v1144 = vlaneseq
      %v1145 = vshrl.u32 %v1144, 7
      %v1146 = vsub.s32 5, %v1145
      %v1147 = vrot.slane %v246, %v1146
      %v1148 = vlaneseq
      %v1149 = vshrl.u32 %v1148, 7
      %v1150 = vsub.s32 5, %v1149
      %v1151 = vrot.slane %v247, %v1150
      %v1152 = vlaneseq
      %v1153 = vshrl.u32 %v1152, 7
      %v1154 = vsub.s32 5, %v1153
      %v1155 = vrot.slane %v248, %v1154
      %v1156 = vlaneseq
      %v1157 = vshrl.u32 %v1156, 7
      %v1158 = vsub.s32 5, %v1157
      %v1159 = vrot.slane %v249, %v1158
      %v1160 = vlaneseq
      %v1161 = vshrl.u32 %v1160, 7
      %v1162 = vsub.s32 5, %v1161
      %v1163 = vrot.slane %v250, %v1162
      %v1164 = vlaneseq
      %v1165 = vshrl.u32 %v1164, 7
      %v1166 = vsub.s32 5, %v1165
      %v1167 = vrot.slane %v251, %v1166
      %v1168 = vlaneseq
      %v1169 = vshrl.u32 %v1168, 7
      %v1170 = vsub.s32 5, %v1169
      %v1171 = vrot.slane %v252, %v1170
      %v1172 = vlaneseq
      %v1173 = vshrl.u32 %v1172, 7
      %v1174 = vsub.s32 5, %v1173
      %v1175 = vrot.slane %v253, %v1174
      %v1176 = vlaneseq
      %v1177 = vshrl.u32 %v1176, 7
      %v1178 = vsub.s32 5, %v1177
      %v1179 = vrot.slane %v254, %v1178
      %v1180 = vlaneseq
      %v1181 = vshrl.u32 %v1180, 7
      %v1182 = vsub.s32 5, %v1181
      %v1183 = vrot.slane %v255, %v1182
      %v1184 = vmul.f32 %v1058, %v1123
      %v1185 = vmul.f32 %v1062, %v1127
      %v1186 = vmul.f32 %v1066, %v1131
      %v1187 = vmul.f32 %v1070, %v1135
      %v1188 = vmul.f32 %v1074, %v1139
      %v1189 = vmul.f32 %v1078, %v1143
      %v1190 = vmul.f32 %v1082, %v1147
      %v1191 = vmul.f32 %v1086, %v1151
      %v1192 = vmul.f32 %v1090, %v1155
      %v1193 = vmul.f32 %v1094, %v1159
      %v1194 = vmul.f32 %v1098, %v1163
      %v1195 = vmul.f32 %v1102, %v1167
      %v1196 = vmul.f32 %v1106, %v1171
      %v1197 = vmul.f32 %v1110, %v1175
      %v1198 = vmul.f32 %v1114, %v1179
      %v1199 = vmul.f32 %v1118, %v1183
      %v1200 = vadd.f32 %v1040, %v1184
      %v1201 = vadd.f32 %v1041, %v1185
      %v1202 = vadd.f32 %v1042, %v1186
      %v1203 = vadd.f32 %v1043, %v1187
      %v1204 = vadd.f32 %v1044, %v1188
      %v1205 = vadd.f32 %v1045, %v1189
      %v1206 = vadd.f32 %v1046, %v1190
      %v1207 = vadd.f32 %v1047, %v1191
      %v1208 = vadd.f32 %v1048, %v1192
      %v1209 = vadd.f32 %v1049, %v1193
      %v1210 = vadd.f32 %v1050, %v1194
      %v1211 = vadd.f32 %v1051, %v1195
      %v1212 = vadd.f32 %v1052, %v1196
      %v1213 = vadd.f32 %v1053, %v1197
      %v1214 = vadd.f32 %v1054, %v1198
      %v1215 = vadd.f32 %v1055, %v1199
      %1216 = vset.pattern.permute.xlu0 6
      %1217 = vperm.xlu0 %1216, %v224
      %v1218 = vpop.permute.xlu0 %1217
      %1220 = vset.pattern.permute.xlu0 6
      %1221 = vperm.xlu0 %1220, %v225
      %v1222 = vpop.permute.xlu0 %1221
      %1224 = vset.pattern.permute.xlu0 6
      %1225 = vperm.xlu0 %1224, %v226
      %v1226 = vpop.permute.xlu0 %1225
      %1228 = vset.pattern.permute.xlu0 6
      %1229 = vperm.xlu0 %1228, %v227
      %v1230 = vpop.permute.xlu0 %1229
      %1232 = vset.pattern.permute.xlu0 6
      %1233 = vperm.xlu0 %1232, %v228
      %v1234 = vpop.permute.xlu0 %1233
      %1236 = vset.pattern.permute.xlu0 6
      %1237 = vperm.xlu0 %1236, %v229
      %v1238 = vpop.permute.xlu0 %1237
      %1240 = vset.pattern.permute.xlu0 6
      %1241 = vperm.xlu0 %1240, %v230
      %v1242 = vpop.permute.xlu0 %1241
      %1244 = vset.pattern.permute.xlu0 6
      %1245 = vperm.xlu0 %1244, %v231
      %v1246 = vpop.permute.xlu0 %1245
      %1248 = vset.pattern.permute.xlu0 6
      %1249 = vperm.xlu0 %1248, %v232
      %v1250 = vpop.permute.xlu0 %1249
      %1252 = vset.pattern.permute.xlu0 6
      %1253 = vperm.xlu0 %1252, %v233
      %v1254 = vpop.permute.xlu0 %1253
      %1256 = vset.pattern.permute.xlu0 6
      %1257 = vperm.xlu0 %1256, %v234
      %v1258 = vpop.permute.xlu0 %1257
      %1260 = vset.pattern.permute.xlu0 6
      %1261 = vperm.xlu0 %1260, %v235
      %v1262 = vpop.permute.xlu0 %1261
      %1264 = vset.pattern.permute.xlu0 6
      %1265 = vperm.xlu0 %1264, %v236
      %v1266 = vpop.permute.xlu0 %1265
      %1268 = vset.pattern.permute.xlu0 6
      %1269 = vperm.xlu0 %1268, %v237
      %v1270 = vpop.permute.xlu0 %1269
      %1272 = vset.pattern.permute.xlu0 6
      %1273 = vperm.xlu0 %1272, %v238
      %v1274 = vpop.permute.xlu0 %1273
      %1276 = vset.pattern.permute.xlu0 6
      %1277 = vperm.xlu0 %1276, %v239
      %v1278 = vpop.permute.xlu0 %1277
      %v1280 = vlaneseq
      %v1281 = vshrl.u32 %v1280, 7
      %v1282 = vsub.s32 6, %v1281
      %v1283 = vrot.slane %v240, %v1282
      %v1284 = vlaneseq
      %v1285 = vshrl.u32 %v1284, 7
      %v1286 = vsub.s32 6, %v1285
      %v1287 = vrot.slane %v241, %v1286
      %v1288 = vlaneseq
      %v1289 = vshrl.u32 %v1288, 7
      %v1290 = vsub.s32 6, %v1289
      %v1291 = vrot.slane %v242, %v1290
      %v1292 = vlaneseq
      %v1293 = vshrl.u32 %v1292, 7
      %v1294 = vsub.s32 6, %v1293
      %v1295 = vrot.slane %v243, %v1294
      %v1296 = vlaneseq
      %v1297 = vshrl.u32 %v1296, 7
      %v1298 = vsub.s32 6, %v1297
      %v1299 = vrot.slane %v244, %v1298
      %v1300 = vlaneseq
      %v1301 = vshrl.u32 %v1300, 7
      %v1302 = vsub.s32 6, %v1301
      %v1303 = vrot.slane %v245, %v1302
      %v1304 = vlaneseq
      %v1305 = vshrl.u32 %v1304, 7
      %v1306 = vsub.s32 6, %v1305
      %v1307 = vrot.slane %v246, %v1306
      %v1308 = vlaneseq
      %v1309 = vshrl.u32 %v1308, 7
      %v1310 = vsub.s32 6, %v1309
      %v1311 = vrot.slane %v247, %v1310
      %v1312 = vlaneseq
      %v1313 = vshrl.u32 %v1312, 7
      %v1314 = vsub.s32 6, %v1313
      %v1315 = vrot.slane %v248, %v1314
      %v1316 = vlaneseq
      %v1317 = vshrl.u32 %v1316, 7
      %v1318 = vsub.s32 6, %v1317
      %v1319 = vrot.slane %v249, %v1318
      %v1320 = vlaneseq
      %v1321 = vshrl.u32 %v1320, 7
      %v1322 = vsub.s32 6, %v1321
      %v1323 = vrot.slane %v250, %v1322
      %v1324 = vlaneseq
      %v1325 = vshrl.u32 %v1324, 7
      %v1326 = vsub.s32 6, %v1325
      %v1327 = vrot.slane %v251, %v1326
      %v1328 = vlaneseq
      %v1329 = vshrl.u32 %v1328, 7
      %v1330 = vsub.s32 6, %v1329
      %v1331 = vrot.slane %v252, %v1330
      %v1332 = vlaneseq
      %v1333 = vshrl.u32 %v1332, 7
      %v1334 = vsub.s32 6, %v1333
      %v1335 = vrot.slane %v253, %v1334
      %v1336 = vlaneseq
      %v1337 = vshrl.u32 %v1336, 7
      %v1338 = vsub.s32 6, %v1337
      %v1339 = vrot.slane %v254, %v1338
      %v1340 = vlaneseq
      %v1341 = vshrl.u32 %v1340, 7
      %v1342 = vsub.s32 6, %v1341
      %v1343 = vrot.slane %v255, %v1342
      %v1344 = vmul.f32 %v1218, %v1283
      %v1345 = vmul.f32 %v1222, %v1287
      %v1346 = vmul.f32 %v1226, %v1291
      %v1347 = vmul.f32 %v1230, %v1295
      %v1348 = vmul.f32 %v1234, %v1299
      %v1349 = vmul.f32 %v1238, %v1303
      %v1350 = vmul.f32 %v1242, %v1307
      %v1351 = vmul.f32 %v1246, %v1311
      %v1352 = vmul.f32 %v1250, %v1315
      %v1353 = vmul.f32 %v1254, %v1319
      %v1354 = vmul.f32 %v1258, %v1323
      %v1355 = vmul.f32 %v1262, %v1327
      %v1356 = vmul.f32 %v1266, %v1331
      %v1357 = vmul.f32 %v1270, %v1335
      %v1358 = vmul.f32 %v1274, %v1339
      %v1359 = vmul.f32 %v1278, %v1343
      %v1360 = vadd.f32 %v1200, %v1344
      %v1361 = vadd.f32 %v1201, %v1345
      %v1362 = vadd.f32 %v1202, %v1346
      %v1363 = vadd.f32 %v1203, %v1347
      %v1364 = vadd.f32 %v1204, %v1348
      %v1365 = vadd.f32 %v1205, %v1349
      %v1366 = vadd.f32 %v1206, %v1350
      %v1367 = vadd.f32 %v1207, %v1351
      %v1368 = vadd.f32 %v1208, %v1352
      %v1369 = vadd.f32 %v1209, %v1353
      %v1370 = vadd.f32 %v1210, %v1354
      %v1371 = vadd.f32 %v1211, %v1355
      %v1372 = vadd.f32 %v1212, %v1356
      %v1373 = vadd.f32 %v1213, %v1357
      %v1374 = vadd.f32 %v1214, %v1358
      %v1375 = vadd.f32 %v1215, %v1359
      %1376 = vset.pattern.permute.xlu0 7
      %1377 = vperm.xlu0 %1376, %v224
      %v1378 = vpop.permute.xlu0 %1377
      %1380 = vset.pattern.permute.xlu0 7
      %1381 = vperm.xlu0 %1380, %v225
      %v1382 = vpop.permute.xlu0 %1381
      %1384 = vset.pattern.permute.xlu0 7
      %1385 = vperm.xlu0 %1384, %v226
      %v1386 = vpop.permute.xlu0 %1385
      %1388 = vset.pattern.permute.xlu0 7
      %1389 = vperm.xlu0 %1388, %v227
      %v1390 = vpop.permute.xlu0 %1389
      %1392 = vset.pattern.permute.xlu0 7
      %1393 = vperm.xlu0 %1392, %v228
      %v1394 = vpop.permute.xlu0 %1393
      %1396 = vset.pattern.permute.xlu0 7
      %1397 = vperm.xlu0 %1396, %v229
      %v1398 = vpop.permute.xlu0 %1397
      %1400 = vset.pattern.permute.xlu0 7
      %1401 = vperm.xlu0 %1400, %v230
      %v1402 = vpop.permute.xlu0 %1401
      %1404 = vset.pattern.permute.xlu0 7
      %1405 = vperm.xlu0 %1404, %v231
      %v1406 = vpop.permute.xlu0 %1405
      %1408 = vset.pattern.permute.xlu0 7
      %1409 = vperm.xlu0 %1408, %v232
      %v1410 = vpop.permute.xlu0 %1409
      %1412 = vset.pattern.permute.xlu0 7
      %1413 = vperm.xlu0 %1412, %v233
      %v1414 = vpop.permute.xlu0 %1413
      %1416 = vset.pattern.permute.xlu0 7
      %1417 = vperm.xlu0 %1416, %v234
      %v1418 = vpop.permute.xlu0 %1417
      %1420 = vset.pattern.permute.xlu0 7
      %1421 = vperm.xlu0 %1420, %v235
      %v1422 = vpop.permute.xlu0 %1421
      %1424 = vset.pattern.permute.xlu0 7
      %1425 = vperm.xlu0 %1424, %v236
      %v1426 = vpop.permute.xlu0 %1425
      %1428 = vset.pattern.permute.xlu0 7
      %1429 = vperm.xlu0 %1428, %v237
      %v1430 = vpop.permute.xlu0 %1429
      %1432 = vset.pattern.permute.xlu0 7
      %1433 = vperm.xlu0 %1432, %v238
      %v1434 = vpop.permute.xlu0 %1433
      %1436 = vset.pattern.permute.xlu0 7
      %1437 = vperm.xlu0 %1436, %v239
      %v1438 = vpop.permute.xlu0 %1437
      %v1440 = vlaneseq
      %v1441 = vshrl.u32 %v1440, 7
      %v1442 = vsub.s32 7, %v1441
      %v1443 = vrot.slane %v240, %v1442
      %v1444 = vlaneseq
      %v1445 = vshrl.u32 %v1444, 7
      %v1446 = vsub.s32 7, %v1445
      %v1447 = vrot.slane %v241, %v1446
      %v1448 = vlaneseq
      %v1449 = vshrl.u32 %v1448, 7
      %v1450 = vsub.s32 7, %v1449
      %v1451 = vrot.slane %v242, %v1450
      %v1452 = vlaneseq
      %v1453 = vshrl.u32 %v1452, 7
      %v1454 = vsub.s32 7, %v1453
      %v1455 = vrot.slane %v243, %v1454
      %v1456 = vlaneseq
      %v1457 = vshrl.u32 %v1456, 7
      %v1458 = vsub.s32 7, %v1457
      %v1459 = vrot.slane %v244, %v1458
      %v1460 = vlaneseq
      %v1461 = vshrl.u32 %v1460, 7
      %v1462 = vsub.s32 7, %v1461
      %v1463 = vrot.slane %v245, %v1462
      %v1464 = vlaneseq
      %v1465 = vshrl.u32 %v1464, 7
      %v1466 = vsub.s32 7, %v1465
      %v1467 = vrot.slane %v246, %v1466
      %v1468 = vlaneseq
      %v1469 = vshrl.u32 %v1468, 7
      %v1470 = vsub.s32 7, %v1469
      %v1471 = vrot.slane %v247, %v1470
      %v1472 = vlaneseq
      %v1473 = vshrl.u32 %v1472, 7
      %v1474 = vsub.s32 7, %v1473
      %v1475 = vrot.slane %v248, %v1474
      %v1476 = vlaneseq
      %v1477 = vshrl.u32 %v1476, 7
      %v1478 = vsub.s32 7, %v1477
      %v1479 = vrot.slane %v249, %v1478
      %v1480 = vlaneseq
      %v1481 = vshrl.u32 %v1480, 7
      %v1482 = vsub.s32 7, %v1481
      %v1483 = vrot.slane %v250, %v1482
      %v1484 = vlaneseq
      %v1485 = vshrl.u32 %v1484, 7
      %v1486 = vsub.s32 7, %v1485
      %v1487 = vrot.slane %v251, %v1486
      %v1488 = vlaneseq
      %v1489 = vshrl.u32 %v1488, 7
      %v1490 = vsub.s32 7, %v1489
      %v1491 = vrot.slane %v252, %v1490
      %v1492 = vlaneseq
      %v1493 = vshrl.u32 %v1492, 7
      %v1494 = vsub.s32 7, %v1493
      %v1495 = vrot.slane %v253, %v1494
      %v1496 = vlaneseq
      %v1497 = vshrl.u32 %v1496, 7
      %v1498 = vsub.s32 7, %v1497
      %v1499 = vrot.slane %v254, %v1498
      %v1500 = vlaneseq
      %v1501 = vshrl.u32 %v1500, 7
      %v1502 = vsub.s32 7, %v1501
      %v1503 = vrot.slane %v255, %v1502
      %v1504 = vmul.f32 %v1378, %v1443
      %v1505 = vmul.f32 %v1382, %v1447
      %v1506 = vmul.f32 %v1386, %v1451
      %v1507 = vmul.f32 %v1390, %v1455
      %v1508 = vmul.f32 %v1394, %v1459
      %v1509 = vmul.f32 %v1398, %v1463
      %v1510 = vmul.f32 %v1402, %v1467
      %v1511 = vmul.f32 %v1406, %v1471
      %v1512 = vmul.f32 %v1410, %v1475
      %v1513 = vmul.f32 %v1414, %v1479
      %v1514 = vmul.f32 %v1418, %v1483
      %v1515 = vmul.f32 %v1422, %v1487
      %v1516 = vmul.f32 %v1426, %v1491
      %v1517 = vmul.f32 %v1430, %v1495
      %v1518 = vmul.f32 %v1434, %v1499
      %v1519 = vmul.f32 %v1438, %v1503
      %v1520 = vadd.f32 %v1360, %v1504
      %v1521 = vadd.f32 %v1361, %v1505
      %v1522 = vadd.f32 %v1362, %v1506
      %v1523 = vadd.f32 %v1363, %v1507
      %v1524 = vadd.f32 %v1364, %v1508
      %v1525 = vadd.f32 %v1365, %v1509
      %v1526 = vadd.f32 %v1366, %v1510
      %v1527 = vadd.f32 %v1367, %v1511
      %v1528 = vadd.f32 %v1368, %v1512
      %v1529 = vadd.f32 %v1369, %v1513
      %v1530 = vadd.f32 %v1370, %v1514
      %v1531 = vadd.f32 %v1371, %v1515
      %v1532 = vadd.f32 %v1372, %v1516
      %v1533 = vadd.f32 %v1373, %v1517
      %v1534 = vadd.f32 %v1374, %v1518
      %v1535 = vadd.f32 %v1375, %v1519
      %v1536 = vcombine.low %v1520, %v1522
      %v1537 = vcombine.high %v1520, %v1522
      %v1539 = vunpack.c.l.s4 1983009808
      %v1540 = vunpack.c.0.s8 %v1539
      %v1541 = vlaneseq
      %v1542 = vshrl.u32 %v1541, 7
      %v1543 = vsub.s32 %v1540, %v1542
      %v1544 = vrot.slane %v1536, %v1543
      %v1546 = vunpack.c.l.s4 1983009808
      %v1547 = vunpack.c.0.s8 %v1546
      %v1548 = vlaneseq
      %v1549 = vshrl.u32 %v1548, 7
      %v1550 = vsub.s32 %v1547, %v1549
      %v1551 = vrot.slane %v1537, %v1550
      %v1552 = vcombine.low %v1521, %v1523
      %v1553 = vcombine.high %v1521, %v1523
      %v1555 = vunpack.c.l.s4 1983009808
      %v1556 = vunpack.c.0.s8 %v1555
      %v1557 = vlaneseq
      %v1558 = vshrl.u32 %v1557, 7
      %v1559 = vsub.s32 %v1556, %v1558
      %v1560 = vrot.slane %v1552, %v1559
      %v1562 = vunpack.c.l.s4 1983009808
      %v1563 = vunpack.c.0.s8 %v1562
      %v1564 = vlaneseq
      %v1565 = vshrl.u32 %v1564, 7
      %v1566 = vsub.s32 %v1563, %v1565
      %v1567 = vrot.slane %v1553, %v1566
      %v1568 = vcombine.low %v1524, %v1526
      %v1569 = vcombine.high %v1524, %v1526
      %v1571 = vunpack.c.l.s4 1983009808
      %v1572 = vunpack.c.0.s8 %v1571
      %v1573 = vlaneseq
      %v1574 = vshrl.u32 %v1573, 7
      %v1575 = vsub.s32 %v1572, %v1574
      %v1576 = vrot.slane %v1568, %v1575
      %v1578 = vunpack.c.l.s4 1983009808
      %v1579 = vunpack.c.0.s8 %v1578
      %v1580 = vlaneseq
      %v1581 = vshrl.u32 %v1580, 7
      %v1582 = vsub.s32 %v1579, %v1581
      %v1583 = vrot.slane %v1569, %v1582
      %v1584 = vcombine.low %v1525, %v1527
      %v1585 = vcombine.high %v1525, %v1527
      %v1587 = vunpack.c.l.s4 1983009808
      %v1588 = vunpack.c.0.s8 %v1587
      %v1589 = vlaneseq
      %v1590 = vshrl.u32 %v1589, 7
      %v1591 = vsub.s32 %v1588, %v1590
      %v1592 = vrot.slane %v1584, %v1591
      %v1594 = vunpack.c.l.s4 1983009808
      %v1595 = vunpack.c.0.s8 %v1594
      %v1596 = vlaneseq
      %v1597 = vshrl.u32 %v1596, 7
      %v1598 = vsub.s32 %v1595, %v1597
      %v1599 = vrot.slane %v1585, %v1598
      %v1600 = vcombine.low %v1544, %v1560
      %v1601 = vcombine.high %v1544, %v1560
      %v1603 = vunpack.c.l.s4 1934713408
      %v1604 = vunpack.c.0.s8 %v1603
      %v1605 = vlaneseq
      %v1606 = vshrl.u32 %v1605, 7
      %v1607 = vsub.s32 %v1604, %v1606
      %v1608 = vrot.slane %v1600, %v1607
      %v1610 = vunpack.c.l.s4 1934713408
      %v1611 = vunpack.c.0.s8 %v1610
      %v1612 = vlaneseq
      %v1613 = vshrl.u32 %v1612, 7
      %v1614 = vsub.s32 %v1611, %v1613
      %v1615 = vrot.slane %v1601, %v1614
      %v1616 = vcombine.low %v1551, %v1567
      %v1617 = vcombine.high %v1551, %v1567
      %v1619 = vunpack.c.l.s4 1934713408
      %v1620 = vunpack.c.0.s8 %v1619
      %v1621 = vlaneseq
      %v1622 = vshrl.u32 %v1621, 7
      %v1623 = vsub.s32 %v1620, %v1622
      %v1624 = vrot.slane %v1616, %v1623
      %v1626 = vunpack.c.l.s4 1934713408
      %v1627 = vunpack.c.0.s8 %v1626
      %v1628 = vlaneseq
      %v1629 = vshrl.u32 %v1628, 7
      %v1630 = vsub.s32 %v1627, %v1629
      %v1631 = vrot.slane %v1617, %v1630
      %v1632 = vcombine.low %v1576, %v1592
      %v1633 = vcombine.high %v1576, %v1592
      %v1635 = vunpack.c.l.s4 1934713408
      %v1636 = vunpack.c.0.s8 %v1635
      %v1637 = vlaneseq
      %v1638 = vshrl.u32 %v1637, 7
      %v1639 = vsub.s32 %v1636, %v1638
      %v1640 = vrot.slane %v1632, %v1639
      %v1642 = vunpack.c.l.s4 1934713408
      %v1643 = vunpack.c.0.s8 %v1642
      %v1644 = vlaneseq
      %v1645 = vshrl.u32 %v1644, 7
      %v1646 = vsub.s32 %v1643, %v1645
      %v1647 = vrot.slane %v1633, %v1646
      %v1648 = vcombine.low %v1583, %v1599
      %v1649 = vcombine.high %v1583, %v1599
      %v1651 = vunpack.c.l.s4 1934713408
      %v1652 = vunpack.c.0.s8 %v1651
      %v1653 = vlaneseq
      %v1654 = vshrl.u32 %v1653, 7
      %v1655 = vsub.s32 %v1652, %v1654
      %v1656 = vrot.slane %v1648, %v1655
      %v1658 = vunpack.c.l.s4 1934713408
      %v1659 = vunpack.c.0.s8 %v1658
      %v1660 = vlaneseq
      %v1661 = vshrl.u32 %v1660, 7
      %v1662 = vsub.s32 %v1659, %v1661
      %v1663 = vrot.slane %v1649, %v1662
      %v1664 = vcombine.low %v1608, %v1640
      %v1665 = vcombine.high %v1608, %v1640
      %v1666 = vcombine.low %v1615, %v1647
      %v1667 = vcombine.high %v1615, %v1647
      %v1668 = vcombine.low %v1624, %v1656
      %v1669 = vcombine.high %v1624, %v1656
      %v1670 = vcombine.low %v1631, %v1663
      %v1671 = vcombine.high %v1631, %v1663
      %v1672 = vcombine.low %v1528, %v1530
      %v1673 = vcombine.high %v1528, %v1530
      %v1675 = vunpack.c.l.s4 1983009808
      %v1676 = vunpack.c.0.s8 %v1675
      %v1677 = vlaneseq
      %v1678 = vshrl.u32 %v1677, 7
      %v1679 = vsub.s32 %v1676, %v1678
      %v1680 = vrot.slane %v1672, %v1679
      %v1682 = vunpack.c.l.s4 1983009808
      %v1683 = vunpack.c.0.s8 %v1682
      %v1684 = vlaneseq
      %v1685 = vshrl.u32 %v1684, 7
      %v1686 = vsub.s32 %v1683, %v1685
      %v1687 = vrot.slane %v1673, %v1686
      %v1688 = vcombine.low %v1529, %v1531
      %v1689 = vcombine.high %v1529, %v1531
      %v1691 = vunpack.c.l.s4 1983009808
      %v1692 = vunpack.c.0.s8 %v1691
      %v1693 = vlaneseq
      %v1694 = vshrl.u32 %v1693, 7
      %v1695 = vsub.s32 %v1692, %v1694
      %v1696 = vrot.slane %v1688, %v1695
      %v1698 = vunpack.c.l.s4 1983009808
      %v1699 = vunpack.c.0.s8 %v1698
      %v1700 = vlaneseq
      %v1701 = vshrl.u32 %v1700, 7
      %v1702 = vsub.s32 %v1699, %v1701
      %v1703 = vrot.slane %v1689, %v1702
      %v1704 = vcombine.low %v1532, %v1534
      %v1705 = vcombine.high %v1532, %v1534
      %v1707 = vunpack.c.l.s4 1983009808
      %v1708 = vunpack.c.0.s8 %v1707
      %v1709 = vlaneseq
      %v1710 = vshrl.u32 %v1709, 7
      %v1711 = vsub.s32 %v1708, %v1710
      %v1712 = vrot.slane %v1704, %v1711
      %v1714 = vunpack.c.l.s4 1983009808
      %v1715 = vunpack.c.0.s8 %v1714
      %v1716 = vlaneseq
      %v1717 = vshrl.u32 %v1716, 7
      %v1718 = vsub.s32 %v1715, %v1717
      %v1719 = vrot.slane %v1705, %v1718
      %v1720 = vcombine.low %v1533, %v1535
      %v1721 = vcombine.high %v1533, %v1535
      %v1723 = vunpack.c.l.s4 1983009808
      %v1724 = vunpack.c.0.s8 %v1723
      %v1725 = vlaneseq
      %v1726 = vshrl.u32 %v1725, 7
      %v1727 = vsub.s32 %v1724, %v1726
      %v1728 = vrot.slane %v1720, %v1727
      %v1730 = vunpack.c.l.s4 1983009808
      %v1731 = vunpack.c.0.s8 %v1730
      %v1732 = vlaneseq
      %v1733 = vshrl.u32 %v1732, 7
      %v1734 = vsub.s32 %v1731, %v1733
      %v1735 = vrot.slane %v1721, %v1734
      %v1736 = vcombine.low %v1680, %v1696
      %v1737 = vcombine.high %v1680, %v1696
      %v1739 = vunpack.c.l.s4 1934713408
      %v1740 = vunpack.c.0.s8 %v1739
      %v1741 = vlaneseq
      %v1742 = vshrl.u32 %v1741, 7
      %v1743 = vsub.s32 %v1740, %v1742
      %v1744 = vrot.slane %v1736, %v1743
      %v1746 = vunpack.c.l.s4 1934713408
      %v1747 = vunpack.c.0.s8 %v1746
      %v1748 = vlaneseq
      %v1749 = vshrl.u32 %v1748, 7
      %v1750 = vsub.s32 %v1747, %v1749
      %v1751 = vrot.slane %v1737, %v1750
      %v1752 = vcombine.low %v1687, %v1703
      %v1753 = vcombine.high %v1687, %v1703
      %v1755 = vunpack.c.l.s4 1934713408
      %v1756 = vunpack.c.0.s8 %v1755
      %v1757 = vlaneseq
      %v1758 = vshrl.u32 %v1757, 7
      %v1759 = vsub.s32 %v1756, %v1758
      %v1760 = vrot.slane %v1752, %v1759
      %v1762 = vunpack.c.l.s4 1934713408
      %v1763 = vunpack.c.0.s8 %v1762
      %v1764 = vlaneseq
      %v1765 = vshrl.u32 %v1764, 7
      %v1766 = vsub.s32 %v1763, %v1765
      %v1767 = vrot.slane %v1753, %v1766
      %v1768 = vcombine.low %v1712, %v1728
      %v1769 = vcombine.high %v1712, %v1728
      %v1771 = vunpack.c.l.s4 1934713408
      %v1772 = vunpack.c.0.s8 %v1771
      %v1773 = vlaneseq
      %v1774 = vshrl.u32 %v1773, 7
      %v1775 = vsub.s32 %v1772, %v1774
      %v1776 = vrot.slane %v1768, %v1775
      %v1778 = vunpack.c.l.s4 1934713408
      %v1779 = vunpack.c.0.s8 %v1778
      %v1780 = vlaneseq
      %v1781 = vshrl.u32 %v1780, 7
      %v1782 = vsub.s32 %v1779, %v1781
      %v1783 = vrot.slane %v1769, %v1782
      %v1784 = vcombine.low %v1719, %v1735
      %v1785 = vcombine.high %v1719, %v1735
      %v1787 = vunpack.c.l.s4 1934713408
      %v1788 = vunpack.c.0.s8 %v1787
      %v1789 = vlaneseq
      %v1790 = vshrl.u32 %v1789, 7
      %v1791 = vsub.s32 %v1788, %v1790
      %v1792 = vrot.slane %v1784, %v1791
      %v1794 = vunpack.c.l.s4 1934713408
      %v1795 = vunpack.c.0.s8 %v1794
      %v1796 = vlaneseq
      %v1797 = vshrl.u32 %v1796, 7
      %v1798 = vsub.s32 %v1795, %v1797
      %v1799 = vrot.slane %v1785, %v1798
      %v1800 = vcombine.low %v1744, %v1776
      %v1801 = vcombine.high %v1744, %v1776
      %v1802 = vcombine.low %v1751, %v1783
      %v1803 = vcombine.high %v1751, %v1783
      %v1804 = vcombine.low %v1760, %v1792
      %v1805 = vcombine.high %v1760, %v1792
      %v1806 = vcombine.low %v1767, %v1799
      %v1807 = vcombine.high %v1767, %v1799
      %1810 = vrot.lane.b32.xlu0 %v1665, 16
      %v1811 = vpop.permute.xlu0 %1810
      %1812 = vrot.lane.b32.xlu0 %v1801, 16
      %v1813 = vpop.permute.xlu0 %1812
      %1818 = vrot.lane.b32.xlu0 %v1666, 32
      %v1819 = vpop.permute.xlu0 %1818
      %1820 = vrot.lane.b32.xlu0 %v1802, 32
      %v1821 = vpop.permute.xlu0 %1820
      %1826 = vrot.lane.b32.xlu0 %v1667, 48
      %v1827 = vpop.permute.xlu0 %1826
      %1828 = vrot.lane.b32.xlu0 %v1803, 48
      %v1829 = vpop.permute.xlu0 %1828
      %1834 = vrot.lane.b32.xlu0 %v1668, 64
      %v1835 = vpop.permute.xlu0 %1834
      %1836 = vrot.lane.b32.xlu0 %v1804, 64
      %v1837 = vpop.permute.xlu0 %1836
      %1842 = vrot.lane.b32.xlu0 %v1669, 80
      %v1843 = vpop.permute.xlu0 %1842
      %1844 = vrot.lane.b32.xlu0 %v1805, 80
      %v1845 = vpop.permute.xlu0 %1844
      %1850 = vrot.lane.b32.xlu0 %v1670, 96
      %v1851 = vpop.permute.xlu0 %1850
      %1852 = vrot.lane.b32.xlu0 %v1806, 96
      %v1853 = vpop.permute.xlu0 %1852
      %1858 = vrot.lane.b32.xlu0 %v1671, 112
      %v1859 = vpop.permute.xlu0 %1858
      %1860 = vrot.lane.b32.xlu0 %v1807, 112
      %v1861 = vpop.permute.xlu0 %1860
      %vm1864 = vcmask 130048
      %v1865 = vsel %vm1864, %v1664, %v1811
      %v1866 = vsel %vm1864, %v1800, %v1813
      %vm1867 = vcmask 261120
      %v1868 = vsel %vm1867, %v1865, %v1819
      %v1869 = vsel %vm1867, %v1866, %v1821
      %vm1870 = vcmask 392192
      %v1871 = vsel %vm1870, %v1868, %v1827
      %v1872 = vsel %vm1870, %v1869, %v1829
      %vm1873 = vcmask 523264
      %v1874 = vsel %vm1873, %v1871, %v1835
      %v1875 = vsel %vm1873, %v1872, %v1837
      %vm1876 = vcmask 654336
      %v1877 = vsel %vm1876, %v1874, %v1843
      %v1878 = vsel %vm1876, %v1875, %v1845
      %vm1879 = vcmask 785408
      %v1880 = vsel %vm1879, %v1877, %v1851
      %v1881 = vsel %vm1879, %v1878, %v1853
      %vm1882 = vcmask 916480
      %v1883 = vsel %vm1882, %v1880, %v1859
      %v1884 = vsel %vm1882, %v1881, %v1861
      %v1885 = vld [vmem:[%s2] sm:$0xf]
      %v1886 = vld [vmem:[%s2 + $0x4] sm:$0xf]
      %v1887 = vld [vmem:[%s2 + $0x8] sm:$0xf]
      %v1888 = vld [vmem:[%s2 + $0xc] sm:$0xf]
      %v1889 = vld [vmem:[%s2 + $0x10] sm:$0xf]
      %v1890 = vld [vmem:[%s2 + $0x14] sm:$0xf]
      %v1891 = vld [vmem:[%s2 + $0x18] sm:$0xf]
      %v1892 = vld [vmem:[%s2 + $0x1c] sm:$0xf]
      %v1893 = vld [vmem:[%s2 + $0x20] sm:$0xf]
      %v1894 = vld [vmem:[%s2 + $0x24] sm:$0xf]
      %v1895 = vld [vmem:[%s2 + $0x28] sm:$0xf]
      %v1896 = vld [vmem:[%s2 + $0x2c] sm:$0xf]
      %v1897 = vld [vmem:[%s2 + $0x30] sm:$0xf]
      %v1898 = vld [vmem:[%s2 + $0x34] sm:$0xf]
      %v1899 = vld [vmem:[%s2 + $0x38] sm:$0xf]
      %v1900 = vld [vmem:[%s2 + $0x3c] sm:$0xf]
      %v1901 = vpack.c.bf16 %v1884, %v1883
      %v1918 = vunpack.c.l.b16 %v1885
      %v1919 = vunpack.c.l.b16 %v1886
      %v1920 = vunpack.c.l.b16 %v1887
      %v1921 = vunpack.c.l.b16 %v1888
      %v1922 = vunpack.c.l.b16 %v1889
      %v1923 = vunpack.c.l.b16 %v1890
      %v1924 = vunpack.c.l.b16 %v1891
      %v1925 = vunpack.c.l.b16 %v1892
      %v1926 = vunpack.c.l.b16 %v1893
      %v1927 = vunpack.c.l.b16 %v1894
      %v1928 = vunpack.c.l.b16 %v1895
      %v1929 = vunpack.c.l.b16 %v1896
      %v1930 = vunpack.c.l.b16 %v1897
      %v1931 = vunpack.c.l.b16 %v1898
      %v1932 = vunpack.c.l.b16 %v1899
      %v1933 = vunpack.c.l.b16 %v1900
      %v1934 = vpack.c.b16 %v1919, %v1918
      %v1935 = vpack.c.b16 %v1921, %v1920
      %v1936 = vpack.c.b16 %v1923, %v1922
      %v1937 = vpack.c.b16 %v1925, %v1924
      %v1938 = vpack.c.b16 %v1927, %v1926
      %v1939 = vpack.c.b16 %v1929, %v1928
      %v1940 = vpack.c.b16 %v1931, %v1930
      %v1941 = vpack.c.b16 %v1933, %v1932
      %1950 = vmatprep.subr.bf16.mxu0 0
      %1951 = vmatpush1.bf16.msra.mxu0 %v1934
      %1952 = vmatprep.subr.bf16.mxu0 0
      %1953 = vmatpush1.bf16.msra.mxu0 %v1935
      %1954 = vmatprep.subr.bf16.mxu0 0
      %1955 = vmatpush1.bf16.msra.mxu0 %v1936
      %1956 = vmatprep.subr.bf16.mxu0 0
      %1957 = vmatpush1.bf16.msra.mxu0 %v1937
      %1958 = vmatprep.subr.bf16.mxu0 0
      %1959 = vmatpush1.bf16.msra.mxu0 %v1938
      %1960 = vmatprep.subr.bf16.mxu0 0
      %1961 = vmatpush1.bf16.msra.mxu0 %v1939
      %1962 = vmatprep.subr.bf16.mxu0 0
      %1963 = vmatpush1.bf16.msra.mxu0 %v1940
      %1964 = vmatprep.subr.bf16.mxu0 0
      %1965 = vmatpush1.bf16.msra.mxu0 %v1941
      %1966 = vmatprep.subr.bf16.mxu0 0
      %1967 = vmatpush1.bf16.msra.mxu0 0
      %1968 = vmatprep.subr.bf16.mxu0 0
      %1969 = vmatpush1.bf16.msra.mxu0 0
      %1970 = vmatprep.subr.bf16.mxu0 0
      %1971 = vmatpush1.bf16.msra.mxu0 0
      %1972 = vmatprep.subr.bf16.mxu0 0
      %1973 = vmatpush1.bf16.msra.mxu0 0
      %1974 = vmatprep.subr.bf16.mxu0 0
      %1975 = vmatpush1.bf16.msra.mxu0 0
      %1976 = vmatprep.subr.bf16.mxu0 0
      %1977 = vmatpush1.bf16.msra.mxu0 0
      %1978 = vmatprep.subr.bf16.mxu0 0
      %1979 = vmatpush1.bf16.msra.mxu0 0
      %1980 = vmatprep.subr.bf16.mxu0 0
      %1981 = vmatpush1.bf16.msra.mxu0 0
      %1982 = vmatprep.mubr.bf16.mxu0 0
      %1983 = vmatmul.mubr.bf16.gmra.mrb[0].mxu0 %v1901
      %v1984 = vpop.f32.mrb[0].mxu0
      %v1985 = vadd.f32 0.0, %v1984
      %v1986 = vpop.f32.mrb[0].mxu0
      %v1987 = vpop.f32.mrb[0].mxu0
      %v1988 = vadd.f32 0.0, %v1987
      %v1989 = vpop.f32.mrb[0].mxu0
      %1990 = vdwg.mxu0
      %v1991 = vld [vmem:[%s3] sm:$0xf]
      %v1992 = vld [vmem:[%s3 + $0x4] sm:$0xf]
      %v1993 = vpack.c.bf16 %v1988, %v1985
      %v1996 = vunpack.c.l.b16 %v1991
      %v1997 = vunpack.c.l.b16 %v1992
      %v1998 = vpack.c.b16 %v1997, %v1996
      %v2001 = vsel %vm1864, %v1993, 0
      %2003 = vmatprep.subr.bf16.mxu0 0
      %2004 = vmatpush1.bf16.msra.mxu0 %v1998
      %2005 = vmatprep.subr.bf16.mxu0 0
      %2006 = vmatpush1.bf16.msra.mxu0 0
      %2007 = vmatprep.subr.bf16.mxu0 0
      %2008 = vmatpush1.bf16.msra.mxu0 0
      %2009 = vmatprep.subr.bf16.mxu0 0
      %2010 = vmatpush1.bf16.msra.mxu0 0
      %2011 = vmatprep.subr.bf16.mxu0 0
      %2012 = vmatpush1.bf16.msra.mxu0 0
      %2013 = vmatprep.subr.bf16.mxu0 0
      %2014 = vmatpush1.bf16.msra.mxu0 0
      %2015 = vmatprep.subr.bf16.mxu0 0
      %2016 = vmatpush1.bf16.msra.mxu0 0
      %2017 = vmatprep.subr.bf16.mxu0 0
      %2018 = vmatpush1.bf16.msra.mxu0 0
      %2019 = vmatprep.subr.bf16.mxu0 0
      %2020 = vmatpush1.bf16.msra.mxu0 0
      %2021 = vmatprep.subr.bf16.mxu0 0
      %2022 = vmatpush1.bf16.msra.mxu0 0
      %2023 = vmatprep.subr.bf16.mxu0 0
      %2024 = vmatpush1.bf16.msra.mxu0 0
      %2025 = vmatprep.subr.bf16.mxu0 0
      %2026 = vmatpush1.bf16.msra.mxu0 0
      %2027 = vmatprep.subr.bf16.mxu0 0
      %2028 = vmatpush1.bf16.msra.mxu0 0
      %2029 = vmatprep.subr.bf16.mxu0 0
      %2030 = vmatpush1.bf16.msra.mxu0 0
      %2031 = vmatprep.subr.bf16.mxu0 0
      %2032 = vmatpush1.bf16.msra.mxu0 0
      %2033 = vmatprep.subr.bf16.mxu0 0
      %2034 = vmatpush1.bf16.msra.mxu0 0
      %2035 = vmatprep.mubr.bf16.mxu0 0
      %2036 = vmatmul.mubr.bf16.gmra.mrb[0].mxu0 %v2001
      %v2037 = vpop.f32.mrb[0].mxu0
      %v2038 = vadd.f32 0.0, %v2037
      %v2039 = vpop.f32.mrb[0].mxu0
      %v2040 = vpop.f32.mrb[0].mxu0
      %v2041 = vadd.f32 0.0, %v2040
      %v2042 = vpop.f32.mrb[0].mxu0
      %2043 = vdwg.mxu0
      %v2044 = vxor.u32 %v2038, 2147483648
      %v2045 = vxor.u32 %v2041, 2147483648
      %v2046 = vmul.f32 %v2044, 1.442695
      %v2047 = vpow.pop %v2046
      %v2048 = vmul.f32 %v2045, 1.442695
      %v2049 = vpow.pop %v2048
      %v2050 = vadd.f32 %v2047, 1.0
      %v2051 = vadd.f32 %v2049, 1.0
      %v2052 = vrcp.pop %v2050
      %v2053 = vmul.f32 1.0, %v2052
      %v2054 = vrcp.pop %v2051
      %v2055 = vmul.f32 1.0, %v2054
      %v2056 = vmul.f32 %v2038, %v2053
      %v2057 = vmul.f32 %v2041, %v2055
      %v2058 = vmul.f32 %v2056, 1.6666666
      %v2059 = vmul.f32 %v2057, 1.6666666
      %2060 = vst.msk [vmem:[%s221] sm:$0xff] %vm1873, %v2058
      %2061 = vst.msk [vmem:[%s221 + $0x8] sm:$0xff] %vm1873, %v2059
      %s2062 = smul.u32 2, %s15
      %p2063 = scmp.lt.s32.totalorder %s2062, 3
      %s2064 = scalar_select %p2063, %s2062, 3
      %s2065 = smul.addr %s2064, 8
      %s2066 = scalar_lea.vmem %s4, %s2065
      // Predicated region
      $region37: #{gemnet_forward.37} parent=35 // pred_check
        %p2067 = pneg %p127
      $region38: #{gemnet_forward.37} parent=35 // pred_check_branch
        %2069 = sbr.rel (%p2067) target = $region40
      $region39: #{gemnet_forward.37} parent=35 // pred_region
        %s2070 = smul.u32 2, %s15
      $region40: #{gemnet_forward.37} parent=35 // pred_fallthru
        _
    $region36: #{gemnet_forward.37} parent=5 // pred_fallthru
      _
    %p2071 = scmp.le.s32.totalorder 2, %s10
    // Predicated region
    $region41: #{gemnet_forward.37} parent=5 // pred_check
      %p2072 = pneg %p2071
    $region42: #{gemnet_forward.37} parent=5 // pred_check_branch
      %2074 = sbr.rel (%p2072) target = $region44
    $region43: #{gemnet_forward.37} parent=5 // pred_region
      %s2075 = ssub.s32 %s10, 2
      // Predicated region
      $region45: #{gemnet_forward.37} parent=43 // pred_check
        %p2076 = pneg %p133
      $region46: #{gemnet_forward.37} parent=43 // pred_check_branch
        %2078 = sbr.rel (%p2076) target = $region48
      $region47: #{gemnet_forward.37} parent=43 // pred_region
        %s2079 = smul.u32 2, %s16
        %p2080 = scmp.lt.s32.totalorder %s2079, 3
        %s2081 = scalar_select %p2080, %s2079, 3
        %s2082 = smul.addr %s2081, 8
        %s2083 = scalar_lea.vmem %s4, %s2082
      $region48: #{gemnet_forward.37} parent=43 // pred_fallthru
        _
    $region44: #{gemnet_forward.37} parent=5 // pred_fallthru
      _
  $region6: #{gemnet_forward.37} parent=0 // loop_footer
    %s14 = sadd.s32 1, %s10
  $region7: #{gemnet_forward.37} parent=0 // loop_footer_branch
    %9 = sbr.rel target = $region3
  $region8: #{gemnet_forward.37} parent=0 // loop_exit
    _

// kernel: gemnet_forward.30
$region0: #{gemnet_forward.30}
  #allocation0 [shape = 'u32[]', space=smem, size = 0x4, offset = 0x4, fixed_abs, tag = 'smem constant byte address 0x4 - core index']
  #allocation1 [shape = 'u32[144,128]{1,0:T(1,128)}', space=vmem, size = 0x12000, scoped, tag = 'internal scratch']
  %s0 = inlined_call_operand.vmem [shape: f32[8,32], index: 0, kind: input, shape index: {}]
  %s1 = inlined_call_operand.vmem [shape: f32[1,32], index: 1, kind: input, shape index: {}]
  %s2 = inlined_call_operand.vmem [shape: f32[1,32], index: 2, kind: input, shape index: {}]
  %s3 = inlined_call_operand.vmem [shape: f32[8,32], index: 3, kind: output, shape index: {}]
  %s4 = sld [smem:[#allocation0]]
  $region22: #{gemnet_forward.30} parent=0
    _
  %s6 = ssub.s32 1, %s4
  %s7 = scalar_select 0, %s6, %s4
  // Predicated region
  $region2: #{gemnet_forward.30} parent=0 // pred_check
    _
  $region3: #{gemnet_forward.30} parent=0 // pred_check_branch
    %9 = sbr.rel (0) target = $region5
  $region4: #{gemnet_forward.30} parent=0 // pred_region
    _
  $region5: #{gemnet_forward.30} parent=0 // pred_fallthru
    _
  // Predicated region
  $region6: #{gemnet_forward.30} parent=0 // pred_check
    _
  $region7: #{gemnet_forward.30} parent=0 // pred_check_branch
    %11 = sbr.rel (0) target = $region9
  $region8: #{gemnet_forward.30} parent=0 // pred_region
    _
  $region9: #{gemnet_forward.30} parent=0 // pred_fallthru
    _
  // Predicated region
  $region10: #{gemnet_forward.30} parent=0 // pred_check
    _
  $region11: #{gemnet_forward.30} parent=0 // pred_check_branch
    %13 = sbr.rel (0) target = $region13
  $region12: #{gemnet_forward.30} parent=0 // pred_region
    _
  $region13: #{gemnet_forward.30} parent=0 // pred_fallthru
    _
  %v14 = vld [vmem:[%s0] sm:$0xff]
  %v15 = vld [vmem:[%s1] sm:$0x1]
  %v16 = vld [vmem:[%s2] sm:$0x1]
  %vm17 = vcmask 261120
  %v18 = vsel %vm17, %v14, 0.0
  %19 = vadd.xlane.f32.xlu0 %v18
  %v20 = vpop.xlane.xlu0 %19
  %v21 = vrcp.pop 32.0
  %v22 = vmul.f32 %v20, %v21
  %v23 = vsub.f32 %v14, %v22
  %v24 = vmul.f32 %v23, %v23
  %v25 = vsel %vm17, %v24, 0.0
  %26 = vadd.xlane.f32.xlu0 %v25
  %v27 = vpop.xlane.xlu0 %26
  %v28 = vmul.f32 %v27, %v21
  %v29 = vadd.f32 %v28, 1e-05
  %v30 = vrsqrt.pop %v29
  %v31 = vmul.f32 %v23, %v30
  %v33 = vlaneseq
  %v34 = vshrl.u32 %v33, 7
  %v35 = vsub.s32 0, %v34
  %v36 = vrot.slane %v15, %v35
  %v38 = vmul.f32 %v31, %v36
  %v40 = vlaneseq
  %v41 = vshrl.u32 %v40, 7
  %v42 = vsub.s32 0, %v41
  %v43 = vrot.slane %v16, %v42
  %v45 = vadd.f32 %v38, %v43
  %46 = vst.msk [vmem:[%s3] sm:$0xff] %vm17, %v45
  // Predicated region
  $region14: #{gemnet_forward.30} parent=0 // pred_check
    _
  $region15: #{gemnet_forward.30} parent=0 // pred_check_branch
    %48 = sbr.rel (0) target = $region17
  $region16: #{gemnet_forward.30} parent=0 // pred_region
    _
  $region17: #{gemnet_forward.30} parent=0 // pred_fallthru
    _
  // Predicated region
  $region18: #{gemnet_forward.30} parent=0 // pred_check
    _
  $region19: #{gemnet_forward.30} parent=0 // pred_check_branch
    %50 = sbr.rel (0) target = $region21
  $region20: #{gemnet_forward.30} parent=0 // pred_region
    _
  $region21: #{gemnet_forward.30} parent=0 // pred_fallthru
    _

// kernel: gemnet_forward.40
$region0: #{gemnet_forward.40}
  #allocation0 [shape = 'u32[]', space=smem, size = 0x4, offset = 0x4, fixed_abs, tag = 'smem constant byte address 0x4 - core index']
  #allocation1 [shape = 'u32[144,128]{1,0:T(1,128)}', space=vmem, size = 0x12000, scoped, tag = 'internal scratch']
  %s0 = inlined_call_operand.vmem [shape: f32[8,32], index: 0, kind: input, shape index: {}]
  %s1 = inlined_call_operand.vmem [shape: f32[8,32], index: 1, kind: input, shape index: {}]
  %s2 = inlined_call_operand.vmem [shape: bf16[32,32], index: 2, kind: input, shape index: {}]
  %s3 = inlined_call_operand.vmem [shape: bf16[32,32], index: 3, kind: input, shape index: {}]
  %s4 = inlined_call_operand.vmem [shape: bf16[32,32], index: 4, kind: input, shape index: {}]
  %s5 = inlined_call_operand.vmem [shape: bf16[32,32], index: 5, kind: input, shape index: {}]
  %s6 = inlined_call_operand.vmem [shape: bf16[32,32], index: 6, kind: input, shape index: {}]
  %s7 = inlined_call_operand.vmem [shape: f32[8,32], index: 7, kind: output, shape index: {}]
  %s8 = sld [smem:[#allocation0]]
  $region38: #{gemnet_forward.40} parent=0
    _
  %s10 = ssub.s32 1, %s8
  %s11 = scalar_select 0, %s10, %s8
  // Predicated region
  $region2: #{gemnet_forward.40} parent=0 // pred_check
    _
  $region3: #{gemnet_forward.40} parent=0 // pred_check_branch
    %13 = sbr.rel (0) target = $region5
  $region4: #{gemnet_forward.40} parent=0 // pred_region
    _
  $region5: #{gemnet_forward.40} parent=0 // pred_fallthru
    _
  // Predicated region
  $region6: #{gemnet_forward.40} parent=0 // pred_check
    _
  $region7: #{gemnet_forward.40} parent=0 // pred_check_branch
    %15 = sbr.rel (0) target = $region9
  $region8: #{gemnet_forward.40} parent=0 // pred_region
    _
  $region9: #{gemnet_forward.40} parent=0 // pred_fallthru
    _
  // Predicated region
  $region10: #{gemnet_forward.40} parent=0 // pred_check
    _
  $region11: #{gemnet_forward.40} parent=0 // pred_check_branch
    %17 = sbr.rel (0) target = $region13
  $region12: #{gemnet_forward.40} parent=0 // pred_region
    _
  $region13: #{gemnet_forward.40} parent=0 // pred_fallthru
    _
  // Predicated region
  $region14: #{gemnet_forward.40} parent=0 // pred_check
    _
  $region15: #{gemnet_forward.40} parent=0 // pred_check_branch
    %19 = sbr.rel (0) target = $region17
  $region16: #{gemnet_forward.40} parent=0 // pred_region
    _
  $region17: #{gemnet_forward.40} parent=0 // pred_fallthru
    _
  // Predicated region
  $region18: #{gemnet_forward.40} parent=0 // pred_check
    _
  $region19: #{gemnet_forward.40} parent=0 // pred_check_branch
    %21 = sbr.rel (0) target = $region21
  $region20: #{gemnet_forward.40} parent=0 // pred_region
    _
  $region21: #{gemnet_forward.40} parent=0 // pred_fallthru
    _
  // Predicated region
  $region22: #{gemnet_forward.40} parent=0 // pred_check
    _
  $region23: #{gemnet_forward.40} parent=0 // pred_check_branch
    %23 = sbr.rel (0) target = $region25
  $region24: #{gemnet_forward.40} parent=0 // pred_region
    _
  $region25: #{gemnet_forward.40} parent=0 // pred_fallthru
    _
  // Predicated region
  $region26: #{gemnet_forward.40} parent=0 // pred_check
    _
  $region27: #{gemnet_forward.40} parent=0 // pred_check_branch
    %25 = sbr.rel (0) target = $region29
  $region28: #{gemnet_forward.40} parent=0 // pred_region
    _
  $region29: #{gemnet_forward.40} parent=0 // pred_fallthru
    _
  %v27 = vld [vmem:[%s0] sm:$0xff]
  %v28 = vld [vmem:[%s2] sm:$0xf]
  %v29 = vld [vmem:[%s2 + $0x4] sm:$0xf]
  %v30 = vld [vmem:[%s2 + $0x8] sm:$0xf]
  %v31 = vld [vmem:[%s2 + $0xc] sm:$0xf]
  %v32 = vpack.c.bf16 %v27, %v27
  %v37 = vunpack.c.l.b16 %v28
  %v38 = vunpack.c.l.b16 %v29
  %v39 = vunpack.c.l.b16 %v30
  %v40 = vunpack.c.l.b16 %v31
  %v41 = vpack.c.b16 %v38, %v37
  %v42 = vpack.c.b16 %v40, %v39
  %vm45 = vcmask 261120
  %v47 = vsel %vm45, %v32, 0
  %49 = vmatprep.subr.bf16.mxu0 0
  %50 = vmatpush1.bf16.msra.mxu0 %v41
  %51 = vmatprep.subr.bf16.mxu0 0
  %52 = vmatpush1.bf16.msra.mxu0 %v42
  %53 = vmatprep.subr.bf16.mxu0 0
  %54 = vmatpush1.bf16.msra.mxu0 0
  %55 = vmatprep.subr.bf16.mxu0 0
  %56 = vmatpush1.bf16.msra.mxu0 0
  %57 = vmatprep.subr.bf16.mxu0 0
  %58 = vmatpush1.bf16.msra.mxu0 0
  %59 = vmatprep.subr.bf16.mxu0 0
  %60 = vmatpush1.bf16.msra.mxu0 0
  %61 = vmatprep.subr.bf16.mxu0 0
  %62 = vmatpush1.bf16.msra.mxu0 0
  %63 = vmatprep.subr.bf16.mxu0 0
  %64 = vmatpush1.bf16.msra.mxu0 0
  %65 = vmatprep.subr.bf16.mxu0 0
  %66 = vmatpush1.bf16.msra.mxu0 0
  %67 = vmatprep.subr.bf16.mxu0 0
  %68 = vmatpush1.bf16.msra.mxu0 0
  %69 = vmatprep.subr.bf16.mxu0 0
  %70 = vmatpush1.bf16.msra.mxu0 0
  %71 = vmatprep.subr.bf16.mxu0 0
  %72 = vmatpush1.bf16.msra.mxu0 0
  %73 = vmatprep.subr.bf16.mxu0 0
  %74 = vmatpush1.bf16.msra.mxu0 0
  %75 = vmatprep.subr.bf16.mxu0 0
  %76 = vmatpush1.bf16.msra.mxu0 0
  %77 = vmatprep.subr.bf16.mxu0 0
  %78 = vmatpush1.bf16.msra.mxu0 0
  %79 = vmatprep.subr.bf16.mxu0 0
  %80 = vmatpush1.bf16.msra.mxu0 0
  %81 = vmatprep.mubr.bf16.mxu0 0
  %82 = vmatmul.mubr.bf16.gmra.mrb[0].mxu0 %v47
  %v83 = vpop.f32.mrb[0].mxu0
  %v84 = vadd.f32 0.0, %v83
  %v85 = vpop.f32.mrb[0].mxu0
  %v86 = vpop.f32.mrb[0].mxu0
  %v87 = vpop.f32.mrb[0].mxu0
  %88 = vdwg.mxu0
  %v89 = vxor.u32 %v84, 2147483648
  %v90 = vmul.f32 %v89, 1.442695
  %v91 = vpow.pop %v90
  %v92 = vadd.f32 %v91, 1.0
  %v93 = vrcp.pop %v92
  %v94 = vmul.f32 1.0, %v93
  %v95 = vmul.f32 %v84, %v94
  %v96 = vmul.f32 %v95, 1.6666666
  %v97 = vld [vmem:[%s3] sm:$0xf]
  %v98 = vld [vmem:[%s3 + $0x4] sm:$0xf]
  %v99 = vld [vmem:[%s3 + $0x8] sm:$0xf]
  %v100 = vld [vmem:[%s3 + $0xc] sm:$0xf]
  %v101 = vpack.c.bf16 %v96, %v96
  %v106 = vunpack.c.l.b16 %v97
  %v107 = vunpack.c.l.b16 %v98
  %v108 = vunpack.c.l.b16 %v99
  %v109 = vunpack.c.l.b16 %v100
  %v110 = vpack.c.b16 %v107, %v106
  %v111 = vpack.c.b16 %v109, %v108
  %v115 = vsel %vm45, %v101, 0
  %117 = vmatprep.subr.bf16.mxu0 0
  %118 = vmatpush1.bf16.msra.mxu0 %v110
  %119 = vmatprep.subr.bf16.mxu0 0
  %120 = vmatpush1.bf16.msra.mxu0 %v111
  %121 = vmatprep.subr.bf16.mxu0 0
  %122 = vmatpush1.bf16.msra.mxu0 0
  %123 = vmatprep.subr.bf16.mxu0 0
  %124 = vmatpush1.bf16.msra.mxu0 0
  %125 = vmatprep.subr.bf16.mxu0 0
  %126 = vmatpush1.bf16.msra.mxu0 0
  %127 = vmatprep.subr.bf16.mxu0 0
  %128 = vmatpush1.bf16.msra.mxu0 0
  %129 = vmatprep.subr.bf16.mxu0 0
  %130 = vmatpush1.bf16.msra.mxu0 0
  %131 = vmatprep.subr.bf16.mxu0 0
  %132 = vmatpush1.bf16.msra.mxu0 0
  %133 = vmatprep.subr.bf16.mxu0 0
  %134 = vmatpush1.bf16.msra.mxu0 0
  %135 = vmatprep.subr.bf16.mxu0 0
  %136 = vmatpush1.bf16.msra.mxu0 0
  %137 = vmatprep.subr.bf16.mxu0 0
  %138 = vmatpush1.bf16.msra.mxu0 0
  %139 = vmatprep.subr.bf16.mxu0 0
  %140 = vmatpush1.bf16.msra.mxu0 0
  %141 = vmatprep.subr.bf16.mxu0 0
  %142 = vmatpush1.bf16.msra.mxu0 0
  %143 = vmatprep.subr.bf16.mxu0 0
  %144 = vmatpush1.bf16.msra.mxu0 0
  %145 = vmatprep.subr.bf16.mxu0 0
  %146 = vmatpush1.bf16.msra.mxu0 0
  %147 = vmatprep.subr.bf16.mxu0 0
  %148 = vmatpush1.bf16.msra.mxu0 0
  %149 = vmatprep.mubr.bf16.mxu0 0
  %150 = vmatmul.mubr.bf16.gmra.mrb[0].mxu0 %v115
  %v151 = vpop.f32.mrb[0].mxu0
  %v152 = vadd.f32 0.0, %v151
  %v153 = vpop.f32.mrb[0].mxu0
  %v154 = vpop.f32.mrb[0].mxu0
  %v155 = vpop.f32.mrb[0].mxu0
  %156 = vdwg.mxu0
  %v157 = vxor.u32 %v152, 2147483648
  %v158 = vmul.f32 %v157, 1.442695
  %v159 = vpow.pop %v158
  %v160 = vadd.f32 %v159, 1.0
  %v161 = vrcp.pop %v160
  %v162 = vmul.f32 1.0, %v161
  %v163 = vmul.f32 %v152, %v162
  %v164 = vmul.f32 %v163, 1.6666666
  %v165 = vld [vmem:[%s4] sm:$0xf]
  %v166 = vld [vmem:[%s4 + $0x4] sm:$0xf]
  %v167 = vld [vmem:[%s4 + $0x8] sm:$0xf]
  %v168 = vld [vmem:[%s4 + $0xc] sm:$0xf]
  %v169 = vpack.c.bf16 %v164, %v164
  %v174 = vunpack.c.l.b16 %v165
  %v175 = vunpack.c.l.b16 %v166
  %v176 = vunpack.c.l.b16 %v167
  %v177 = vunpack.c.l.b16 %v168
  %v178 = vpack.c.b16 %v175, %v174
  %v179 = vpack.c.b16 %v177, %v176
  %v183 = vsel %vm45, %v169, 0
  %185 = vmatprep.subr.bf16.mxu0 0
  %186 = vmatpush1.bf16.msra.mxu0 %v178
  %187 = vmatprep.subr.bf16.mxu0 0
  %188 = vmatpush1.bf16.msra.mxu0 %v179
  %189 = vmatprep.subr.bf16.mxu0 0
  %190 = vmatpush1.bf16.msra.mxu0 0
  %191 = vmatprep.subr.bf16.mxu0 0
  %192 = vmatpush1.bf16.msra.mxu0 0
  %193 = vmatprep.subr.bf16.mxu0 0
  %194 = vmatpush1.bf16.msra.mxu0 0
  %195 = vmatprep.subr.bf16.mxu0 0
  %196 = vmatpush1.bf16.msra.mxu0 0
  %197 = vmatprep.subr.bf16.mxu0 0
  %198 = vmatpush1.bf16.msra.mxu0 0
  %199 = vmatprep.subr.bf16.mxu0 0
  %200 = vmatpush1.bf16.msra.mxu0 0
  %201 = vmatprep.subr.bf16.mxu0 0
  %202 = vmatpush1.bf16.msra.mxu0 0
  %203 = vmatprep.subr.bf16.mxu0 0
  %204 = vmatpush1.bf16.msra.mxu0 0
  %205 = vmatprep.subr.bf16.mxu0 0
  %206 = vmatpush1.bf16.msra.mxu0 0
  %207 = vmatprep.subr.bf16.mxu0 0
  %208 = vmatpush1.bf16.msra.mxu0 0
  %209 = vmatprep.subr.bf16.mxu0 0
  %210 = vmatpush1.bf16.msra.mxu0 0
  %211 = vmatprep.subr.bf16.mxu0 0
  %212 = vmatpush1.bf16.msra.mxu0 0
  %213 = vmatprep.subr.bf16.mxu0 0
  %214 = vmatpush1.bf16.msra.mxu0 0
  %215 = vmatprep.subr.bf16.mxu0 0
  %216 = vmatpush1.bf16.msra.mxu0 0
  %217 = vmatprep.mubr.bf16.mxu0 0
  %218 = vmatmul.mubr.bf16.gmra.mrb[0].mxu0 %v183
  %v219 = vpop.f32.mrb[0].mxu0
  %v220 = vadd.f32 0.0, %v219
  %v221 = vpop.f32.mrb[0].mxu0
  %v222 = vpop.f32.mrb[0].mxu0
  %v223 = vpop.f32.mrb[0].mxu0
  %224 = vdwg.mxu0
  %v225 = vxor.u32 %v220, 2147483648
  %v226 = vmul.f32 %v225, 1.442695
  %v227 = vpow.pop %v226
  %v228 = vadd.f32 %v227, 1.0
  %v229 = vrcp.pop %v228
  %v230 = vmul.f32 1.0, %v229
  %v231 = vmul.f32 %v220, %v230
  %v232 = vmul.f32 %v231, 1.6666666
  %v233 = vadd.f32 %v96, %v232
  %v234 = vmul.f32 %v233, 0.70710677
  %v235 = vld [vmem:[%s5] sm:$0xf]
  %v236 = vld [vmem:[%s5 + $0x4] sm:$0xf]
  %v237 = vld [vmem:[%s5 + $0x8] sm:$0xf]
  %v238 = vld [vmem:[%s5 + $0xc] sm:$0xf]
  %v239 = vpack.c.bf16 %v234, %v234
  %v244 = vunpack.c.l.b16 %v235
  %v245 = vunpack.c.l.b16 %v236
  %v246 = vunpack.c.l.b16 %v237
  %v247 = vunpack.c.l.b16 %v238
  %v248 = vpack.c.b16 %v245, %v244
  %v249 = vpack.c.b16 %v247, %v246
  %v253 = vsel %vm45, %v239, 0
  %255 = vmatprep.subr.bf16.mxu0 0
  %256 = vmatpush1.bf16.msra.mxu0 %v248
  %257 = vmatprep.subr.bf16.mxu0 0
  %258 = vmatpush1.bf16.msra.mxu0 %v249
  %259 = vmatprep.subr.bf16.mxu0 0
  %260 = vmatpush1.bf16.msra.mxu0 0
  %261 = vmatprep.subr.bf16.mxu0 0
  %262 = vmatpush1.bf16.msra.mxu0 0
  %263 = vmatprep.subr.bf16.mxu0 0
  %264 = vmatpush1.bf16.msra.mxu0 0
  %265 = vmatprep.subr.bf16.mxu0 0
  %266 = vmatpush1.bf16.msra.mxu0 0
  %267 = vmatprep.subr.bf16.mxu0 0
  %268 = vmatpush1.bf16.msra.mxu0 0
  %269 = vmatprep.subr.bf16.mxu0 0
  %270 = vmatpush1.bf16.msra.mxu0 0
  %271 = vmatprep.subr.bf16.mxu0 0
  %272 = vmatpush1.bf16.msra.mxu0 0
  %273 = vmatprep.subr.bf16.mxu0 0
  %274 = vmatpush1.bf16.msra.mxu0 0
  %275 = vmatprep.subr.bf16.mxu0 0
  %276 = vmatpush1.bf16.msra.mxu0 0
  %277 = vmatprep.subr.bf16.mxu0 0
  %278 = vmatpush1.bf16.msra.mxu0 0
  %279 = vmatprep.subr.bf16.mxu0 0
  %280 = vmatpush1.bf16.msra.mxu0 0
  %281 = vmatprep.subr.bf16.mxu0 0
  %282 = vmatpush1.bf16.msra.mxu0 0
  %283 = vmatprep.subr.bf16.mxu0 0
  %284 = vmatpush1.bf16.msra.mxu0 0
  %285 = vmatprep.subr.bf16.mxu0 0
  %286 = vmatpush1.bf16.msra.mxu0 0
  %287 = vmatprep.mubr.bf16.mxu0 0
  %288 = vmatmul.mubr.bf16.gmra.mrb[0].mxu0 %v253
  %v289 = vpop.f32.mrb[0].mxu0
  %v290 = vadd.f32 0.0, %v289
  %v291 = vpop.f32.mrb[0].mxu0
  %v292 = vpop.f32.mrb[0].mxu0
  %v293 = vpop.f32.mrb[0].mxu0
  %294 = vdwg.mxu0
  %v295 = vxor.u32 %v290, 2147483648
  %v296 = vmul.f32 %v295, 1.442695
  %v297 = vpow.pop %v296
  %v298 = vadd.f32 %v297, 1.0
  %v299 = vrcp.pop %v298
  %v300 = vmul.f32 1.0, %v299
  %v301 = vmul.f32 %v290, %v300
  %v302 = vmul.f32 %v301, 1.6666666
  %v303 = vld [vmem:[%s6] sm:$0xf]
  %v304 = vld [vmem:[%s6 + $0x4] sm:$0xf]
  %v305 = vld [vmem:[%s6 + $0x8] sm:$0xf]
  %v306 = vld [vmem:[%s6 + $0xc] sm:$0xf]
  %v307 = vpack.c.bf16 %v302, %v302
  %v312 = vunpack.c.l.b16 %v303
  %v313 = vunpack.c.l.b16 %v304
  %v314 = vunpack.c.l.b16 %v305
  %v315 = vunpack.c.l.b16 %v306
  %v316 = vpack.c.b16 %v313, %v312
  %v317 = vpack.c.b16 %v315, %v314
  %v321 = vsel %vm45, %v307, 0
  %323 = vmatprep.subr.bf16.mxu0 0
  %324 = vmatpush1.bf16.msra.mxu0 %v316
  %325 = vmatprep.subr.bf16.mxu0 0
  %326 = vmatpush1.bf16.msra.mxu0 %v317
  %327 = vmatprep.subr.bf16.mxu0 0
  %328 = vmatpush1.bf16.msra.mxu0 0
  %329 = vmatprep.subr.bf16.mxu0 0
  %330 = vmatpush1.bf16.msra.mxu0 0
  %331 = vmatprep.subr.bf16.mxu0 0
  %332 = vmatpush1.bf16.msra.mxu0 0
  %333 = vmatprep.subr.bf16.mxu0 0
  %334 = vmatpush1.bf16.msra.mxu0 0
  %335 = vmatprep.subr.bf16.mxu0 0
  %336 = vmatpush1.bf16.msra.mxu0 0
  %337 = vmatprep.subr.bf16.mxu0 0
  %338 = vmatpush1.bf16.msra.mxu0 0
  %339 = vmatprep.subr.bf16.mxu0 0
  %340 = vmatpush1.bf16.msra.mxu0 0
  %341 = vmatprep.subr.bf16.mxu0 0
  %342 = vmatpush1.bf16.msra.mxu0 0
  %343 = vmatprep.subr.bf16.mxu0 0
  %344 = vmatpush1.bf16.msra.mxu0 0
  %345 = vmatprep.subr.bf16.mxu0 0
  %346 = vmatpush1.bf16.msra.mxu0 0
  %347 = vmatprep.subr.bf16.mxu0 0
  %348 = vmatpush1.bf16.msra.mxu0 0
  %349 = vmatprep.subr.bf16.mxu0 0
  %350 = vmatpush1.bf16.msra.mxu0 0
  %351 = vmatprep.subr.bf16.mxu0 0
  %352 = vmatpush1.bf16.msra.mxu0 0
  %353 = vmatprep.subr.bf16.mxu0 0
  %354 = vmatpush1.bf16.msra.mxu0 0
  %355 = vmatprep.mubr.bf16.mxu0 0
  %356 = vmatmul.mubr.bf16.gmra.mrb[0].mxu0 %v321
  %v357 = vpop.f32.mrb[0].mxu0
  %v358 = vadd.f32 0.0, %v357
  %v359 = vpop.f32.mrb[0].mxu0
  %v360 = vpop.f32.mrb[0].mxu0
  %v361 = vpop.f32.mrb[0].mxu0
  %362 = vdwg.mxu0
  %v363 = vxor.u32 %v358, 2147483648
  %v364 = vmul.f32 %v363, 1.442695
  %v365 = vpow.pop %v364
  %v366 = vadd.f32 %v365, 1.0
  %v367 = vrcp.pop %v366
  %v368 = vmul.f32 1.0, %v367
  %v369 = vmul.f32 %v358, %v368
  %v370 = vmul.f32 %v369, 1.6666666
  %v371 = vadd.f32 %v234, %v370
  %v372 = vmul.f32 %v371, 0.70710677
  %v373 = vld [vmem:[%s1] sm:$0xff]
  %v374 = vadd.f32 %v373, %v372
  %v375 = vmul.f32 %v374, 0.70710677
  %376 = vst.msk [vmem:[%s7] sm:$0xff] %vm45, %v375
  // Predicated region
  $region30: #{gemnet_forward.40} parent=0 // pred_check
    _
  $region31: #{gemnet_forward.40} parent=0 // pred_check_branch
    %378 = sbr.rel (0) target = $region33
  $region32: #{gemnet_forward.40} parent=0 // pred_region
    _
  $region33: #{gemnet_forward.40} parent=0 // pred_fallthru
    _
  // Predicated region
  $region34: #{gemnet_forward.40} parent=0 // pred_check
    _
  $region35: #{gemnet_forward.40} parent=0 // pred_check_branch
    %380 = sbr.rel (0) target = $region37
  $region36: #{gemnet_forward.40} parent=0 // pred_region
    _
  $region37: #{gemnet_forward.40} parent=0 // pred_fallthru
    _

// kernel: gemnet_forward.41
$region0: #{gemnet_forward.41}
  #allocation0 [shape = 'u32[]', space=smem, size = 0x4, offset = 0x4, fixed_abs, tag = 'smem constant byte address 0x4 - core index']
  #allocation1 [shape = 'u32[144,128]{1,0:T(1,128)}', space=vmem, size = 0x12000, scoped, tag = 'internal scratch']
  %s0 = inlined_call_operand.vmem [shape: f32[32,32], index: 0, kind: input, shape index: {}]
  %s1 = inlined_call_operand.vmem [shape: f32[32,32], index: 1, kind: input, shape index: {}]
  %s2 = inlined_call_operand.vmem [shape: f32[32,32], index: 2, kind: input, shape index: {}]
  %s3 = inlined_call_operand.vmem [shape: bf16[32,32], index: 3, kind: input, shape index: {}]
  %s4 = inlined_call_operand.vmem [shape: bf16[32,32], index: 4, kind: input, shape index: {}]
  %s5 = inlined_call_operand.vmem [shape: bf16[32,32], index: 5, kind: input, shape index: {}]
  %s6 = inlined_call_operand.vmem [shape: bf16[32,32], index: 6, kind: input, shape index: {}]
  %s7 = inlined_call_operand.vmem [shape: bf16[32,32], index: 7, kind: input, shape index: {}]
  %s8 = inlined_call_operand.vmem [shape: f32[1,32], index: 8, kind: input, shape index: {}]
  %s9 = inlined_call_operand.vmem [shape: f32[1,32], index: 9, kind: input, shape index: {}]
  %s10 = inlined_call_operand.vmem [shape: f32[32,32], index: 10, kind: output, shape index: {}]
  %s11 = sld [smem:[#allocation0]]
  $region73: #{gemnet_forward.41} parent=0
    _
  %s13 = ssub.s32 1, %s11
  %s14 = scalar_select 0, %s13, %s11
  loop: start=0, step=1, limit=4
  $region2: #{gemnet_forward.41} parent=0 // loop_pre_header
    _
  $region3: #{gemnet_forward.41} parent=0 // loop_header
    %s16 = sphi 0, %s20
    %p17 = scmp.ge.s32.totalorder %s16, 4
    %s26 = sphi 0, %s28
    %s29 = sphi 0, %s26
    %s30 = sphi 0, %s29
    %s46 = sphi 0, %s30
    %s52 = sphi 0, %s54
    %s55 = sphi 0, %s52
    %s56 = sphi 0, %s55
    %s72 = sphi 0, %s56
    %s78 = sphi 0, %s80
    %s81 = sphi 0, %s78
    %s82 = sphi 0, %s81
    %s98 = sphi 0, %s82
    %s102 = sphi 0, %s102
    %s104 = sphi 0, %s102
    %s105 = sphi 0, %s104
    %s119 = sphi 0, %s105
    %s123 = sphi 0, %s123
    %s125 = sphi 0, %s123
    %s126 = sphi 0, %s125
    %s140 = sphi 0, %s126
    %s144 = sphi 0, %s144
    %s146 = sphi 0, %s144
    %s147 = sphi 0, %s146
    %s161 = sphi 0, %s147
    %s165 = sphi 0, %s165
    %s167 = sphi 0, %s165
    %s168 = sphi 0, %s167
    %s182 = sphi 0, %s168
    %s186 = sphi 0, %s186
    %s188 = sphi 0, %s186
    %s189 = sphi 0, %s188
    %s203 = sphi 0, %s189
    %s207 = sphi 0, %s207
    %s209 = sphi 0, %s207
    %s210 = sphi 0, %s209
    %s224 = sphi 0, %s210
    %s228 = sphi 0, %s228
    %s230 = sphi 0, %s228
    %s231 = sphi 0, %s230
    %s245 = sphi 0, %s231
    %s251 = sphi 0, %s253
    %s254 = sphi 0, %s251
    %s255 = sphi 0, %s254
    %s271 = sphi 0, %s255
  $region4: #{gemnet_forward.41} parent=0 // loop_header_branch
    %19 = sbr.rel (%p17) target = $region8
  $region5: #{gemnet_forward.41} parent=0 // loop_body
    %s21 = ssub.s32 %s16, 1
    %s22 = ssub.s32 %s16, 2
    %s23 = sadd.s32 %s16, 1
    %s24 = ssub.s32 %s16, %s23
    %p25 = scmp.eq.s32.totalorder %s24, 0
    %s27 = sadd.s32 %s26, 1
    %s28 = scalar_select %p25, %s26, %s27
    %p31 = pneg %p25
    %p32 = scmp.eq.s32.totalorder %s16, 1
    %p33 = por %p31, %p32
    %p34 = scmp.ne.s32.totalorder %s26, %s29
    %p35 = scmp.eq.s32.totalorder %s16, 0
    %p36 = por %p34, %p35
    %p37 = scmp.ne.s32.totalorder %s26, %s29
    %p38 = scmp.eq.s32.totalorder %s21, 1
    %p39 = por %p37, %p38
    %p40 = scmp.ne.s32.totalorder %s29, %s30
    %p41 = scmp.eq.s32.totalorder %s21, 0
    %p42 = por %p40, %p41
    %p43 = scmp.ne.s32.totalorder %s29, %s30
    %p44 = scmp.eq.s32.totalorder %s22, 1
    %p45 = por %p43, %p44
    %p47 = scmp.ne.s32.totalorder %s30, %s46
    %p48 = scmp.eq.s32.totalorder %s22, 0
    %p49 = por %p47, %p48
    %s50 = ssub.s32 %s16, %s23
    %p51 = scmp.eq.s32.totalorder %s50, 0
    %s53 = sadd.s32 %s52, 1
    %s54 = scalar_select %p51, %s52, %s53
    %p57 = pneg %p51
    %p58 = scmp.eq.s32.totalorder %s16, 1
    %p59 = por %p57, %p58
    %p60 = scmp.ne.s32.totalorder %s52, %s55
    %p61 = scmp.eq.s32.totalorder %s16, 0
    %p62 = por %p60, %p61
    %p63 = scmp.ne.s32.totalorder %s52, %s55
    %p64 = scmp.eq.s32.totalorder %s21, 1
    %p65 = por %p63, %p64
    %p66 = scmp.ne.s32.totalorder %s55, %s56
    %p67 = scmp.eq.s32.totalorder %s21, 0
    %p68 = por %p66, %p67
    %p69 = scmp.ne.s32.totalorder %s55, %s56
    %p70 = scmp.eq.s32.totalorder %s22, 1
    %p71 = por %p69, %p70
    %p73 = scmp.ne.s32.totalorder %s56, %s72
    %p74 = scmp.eq.s32.totalorder %s22, 0
    %p75 = por %p73, %p74
    %s76 = ssub.s32 %s16, %s23
    %p77 = scmp.eq.s32.totalorder %s76, 0
    %s79 = sadd.s32 %s78, 1
    %s80 = scalar_select %p77, %s78, %s79
    %p83 = pneg %p77
    %p84 = scmp.eq.s32.totalorder %s16, 1
    %p85 = por %p83, %p84
    %p86 = scmp.ne.s32.totalorder %s78, %s81
    %p87 = scmp.eq.s32.totalorder %s16, 0
    %p88 = por %p86, %p87
    %p89 = scmp.ne.s32.totalorder %s78, %s81
    %p90 = scmp.eq.s32.totalorder %s21, 1
    %p91 = por %p89, %p90
    %p92 = scmp.ne.s32.totalorder %s81, %s82
    %p93 = scmp.eq.s32.totalorder %s21, 0
    %p94 = por %p92, %p93
    %p95 = scmp.ne.s32.totalorder %s81, %s82
    %p96 = scmp.eq.s32.totalorder %s22, 1
    %p97 = por %p95, %p96
    %p99 = scmp.ne.s32.totalorder %s82, %s98
    %p100 = scmp.eq.s32.totalorder %s22, 0
    %p101 = por %p99, %p100
    %s103 = sadd.s32 %s102, 1
    %p106 = scmp.eq.s32.totalorder %s16, 1
    %p107 = scmp.ne.s32.totalorder %s102, %s104
    %p108 = scmp.eq.s32.totalorder %s16, 0
    %p109 = por %p107, %p108
    %p110 = scmp.ne.s32.totalorder %s102, %s104
    %p111 = scmp.eq.s32.totalorder %s21, 1
    %p112 = por %p110, %p111
    %p113 = scmp.ne.s32.totalorder %s104, %s105
    %p114 = scmp.eq.s32.totalorder %s21, 0
    %p115 = por %p113, %p114
    %p116 = scmp.ne.s32.totalorder %s104, %s105
    %p117 = scmp.eq.s32.totalorder %s22, 1
    %p118 = por %p116, %p117
    %p120 = scmp.ne.s32.totalorder %s105, %s119
    %p121 = scmp.eq.s32.totalorder %s22, 0
    %p122 = por %p120, %p121
    %s124 = sadd.s32 %s123, 1
    %p127 = scmp.eq.s32.totalorder %s16, 1
    %p128 = scmp.ne.s32.totalorder %s123, %s125
    %p129 = scmp.eq.s32.totalorder %s16, 0
    %p130 = por %p128, %p129
    %p131 = scmp.ne.s32.totalorder %s123, %s125
    %p132 = scmp.eq.s32.totalorder %s21, 1
    %p133 = por %p131, %p132
    %p134 = scmp.ne.s32.totalorder %s125, %s126
    %p135 = scmp.eq.s32.totalorder %s21, 0
    %p136 = por %p134, %p135
    %p137 = scmp.ne.s32.totalorder %s125, %s126
    %p138 = scmp.eq.s32.totalorder %s22, 1
    %p139 = por %p137, %p138
    %p141 = scmp.ne.s32.totalorder %s126, %s140
    %p142 = scmp.eq.s32.totalorder %s22, 0
    %p143 = por %p141, %p142
    %s145 = sadd.s32 %s144, 1
    %p148 = scmp.eq.s32.totalorder %s16, 1
    %p149 = scmp.ne.s32.totalorder %s144, %s146
    %p150 = scmp.eq.s32.totalorder %s16, 0
    %p151 = por %p149, %p150
    %p152 = scmp.ne.s32.totalorder %s144, %s146
    %p153 = scmp.eq.s32.totalorder %s21, 1
    %p154 = por %p152, %p153
    %p155 = scmp.ne.s32.totalorder %s146, %s147
    %p156 = scmp.eq.s32.totalorder %s21, 0
    %p157 = por %p155, %p156
    %p158 = scmp.ne.s32.totalorder %s146, %s147
    %p159 = scmp.eq.s32.totalorder %s22, 1
    %p160 = por %p158, %p159
    %p162 = scmp.ne.s32.totalorder %s147, %s161
    %p163 = scmp.eq.s32.totalorder %s22, 0
    %p164 = por %p162, %p163
    %s166 = sadd.s32 %s165, 1
    %p169 = scmp.eq.s32.totalorder %s16, 1
    %p170 = scmp.ne.s32.totalorder %s165, %s167
    %p171 = scmp.eq.s32.totalorder %s16, 0
    %p172 = por %p170, %p171
    %p173 = scmp.ne.s32.totalorder %s165, %s167
    %p174 = scmp.eq.s32.totalorder %s21, 1
    %p175 = por %p173, %p174
    %p176 = scmp.ne.s32.totalorder %s167, %s168
    %p177 = scmp.eq.s32.totalorder %s21, 0
    %p178 = por %p176, %p177
    %p179 = scmp.ne.s32.totalorder %s167, %s168
    %p180 = scmp.eq.s32.totalorder %s22, 1
    %p181 = por %p179, %p180
    %p183 = scmp.ne.s32.totalorder %s168, %s182
    %p184 = scmp.eq.s32.totalorder %s22, 0
    %p185 = por %p183, %p184
    %s187 = sadd.s32 %s186, 1
    %p190 = scmp.eq.s32.totalorder %s16, 1
    %p191 = scmp.ne.s32.totalorder %s186, %s188
    %p192 = scmp.eq.s32.totalorder %s16, 0
    %p193 = por %p191, %p192
    %p194 = scmp.ne.s32.totalorder %s186, %s188
    %p195 = scmp.eq.s32.totalorder %s21, 1
    %p196 = por %p194, %p195
    %p197 = scmp.ne.s32.totalorder %s188, %s189
    %p198 = scmp.eq.s32.totalorder %s21, 0
    %p199 = por %p197, %p198
    %p200 = scmp.ne.s32.totalorder %s188, %s189
    %p201 = scmp.eq.s32.totalorder %s22, 1
    %p202 = por %p200, %p201
    %p204 = scmp.ne.s32.totalorder %s189, %s203
    %p205 = scmp.eq.s32.totalorder %s22, 0
    %p206 = por %p204, %p205
    %s208 = sadd.s32 %s207, 1
    %p211 = scmp.eq.s32.totalorder %s16, 1
    %p212 = scmp.ne.s32.totalorder %s207, %s209
    %p213 = scmp.eq.s32.totalorder %s16, 0
    %p214 = por %p212, %p213
    %p215 = scmp.ne.s32.totalorder %s207, %s209
    %p216 = scmp.eq.s32.totalorder %s21, 1
    %p217 = por %p215, %p216
    %p218 = scmp.ne.s32.totalorder %s209, %s210
    %p219 = scmp.eq.s32.totalorder %s21, 0
    %p220 = por %p218, %p219
    %p221 = scmp.ne.s32.totalorder %s209, %s210
    %p222 = scmp.eq.s32.totalorder %s22, 1
    %p223 = por %p221, %p222
    %p225 = scmp.ne.s32.totalorder %s210, %s224
    %p226 = scmp.eq.s32.totalorder %s22, 0
    %p227 = por %p225, %p226
    %s229 = sadd.s32 %s228, 1
    %p232 = scmp.eq.s32.totalorder %s16, 1
    %p233 = scmp.ne.s32.totalorder %s228, %s230
    %p234 = scmp.eq.s32.totalorder %s16, 0
    %p235 = por %p233, %p234
    %p236 = scmp.ne.s32.totalorder %s228, %s230
    %p237 = scmp.eq.s32.totalorder %s21, 1
    %p238 = por %p236, %p237
    %p239 = scmp.ne.s32.totalorder %s230, %s231
    %p240 = scmp.eq.s32.totalorder %s21, 0
    %p241 = por %p239, %p240
    %p242 = scmp.ne.s32.totalorder %s230, %s231
    %p243 = scmp.eq.s32.totalorder %s22, 1
    %p244 = por %p242, %p243
    %p246 = scmp.ne.s32.totalorder %s231, %s245
    %p247 = scmp.eq.s32.totalorder %s22, 0
    %p248 = por %p246, %p247
    %s249 = ssub.s32 %s16, %s23
    %p250 = scmp.eq.s32.totalorder %s249, 0
    %s252 = sadd.s32 %s251, 1
    %s253 = scalar_select %p250, %s251, %s252
    %p256 = pneg %p250
    %p257 = scmp.eq.s32.totalorder %s16, 1
    %p258 = por %p256, %p257
    %p259 = scmp.ne.s32.totalorder %s251, %s254
    %p260 = scmp.eq.s32.totalorder %s16, 0
    %p261 = por %p259, %p260
    %p262 = scmp.ne.s32.totalorder %s251, %s254
    %p263 = scmp.eq.s32.totalorder %s21, 1
    %p264 = por %p262, %p263
    %p265 = scmp.ne.s32.totalorder %s254, %s255
    %p266 = scmp.eq.s32.totalorder %s21, 0
    %p267 = por %p265, %p266
    %p268 = scmp.ne.s32.totalorder %s254, %s255
    %p269 = scmp.eq.s32.totalorder %s22, 1
    %p270 = por %p268, %p269
    %p272 = scmp.ne.s32.totalorder %s255, %s271
    %p273 = scmp.eq.s32.totalorder %s22, 0
    %p274 = por %p272, %p273
    %p275 = scmp.le.s32.totalorder 1, %s16
    %p276 = scmp.lt.s32.totalorder %s16, 3
    %p277 = pnand %p275, %p276
    %p278 = pneg %p277
    // Predicated region
    $region9: #{gemnet_forward.41} parent=5 // pred_check
      _
    $region10: #{gemnet_forward.41} parent=5 // pred_check_branch
      %280 = sbr.rel (%p277) target = $region12
    $region11: #{gemnet_forward.41} parent=5 // pred_region
      %s281 = ssub.s32 %s16, 1
      // Predicated region
      $region13: #{gemnet_forward.41} parent=11 // pred_check
        %p282 = pneg %p115
      $region14: #{gemnet_forward.41} parent=11 // pred_check_branch
        %284 = sbr.rel (%p282) target = $region16
      $region15: #{gemnet_forward.41} parent=11 // pred_region
        _
      $region16: #{gemnet_forward.41} parent=11 // pred_fallthru
        _
      // Predicated region
      $region17: #{gemnet_forward.41} parent=11 // pred_check
        %p285 = pneg %p136
      $region18: #{gemnet_forward.41} parent=11 // pred_check_branch
        %287 = sbr.rel (%p285) target = $region20
      $region19: #{gemnet_forward.41} parent=11 // pred_region
        _
      $region20: #{gemnet_forward.41} parent=11 // pred_fallthru
        _
      // Predicated region
      $region21: #{gemnet_forward.41} parent=11 // pred_check
        %p288 = pneg %p157
      $region22: #{gemnet_forward.41} parent=11 // pred_check_branch
        %290 = sbr.rel (%p288) target = $region24
      $region23: #{gemnet_forward.41} parent=11 // pred_region
        _
      $region24: #{gemnet_forward.41} parent=11 // pred_fallthru
        _
      // Predicated region
      $region25: #{gemnet_forward.41} parent=11 // pred_check
        %p291 = pneg %p178
      $region26: #{gemnet_forward.41} parent=11 // pred_check_branch
        %293 = sbr.rel (%p291) target = $region28
      $region27: #{gemnet_forward.41} parent=11 // pred_region
        _
      $region28: #{gemnet_forward.41} parent=11 // pred_fallthru
        _
      // Predicated region
      $region29: #{gemnet_forward.41} parent=11 // pred_check
        %p294 = pneg %p199
      $region30: #{gemnet_forward.41} parent=11 // pred_check_branch
        %296 = sbr.rel (%p294) target = $region32
      $region31: #{gemnet_forward.41} parent=11 // pred_region
        _
      $region32: #{gemnet_forward.41} parent=11 // pred_fallthru
        _
      // Predicated region
      $region33: #{gemnet_forward.41} parent=11 // pred_check
        %p297 = pneg %p220
      $region34: #{gemnet_forward.41} parent=11 // pred_check_branch
        %299 = sbr.rel (%p297) target = $region36
      $region35: #{gemnet_forward.41} parent=11 // pred_region
        _
      $region36: #{gemnet_forward.41} parent=11 // pred_fallthru
        _
      // Predicated region
      $region37: #{gemnet_forward.41} parent=11 // pred_check
        %p300 = pneg %p241
      $region38: #{gemnet_forward.41} parent=11 // pred_check_branch
        %302 = sbr.rel (%p300) target = $region40
      $region39: #{gemnet_forward.41} parent=11 // pred_region
        _
      $region40: #{gemnet_forward.41} parent=11 // pred_fallthru
        _
    $region12: #{gemnet_forward.41} parent=5 // pred_fallthru
      _
    %p303 = scmp.lt.s32.totalorder %s16, 2
    // Predicated region
    $region41: #{gemnet_forward.41} parent=5 // pred_check
      %p304 = pneg %p303
    $region42: #{gemnet_forward.41} parent=5 // pred_check_branch
      %306 = sbr.rel (%p304) target = $region44
    $region43: #{gemnet_forward.41} parent=5 // pred_region
      // Predicated region
      $region45: #{gemnet_forward.41} parent=43 // pred_check
        %p307 = pneg %p36
      $region46: #{gemnet_forward.41} parent=43 // pred_check_branch
        %309 = sbr.rel (%p307) target = $region48
      $region47: #{gemnet_forward.41} parent=43 // pred_region
        %s310 = smul.u32 2, %s16
        %p311 = scmp.lt.s32.totalorder %s310, 3
        %s312 = scalar_select %p311, %s310, 3
        %s313 = smul.addr %s312, 8
        %s314 = scalar_lea.vmem %s0, %s313
        %s315 = smul.u32 2, %s16
      $region48: #{gemnet_forward.41} parent=43 // pred_fallthru
        _
      // Predicated region
      $region49: #{gemnet_forward.41} parent=43 // pred_check
        %p316 = pneg %p62
      $region50: #{gemnet_forward.41} parent=43 // pred_check_branch
        %318 = sbr.rel (%p316) target = $region52
      $region51: #{gemnet_forward.41} parent=43 // pred_region
        %s319 = smul.u32 2, %s16
        %p320 = scmp.lt.s32.totalorder %s319, 3
        %s321 = scalar_select %p320, %s319, 3
        %s322 = smul.addr %s321, 8
        %s323 = scalar_lea.vmem %s1, %s322
        %s324 = smul.u32 2, %s16
      $region52: #{gemnet_forward.41} parent=43 // pred_fallthru
        _
      // Predicated region
      $region53: #{gemnet_forward.41} parent=43 // pred_check
        %p325 = pneg %p88
      $region54: #{gemnet_forward.41} parent=43 // pred_check_branch
        %327 = sbr.rel (%p325) target = $region56
      $region55: #{gemnet_forward.41} parent=43 // pred_region
        %s328 = smul.u32 2, %s16
        %p329 = scmp.lt.s32.totalorder %s328, 3
        %s330 = scalar_select %p329, %s328, 3
        %s331 = smul.addr %s330, 8
        %s332 = scalar_lea.vmem %s2, %s331
        %s333 = smul.u32 2, %s16
      $region56: #{gemnet_forward.41} parent=43 // pred_fallthru
        _
    $region44: #{gemnet_forward.41} parent=5 // pred_fallthru
      _
    %p334 = scmp.le.s32.totalorder 1, %s16
    %p335 = scmp.lt.s32.totalorder %s16, 3
    %p336 = pnand %p334, %p335
    %p337 = pneg %p336
    // Predicated region
    $region57: #{gemnet_forward.41} parent=5 // pred_check
      _
    $region58: #{gemnet_forward.41} parent=5 // pred_check_branch
      %339 = sbr.rel (%p336) target = $region60
    $region59: #{gemnet_forward.41} parent=5 // pred_region
      %s340 = ssub.s32 %s16, 1
      %s341 = smul.u32 2, %s21
      %p342 = scmp.lt.s32.totalorder %s341, 3
      %s343 = scalar_select %p342, %s341, 3
      %s344 = smul.addr %s343, 8
      %s345 = scalar_lea.vmem %s0, %s344
      %p346 = pneg %p42
      %p347 = pneg %p39
      %s348 = smul.u32 2, %s21
      %p349 = scmp.lt.s32.totalorder %s348, 3
      %s350 = scalar_select %p349, %s348, 3
      %s351 = smul.addr %s350, 8
      %s352 = scalar_lea.vmem %s1, %s351
      %p353 = pneg %p68
      %p354 = pneg %p65
      %s355 = smul.u32 2, %s21
      %p356 = scmp.lt.s32.totalorder %s355, 3
      %s357 = scalar_select %p356, %s355, 3
      %s358 = smul.addr %s357, 8
      %s359 = scalar_lea.vmem %s2, %s358
      %p360 = pneg %p94
      %p361 = pneg %p91
      %p362 = pneg %p115
      %p363 = pneg %p112
      %p364 = pneg %p136
      %p365 = pneg %p133
      %p366 = pneg %p157
      %p367 = pneg %p154
      %p368 = pneg %p178
      %p369 = pneg %p175
      %p370 = pneg %p199
      %p371 = pneg %p196
      %p372 = pneg %p220
      %p373 = pneg %p217
      %p374 = pneg %p241
      %p375 = pneg %p238
      %p376 = pneg %p267
      %p377 = pneg %p264
      %s378 = smul.u32 2, %s21
      %p379 = scmp.lt.s32.totalorder %s378, 3
      %s380 = scalar_select %p379, %s378, 3
      %s381 = smul.addr %s380, 8
      %s382 = scalar_lea.vmem %s10, %s381
      %s383 = smul.u32 2, %s21
      %p384 = scmp.lt.s32.totalorder %s383, 3
      %s385 = scalar_select %p384, %s383, 3
      %s386 = smul.addr %s385, 8
      %s387 = scalar_lea.vmem %s0, %s386
      %s388 = smul.u32 2, %s21
      %s389 = smul.u32 2, %s21
      %p390 = scmp.lt.s32.totalorder %s389, 3
      %s391 = scalar_select %p390, %s389, 3
      %s392 = smul.addr %s391, 8
      %s393 = scalar_lea.vmem %s1, %s392
      %s394 = smul.u32 2, %s21
      %s395 = smul.u32 2, %s21
      %p396 = scmp.lt.s32.totalorder %s395, 3
      %s397 = scalar_select %p396, %s395, 3
      %s398 = smul.addr %s397, 8
      %s399 = scalar_lea.vmem %s2, %s398
      %s400 = smul.u32 2, %s21
      %s401 = smul.u32 2, %s21
      %p402 = scmp.lt.s32.totalorder %s401, 3
      %s403 = scalar_select %p402, %s401, 3
      %s404 = smul.addr %s403, 8
      %s405 = scalar_lea.vmem %s10, %s404
      %s406 = smul.u32 2, %s21
      %v408 = vld [vmem:[%s399] sm:$0xff]
      %v409 = vld [vmem:[%s399 + $0x8] sm:$0xff]
      %v410 = vld [vmem:[%s387] sm:$0xff]
      %v411 = vld [vmem:[%s387 + $0x8] sm:$0xff]
      %v412 = vld [vmem:[%s3] sm:$0xf]
      %v413 = vld [vmem:[%s3 + $0x4] sm:$0xf]
      %v414 = vld [vmem:[%s3 + $0x8] sm:$0xf]
      %v415 = vld [vmem:[%s3 + $0xc] sm:$0xf]
      %v416 = vpack.c.bf16 %v411, %v410
      %v417 = vld [vmem:[%s393] sm:$0xff]
      %v418 = vld [vmem:[%s393 + $0x8] sm:$0xff]
      %v419 = vld [vmem:[%s4] sm:$0xf]
      %v420 = vld [vmem:[%s4 + $0x4] sm:$0xf]
      %v421 = vld [vmem:[%s4 + $0x8] sm:$0xf]
      %v422 = vld [vmem:[%s4 + $0xc] sm:$0xf]
      %v423 = vpack.c.bf16 %v418, %v417
      %v428 = vunpack.c.l.b16 %v419
      %v429 = vunpack.c.l.b16 %v420
      %v430 = vunpack.c.l.b16 %v421
      %v431 = vunpack.c.l.b16 %v422
      %v432 = vpack.c.b16 %v429, %v428
      %v433 = vpack.c.b16 %v431, %v430
      %vm436 = vcmask 261120
      %v438 = vsel %vm436, %v423, 0
      %440 = vmatprep.subr.bf16.mxu0 0
      %441 = vmatpush1.bf16.msra.mxu0 %v432
      %442 = vmatprep.subr.bf16.mxu0 0
      %443 = vmatpush1.bf16.msra.mxu0 %v433
      %444 = vmatprep.subr.bf16.mxu0 0
      %445 = vmatpush1.bf16.msra.mxu0 0
      %446 = vmatprep.subr.bf16.mxu0 0
      %447 = vmatpush1.bf16.msra.mxu0 0
      %448 = vmatprep.subr.bf16.mxu0 0
      %449 = vmatpush1.bf16.msra.mxu0 0
      %450 = vmatprep.subr.bf16.mxu0 0
      %451 = vmatpush1.bf16.msra.mxu0 0
      %452 = vmatprep.subr.bf16.mxu0 0
      %453 = vmatpush1.bf16.msra.mxu0 0
      %454 = vmatprep.subr.bf16.mxu0 0
      %455 = vmatpush1.bf16.msra.mxu0 0
      %456 = vmatprep.subr.bf16.mxu0 0
      %457 = vmatpush1.bf16.msra.mxu0 0
      %458 = vmatprep.subr.bf16.mxu0 0
      %459 = vmatpush1.bf16.msra.mxu0 0
      %460 = vmatprep.subr.bf16.mxu0 0
      %461 = vmatpush1.bf16.msra.mxu0 0
      %462 = vmatprep.subr.bf16.mxu0 0
      %463 = vmatpush1.bf16.msra.mxu0 0
      %464 = vmatprep.subr.bf16.mxu0 0
      %465 = vmatpush1.bf16.msra.mxu0 0
      %466 = vmatprep.subr.bf16.mxu0 0
      %467 = vmatpush1.bf16.msra.mxu0 0
      %468 = vmatprep.subr.bf16.mxu0 0
      %469 = vmatpush1.bf16.msra.mxu0 0
      %470 = vmatprep.subr.bf16.mxu0 0
      %471 = vmatpush1.bf16.msra.mxu0 0
      %472 = vmatprep.mubr.bf16.mxu0 0
      %473 = vmatmul.mubr.bf16.gmra.mrb[0].mxu0 %v438
      %v474 = vpop.f32.mrb[0].mxu0
      %v475 = vadd.f32 0.0, %v474
      %v476 = vpop.f32.mrb[0].mxu0
      %v477 = vpop.f32.mrb[0].mxu0
      %v478 = vadd.f32 0.0, %v477
      %v479 = vpop.f32.mrb[0].mxu0
      %480 = vdwg.mxu0
      %v485 = vunpack.c.l.b16 %v412
      %v486 = vunpack.c.l.b16 %v413
      %v487 = vunpack.c.l.b16 %v414
      %v488 = vunpack.c.l.b16 %v415
      %v489 = vpack.c.b16 %v486, %v485
      %v490 = vpack.c.b16 %v488, %v487
      %v494 = vsel %vm436, %v416, 0
      %496 = vmatprep.subr.bf16.mxu0 0
      %497 = vmatpush1.bf16.msra.mxu0 %v489
      %498 = vmatprep.subr.bf16.mxu0 0
      %499 = vmatpush1.bf16.msra.mxu0 %v490
      %500 = vmatprep.subr.bf16.mxu0 0
      %501 = vmatpush1.bf16.msra.mxu0 0
      %502 = vmatprep.subr.bf16.mxu0 0
      %503 = vmatpush1.bf16.msra.mxu0 0
      %504 = vmatprep.subr.bf16.mxu0 0
      %505 = vmatpush1.bf16.msra.mxu0 0
      %506 = vmatprep.subr.bf16.mxu0 0
      %507 = vmatpush1.bf16.msra.mxu0 0
      %508 = vmatprep.subr.bf16.mxu0 0
      %509 = vmatpush1.bf16.msra.mxu0 0
      %510 = vmatprep.subr.bf16.mxu0 0
      %511 = vmatpush1.bf16.msra.mxu0 0
      %512 = vmatprep.subr.bf16.mxu0 0
      %513 = vmatpush1.bf16.msra.mxu0 0
      %514 = vmatprep.subr.bf16.mxu0 0
      %515 = vmatpush1.bf16.msra.mxu0 0
      %516 = vmatprep.subr.bf16.mxu0 0
      %517 = vmatpush1.bf16.msra.mxu0 0
      %518 = vmatprep.subr.bf16.mxu0 0
      %519 = vmatpush1.bf16.msra.mxu0 0
      %520 = vmatprep.subr.bf16.mxu0 0
      %521 = vmatpush1.bf16.msra.mxu0 0
      %522 = vmatprep.subr.bf16.mxu0 0
      %523 = vmatpush1.bf16.msra.mxu0 0
      %524 = vmatprep.subr.bf16.mxu0 0
      %525 = vmatpush1.bf16.msra.mxu0 0
      %526 = vmatprep.subr.bf16.mxu0 0
      %527 = vmatpush1.bf16.msra.mxu0 0
      %528 = vmatprep.mubr.bf16.mxu0 0
      %529 = vmatmul.mubr.bf16.gmra.mrb[0].mxu0 %v494
      %v530 = vpop.f32.mrb[0].mxu0
      %v531 = vadd.f32 %v475, %v530
      %v532 = vpop.f32.mrb[0].mxu0
      %v533 = vpop.f32.mrb[0].mxu0
      %v534 = vadd.f32 %v478, %v533
      %v535 = vpop.f32.mrb[0].mxu0
      %536 = vdwg.mxu0
      %v537 = vld [vmem:[%s5] sm:$0xf]
      %v538 = vld [vmem:[%s5 + $0x4] sm:$0xf]
      %v539 = vld [vmem:[%s5 + $0x8] sm:$0xf]
      %v540 = vld [vmem:[%s5 + $0xc] sm:$0xf]
      %v541 = vpack.c.bf16 %v409, %v408
      %v546 = vunpack.c.l.b16 %v537
      %v547 = vunpack.c.l.b16 %v538
      %v548 = vunpack.c.l.b16 %v539
      %v549 = vunpack.c.l.b16 %v540
      %v550 = vpack.c.b16 %v547, %v546
      %v551 = vpack.c.b16 %v549, %v548
      %v555 = vsel %vm436, %v541, 0
      %557 = vmatprep.subr.bf16.mxu0 0
      %558 = vmatpush1.bf16.msra.mxu0 %v550
      %559 = vmatprep.subr.bf16.mxu0 0
      %560 = vmatpush1.bf16.msra.mxu0 %v551
      %561 = vmatprep.subr.bf16.mxu0 0
      %562 = vmatpush1.bf16.msra.mxu0 0
      %563 = vmatprep.subr.bf16.mxu0 0
      %564 = vmatpush1.bf16.msra.mxu0 0
      %565 = vmatprep.subr.bf16.mxu0 0
      %566 = vmatpush1.bf16.msra.mxu0 0
      %567 = vmatprep.subr.bf16.mxu0 0
      %568 = vmatpush1.bf16.msra.mxu0 0
      %569 = vmatprep.subr.bf16.mxu0 0
      %570 = vmatpush1.bf16.msra.mxu0 0
      %571 = vmatprep.subr.bf16.mxu0 0
      %572 = vmatpush1.bf16.msra.mxu0 0
      %573 = vmatprep.subr.bf16.mxu0 0
      %574 = vmatpush1.bf16.msra.mxu0 0
      %575 = vmatprep.subr.bf16.mxu0 0
      %576 = vmatpush1.bf16.msra.mxu0 0
      %577 = vmatprep.subr.bf16.mxu0 0
      %578 = vmatpush1.bf16.msra.mxu0 0
      %579 = vmatprep.subr.bf16.mxu0 0
      %580 = vmatpush1.bf16.msra.mxu0 0
      %581 = vmatprep.subr.bf16.mxu0 0
      %582 = vmatpush1.bf16.msra.mxu0 0
      %583 = vmatprep.subr.bf16.mxu0 0
      %584 = vmatpush1.bf16.msra.mxu0 0
      %585 = vmatprep.subr.bf16.mxu0 0
      %586 = vmatpush1.bf16.msra.mxu0 0
      %587 = vmatprep.subr.bf16.mxu0 0
      %588 = vmatpush1.bf16.msra.mxu0 0
      %589 = vmatprep.mubr.bf16.mxu0 0
      %590 = vmatmul.mubr.bf16.gmra.mrb[0].mxu0 %v555
      %v591 = vpop.f32.mrb[0].mxu0
      %v592 = vadd.f32 0.0, %v591
      %v593 = vpop.f32.mrb[0].mxu0
      %v594 = vpop.f32.mrb[0].mxu0
      %v595 = vadd.f32 0.0, %v594
      %v596 = vpop.f32.mrb[0].mxu0
      %597 = vdwg.mxu0
      %v598 = vadd.f32 %v531, %v592
      %v599 = vadd.f32 %v534, %v595
      %v600 = vxor.u32 %v598, 2147483648
      %v601 = vxor.u32 %v599, 2147483648
      %v602 = vmul.f32 %v600, 1.442695
      %v603 = vpow.pop %v602
      %v604 = vmul.f32 %v601, 1.442695
      %v605 = vpow.pop %v604
      %v606 = vadd.f32 %v603, 1.0
      %v607 = vadd.f32 %v605, 1.0
      %v608 = vrcp.pop %v606
      %v609 = vmul.f32 1.0, %v608
      %v610 = vrcp.pop %v607
      %v611 = vmul.f32 1.0, %v610
      %v612 = vmul.f32 %v598, %v609
      %v613 = vmul.f32 %v599, %v611
      %v614 = vmul.f32 %v612, 1.6666666
      %v615 = vmul.f32 %v613, 1.6666666
      %v616 = vld [vmem:[%s6] sm:$0xf]
      %v617 = vld [vmem:[%s6 + $0x4] sm:$0xf]
      %v618 = vld [vmem:[%s6 + $0x8] sm:$0xf]
      %v619 = vld [vmem:[%s6 + $0xc] sm:$0xf]
      %v620 = vpack.c.bf16 %v615, %v614
      %v625 = vunpack.c.l.b16 %v616
      %v626 = vunpack.c.l.b16 %v617
      %v627 = vunpack.c.l.b16 %v618
      %v628 = vunpack.c.l.b16 %v619
      %v629 = vpack.c.b16 %v626, %v625
      %v630 = vpack.c.b16 %v628, %v627
      %v634 = vsel %vm436, %v620, 0
      %636 = vmatprep.subr.bf16.mxu0 0
      %637 = vmatpush1.bf16.msra.mxu0 %v629
      %638 = vmatprep.subr.bf16.mxu0 0
      %639 = vmatpush1.bf16.msra.mxu0 %v630
      %640 = vmatprep.subr.bf16.mxu0 0
      %641 = vmatpush1.bf16.msra.mxu0 0
      %642 = vmatprep.subr.bf16.mxu0 0
      %643 = vmatpush1.bf16.msra.mxu0 0
      %644 = vmatprep.subr.bf16.mxu0 0
      %645 = vmatpush1.bf16.msra.mxu0 0
      %646 = vmatprep.subr.bf16.mxu0 0
      %647 = vmatpush1.bf16.msra.mxu0 0
      %648 = vmatprep.subr.bf16.mxu0 0
      %649 = vmatpush1.bf16.msra.mxu0 0
      %650 = vmatprep.subr.bf16.mxu0 0
      %651 = vmatpush1.bf16.msra.mxu0 0
      %652 = vmatprep.subr.bf16.mxu0 0
      %653 = vmatpush1.bf16.msra.mxu0 0
      %654 = vmatprep.subr.bf16.mxu0 0
      %655 = vmatpush1.bf16.msra.mxu0 0
      %656 = vmatprep.subr.bf16.mxu0 0
      %657 = vmatpush1.bf16.msra.mxu0 0
      %658 = vmatprep.subr.bf16.mxu0 0
      %659 = vmatpush1.bf16.msra.mxu0 0
      %660 = vmatprep.subr.bf16.mxu0 0
      %661 = vmatpush1.bf16.msra.mxu0 0
      %662 = vmatprep.subr.bf16.mxu0 0
      %663 = vmatpush1.bf16.msra.mxu0 0
      %664 = vmatprep.subr.bf16.mxu0 0
      %665 = vmatpush1.bf16.msra.mxu0 0
      %666 = vmatprep.subr.bf16.mxu0 0
      %667 = vmatpush1.bf16.msra.mxu0 0
      %668 = vmatprep.mubr.bf16.mxu0 0
      %669 = vmatmul.mubr.bf16.gmra.mrb[0].mxu0 %v634
      %v670 = vpop.f32.mrb[0].mxu0
      %v671 = vadd.f32 0.0, %v670
      %v672 = vpop.f32.mrb[0].mxu0
      %v673 = vpop.f32.mrb[0].mxu0
      %v674 = vadd.f32 0.0, %v673
      %v675 = vpop.f32.mrb[0].mxu0
      %676 = vdwg.mxu0
      %v677 = vxor.u32 %v671, 2147483648
      %v678 = vxor.u32 %v674, 2147483648
      %v679 = vmul.f32 %v677, 1.442695
      %v680 = vpow.pop %v679
      %v681 = vmul.f32 %v678, 1.442695
      %v682 = vpow.pop %v681
      %v683 = vadd.f32 %v680, 1.0
      %v684 = vadd.f32 %v682, 1.0
      %v685 = vrcp.pop %v683
      %v686 = vmul.f32 1.0, %v685
      %v687 = vrcp.pop %v684
      %v688 = vmul.f32 1.0, %v687
      %v689 = vmul.f32 %v671, %v686
      %v690 = vmul.f32 %v674, %v688
      %v691 = vmul.f32 %v689, 1.6666666
      %v692 = vmul.f32 %v690, 1.6666666
      %v693 = vld [vmem:[%s7] sm:$0xf]
      %v694 = vld [vmem:[%s7 + $0x4] sm:$0xf]
      %v695 = vld [vmem:[%s7 + $0x8] sm:$0xf]
      %v696 = vld [vmem:[%s7 + $0xc] sm:$0xf]
      %v697 = vpack.c.bf16 %v692, %v691
      %v702 = vunpack.c.l.b16 %v693
      %v703 = vunpack.c.l.b16 %v694
      %v704 = vunpack.c.l.b16 %v695
      %v705 = vunpack.c.l.b16 %v696
      %v706 = vpack.c.b16 %v703, %v702
      %v707 = vpack.c.b16 %v705, %v704
      %v711 = vsel %vm436, %v697, 0
      %713 = vmatprep.subr.bf16.mxu0 0
      %714 = vmatpush1.bf16.msra.mxu0 %v706
      %715 = vmatprep.subr.bf16.mxu0 0
      %716 = vmatpush1.bf16.msra.mxu0 %v707
      %717 = vmatprep.subr.bf16.mxu0 0
      %718 = vmatpush1.bf16.msra.mxu0 0
      %719 = vmatprep.subr.bf16.mxu0 0
      %720 = vmatpush1.bf16.msra.mxu0 0
      %721 = vmatprep.subr.bf16.mxu0 0
      %722 = vmatpush1.bf16.msra.mxu0 0
      %723 = vmatprep.subr.bf16.mxu0 0
      %724 = vmatpush1.bf16.msra.mxu0 0
      %725 = vmatprep.subr.bf16.mxu0 0
      %726 = vmatpush1.bf16.msra.mxu0 0
      %727 = vmatprep.subr.bf16.mxu0 0
      %728 = vmatpush1.bf16.msra.mxu0 0
      %729 = vmatprep.subr.bf16.mxu0 0
      %730 = vmatpush1.bf16.msra.mxu0 0
      %731 = vmatprep.subr.bf16.mxu0 0
      %732 = vmatpush1.bf16.msra.mxu0 0
      %733 = vmatprep.subr.bf16.mxu0 0
      %734 = vmatpush1.bf16.msra.mxu0 0
      %735 = vmatprep.subr.bf16.mxu0 0
      %736 = vmatpush1.bf16.msra.mxu0 0
      %737 = vmatprep.subr.bf16.mxu0 0
      %738 = vmatpush1.bf16.msra.mxu0 0
      %739 = vmatprep.subr.bf16.mxu0 0
      %740 = vmatpush1.bf16.msra.mxu0 0
      %741 = vmatprep.subr.bf16.mxu0 0
      %742 = vmatpush1.bf16.msra.mxu0 0
      %743 = vmatprep.subr.bf16.mxu0 0
      %744 = vmatpush1.bf16.msra.mxu0 0
      %745 = vmatprep.mubr.bf16.mxu0 0
      %746 = vmatmul.mubr.bf16.gmra.mrb[0].mxu0 %v711
      %v747 = vpop.f32.mrb[0].mxu0
      %v748 = vadd.f32 0.0, %v747
      %v749 = vpop.f32.mrb[0].mxu0
      %v750 = vpop.f32.mrb[0].mxu0
      %v751 = vadd.f32 0.0, %v750
      %v752 = vpop.f32.mrb[0].mxu0
      %753 = vdwg.mxu0
      %v754 = vxor.u32 %v748, 2147483648
      %v755 = vxor.u32 %v751, 2147483648
      %v756 = vmul.f32 %v754, 1.442695
      %v757 = vpow.pop %v756
      %v758 = vmul.f32 %v755, 1.442695
      %v759 = vpow.pop %v758
      %v760 = vadd.f32 %v757, 1.0
      %v761 = vadd.f32 %v759, 1.0
      %v762 = vrcp.pop %v760
      %v763 = vmul.f32 1.0, %v762
      %v764 = vrcp.pop %v761
      %v765 = vmul.f32 1.0, %v764
      %v766 = vmul.f32 %v748, %v763
      %v767 = vmul.f32 %v751, %v765
      %v768 = vmul.f32 %v766, 1.6666666
      %v769 = vmul.f32 %v767, 1.6666666
      %v770 = vadd.f32 %v614, %v768
      %v771 = vadd.f32 %v615, %v769
      %v772 = vmul.f32 %v770, 0.70710677
      %v773 = vmul.f32 %v771, 0.70710677
      %v774 = vadd.f32 %v408, %v772
      %v775 = vadd.f32 %v409, %v773
      %v776 = vmul.f32 %v774, 0.70710677
      %v777 = vmul.f32 %v775, 0.70710677
      %v778 = vld [vmem:[%s8] sm:$0x1]
      %v779 = vld [vmem:[%s9] sm:$0x1]
      %v780 = vsel %vm436, %v776, 0.0
      %781 = vadd.xlane.f32.xlu0 %v780
      %v782 = vpop.xlane.xlu0 %781
      %v783 = vsel %vm436, %v777, 0.0
      %784 = vadd.xlane.f32.xlu0 %v783
      %v785 = vpop.xlane.xlu0 %784
      %v786 = vrcp.pop 32.0
      %v787 = vmul.f32 %v782, %v786
      %v788 = vmul.f32 %v785, %v786
      %v789 = vsub.f32 %v776, %v787
      %v790 = vsub.f32 %v777, %v788
      %v791 = vmul.f32 %v789, %v789
      %v792 = vmul.f32 %v790, %v790
      %v793 = vsel %vm436, %v791, 0.0
      %794 = vadd.xlane.f32.xlu0 %v793
      %v795 = vpop.xlane.xlu0 %794
      %v796 = vsel %vm436, %v792, 0.0
      %797 = vadd.xlane.f32.xlu0 %v796
      %v798 = vpop.xlane.xlu0 %797
      %v799 = vmul.f32 %v795, %v786
      %v800 = vmul.f32 %v798, %v786
      %v801 = vadd.f32 %v799, 1e-05
      %v802 = vadd.f32 %v800, 1e-05
      %v803 = vrsqrt.pop %v801
      %v804 = vrsqrt.pop %v802
      %v805 = vmul.f32 %v789, %v803
      %v806 = vmul.f32 %v790, %v804
      %v808 = vlaneseq
      %v809 = vshrl.u32 %v808, 7
      %v810 = vsub.s32 0, %v809
      %v811 = vrot.slane %v778, %v810
      %v813 = vmul.f32 %v805, %v811
      %v814 = vmul.f32 %v806, %v811
      %v816 = vlaneseq
      %v817 = vshrl.u32 %v816, 7
      %v818 = vsub.s32 0, %v817
      %v819 = vrot.slane %v779, %v818
      %v821 = vadd.f32 %v813, %v819
      %v822 = vadd.f32 %v814, %v819
      %823 = vst.msk [vmem:[%s405] sm:$0xff] %vm436, %v821
      %824 = vst.msk [vmem:[%s405 + $0x8] sm:$0xff] %vm436, %v822
      %s825 = smul.u32 2, %s21
      %p826 = scmp.lt.s32.totalorder %s825, 3
      %s827 = scalar_select %p826, %s825, 3
      %s828 = smul.addr %s827, 8
      %s829 = scalar_lea.vmem %s10, %s828
      // Predicated region
      $region61: #{gemnet_forward.41} parent=59 // pred_check
        %p830 = pneg %p264
      $region62: #{gemnet_forward.41} parent=59 // pred_check_branch
        %832 = sbr.rel (%p830) target = $region64
      $region63: #{gemnet_forward.41} parent=59 // pred_region
        %s833 = smul.u32 2, %s21
      $region64: #{gemnet_forward.41} parent=59 // pred_fallthru
        _
    $region60: #{gemnet_forward.41} parent=5 // pred_fallthru
      _
    %p834 = scmp.le.s32.totalorder 2, %s16
    // Predicated region
    $region65: #{gemnet_forward.41} parent=5 // pred_check
      %p835 = pneg %p834
    $region66: #{gemnet_forward.41} parent=5 // pred_check_branch
      %837 = sbr.rel (%p835) target = $region68
    $region67: #{gemnet_forward.41} parent=5 // pred_region
      %s838 = ssub.s32 %s16, 2
      // Predicated region
      $region69: #{gemnet_forward.41} parent=67 // pred_check
        %p839 = pneg %p270
      $region70: #{gemnet_forward.41} parent=67 // pred_check_branch
        %841 = sbr.rel (%p839) target = $region72
      $region71: #{gemnet_forward.41} parent=67 // pred_region
        %s842 = smul.u32 2, %s22
        %p843 = scmp.lt.s32.totalorder %s842, 3
        %s844 = scalar_select %p843, %s842, 3
        %s845 = smul.addr %s844, 8
        %s846 = scalar_lea.vmem %s10, %s845
      $region72: #{gemnet_forward.41} parent=67 // pred_fallthru
        _
    $region68: #{gemnet_forward.41} parent=5 // pred_fallthru
      _
  $region6: #{gemnet_forward.41} parent=0 // loop_footer
    %s20 = sadd.s32 1, %s16
  $region7: #{gemnet_forward.41} parent=0 // loop_footer_branch
    %15 = sbr.rel target = $region3
  $region8: #{gemnet_forward.41} parent=0 // loop_exit
    _

// kernel: gemnet_forward.42
$region0: #{gemnet_forward.42}
  #allocation0 [shape = 'u32[]', space=smem, size = 0x4, offset = 0x4, fixed_abs, tag = 'smem constant byte address 0x4 - core index']
  #allocation1 [shape = 'u32[144,128]{1,0:T(1,128)}', space=vmem, size = 0x12000, scoped, tag = 'internal scratch']
  %s0 = inlined_call_operand.vmem [shape: f32[8,32], index: 0, kind: input, shape index: {}]
  %s1 = inlined_call_operand.vmem [shape: f32[8,32], index: 1, kind: input, shape index: {}]
  %s2 = inlined_call_operand.vmem [shape: f32[1,32], index: 2, kind: input, shape index: {}]
  %s3 = inlined_call_operand.vmem [shape: f32[1,32], index: 3, kind: input, shape index: {}]
  %s4 = inlined_call_operand.vmem [shape: f32[8,32], index: 4, kind: output, shape index: {}]
  %s5 = sld [smem:[#allocation0]]
  $region26: #{gemnet_forward.42} parent=0
    _
  %s7 = ssub.s32 1, %s5
  %s8 = scalar_select 0, %s7, %s5
  // Predicated region
  $region2: #{gemnet_forward.42} parent=0 // pred_check
    _
  $region3: #{gemnet_forward.42} parent=0 // pred_check_branch
    %10 = sbr.rel (0) target = $region5
  $region4: #{gemnet_forward.42} parent=0 // pred_region
    _
  $region5: #{gemnet_forward.42} parent=0 // pred_fallthru
    _
  // Predicated region
  $region6: #{gemnet_forward.42} parent=0 // pred_check
    _
  $region7: #{gemnet_forward.42} parent=0 // pred_check_branch
    %12 = sbr.rel (0) target = $region9
  $region8: #{gemnet_forward.42} parent=0 // pred_region
    _
  $region9: #{gemnet_forward.42} parent=0 // pred_fallthru
    _
  // Predicated region
  $region10: #{gemnet_forward.42} parent=0 // pred_check
    _
  $region11: #{gemnet_forward.42} parent=0 // pred_check_branch
    %14 = sbr.rel (0) target = $region13
  $region12: #{gemnet_forward.42} parent=0 // pred_region
    _
  $region13: #{gemnet_forward.42} parent=0 // pred_fallthru
    _
  // Predicated region
  $region14: #{gemnet_forward.42} parent=0 // pred_check
    _
  $region15: #{gemnet_forward.42} parent=0 // pred_check_branch
    %16 = sbr.rel (0) target = $region17
  $region16: #{gemnet_forward.42} parent=0 // pred_region
    _
  $region17: #{gemnet_forward.42} parent=0 // pred_fallthru
    _
  %v17 = vld [vmem:[%s0] sm:$0xff]
  %v18 = vld [vmem:[%s1] sm:$0xff]
  %v19 = vadd.f32 %v17, %v18
  %v20 = vld [vmem:[%s2] sm:$0x1]
  %v21 = vld [vmem:[%s3] sm:$0x1]
  %vm22 = vcmask 261120
  %v23 = vsel %vm22, %v19, 0.0
  %24 = vadd.xlane.f32.xlu0 %v23
  %v25 = vpop.xlane.xlu0 %24
  %v26 = vrcp.pop 32.0
  %v27 = vmul.f32 %v25, %v26
  %v28 = vsub.f32 %v19, %v27
  %v29 = vmul.f32 %v28, %v28
  %v30 = vsel %vm22, %v29, 0.0
  %31 = vadd.xlane.f32.xlu0 %v30
  %v32 = vpop.xlane.xlu0 %31
  %v33 = vmul.f32 %v32, %v26
  %v34 = vadd.f32 %v33, 1e-05
  %v35 = vrsqrt.pop %v34
  %v36 = vmul.f32 %v28, %v35
  %v38 = vlaneseq
  %v39 = vshrl.u32 %v38, 7
  %v40 = vsub.s32 0, %v39
  %v41 = vrot.slane %v20, %v40
  %v43 = vmul.f32 %v36, %v41
  %v45 = vlaneseq
  %v46 = vshrl.u32 %v45, 7
  %v47 = vsub.s32 0, %v46
  %v48 = vrot.slane %v21, %v47
  %v50 = vadd.f32 %v43, %v48
  %51 = vst.msk [vmem:[%s4] sm:$0xff] %vm22, %v50
  // Predicated region
  $region18: #{gemnet_forward.42} parent=0 // pred_check
    _
  $region19: #{gemnet_forward.42} parent=0 // pred_check_branch
    %53 = sbr.rel (0) target = $region21
  $region20: #{gemnet_forward.42} parent=0 // pred_region
    _
  $region21: #{gemnet_forward.42} parent=0 // pred_fallthru
    _
  // Predicated region
  $region22: #{gemnet_forward.42} parent=0 // pred_check
    _
  $region23: #{gemnet_forward.42} parent=0 // pred_check_branch
    %55 = sbr.rel (0) target = $region25
  $region24: #{gemnet_forward.42} parent=0 // pred_region
    _
  $region25: #{gemnet_forward.42} parent=0 // pred_fallthru
    _

// kernel: gemnet_forward.54
$region0: #{gemnet_forward.54}
  #allocation0 [shape = 'u32[]', space=smem, size = 0x4, offset = 0x4, fixed_abs, tag = 'smem constant byte address 0x4 - core index']
  #allocation1 [shape = 'u32[144,128]{1,0:T(1,128)}', space=vmem, size = 0x12000, scoped, tag = 'internal scratch']
  %s0 = inlined_call_operand.vmem [shape: f32[8,32], index: 0, kind: input, shape index: {}]
  %s1 = inlined_call_operand.vmem [shape: bf16[32,32], index: 1, kind: input, shape index: {}]
  %s2 = inlined_call_operand.vmem [shape: bf16[32,32], index: 2, kind: input, shape index: {}]
  %s3 = inlined_call_operand.vmem [shape: bf16[32,32], index: 3, kind: input, shape index: {}]
  %s4 = inlined_call_operand.vmem [shape: bf16[32,32], index: 4, kind: input, shape index: {}]
  %s5 = inlined_call_operand.vmem [shape: bf16[32,32], index: 5, kind: input, shape index: {}]
  %s6 = inlined_call_operand.vmem [shape: f32[8,32], index: 6, kind: output, shape index: {}]
  %s7 = sld [smem:[#allocation0]]
  $region34: #{gemnet_forward.54} parent=0
    _
  %s9 = ssub.s32 1, %s7
  %s10 = scalar_select 0, %s9, %s7
  // Predicated region
  $region2: #{gemnet_forward.54} parent=0 // pred_check
    _
  $region3: #{gemnet_forward.54} parent=0 // pred_check_branch
    %12 = sbr.rel (0) target = $region5
  $region4: #{gemnet_forward.54} parent=0 // pred_region
    _
  $region5: #{gemnet_forward.54} parent=0 // pred_fallthru
    _
  // Predicated region
  $region6: #{gemnet_forward.54} parent=0 // pred_check
    _
  $region7: #{gemnet_forward.54} parent=0 // pred_check_branch
    %14 = sbr.rel (0) target = $region9
  $region8: #{gemnet_forward.54} parent=0 // pred_region
    _
  $region9: #{gemnet_forward.54} parent=0 // pred_fallthru
    _
  // Predicated region
  $region10: #{gemnet_forward.54} parent=0 // pred_check
    _
  $region11: #{gemnet_forward.54} parent=0 // pred_check_branch
    %16 = sbr.rel (0) target = $region13
  $region12: #{gemnet_forward.54} parent=0 // pred_region
    _
  $region13: #{gemnet_forward.54} parent=0 // pred_fallthru
    _
  // Predicated region
  $region14: #{gemnet_forward.54} parent=0 // pred_check
    _
  $region15: #{gemnet_forward.54} parent=0 // pred_check_branch
    %18 = sbr.rel (0) target = $region17
  $region16: #{gemnet_forward.54} parent=0 // pred_region
    _
  $region17: #{gemnet_forward.54} parent=0 // pred_fallthru
    _
  // Predicated region
  $region18: #{gemnet_forward.54} parent=0 // pred_check
    _
  $region19: #{gemnet_forward.54} parent=0 // pred_check_branch
    %20 = sbr.rel (0) target = $region21
  $region20: #{gemnet_forward.54} parent=0 // pred_region
    _
  $region21: #{gemnet_forward.54} parent=0 // pred_fallthru
    _
  // Predicated region
  $region22: #{gemnet_forward.54} parent=0 // pred_check
    _
  $region23: #{gemnet_forward.54} parent=0 // pred_check_branch
    %22 = sbr.rel (0) target = $region25
  $region24: #{gemnet_forward.54} parent=0 // pred_region
    _
  $region25: #{gemnet_forward.54} parent=0 // pred_fallthru
    _
  %v24 = vld [vmem:[%s0] sm:$0xff]
  %v25 = vld [vmem:[%s1] sm:$0xf]
  %v26 = vld [vmem:[%s1 + $0x4] sm:$0xf]
  %v27 = vld [vmem:[%s1 + $0x8] sm:$0xf]
  %v28 = vld [vmem:[%s1 + $0xc] sm:$0xf]
  %v29 = vpack.c.bf16 %v24, %v24
  %v34 = vunpack.c.l.b16 %v25
  %v35 = vunpack.c.l.b16 %v26
  %v36 = vunpack.c.l.b16 %v27
  %v37 = vunpack.c.l.b16 %v28
  %v38 = vpack.c.b16 %v35, %v34
  %v39 = vpack.c.b16 %v37, %v36
  %vm42 = vcmask 261120
  %v44 = vsel %vm42, %v29, 0
  %46 = vmatprep.subr.bf16.mxu0 0
  %47 = vmatpush1.bf16.msra.mxu0 %v38
  %48 = vmatprep.subr.bf16.mxu0 0
  %49 = vmatpush1.bf16.msra.mxu0 %v39
  %50 = vmatprep.subr.bf16.mxu0 0
  %51 = vmatpush1.bf16.msra.mxu0 0
  %52 = vmatprep.subr.bf16.mxu0 0
  %53 = vmatpush1.bf16.msra.mxu0 0
  %54 = vmatprep.subr.bf16.mxu0 0
  %55 = vmatpush1.bf16.msra.mxu0 0
  %56 = vmatprep.subr.bf16.mxu0 0
  %57 = vmatpush1.bf16.msra.mxu0 0
  %58 = vmatprep.subr.bf16.mxu0 0
  %59 = vmatpush1.bf16.msra.mxu0 0
  %60 = vmatprep.subr.bf16.mxu0 0
  %61 = vmatpush1.bf16.msra.mxu0 0
  %62 = vmatprep.subr.bf16.mxu0 0
  %63 = vmatpush1.bf16.msra.mxu0 0
  %64 = vmatprep.subr.bf16.mxu0 0
  %65 = vmatpush1.bf16.msra.mxu0 0
  %66 = vmatprep.subr.bf16.mxu0 0
  %67 = vmatpush1.bf16.msra.mxu0 0
  %68 = vmatprep.subr.bf16.mxu0 0
  %69 = vmatpush1.bf16.msra.mxu0 0
  %70 = vmatprep.subr.bf16.mxu0 0
  %71 = vmatpush1.bf16.msra.mxu0 0
  %72 = vmatprep.subr.bf16.mxu0 0
  %73 = vmatpush1.bf16.msra.mxu0 0
  %74 = vmatprep.subr.bf16.mxu0 0
  %75 = vmatpush1.bf16.msra.mxu0 0
  %76 = vmatprep.subr.bf16.mxu0 0
  %77 = vmatpush1.bf16.msra.mxu0 0
  %78 = vmatprep.mubr.bf16.mxu0 0
  %79 = vmatmul.mubr.bf16.gmra.mrb[0].mxu0 %v44
  %v80 = vpop.f32.mrb[0].mxu0
  %v81 = vadd.f32 0.0, %v80
  %v82 = vpop.f32.mrb[0].mxu0
  %v83 = vpop.f32.mrb[0].mxu0
  %v84 = vpop.f32.mrb[0].mxu0
  %85 = vdwg.mxu0
  %v86 = vxor.u32 %v81, 2147483648
  %v87 = vmul.f32 %v86, 1.442695
  %v88 = vpow.pop %v87
  %v89 = vadd.f32 %v88, 1.0
  %v90 = vrcp.pop %v89
  %v91 = vmul.f32 1.0, %v90
  %v92 = vmul.f32 %v81, %v91
  %v93 = vmul.f32 %v92, 1.6666666
  %v94 = vld [vmem:[%s2] sm:$0xf]
  %v95 = vld [vmem:[%s2 + $0x4] sm:$0xf]
  %v96 = vld [vmem:[%s2 + $0x8] sm:$0xf]
  %v97 = vld [vmem:[%s2 + $0xc] sm:$0xf]
  %v98 = vpack.c.bf16 %v93, %v93
  %v103 = vunpack.c.l.b16 %v94
  %v104 = vunpack.c.l.b16 %v95
  %v105 = vunpack.c.l.b16 %v96
  %v106 = vunpack.c.l.b16 %v97
  %v107 = vpack.c.b16 %v104, %v103
  %v108 = vpack.c.b16 %v106, %v105
  %v112 = vsel %vm42, %v98, 0
  %114 = vmatprep.subr.bf16.mxu0 0
  %115 = vmatpush1.bf16.msra.mxu0 %v107
  %116 = vmatprep.subr.bf16.mxu0 0
  %117 = vmatpush1.bf16.msra.mxu0 %v108
  %118 = vmatprep.subr.bf16.mxu0 0
  %119 = vmatpush1.bf16.msra.mxu0 0
  %120 = vmatprep.subr.bf16.mxu0 0
  %121 = vmatpush1.bf16.msra.mxu0 0
  %122 = vmatprep.subr.bf16.mxu0 0
  %123 = vmatpush1.bf16.msra.mxu0 0
  %124 = vmatprep.subr.bf16.mxu0 0
  %125 = vmatpush1.bf16.msra.mxu0 0
  %126 = vmatprep.subr.bf16.mxu0 0
  %127 = vmatpush1.bf16.msra.mxu0 0
  %128 = vmatprep.subr.bf16.mxu0 0
  %129 = vmatpush1.bf16.msra.mxu0 0
  %130 = vmatprep.subr.bf16.mxu0 0
  %131 = vmatpush1.bf16.msra.mxu0 0
  %132 = vmatprep.subr.bf16.mxu0 0
  %133 = vmatpush1.bf16.msra.mxu0 0
  %134 = vmatprep.subr.bf16.mxu0 0
  %135 = vmatpush1.bf16.msra.mxu0 0
  %136 = vmatprep.subr.bf16.mxu0 0
  %137 = vmatpush1.bf16.msra.mxu0 0
  %138 = vmatprep.subr.bf16.mxu0 0
  %139 = vmatpush1.bf16.msra.mxu0 0
  %140 = vmatprep.subr.bf16.mxu0 0
  %141 = vmatpush1.bf16.msra.mxu0 0
  %142 = vmatprep.subr.bf16.mxu0 0
  %143 = vmatpush1.bf16.msra.mxu0 0
  %144 = vmatprep.subr.bf16.mxu0 0
  %145 = vmatpush1.bf16.msra.mxu0 0
  %146 = vmatprep.mubr.bf16.mxu0 0
  %147 = vmatmul.mubr.bf16.gmra.mrb[0].mxu0 %v112
  %v148 = vpop.f32.mrb[0].mxu0
  %v149 = vadd.f32 0.0, %v148
  %v150 = vpop.f32.mrb[0].mxu0
  %v151 = vpop.f32.mrb[0].mxu0
  %v152 = vpop.f32.mrb[0].mxu0
  %153 = vdwg.mxu0
  %v154 = vxor.u32 %v149, 2147483648
  %v155 = vmul.f32 %v154, 1.442695
  %v156 = vpow.pop %v155
  %v157 = vadd.f32 %v156, 1.0
  %v158 = vrcp.pop %v157
  %v159 = vmul.f32 1.0, %v158
  %v160 = vmul.f32 %v149, %v159
  %v161 = vmul.f32 %v160, 1.6666666
  %v162 = vld [vmem:[%s3] sm:$0xf]
  %v163 = vld [vmem:[%s3 + $0x4] sm:$0xf]
  %v164 = vld [vmem:[%s3 + $0x8] sm:$0xf]
  %v165 = vld [vmem:[%s3 + $0xc] sm:$0xf]
  %v166 = vpack.c.bf16 %v161, %v161
  %v171 = vunpack.c.l.b16 %v162
  %v172 = vunpack.c.l.b16 %v163
  %v173 = vunpack.c.l.b16 %v164
  %v174 = vunpack.c.l.b16 %v165
  %v175 = vpack.c.b16 %v172, %v171
  %v176 = vpack.c.b16 %v174, %v173
  %v180 = vsel %vm42, %v166, 0
  %182 = vmatprep.subr.bf16.mxu0 0
  %183 = vmatpush1.bf16.msra.mxu0 %v175
  %184 = vmatprep.subr.bf16.mxu0 0
  %185 = vmatpush1.bf16.msra.mxu0 %v176
  %186 = vmatprep.subr.bf16.mxu0 0
  %187 = vmatpush1.bf16.msra.mxu0 0
  %188 = vmatprep.subr.bf16.mxu0 0
  %189 = vmatpush1.bf16.msra.mxu0 0
  %190 = vmatprep.subr.bf16.mxu0 0
  %191 = vmatpush1.bf16.msra.mxu0 0
  %192 = vmatprep.subr.bf16.mxu0 0
  %193 = vmatpush1.bf16.msra.mxu0 0
  %194 = vmatprep.subr.bf16.mxu0 0
  %195 = vmatpush1.bf16.msra.mxu0 0
  %196 = vmatprep.subr.bf16.mxu0 0
  %197 = vmatpush1.bf16.msra.mxu0 0
  %198 = vmatprep.subr.bf16.mxu0 0
  %199 = vmatpush1.bf16.msra.mxu0 0
  %200 = vmatprep.subr.bf16.mxu0 0
  %201 = vmatpush1.bf16.msra.mxu0 0
  %202 = vmatprep.subr.bf16.mxu0 0
  %203 = vmatpush1.bf16.msra.mxu0 0
  %204 = vmatprep.subr.bf16.mxu0 0
  %205 = vmatpush1.bf16.msra.mxu0 0
  %206 = vmatprep.subr.bf16.mxu0 0
  %207 = vmatpush1.bf16.msra.mxu0 0
  %208 = vmatprep.subr.bf16.mxu0 0
  %209 = vmatpush1.bf16.msra.mxu0 0
  %210 = vmatprep.subr.bf16.mxu0 0
  %211 = vmatpush1.bf16.msra.mxu0 0
  %212 = vmatprep.subr.bf16.mxu0 0
  %213 = vmatpush1.bf16.msra.mxu0 0
  %214 = vmatprep.mubr.bf16.mxu0 0
  %215 = vmatmul.mubr.bf16.gmra.mrb[0].mxu0 %v180
  %v216 = vpop.f32.mrb[0].mxu0
  %v217 = vadd.f32 0.0, %v216
  %v218 = vpop.f32.mrb[0].mxu0
  %v219 = vpop.f32.mrb[0].mxu0
  %v220 = vpop.f32.mrb[0].mxu0
  %221 = vdwg.mxu0
  %v222 = vxor.u32 %v217, 2147483648
  %v223 = vmul.f32 %v222, 1.442695
  %v224 = vpow.pop %v223
  %v225 = vadd.f32 %v224, 1.0
  %v226 = vrcp.pop %v225
  %v227 = vmul.f32 1.0, %v226
  %v228 = vmul.f32 %v217, %v227
  %v229 = vmul.f32 %v228, 1.6666666
  %v230 = vadd.f32 %v93, %v229
  %v231 = vmul.f32 %v230, 0.70710677
  %v232 = vld [vmem:[%s4] sm:$0xf]
  %v233 = vld [vmem:[%s4 + $0x4] sm:$0xf]
  %v234 = vld [vmem:[%s4 + $0x8] sm:$0xf]
  %v235 = vld [vmem:[%s4 + $0xc] sm:$0xf]
  %v236 = vpack.c.bf16 %v231, %v231
  %v241 = vunpack.c.l.b16 %v232
  %v242 = vunpack.c.l.b16 %v233
  %v243 = vunpack.c.l.b16 %v234
  %v244 = vunpack.c.l.b16 %v235
  %v245 = vpack.c.b16 %v242, %v241
  %v246 = vpack.c.b16 %v244, %v243
  %v250 = vsel %vm42, %v236, 0
  %252 = vmatprep.subr.bf16.mxu0 0
  %253 = vmatpush1.bf16.msra.mxu0 %v245
  %254 = vmatprep.subr.bf16.mxu0 0
  %255 = vmatpush1.bf16.msra.mxu0 %v246
  %256 = vmatprep.subr.bf16.mxu0 0
  %257 = vmatpush1.bf16.msra.mxu0 0
  %258 = vmatprep.subr.bf16.mxu0 0
  %259 = vmatpush1.bf16.msra.mxu0 0
  %260 = vmatprep.subr.bf16.mxu0 0
  %261 = vmatpush1.bf16.msra.mxu0 0
  %262 = vmatprep.subr.bf16.mxu0 0
  %263 = vmatpush1.bf16.msra.mxu0 0
  %264 = vmatprep.subr.bf16.mxu0 0
  %265 = vmatpush1.bf16.msra.mxu0 0
  %266 = vmatprep.subr.bf16.mxu0 0
  %267 = vmatpush1.bf16.msra.mxu0 0
  %268 = vmatprep.subr.bf16.mxu0 0
  %269 = vmatpush1.bf16.msra.mxu0 0
  %270 = vmatprep.subr.bf16.mxu0 0
  %271 = vmatpush1.bf16.msra.mxu0 0
  %272 = vmatprep.subr.bf16.mxu0 0
  %273 = vmatpush1.bf16.msra.mxu0 0
  %274 = vmatprep.subr.bf16.mxu0 0
  %275 = vmatpush1.bf16.msra.mxu0 0
  %276 = vmatprep.subr.bf16.mxu0 0
  %277 = vmatpush1.bf16.msra.mxu0 0
  %278 = vmatprep.subr.bf16.mxu0 0
  %279 = vmatpush1.bf16.msra.mxu0 0
  %280 = vmatprep.subr.bf16.mxu0 0
  %281 = vmatpush1.bf16.msra.mxu0 0
  %282 = vmatprep.subr.bf16.mxu0 0
  %283 = vmatpush1.bf16.msra.mxu0 0
  %284 = vmatprep.mubr.bf16.mxu0 0
  %285 = vmatmul.mubr.bf16.gmra.mrb[0].mxu0 %v250
  %v286 = vpop.f32.mrb[0].mxu0
  %v287 = vadd.f32 0.0, %v286
  %v288 = vpop.f32.mrb[0].mxu0
  %v289 = vpop.f32.mrb[0].mxu0
  %v290 = vpop.f32.mrb[0].mxu0
  %291 = vdwg.mxu0
  %v292 = vxor.u32 %v287, 2147483648
  %v293 = vmul.f32 %v292, 1.442695
  %v294 = vpow.pop %v293
  %v295 = vadd.f32 %v294, 1.0
  %v296 = vrcp.pop %v295
  %v297 = vmul.f32 1.0, %v296
  %v298 = vmul.f32 %v287, %v297
  %v299 = vmul.f32 %v298, 1.6666666
  %v300 = vld [vmem:[%s5] sm:$0xf]
  %v301 = vld [vmem:[%s5 + $0x4] sm:$0xf]
  %v302 = vld [vmem:[%s5 + $0x8] sm:$0xf]
  %v303 = vld [vmem:[%s5 + $0xc] sm:$0xf]
  %v304 = vpack.c.bf16 %v299, %v299
  %v309 = vunpack.c.l.b16 %v300
  %v310 = vunpack.c.l.b16 %v301
  %v311 = vunpack.c.l.b16 %v302
  %v312 = vunpack.c.l.b16 %v303
  %v313 = vpack.c.b16 %v310, %v309
  %v314 = vpack.c.b16 %v312, %v311
  %v318 = vsel %vm42, %v304, 0
  %320 = vmatprep.subr.bf16.mxu0 0
  %321 = vmatpush1.bf16.msra.mxu0 %v313
  %322 = vmatprep.subr.bf16.mxu0 0
  %323 = vmatpush1.bf16.msra.mxu0 %v314
  %324 = vmatprep.subr.bf16.mxu0 0
  %325 = vmatpush1.bf16.msra.mxu0 0
  %326 = vmatprep.subr.bf16.mxu0 0
  %327 = vmatpush1.bf16.msra.mxu0 0
  %328 = vmatprep.subr.bf16.mxu0 0
  %329 = vmatpush1.bf16.msra.mxu0 0
  %330 = vmatprep.subr.bf16.mxu0 0
  %331 = vmatpush1.bf16.msra.mxu0 0
  %332 = vmatprep.subr.bf16.mxu0 0
  %333 = vmatpush1.bf16.msra.mxu0 0
  %334 = vmatprep.subr.bf16.mxu0 0
  %335 = vmatpush1.bf16.msra.mxu0 0
  %336 = vmatprep.subr.bf16.mxu0 0
  %337 = vmatpush1.bf16.msra.mxu0 0
  %338 = vmatprep.subr.bf16.mxu0 0
  %339 = vmatpush1.bf16.msra.mxu0 0
  %340 = vmatprep.subr.bf16.mxu0 0
  %341 = vmatpush1.bf16.msra.mxu0 0
  %342 = vmatprep.subr.bf16.mxu0 0
  %343 = vmatpush1.bf16.msra.mxu0 0
  %344 = vmatprep.subr.bf16.mxu0 0
  %345 = vmatpush1.bf16.msra.mxu0 0
  %346 = vmatprep.subr.bf16.mxu0 0
  %347 = vmatpush1.bf16.msra.mxu0 0
  %348 = vmatprep.subr.bf16.mxu0 0
  %349 = vmatpush1.bf16.msra.mxu0 0
  %350 = vmatprep.subr.bf16.mxu0 0
  %351 = vmatpush1.bf16.msra.mxu0 0
  %352 = vmatprep.mubr.bf16.mxu0 0
  %353 = vmatmul.mubr.bf16.gmra.mrb[0].mxu0 %v318
  %v354 = vpop.f32.mrb[0].mxu0
  %v355 = vadd.f32 0.0, %v354
  %v356 = vpop.f32.mrb[0].mxu0
  %v357 = vpop.f32.mrb[0].mxu0
  %v358 = vpop.f32.mrb[0].mxu0
  %359 = vdwg.mxu0
  %v360 = vxor.u32 %v355, 2147483648
  %v361 = vmul.f32 %v360, 1.442695
  %v362 = vpow.pop %v361
  %v363 = vadd.f32 %v362, 1.0
  %v364 = vrcp.pop %v363
  %v365 = vmul.f32 1.0, %v364
  %v366 = vmul.f32 %v355, %v365
  %v367 = vmul.f32 %v366, 1.6666666
  %v368 = vadd.f32 %v231, %v367
  %v369 = vmul.f32 %v368, 0.70710677
  %370 = vst.msk [vmem:[%s6] sm:$0xff] %vm42, %v369
  // Predicated region
  $region26: #{gemnet_forward.54} parent=0 // pred_check
    _
  $region27: #{gemnet_forward.54} parent=0 // pred_check_branch
    %372 = sbr.rel (0) target = $region29
  $region28: #{gemnet_forward.54} parent=0 // pred_region
    _
  $region29: #{gemnet_forward.54} parent=0 // pred_fallthru
    _
  // Predicated region
  $region30: #{gemnet_forward.54} parent=0 // pred_check
    _
  $region31: #{gemnet_forward.54} parent=0 // pred_check_branch
    %374 = sbr.rel (0) target = $region33
  $region32: #{gemnet_forward.54} parent=0 // pred_region
    _
  $region33: #{gemnet_forward.54} parent=0 // pred_fallthru
    _

// kernel: gemnet_forward.55
$region0: #{gemnet_forward.55}
  #allocation0 [shape = 'u32[]', space=smem, size = 0x4, offset = 0x4, fixed_abs, tag = 'smem constant byte address 0x4 - core index']
  #allocation1 [shape = 'u32[144,128]{1,0:T(1,128)}', space=vmem, size = 0x12000, scoped, tag = 'internal scratch']
  %s0 = inlined_call_operand.vmem [shape: f32[8,32], index: 0, kind: input, shape index: {}]
  %s1 = inlined_call_operand.vmem [shape: f32[8,32], index: 1, kind: input, shape index: {}]
  %s2 = inlined_call_operand.vmem [shape: f32[1,32], index: 2, kind: input, shape index: {}]
  %s3 = inlined_call_operand.vmem [shape: f32[1,32], index: 3, kind: input, shape index: {}]
  %s4 = inlined_call_operand.hbm [shape: f32[8,32], index: 4, kind: output, shape index: {}]
  %s5 = sld [smem:[#allocation0]]
  $region26: #{gemnet_forward.55} parent=0
    _
  %s7 = ssub.s32 1, %s5
  %s8 = scalar_select 0, %s7, %s5
  $region1: #{gemnet_forward.55} parent=0
    #allocation2 [shape = 'u8[4096]{0}', space=vmem, size = 0x1000, scoped, tag = 'output window, operand 0, single buffered']
    #allocation3 [shape = 's32[1]{0}', space=sflag, size = 0x4, scoped, tag = 'scoped memory for gemnet_forward.55']
    %9 = vsyncpa [#allocation3], 0
    // Predicated region
    $region2: #{gemnet_forward.55} parent=1 // pred_check
      _
    $region3: #{gemnet_forward.55} parent=1 // pred_check_branch
      %11 = sbr.rel (0) target = $region5
    $region4: #{gemnet_forward.55} parent=1 // pred_region
      _
    $region5: #{gemnet_forward.55} parent=1 // pred_fallthru
      _
    // Predicated region
    $region6: #{gemnet_forward.55} parent=1 // pred_check
      _
    $region7: #{gemnet_forward.55} parent=1 // pred_check_branch
      %13 = sbr.rel (0) target = $region9
    $region8: #{gemnet_forward.55} parent=1 // pred_region
      _
    $region9: #{gemnet_forward.55} parent=1 // pred_fallthru
      _
    // Predicated region
    $region10: #{gemnet_forward.55} parent=1 // pred_check
      _
    $region11: #{gemnet_forward.55} parent=1 // pred_check_branch
      %15 = sbr.rel (0) target = $region13
    $region12: #{gemnet_forward.55} parent=1 // pred_region
      _
    $region13: #{gemnet_forward.55} parent=1 // pred_fallthru
      _
    // Predicated region
    $region14: #{gemnet_forward.55} parent=1 // pred_check
      _
    $region15: #{gemnet_forward.55} parent=1 // pred_check_branch
      %17 = sbr.rel (0) target = $region17
    $region16: #{gemnet_forward.55} parent=1 // pred_region
      _
    $region17: #{gemnet_forward.55} parent=1 // pred_fallthru
      _
    %v18 = vld [vmem:[%s0] sm:$0xff]
    %v19 = vld [vmem:[%s1] sm:$0xff]
    %v20 = vadd.f32 %v18, %v19
    %v21 = vld [vmem:[%s2] sm:$0x1]
    %v22 = vld [vmem:[%s3] sm:$0x1]
    %vm23 = vcmask 261120
    %v24 = vsel %vm23, %v20, 0.0
    %25 = vadd.xlane.f32.xlu0 %v24
    %v26 = vpop.xlane.xlu0 %25
    %v27 = vrcp.pop 32.0
    %v28 = vmul.f32 %v26, %v27
    %v29 = vsub.f32 %v20, %v28
    %v30 = vmul.f32 %v29, %v29
    %v31 = vsel %vm23, %v30, 0.0
    %32 = vadd.xlane.f32.xlu0 %v31
    %v33 = vpop.xlane.xlu0 %32
    %v34 = vmul.f32 %v33, %v27
    %v35 = vadd.f32 %v34, 1e-05
    %v36 = vrsqrt.pop %v35
    %v37 = vmul.f32 %v29, %v36
    %v39 = vlaneseq
    %v40 = vshrl.u32 %v39, 7
    %v41 = vsub.s32 0, %v40
    %v42 = vrot.slane %v21, %v41
    %v44 = vmul.f32 %v37, %v42
    %v46 = vlaneseq
    %v47 = vshrl.u32 %v46, 7
    %v48 = vsub.s32 0, %v47
    %v49 = vrot.slane %v22, %v48
    %v51 = vadd.f32 %v44, %v49
    %52 = vst.msk [vmem:[#allocation2] sm:$0xff] %vm23, %v51
    // Predicated region
    $region18: #{gemnet_forward.55} parent=1 // pred_check
      _
    $region19: #{gemnet_forward.55} parent=1 // pred_check_branch
      %54 = sbr.rel (0) target = $region21
    $region20: #{gemnet_forward.55} parent=1 // pred_region
      %s56 = ssub.s32 128, 128
      %57 = vsyncadd [#allocation3], %s56
      %s59 = sshll.u32 [#allocation2], 4
      %s60 = int_to_ptr.vmem [resolvable:$true] %s59
      %62 = dma.vmem_to_hbm [thread:$0]  %s60, 128, %s4, [#allocation3]
    $region21: #{gemnet_forward.55} parent=1 // pred_fallthru
      _
    // Predicated region
    $region22: #{gemnet_forward.55} parent=1 // pred_check
      _
    $region23: #{gemnet_forward.55} parent=1 // pred_check_branch
      %64 = sbr.rel (0) target = $region25
    $region24: #{gemnet_forward.55} parent=1 // pred_region
      %65 = dma.done [#allocation3], 128
    $region25: #{gemnet_forward.55} parent=1 // pred_fallthru
      _
    %66 = vsyncpa [#allocation3], 1

</llo_original>
